<compile_context>
chip_gen: v7x
topology: tpu7x:2x2x1
jax: 0.10.0
libtpu: 0.0.40
codegen_flags: <defaults>
</compile_context>

<pallas_src>
import functools

import jax
import jax.numpy as jnp
from jax.experimental import pallas as pl
from jax.experimental.pallas import tpu as pltpu

THRESH = 0.5
DECAY = 0.25
TIME_WINDOW = 4
BN_EPS = 1e-5


# --------------------------------------------------------------------------- #
# In-kernel helpers
# --------------------------------------------------------------------------- #
def _maxpool3x3_blocked(spk, S):
    """3x3 / stride-S / pad-1 max pool of non-negative spikes, W-blocked.

    spk: (NB, H, Wo, S, D) with spk[nb, h, wo, s, d] == spike[nb, h, wo*S+s, d].
    Returns (NB, Ho, Wo, D). Requires S >= 2 and H % S == 0. Zero padding is
    equivalent to MaxPool2d's -inf padding because spikes are >= 0, and the
    right/bottom +1 tap is always in range when S >= 2.
    """
    NB, H, Wo, _, D = spk.shape
    Ho = H // S
    # ---- pool along W: taps {wo*S, wo*S+1, wo*S-1} ----
    cols = jnp.maximum(spk[:, :, :, 0], spk[:, :, :, 1])
    if Wo > 1:
        prev_c = jnp.concatenate(
            [jnp.zeros((NB, H, 1, D), spk.dtype), spk[:, :, :-1, S - 1]], axis=2)
        cols = jnp.maximum(cols, prev_c)                    # (NB, H, Wo, D)
    # ---- pool along H: taps {ho*S, ho*S+1, ho*S-1} ----
    cb = cols.reshape(NB, Ho, S, Wo, D)
    rows = jnp.maximum(cb[:, :, 0], cb[:, :, 1])
    if Ho > 1:
        prev_r = jnp.concatenate(
            [jnp.zeros((NB, 1, Wo, D), cb.dtype), cb[:, :-1, S - 1]], axis=1)
        rows = jnp.maximum(rows, prev_r)
    return rows                                             # (NB, Ho, Wo, D)


# --------------------------------------------------------------------------- #
# Single fused kernel
# --------------------------------------------------------------------------- #
def _sps_fused_kernel(patches_ref, wproj_ref, shproj_ref, wrpe_ref, shrpe_ref,
                      o_ref, fpad_ref, *, H, W, C, D, S, T, NB):
    # patches_ref : (NB, T, H*W, 9*C)        bf16 im2col-packed, padded input
    # wproj_ref   : (9*C, D)                 bf16, BN scale folded in
    # shproj_ref  : (1, D)                   f32 BN shift
    # wrpe_ref    : (9, D, D)                bf16 per-tap rpe weight, scale folded
    # shrpe_ref   : (1, D)                   f32 BN shift
    # o_ref       : (NB, T, Ho, Wo*D)        f32 lane-dense output
    # fpad_ref    : (NB, T, Ho+2, Wo+2, D)   bf16 VMEM scratch (padded x_feat)
    Ho, Wo = H // S, W // S
    HW = H * W

    # Zero the padded x_feat scratch so the 3x3 border taps read zeros
    # (spikes >= 0 so zero padding == -inf padding for the preceding pool).
    fpad_ref[...] = jnp.zeros_like(fpad_ref)

    # ---- proj: matmul (+ BN shift) -> LIF -> 3x3/stride-S maxpool, one
    #      timestep at a time so only mem/spike stay live across t. ----------
    mem = None
    spike = None
    for t in range(T):
        p_t = patches_ref[:, t].reshape(NB * HW, 9 * C)              # bf16
        y_t = jnp.dot(p_t, wproj_ref[...],
                      preferred_element_type=jnp.float32) + shproj_ref[...]
        if t == 0:
            mem = y_t
        else:
            mem = mem * (DECAY * (1.0 - spike)) + y_t
        spike = (mem > THRESH).astype(jnp.float32)                   # (NB*HW, D)
        pooled = _maxpool3x3_blocked(spike.reshape(NB, H, Wo, S, D), S)
        fpad_ref[:, t, 1:Ho + 1, 1:Wo + 1, :] = pooled.astype(fpad_ref.dtype)

    # ---- rpe conv: 9 accumulating shifted-window matmuls (no 9*D im2col),
    #      bf16 operands / f32 accumulation, BN scale already folded. --------
    fpad = fpad_ref[...]                                             # bf16
    M = NB * T * Ho * Wo
    zacc = jnp.zeros((M, D), jnp.float32)
    for kh in range(3):
        for kw in range(3):
            tap = fpad[:, :, kh:kh + Ho, kw:kw + Wo, :].reshape(M, D)
            zacc = zacc + jnp.dot(tap, wrpe_ref[kh * 3 + kw],
                                  preferred_element_type=jnp.float32)
    z = (zacc + shrpe_ref[...]).reshape(NB, T, Ho, Wo, D)

    # ---- rpe LIF + residual (x = spikes + x_feat); lane-dense row stores ----
    feat = fpad[:, :, 1:Ho + 1, 1:Wo + 1, :].astype(jnp.float32)
    mem2 = z[:, 0]
    spike2 = (mem2 > THRESH).astype(jnp.float32)
    o_ref[:, 0] = (spike2 + feat[:, 0]).reshape(NB, Ho, Wo * D)
    for t in range(1, T):
        mem2 = mem2 * (DECAY * (1.0 - spike2)) + z[:, t]
        spike2 = (mem2 > THRESH).astype(jnp.float32)
        o_ref[:, t] = (spike2 + feat[:, t]).reshape(NB, Ho, Wo * D)


# --------------------------------------------------------------------------- #
# pallas_call wrapper
# --------------------------------------------------------------------------- #
def sps_fused(patches, w_proj, sh_proj, w_rpe, sh_rpe, *, H, W, S, block_b=1):
    B, T = patches.shape[0], patches.shape[1]
    C = patches.shape[3] // 9
    D = w_proj.shape[-1]
    Ho, Wo = H // S, W // S
    assert B % block_b == 0
    kern = functools.partial(_sps_fused_kernel, H=H, W=W, C=C, D=D, S=S, T=T,
                             NB=block_b)
    return pl.pallas_call(
        kern,
        out_shape=jax.ShapeDtypeStruct((B, T, Ho, Wo * D), jnp.float32),
        grid=(B // block_b,),
        in_specs=[
            pl.BlockSpec((block_b, T, H * W, 9 * C), lambda b: (b, 0, 0, 0)),
            pl.BlockSpec((9 * C, D), lambda b: (0, 0)),
            pl.BlockSpec((1, D), lambda b: (0, 0)),
            pl.BlockSpec((9, D, D), lambda b: (0, 0, 0)),
            pl.BlockSpec((1, D), lambda b: (0, 0)),
        ],
        out_specs=pl.BlockSpec((block_b, T, Ho, Wo * D), lambda b: (b, 0, 0, 0)),
        scratch_shapes=[pltpu.VMEM((block_b, T, Ho + 2, Wo + 2, D), jnp.bfloat16)],
        compiler_params=pltpu.CompilerParams(
            dimension_semantics=("parallel",)),
    )(patches, w_proj, sh_proj, w_rpe, sh_rpe)


# --------------------------------------------------------------------------- #
# Parameter init (deterministic, synthetic) and glue
# --------------------------------------------------------------------------- #
def init_sps_params(key, in_channels, embed_dims):
    ks = jax.random.split(key, 10)
    return {
        # OIHW weights, as in nn.Conv2d
        "w_proj_oihw": jax.random.normal(ks[0], (embed_dims, in_channels, 3, 3), jnp.float32) * 0.3,
        "w_rpe_oihw": jax.random.normal(ks[1], (embed_dims, embed_dims, 3, 3), jnp.float32) * 0.1,
        # eval-mode BatchNorm parameters
        "g_proj": 1.0 + 0.1 * jax.random.normal(ks[2], (embed_dims,), jnp.float32),
        "b_proj": 0.1 * jax.random.normal(ks[3], (embed_dims,), jnp.float32),
        "m_proj": 0.05 * jax.random.normal(ks[4], (embed_dims,), jnp.float32),
        "v_proj": 1.0 + 0.1 * jax.random.uniform(ks[5], (embed_dims,), jnp.float32),
        "g_rpe": 1.0 + 0.1 * jax.random.normal(ks[6], (embed_dims,), jnp.float32),
        "b_rpe": 0.1 * jax.random.normal(ks[7], (embed_dims,), jnp.float32),
        "m_rpe": 0.05 * jax.random.normal(ks[8], (embed_dims,), jnp.float32),
        "v_rpe": 1.0 + 0.1 * jax.random.uniform(ks[9], (embed_dims,), jnp.float32),
    }


def _bn_fold(gamma, beta, mean, var):
    scale = gamma / jnp.sqrt(var + BN_EPS)
    shift = beta - mean * scale
    return scale, shift


def _pack_proj_patches(x_bf, H, W):
    """x_bf: (B, T, H+2, W+2, C) -> (B, T, H*W, 9*C); tap order (kh, kw, c)."""
    taps = [x_bf[:, :, kh:kh + H, kw:kw + W, :]
            for kh in range(3) for kw in range(3)]
    B, T = x_bf.shape[:2]
    C = x_bf.shape[-1]
    return jnp.concatenate(taps, axis=-1).reshape(B, T, H * W, 9 * C)


def sps_forward(x, params, patch_size=4, block_b=1):
    """x: (T, B, C, H, W) f32, PyTorch NCHW convention. Returns (out, (H', W'))."""
    T, B, C, H, W = x.shape
    S = patch_size
    assert T == TIME_WINDOW and S >= 2 and H % S == 0 and W % S == 0
    Ho, Wo = H // S, W // S
    D = params["w_proj_oihw"].shape[0]

    sc1, sh1 = _bn_fold(params["g_proj"], params["b_proj"], params["m_proj"], params["v_proj"])
    sc2, sh2 = _bn_fold(params["g_rpe"], params["b_rpe"], params["m_rpe"], params["v_rpe"])

    # Fold the BN scale into the conv weights (trace-time), cast to bf16 for
    # the MXU; OIHW -> (kh, kw, cin, cout) packing matches the kernel's taps.
    w_proj_folded = (params["w_proj_oihw"] * sc1[:, None, None, None]).astype(jnp.bfloat16)
    w_rpe_folded = (params["w_rpe_oihw"] * sc2[:, None, None, None]).astype(jnp.bfloat16)
    w_proj_packed = jnp.transpose(w_proj_folded, (2, 3, 1, 0)).reshape(9 * C, D)
    w_rpe_split = jnp.transpose(w_rpe_folded, (2, 3, 1, 0)).reshape(9, D, D)
    sh1 = sh1[None, :].astype(jnp.float32)
    sh2 = sh2[None, :].astype(jnp.float32)

    # (T,B,C,H,W) -> batch-leading channels-last, bf16, spatially padded and
    # im2col pre-packed in HBM (tiny for Cin=2); large activations never leave
    # VMEM inside the kernel.
    xb = jnp.transpose(x, (1, 0, 3, 4, 2)).astype(jnp.bfloat16)
    xb = jnp.pad(xb, ((0, 0), (0, 0), (1, 1), (1, 1), (0, 0)))
    patches = _pack_proj_patches(xb, H, W)

    out = sps_fused(patches, w_proj_packed, sh1, w_rpe_split, sh2,
                    H=H, W=W, S=S, block_b=block_b)          # (B,T,Ho,Wo*D) f32
    out = out.reshape(B, T, Ho, Wo, D)
    out = jnp.transpose(out, (1, 0, 4, 2, 3))                # (T,B,D,Ho,Wo)
    return out, (Ho, Wo)


# --------------------------------------------------------------------------- #
# Pure-JAX reference (mirrors the PyTorch module; same bf16-rounded operands)
# --------------------------------------------------------------------------- #
def _lif_ref(x):
    T = x.shape[0]
    outs = []
    mem = x[0]
    spike = (mem > THRESH).astype(jnp.float32)
    outs.append(spike)
    for i in range(1, T):
        mem = mem * DECAY * (1.0 - spike) + x[i]
        spike = (mem > THRESH).astype(jnp.float32)
        outs.append(spike)
    return jnp.stack(outs)


def reference_sps(x, params, patch_size=4):
    T, B, C, H, W = x.shape
    Ho, Wo = H // patch_size, W // patch_size
    D = params["w_proj_oihw"].shape[0]
    sc1, sh1 = _bn_fold(params["g_proj"], params["b_proj"], params["m_proj"], params["v_proj"])
    sc2, sh2 = _bn_fold(params["g_rpe"], params["b_rpe"], params["m_rpe"], params["v_rpe"])
    w1 = (params["w_proj_oihw"] * sc1[:, None, None, None]).astype(jnp.bfloat16).astype(jnp.float32)
    w2 = (params["w_rpe_oihw"] * sc2[:, None, None, None]).astype(jnp.bfloat16).astype(jnp.float32)
    dn = ("NCHW", "OIHW", "NCHW")

    xf = x.astype(jnp.bfloat16).astype(jnp.float32).reshape(T * B, C, H, W)
    y = jax.lax.conv_general_dilated(xf, w1, (1, 1), ((1, 1), (1, 1)),
                                     dimension_numbers=dn)
    y = y + sh1[None, :, None, None]
    s = _lif_ref(y.reshape(T, B, D, H, W)).reshape(T * B, D, H, W)
    p = jax.lax.reduce_window(s, -jnp.inf, jax.lax.max, (1, 1, 3, 3),
                              (1, 1, patch_size, patch_size),
                              ((0, 0), (0, 0), (1, 1), (1, 1)))
    x_feat = p.reshape(T, B, D, Ho, Wo)
    z = jax.lax.conv_general_dilated(p, w2, (1, 1), ((1, 1), (1, 1)),
                                     dimension_numbers=dn)
    z = z + sh2[None, :, None, None]
    out = _lif_ref(z.reshape(T, B, D, Ho, Wo)) + x_feat
    return out, (Ho, Wo)


# --------------------------------------------------------------------------- #
if __name__ == "__main__":
    key = jax.random.PRNGKey(0)
    T, B, C, H, W = TIME_WINDOW, 2, 2, 16, 16
    D, patch = 32, 4

    kx, kp = jax.random.split(key)
    x = jax.random.normal(kx, (T, B, C, H, W), jnp.float32)
    params = init_sps_params(kp, C, D)

    out, (Ho, Wo) = sps_forward(x, params, patch)
    out = jax.block_until_ready(out)

    assert out.shape == (T, B, D, Ho, Wo), out.shape
    assert bool(jnp.all(jnp.isfinite(out)))

    ref, _ = reference_sps(x, params, patch)
    # Outputs are spike sums in {0,1,2}; allow a tiny fraction of threshold
    # flips from accumulation-order differences.
    mismatch_frac = float(jnp.mean((jnp.abs(out - ref) > 1e-3).astype(jnp.float32)))
    assert mismatch_frac < 2e-3, f"mismatch fraction {mismatch_frac}"

    print("KERNEL_OK")
</pallas_src>

<mosaic_0001>
module attributes {stable_mosaic.version = 11 : i64} {
  func.func @_sps_fused_kernel(%arg0: i32, %arg1: memref<1x4x256x18xbf16, #tpu.memory_space<vmem>>, %arg2: memref<18x32xbf16, #tpu.memory_space<vmem>>, %arg3: memref<1x32xf32, #tpu.memory_space<vmem>>, %arg4: memref<9x32x32xbf16, #tpu.memory_space<vmem>>, %arg5: memref<1x32xf32, #tpu.memory_space<vmem>>, %arg6: memref<1x4x4x128xf32, #tpu.memory_space<vmem>>, %arg7: memref<1x4x6x6x32xbf16, #tpu.memory_space<vmem>>) attributes {dimension_semantics = [#tpu.dimension_semantics<parallel>], iteration_bounds = array<i64: 2>, scalar_prefetch = 0 : i64, scratch_operands = 1 : i64, tpu.core_type = #tpu.core_type<tc>, window_params = [{transform_indices = @transform_0, window_bounds = array<i64: 1, 4, 256, 18>}, {pipeline_mode = #tpu.pipeline_mode<synchronous>, transform_indices = @transform_1, window_bounds = array<i64: 18, 32>}, {pipeline_mode = #tpu.pipeline_mode<synchronous>, transform_indices = @transform_2, window_bounds = array<i64: 1, 32>}, {pipeline_mode = #tpu.pipeline_mode<synchronous>, transform_indices = @transform_3, window_bounds = array<i64: 9, 32, 32>}, {pipeline_mode = #tpu.pipeline_mode<synchronous>, transform_indices = @transform_4, window_bounds = array<i64: 1, 32>}, {transform_indices = @transform_5, window_bounds = array<i64: 1, 4, 4, 128>}]} {
    %cst = arith.constant 0.000000e+00 : bf16
    %0 = vector.broadcast %cst : bf16 to vector<1x4x6x6x32xbf16>
    %c0 = arith.constant 0 : index
    %c0_0 = arith.constant 0 : index
    %c0_1 = arith.constant 0 : index
    %c0_2 = arith.constant 0 : index
    %c0_3 = arith.constant 0 : index
    %1 = vector.load %arg7[%c0, %c0_0, %c0_1, %c0_2, %c0_3] : memref<1x4x6x6x32xbf16, #tpu.memory_space<vmem>>, vector<1x4x6x6x32xbf16>
    tpu.vector_store %arg7[%c0, %c0_0, %c0_1, %c0_2, %c0_3], %0 {strides = array<i32>} : memref<1x4x6x6x32xbf16, #tpu.memory_space<vmem>>, vector<1x4x6x6x32xbf16>,
    %c0_4 = arith.constant 0 : index
    %c0_5 = arith.constant 0 : index
    %c0_6 = arith.constant 0 : index
    %c0_7 = arith.constant 0 : index
    %2 = vector.load %arg1[%c0_4, %c0_5, %c0_6, %c0_7] : memref<1x4x256x18xbf16, #tpu.memory_space<vmem>>, vector<1x1x256x18xbf16>
    %3 = vector.shape_cast %2 : vector<1x1x256x18xbf16> to vector<1x256x18xbf16>
    %4 = vector.shape_cast %3 : vector<1x256x18xbf16> to vector<256x18xbf16>
    %c0_8 = arith.constant 0 : index
    %c0_9 = arith.constant 0 : index
    %5 = vector.load %arg2[%c0_8, %c0_9] : memref<18x32xbf16, #tpu.memory_space<vmem>>, vector<18x32xbf16>
    %cst_10 = arith.constant dense<0.000000e+00> : vector<256x32xf32>
    %6 = tpu.matmul %4, %5, %cst_10 {dimension_numbers = #tpu.dot_dimension_numbers<[1], [0], [0], [1], [0, 0, 1, 1], [], []>} : vector<256x18xbf16>, vector<18x32xbf16>, vector<256x32xf32> -> vector<256x32xf32>
    %c0_11 = arith.constant 0 : index
    %c0_12 = arith.constant 0 : index
    %7 = vector.load %arg3[%c0_11, %c0_12] : memref<1x32xf32, #tpu.memory_space<vmem>>, vector<1x32xf32>
    %8 = vector.broadcast %7 : vector<1x32xf32> to vector<256x32xf32>
    %9 = arith.addf %6, %8 : vector<256x32xf32>
    %cst_13 = arith.constant 5.000000e-01 : f32
    %10 = vector.broadcast %cst_13 : f32 to vector<256x32xf32>
    %11 = arith.cmpf ogt, %9, %10 : vector<256x32xf32>
    %12 = arith.extui %11 : vector<256x32xi1> to vector<256x32xi32>
    %13 = arith.sitofp %12 : vector<256x32xi32> to vector<256x32xf32>
    %14 = vector.shape_cast %13 : vector<256x32xf32> to vector<1x16x4x4x32xf32>
    %15 = vector.extract_strided_slice %14 {offsets = [0, 0, 0, 0, 0], sizes = [1, 16, 4, 1, 32], strides = [1, 1, 1, 1, 1]} : vector<1x16x4x4x32xf32> to vector<1x16x4x1x32xf32>
    %16 = vector.shape_cast %15 : vector<1x16x4x1x32xf32> to vector<1x16x4x32xf32>
    %17 = vector.extract_strided_slice %14 {offsets = [0, 0, 0, 1, 0], sizes = [1, 16, 4, 1, 32], strides = [1, 1, 1, 1, 1]} : vector<1x16x4x4x32xf32> to vector<1x16x4x1x32xf32>
    %18 = vector.shape_cast %17 : vector<1x16x4x1x32xf32> to vector<1x16x4x32xf32>
    %19 = arith.maximumf %16, %18 : vector<1x16x4x32xf32>
    %cst_14 = arith.constant 0.000000e+00 : f32
    %20 = vector.broadcast %cst_14 : f32 to vector<1x16x1x32xf32>
    %21 = vector.extract_strided_slice %14 {offsets = [0, 0, 0, 3, 0], sizes = [1, 16, 3, 1, 32], strides = [1, 1, 1, 1, 1]} : vector<1x16x4x4x32xf32> to vector<1x16x3x1x32xf32>
    %22 = vector.shape_cast %21 : vector<1x16x3x1x32xf32> to vector<1x16x3x32xf32>
    %23 = tpu.concatenate %20, %22 in 2 : vector<1x16x1x32xf32>, vector<1x16x3x32xf32> -> vector<1x16x4x32xf32>
    %24 = arith.maximumf %19, %23 : vector<1x16x4x32xf32>
    %25 = vector.shape_cast %24 : vector<1x16x4x32xf32> to vector<1x4x4x4x32xf32>
    %26 = vector.extract_strided_slice %25 {offsets = [0, 0, 0, 0, 0], sizes = [1, 4, 1, 4, 32], strides = [1, 1, 1, 1, 1]} : vector<1x4x4x4x32xf32> to vector<1x4x1x4x32xf32>
    %27 = vector.shape_cast %26 : vector<1x4x1x4x32xf32> to vector<1x4x4x32xf32>
    %28 = vector.extract_strided_slice %25 {offsets = [0, 0, 1, 0, 0], sizes = [1, 4, 1, 4, 32], strides = [1, 1, 1, 1, 1]} : vector<1x4x4x4x32xf32> to vector<1x4x1x4x32xf32>
    %29 = vector.shape_cast %28 : vector<1x4x1x4x32xf32> to vector<1x4x4x32xf32>
    %30 = arith.maximumf %27, %29 : vector<1x4x4x32xf32>
    %cst_15 = arith.constant 0.000000e+00 : f32
    %31 = vector.broadcast %cst_15 : f32 to vector<1x1x4x32xf32>
    %32 = vector.extract_strided_slice %25 {offsets = [0, 0, 3, 0, 0], sizes = [1, 3, 1, 4, 32], strides = [1, 1, 1, 1, 1]} : vector<1x4x4x4x32xf32> to vector<1x3x1x4x32xf32>
    %33 = vector.shape_cast %32 : vector<1x3x1x4x32xf32> to vector<1x3x4x32xf32>
    %34 = tpu.concatenate %31, %33 in 1 : vector<1x1x4x32xf32>, vector<1x3x4x32xf32> -> vector<1x4x4x32xf32>
    %35 = arith.maximumf %30, %34 : vector<1x4x4x32xf32>
    %36 = arith.truncf %35 : vector<1x4x4x32xf32> to vector<1x4x4x32xbf16>
    %c0_16 = arith.constant 0 : index
    %c0_17 = arith.constant 0 : index
    %c1 = arith.constant 1 : index
    %c1_18 = arith.constant 1 : index
    %c0_19 = arith.constant 0 : index
    %37 = vector.load %arg7[%c0_16, %c0_17, %c1, %c1_18, %c0_19] : memref<1x4x6x6x32xbf16, #tpu.memory_space<vmem>>, vector<1x1x4x4x32xbf16>
    %38 = vector.shape_cast %37 : vector<1x1x4x4x32xbf16> to vector<1x4x4x32xbf16>
    %39 = vector.shape_cast %36 : vector<1x4x4x32xbf16> to vector<1x1x4x4x32xbf16>
    tpu.vector_store %arg7[%c0_16, %c0_17, %c1, %c1_18, %c0_19], %39 {strides = array<i32>} : memref<1x4x6x6x32xbf16, #tpu.memory_space<vmem>>, vector<1x1x4x4x32xbf16>,
    %c0_20 = arith.constant 0 : index
    %c1_21 = arith.constant 1 : index
    %c0_22 = arith.constant 0 : index
    %c0_23 = arith.constant 0 : index
    %40 = vector.load %arg1[%c0_20, %c1_21, %c0_22, %c0_23] : memref<1x4x256x18xbf16, #tpu.memory_space<vmem>>, vector<1x1x256x18xbf16>
    %41 = vector.shape_cast %40 : vector<1x1x256x18xbf16> to vector<1x256x18xbf16>
    %42 = vector.shape_cast %41 : vector<1x256x18xbf16> to vector<256x18xbf16>
    %c0_24 = arith.constant 0 : index
    %c0_25 = arith.constant 0 : index
    %43 = vector.load %arg2[%c0_24, %c0_25] : memref<18x32xbf16, #tpu.memory_space<vmem>>, vector<18x32xbf16>
    %cst_26 = arith.constant dense<0.000000e+00> : vector<256x32xf32>
    %44 = tpu.matmul %42, %43, %cst_26 {dimension_numbers = #tpu.dot_dimension_numbers<[1], [0], [0], [1], [0, 0, 1, 1], [], []>} : vector<256x18xbf16>, vector<18x32xbf16>, vector<256x32xf32> -> vector<256x32xf32>
    %c0_27 = arith.constant 0 : index
    %c0_28 = arith.constant 0 : index
    %45 = vector.load %arg3[%c0_27, %c0_28] : memref<1x32xf32, #tpu.memory_space<vmem>>, vector<1x32xf32>
    %46 = vector.broadcast %45 : vector<1x32xf32> to vector<256x32xf32>
    %47 = arith.addf %44, %46 : vector<256x32xf32>
    %cst_29 = arith.constant 1.000000e+00 : f32
    %48 = vector.broadcast %cst_29 : f32 to vector<256x32xf32>
    %49 = arith.subf %48, %13 : vector<256x32xf32>
    %cst_30 = arith.constant 2.500000e-01 : f32
    %50 = vector.broadcast %cst_30 : f32 to vector<256x32xf32>
    %51 = arith.mulf %50, %49 : vector<256x32xf32>
    %52 = arith.mulf %9, %51 : vector<256x32xf32>
    %53 = arith.addf %52, %47 : vector<256x32xf32>
    %cst_31 = arith.constant 5.000000e-01 : f32
    %54 = vector.broadcast %cst_31 : f32 to vector<256x32xf32>
    %55 = arith.cmpf ogt, %53, %54 : vector<256x32xf32>
    %56 = arith.extui %55 : vector<256x32xi1> to vector<256x32xi32>
    %57 = arith.sitofp %56 : vector<256x32xi32> to vector<256x32xf32>
    %58 = vector.shape_cast %57 : vector<256x32xf32> to vector<1x16x4x4x32xf32>
    %59 = vector.extract_strided_slice %58 {offsets = [0, 0, 0, 0, 0], sizes = [1, 16, 4, 1, 32], strides = [1, 1, 1, 1, 1]} : vector<1x16x4x4x32xf32> to vector<1x16x4x1x32xf32>
    %60 = vector.shape_cast %59 : vector<1x16x4x1x32xf32> to vector<1x16x4x32xf32>
    %61 = vector.extract_strided_slice %58 {offsets = [0, 0, 0, 1, 0], sizes = [1, 16, 4, 1, 32], strides = [1, 1, 1, 1, 1]} : vector<1x16x4x4x32xf32> to vector<1x16x4x1x32xf32>
    %62 = vector.shape_cast %61 : vector<1x16x4x1x32xf32> to vector<1x16x4x32xf32>
    %63 = arith.maximumf %60, %62 : vector<1x16x4x32xf32>
    %cst_32 = arith.constant 0.000000e+00 : f32
    %64 = vector.broadcast %cst_32 : f32 to vector<1x16x1x32xf32>
    %65 = vector.extract_strided_slice %58 {offsets = [0, 0, 0, 3, 0], sizes = [1, 16, 3, 1, 32], strides = [1, 1, 1, 1, 1]} : vector<1x16x4x4x32xf32> to vector<1x16x3x1x32xf32>
    %66 = vector.shape_cast %65 : vector<1x16x3x1x32xf32> to vector<1x16x3x32xf32>
    %67 = tpu.concatenate %64, %66 in 2 : vector<1x16x1x32xf32>, vector<1x16x3x32xf32> -> vector<1x16x4x32xf32>
    %68 = arith.maximumf %63, %67 : vector<1x16x4x32xf32>
    %69 = vector.shape_cast %68 : vector<1x16x4x32xf32> to vector<1x4x4x4x32xf32>
    %70 = vector.extract_strided_slice %69 {offsets = [0, 0, 0, 0, 0], sizes = [1, 4, 1, 4, 32], strides = [1, 1, 1, 1, 1]} : vector<1x4x4x4x32xf32> to vector<1x4x1x4x32xf32>
    %71 = vector.shape_cast %70 : vector<1x4x1x4x32xf32> to vector<1x4x4x32xf32>
    %72 = vector.extract_strided_slice %69 {offsets = [0, 0, 1, 0, 0], sizes = [1, 4, 1, 4, 32], strides = [1, 1, 1, 1, 1]} : vector<1x4x4x4x32xf32> to vector<1x4x1x4x32xf32>
    %73 = vector.shape_cast %72 : vector<1x4x1x4x32xf32> to vector<1x4x4x32xf32>
    %74 = arith.maximumf %71, %73 : vector<1x4x4x32xf32>
    %cst_33 = arith.constant 0.000000e+00 : f32
    %75 = vector.broadcast %cst_33 : f32 to vector<1x1x4x32xf32>
    %76 = vector.extract_strided_slice %69 {offsets = [0, 0, 3, 0, 0], sizes = [1, 3, 1, 4, 32], strides = [1, 1, 1, 1, 1]} : vector<1x4x4x4x32xf32> to vector<1x3x1x4x32xf32>
    %77 = vector.shape_cast %76 : vector<1x3x1x4x32xf32> to vector<1x3x4x32xf32>
    %78 = tpu.concatenate %75, %77 in 1 : vector<1x1x4x32xf32>, vector<1x3x4x32xf32> -> vector<1x4x4x32xf32>
    %79 = arith.maximumf %74, %78 : vector<1x4x4x32xf32>
    %80 = arith.truncf %79 : vector<1x4x4x32xf32> to vector<1x4x4x32xbf16>
    %c0_34 = arith.constant 0 : index
    %c1_35 = arith.constant 1 : index
    %c1_36 = arith.constant 1 : index
    %c1_37 = arith.constant 1 : index
    %c0_38 = arith.constant 0 : index
    %81 = vector.load %arg7[%c0_34, %c1_35, %c1_36, %c1_37, %c0_38] : memref<1x4x6x6x32xbf16, #tpu.memory_space<vmem>>, vector<1x1x4x4x32xbf16>
    %82 = vector.shape_cast %81 : vector<1x1x4x4x32xbf16> to vector<1x4x4x32xbf16>
    %83 = vector.shape_cast %80 : vector<1x4x4x32xbf16> to vector<1x1x4x4x32xbf16>
    tpu.vector_store %arg7[%c0_34, %c1_35, %c1_36, %c1_37, %c0_38], %83 {strides = array<i32>} : memref<1x4x6x6x32xbf16, #tpu.memory_space<vmem>>, vector<1x1x4x4x32xbf16>,
    %c0_39 = arith.constant 0 : index
    %c2 = arith.constant 2 : index
    %c0_40 = arith.constant 0 : index
    %c0_41 = arith.constant 0 : index
    %84 = vector.load %arg1[%c0_39, %c2, %c0_40, %c0_41] : memref<1x4x256x18xbf16, #tpu.memory_space<vmem>>, vector<1x1x256x18xbf16>
    %85 = vector.shape_cast %84 : vector<1x1x256x18xbf16> to vector<1x256x18xbf16>
    %86 = vector.shape_cast %85 : vector<1x256x18xbf16> to vector<256x18xbf16>
    %c0_42 = arith.constant 0 : index
    %c0_43 = arith.constant 0 : index
    %87 = vector.load %arg2[%c0_42, %c0_43] : memref<18x32xbf16, #tpu.memory_space<vmem>>, vector<18x32xbf16>
    %cst_44 = arith.constant dense<0.000000e+00> : vector<256x32xf32>
    %88 = tpu.matmul %86, %87, %cst_44 {dimension_numbers = #tpu.dot_dimension_numbers<[1], [0], [0], [1], [0, 0, 1, 1], [], []>} : vector<256x18xbf16>, vector<18x32xbf16>, vector<256x32xf32> -> vector<256x32xf32>
    %c0_45 = arith.constant 0 : index
    %c0_46 = arith.constant 0 : index
    %89 = vector.load %arg3[%c0_45, %c0_46] : memref<1x32xf32, #tpu.memory_space<vmem>>, vector<1x32xf32>
    %90 = vector.broadcast %89 : vector<1x32xf32> to vector<256x32xf32>
    %91 = arith.addf %88, %90 : vector<256x32xf32>
    %cst_47 = arith.constant 1.000000e+00 : f32
    %92 = vector.broadcast %cst_47 : f32 to vector<256x32xf32>
    %93 = arith.subf %92, %57 : vector<256x32xf32>
    %cst_48 = arith.constant 2.500000e-01 : f32
    %94 = vector.broadcast %cst_48 : f32 to vector<256x32xf32>
    %95 = arith.mulf %94, %93 : vector<256x32xf32>
    %96 = arith.mulf %53, %95 : vector<256x32xf32>
    %97 = arith.addf %96, %91 : vector<256x32xf32>
    %cst_49 = arith.constant 5.000000e-01 : f32
    %98 = vector.broadcast %cst_49 : f32 to vector<256x32xf32>
    %99 = arith.cmpf ogt, %97, %98 : vector<256x32xf32>
    %100 = arith.extui %99 : vector<256x32xi1> to vector<256x32xi32>
    %101 = arith.sitofp %100 : vector<256x32xi32> to vector<256x32xf32>
    %102 = vector.shape_cast %101 : vector<256x32xf32> to vector<1x16x4x4x32xf32>
    %103 = vector.extract_strided_slice %102 {offsets = [0, 0, 0, 0, 0], sizes = [1, 16, 4, 1, 32], strides = [1, 1, 1, 1, 1]} : vector<1x16x4x4x32xf32> to vector<1x16x4x1x32xf32>
    %104 = vector.shape_cast %103 : vector<1x16x4x1x32xf32> to vector<1x16x4x32xf32>
    %105 = vector.extract_strided_slice %102 {offsets = [0, 0, 0, 1, 0], sizes = [1, 16, 4, 1, 32], strides = [1, 1, 1, 1, 1]} : vector<1x16x4x4x32xf32> to vector<1x16x4x1x32xf32>
    %106 = vector.shape_cast %105 : vector<1x16x4x1x32xf32> to vector<1x16x4x32xf32>
    %107 = arith.maximumf %104, %106 : vector<1x16x4x32xf32>
    %cst_50 = arith.constant 0.000000e+00 : f32
    %108 = vector.broadcast %cst_50 : f32 to vector<1x16x1x32xf32>
    %109 = vector.extract_strided_slice %102 {offsets = [0, 0, 0, 3, 0], sizes = [1, 16, 3, 1, 32], strides = [1, 1, 1, 1, 1]} : vector<1x16x4x4x32xf32> to vector<1x16x3x1x32xf32>
    %110 = vector.shape_cast %109 : vector<1x16x3x1x32xf32> to vector<1x16x3x32xf32>
    %111 = tpu.concatenate %108, %110 in 2 : vector<1x16x1x32xf32>, vector<1x16x3x32xf32> -> vector<1x16x4x32xf32>
    %112 = arith.maximumf %107, %111 : vector<1x16x4x32xf32>
    %113 = vector.shape_cast %112 : vector<1x16x4x32xf32> to vector<1x4x4x4x32xf32>
    %114 = vector.extract_strided_slice %113 {offsets = [0, 0, 0, 0, 0], sizes = [1, 4, 1, 4, 32], strides = [1, 1, 1, 1, 1]} : vector<1x4x4x4x32xf32> to vector<1x4x1x4x32xf32>
    %115 = vector.shape_cast %114 : vector<1x4x1x4x32xf32> to vector<1x4x4x32xf32>
    %116 = vector.extract_strided_slice %113 {offsets = [0, 0, 1, 0, 0], sizes = [1, 4, 1, 4, 32], strides = [1, 1, 1, 1, 1]} : vector<1x4x4x4x32xf32> to vector<1x4x1x4x32xf32>
    %117 = vector.shape_cast %116 : vector<1x4x1x4x32xf32> to vector<1x4x4x32xf32>
    %118 = arith.maximumf %115, %117 : vector<1x4x4x32xf32>
    %cst_51 = arith.constant 0.000000e+00 : f32
    %119 = vector.broadcast %cst_51 : f32 to vector<1x1x4x32xf32>
    %120 = vector.extract_strided_slice %113 {offsets = [0, 0, 3, 0, 0], sizes = [1, 3, 1, 4, 32], strides = [1, 1, 1, 1, 1]} : vector<1x4x4x4x32xf32> to vector<1x3x1x4x32xf32>
    %121 = vector.shape_cast %120 : vector<1x3x1x4x32xf32> to vector<1x3x4x32xf32>
    %122 = tpu.concatenate %119, %121 in 1 : vector<1x1x4x32xf32>, vector<1x3x4x32xf32> -> vector<1x4x4x32xf32>
    %123 = arith.maximumf %118, %122 : vector<1x4x4x32xf32>
    %124 = arith.truncf %123 : vector<1x4x4x32xf32> to vector<1x4x4x32xbf16>
    %c0_52 = arith.constant 0 : index
    %c2_53 = arith.constant 2 : index
    %c1_54 = arith.constant 1 : index
    %c1_55 = arith.constant 1 : index
    %c0_56 = arith.constant 0 : index
    %125 = vector.load %arg7[%c0_52, %c2_53, %c1_54, %c1_55, %c0_56] : memref<1x4x6x6x32xbf16, #tpu.memory_space<vmem>>, vector<1x1x4x4x32xbf16>
    %126 = vector.shape_cast %125 : vector<1x1x4x4x32xbf16> to vector<1x4x4x32xbf16>
    %127 = vector.shape_cast %124 : vector<1x4x4x32xbf16> to vector<1x1x4x4x32xbf16>
    tpu.vector_store %arg7[%c0_52, %c2_53, %c1_54, %c1_55, %c0_56], %127 {strides = array<i32>} : memref<1x4x6x6x32xbf16, #tpu.memory_space<vmem>>, vector<1x1x4x4x32xbf16>,
    %c0_57 = arith.constant 0 : index
    %c3 = arith.constant 3 : index
    %c0_58 = arith.constant 0 : index
    %c0_59 = arith.constant 0 : index
    %128 = vector.load %arg1[%c0_57, %c3, %c0_58, %c0_59] : memref<1x4x256x18xbf16, #tpu.memory_space<vmem>>, vector<1x1x256x18xbf16>
    %129 = vector.shape_cast %128 : vector<1x1x256x18xbf16> to vector<1x256x18xbf16>
    %130 = vector.shape_cast %129 : vector<1x256x18xbf16> to vector<256x18xbf16>
    %c0_60 = arith.constant 0 : index
    %c0_61 = arith.constant 0 : index
    %131 = vector.load %arg2[%c0_60, %c0_61] : memref<18x32xbf16, #tpu.memory_space<vmem>>, vector<18x32xbf16>
    %cst_62 = arith.constant dense<0.000000e+00> : vector<256x32xf32>
    %132 = tpu.matmul %130, %131, %cst_62 {dimension_numbers = #tpu.dot_dimension_numbers<[1], [0], [0], [1], [0, 0, 1, 1], [], []>} : vector<256x18xbf16>, vector<18x32xbf16>, vector<256x32xf32> -> vector<256x32xf32>
    %c0_63 = arith.constant 0 : index
    %c0_64 = arith.constant 0 : index
    %133 = vector.load %arg3[%c0_63, %c0_64] : memref<1x32xf32, #tpu.memory_space<vmem>>, vector<1x32xf32>
    %134 = vector.broadcast %133 : vector<1x32xf32> to vector<256x32xf32>
    %135 = arith.addf %132, %134 : vector<256x32xf32>
    %cst_65 = arith.constant 1.000000e+00 : f32
    %136 = vector.broadcast %cst_65 : f32 to vector<256x32xf32>
    %137 = arith.subf %136, %101 : vector<256x32xf32>
    %cst_66 = arith.constant 2.500000e-01 : f32
    %138 = vector.broadcast %cst_66 : f32 to vector<256x32xf32>
    %139 = arith.mulf %138, %137 : vector<256x32xf32>
    %140 = arith.mulf %97, %139 : vector<256x32xf32>
    %141 = arith.addf %140, %135 : vector<256x32xf32>
    %cst_67 = arith.constant 5.000000e-01 : f32
    %142 = vector.broadcast %cst_67 : f32 to vector<256x32xf32>
    %143 = arith.cmpf ogt, %141, %142 : vector<256x32xf32>
    %144 = arith.extui %143 : vector<256x32xi1> to vector<256x32xi32>
    %145 = arith.sitofp %144 : vector<256x32xi32> to vector<256x32xf32>
    %146 = vector.shape_cast %145 : vector<256x32xf32> to vector<1x16x4x4x32xf32>
    %147 = vector.extract_strided_slice %146 {offsets = [0, 0, 0, 0, 0], sizes = [1, 16, 4, 1, 32], strides = [1, 1, 1, 1, 1]} : vector<1x16x4x4x32xf32> to vector<1x16x4x1x32xf32>
    %148 = vector.shape_cast %147 : vector<1x16x4x1x32xf32> to vector<1x16x4x32xf32>
    %149 = vector.extract_strided_slice %146 {offsets = [0, 0, 0, 1, 0], sizes = [1, 16, 4, 1, 32], strides = [1, 1, 1, 1, 1]} : vector<1x16x4x4x32xf32> to vector<1x16x4x1x32xf32>
    %150 = vector.shape_cast %149 : vector<1x16x4x1x32xf32> to vector<1x16x4x32xf32>
    %151 = arith.maximumf %148, %150 : vector<1x16x4x32xf32>
    %cst_68 = arith.constant 0.000000e+00 : f32
    %152 = vector.broadcast %cst_68 : f32 to vector<1x16x1x32xf32>
    %153 = vector.extract_strided_slice %146 {offsets = [0, 0, 0, 3, 0], sizes = [1, 16, 3, 1, 32], strides = [1, 1, 1, 1, 1]} : vector<1x16x4x4x32xf32> to vector<1x16x3x1x32xf32>
    %154 = vector.shape_cast %153 : vector<1x16x3x1x32xf32> to vector<1x16x3x32xf32>
    %155 = tpu.concatenate %152, %154 in 2 : vector<1x16x1x32xf32>, vector<1x16x3x32xf32> -> vector<1x16x4x32xf32>
    %156 = arith.maximumf %151, %155 : vector<1x16x4x32xf32>
    %157 = vector.shape_cast %156 : vector<1x16x4x32xf32> to vector<1x4x4x4x32xf32>
    %158 = vector.extract_strided_slice %157 {offsets = [0, 0, 0, 0, 0], sizes = [1, 4, 1, 4, 32], strides = [1, 1, 1, 1, 1]} : vector<1x4x4x4x32xf32> to vector<1x4x1x4x32xf32>
    %159 = vector.shape_cast %158 : vector<1x4x1x4x32xf32> to vector<1x4x4x32xf32>
    %160 = vector.extract_strided_slice %157 {offsets = [0, 0, 1, 0, 0], sizes = [1, 4, 1, 4, 32], strides = [1, 1, 1, 1, 1]} : vector<1x4x4x4x32xf32> to vector<1x4x1x4x32xf32>
    %161 = vector.shape_cast %160 : vector<1x4x1x4x32xf32> to vector<1x4x4x32xf32>
    %162 = arith.maximumf %159, %161 : vector<1x4x4x32xf32>
    %cst_69 = arith.constant 0.000000e+00 : f32
    %163 = vector.broadcast %cst_69 : f32 to vector<1x1x4x32xf32>
    %164 = vector.extract_strided_slice %157 {offsets = [0, 0, 3, 0, 0], sizes = [1, 3, 1, 4, 32], strides = [1, 1, 1, 1, 1]} : vector<1x4x4x4x32xf32> to vector<1x3x1x4x32xf32>
    %165 = vector.shape_cast %164 : vector<1x3x1x4x32xf32> to vector<1x3x4x32xf32>
    %166 = tpu.concatenate %163, %165 in 1 : vector<1x1x4x32xf32>, vector<1x3x4x32xf32> -> vector<1x4x4x32xf32>
    %167 = arith.maximumf %162, %166 : vector<1x4x4x32xf32>
    %168 = arith.truncf %167 : vector<1x4x4x32xf32> to vector<1x4x4x32xbf16>
    %c0_70 = arith.constant 0 : index
    %c3_71 = arith.constant 3 : index
    %c1_72 = arith.constant 1 : index
    %c1_73 = arith.constant 1 : index
    %c0_74 = arith.constant 0 : index
    %169 = vector.load %arg7[%c0_70, %c3_71, %c1_72, %c1_73, %c0_74] : memref<1x4x6x6x32xbf16, #tpu.memory_space<vmem>>, vector<1x1x4x4x32xbf16>
    %170 = vector.shape_cast %169 : vector<1x1x4x4x32xbf16> to vector<1x4x4x32xbf16>
    %171 = vector.shape_cast %168 : vector<1x4x4x32xbf16> to vector<1x1x4x4x32xbf16>
    tpu.vector_store %arg7[%c0_70, %c3_71, %c1_72, %c1_73, %c0_74], %171 {strides = array<i32>} : memref<1x4x6x6x32xbf16, #tpu.memory_space<vmem>>, vector<1x1x4x4x32xbf16>,
    %c0_75 = arith.constant 0 : index
    %c0_76 = arith.constant 0 : index
    %c0_77 = arith.constant 0 : index
    %c0_78 = arith.constant 0 : index
    %c0_79 = arith.constant 0 : index
    %172 = vector.load %arg7[%c0_75, %c0_76, %c0_77, %c0_78, %c0_79] : memref<1x4x6x6x32xbf16, #tpu.memory_space<vmem>>, vector<1x4x6x6x32xbf16>
    %cst_80 = arith.constant 0.000000e+00 : f32
    %173 = vector.broadcast %cst_80 : f32 to vector<64x32xf32>
    %174 = vector.extract_strided_slice %172 {offsets = [0, 0, 0, 0, 0], sizes = [1, 4, 4, 4, 32], strides = [1, 1, 1, 1, 1]} : vector<1x4x6x6x32xbf16> to vector<1x4x4x4x32xbf16>
    %175 = vector.shape_cast %174 : vector<1x4x4x4x32xbf16> to vector<64x32xbf16>
    %c0_81 = arith.constant 0 : index
    %c0_82 = arith.constant 0 : index
    %c0_83 = arith.constant 0 : index
    %176 = vector.load %arg4[%c0_81, %c0_82, %c0_83] : memref<9x32x32xbf16, #tpu.memory_space<vmem>>, vector<1x32x32xbf16>
    %177 = vector.shape_cast %176 : vector<1x32x32xbf16> to vector<32x32xbf16>
    %cst_84 = arith.constant dense<0.000000e+00> : vector<64x32xf32>
    %178 = tpu.matmul %175, %177, %cst_84 {dimension_numbers = #tpu.dot_dimension_numbers<[1], [0], [0], [1], [0, 0, 1, 1], [], []>} : vector<64x32xbf16>, vector<32x32xbf16>, vector<64x32xf32> -> vector<64x32xf32>
    %179 = arith.addf %173, %178 : vector<64x32xf32>
    %180 = vector.extract_strided_slice %172 {offsets = [0, 0, 0, 1, 0], sizes = [1, 4, 4, 4, 32], strides = [1, 1, 1, 1, 1]} : vector<1x4x6x6x32xbf16> to vector<1x4x4x4x32xbf16>
    %181 = vector.shape_cast %180 : vector<1x4x4x4x32xbf16> to vector<64x32xbf16>
    %c1_85 = arith.constant 1 : index
    %c0_86 = arith.constant 0 : index
    %c0_87 = arith.constant 0 : index
    %182 = vector.load %arg4[%c1_85, %c0_86, %c0_87] : memref<9x32x32xbf16, #tpu.memory_space<vmem>>, vector<1x32x32xbf16>
    %183 = vector.shape_cast %182 : vector<1x32x32xbf16> to vector<32x32xbf16>
    %cst_88 = arith.constant dense<0.000000e+00> : vector<64x32xf32>
    %184 = tpu.matmul %181, %183, %cst_88 {dimension_numbers = #tpu.dot_dimension_numbers<[1], [0], [0], [1], [0, 0, 1, 1], [], []>} : vector<64x32xbf16>, vector<32x32xbf16>, vector<64x32xf32> -> vector<64x32xf32>
    %185 = arith.addf %179, %184 : vector<64x32xf32>
    %186 = vector.extract_strided_slice %172 {offsets = [0, 0, 0, 2, 0], sizes = [1, 4, 4, 4, 32], strides = [1, 1, 1, 1, 1]} : vector<1x4x6x6x32xbf16> to vector<1x4x4x4x32xbf16>
    %187 = vector.shape_cast %186 : vector<1x4x4x4x32xbf16> to vector<64x32xbf16>
    %c2_89 = arith.constant 2 : index
    %c0_90 = arith.constant 0 : index
    %c0_91 = arith.constant 0 : index
    %188 = vector.load %arg4[%c2_89, %c0_90, %c0_91] : memref<9x32x32xbf16, #tpu.memory_space<vmem>>, vector<1x32x32xbf16>
    %189 = vector.shape_cast %188 : vector<1x32x32xbf16> to vector<32x32xbf16>
    %cst_92 = arith.constant dense<0.000000e+00> : vector<64x32xf32>
    %190 = tpu.matmul %187, %189, %cst_92 {dimension_numbers = #tpu.dot_dimension_numbers<[1], [0], [0], [1], [0, 0, 1, 1], [], []>} : vector<64x32xbf16>, vector<32x32xbf16>, vector<64x32xf32> -> vector<64x32xf32>
    %191 = arith.addf %185, %190 : vector<64x32xf32>
    %192 = vector.extract_strided_slice %172 {offsets = [0, 0, 1, 0, 0], sizes = [1, 4, 4, 4, 32], strides = [1, 1, 1, 1, 1]} : vector<1x4x6x6x32xbf16> to vector<1x4x4x4x32xbf16>
    %193 = vector.shape_cast %192 : vector<1x4x4x4x32xbf16> to vector<64x32xbf16>
    %c3_93 = arith.constant 3 : index
    %c0_94 = arith.constant 0 : index
    %c0_95 = arith.constant 0 : index
    %194 = vector.load %arg4[%c3_93, %c0_94, %c0_95] : memref<9x32x32xbf16, #tpu.memory_space<vmem>>, vector<1x32x32xbf16>
    %195 = vector.shape_cast %194 : vector<1x32x32xbf16> to vector<32x32xbf16>
    %cst_96 = arith.constant dense<0.000000e+00> : vector<64x32xf32>
    %196 = tpu.matmul %193, %195, %cst_96 {dimension_numbers = #tpu.dot_dimension_numbers<[1], [0], [0], [1], [0, 0, 1, 1], [], []>} : vector<64x32xbf16>, vector<32x32xbf16>, vector<64x32xf32> -> vector<64x32xf32>
    %197 = arith.addf %191, %196 : vector<64x32xf32>
    %198 = vector.extract_strided_slice %172 {offsets = [0, 0, 1, 1, 0], sizes = [1, 4, 4, 4, 32], strides = [1, 1, 1, 1, 1]} : vector<1x4x6x6x32xbf16> to vector<1x4x4x4x32xbf16>
    %199 = vector.shape_cast %198 : vector<1x4x4x4x32xbf16> to vector<64x32xbf16>
    %c4 = arith.constant 4 : index
    %c0_97 = arith.constant 0 : index
    %c0_98 = arith.constant 0 : index
    %200 = vector.load %arg4[%c4, %c0_97, %c0_98] : memref<9x32x32xbf16, #tpu.memory_space<vmem>>, vector<1x32x32xbf16>
    %201 = vector.shape_cast %200 : vector<1x32x32xbf16> to vector<32x32xbf16>
    %cst_99 = arith.constant dense<0.000000e+00> : vector<64x32xf32>
    %202 = tpu.matmul %199, %201, %cst_99 {dimension_numbers = #tpu.dot_dimension_numbers<[1], [0], [0], [1], [0, 0, 1, 1], [], []>} : vector<64x32xbf16>, vector<32x32xbf16>, vector<64x32xf32> -> vector<64x32xf32>
    %203 = arith.addf %197, %202 : vector<64x32xf32>
    %204 = vector.extract_strided_slice %172 {offsets = [0, 0, 1, 2, 0], sizes = [1, 4, 4, 4, 32], strides = [1, 1, 1, 1, 1]} : vector<1x4x6x6x32xbf16> to vector<1x4x4x4x32xbf16>
    %205 = vector.shape_cast %204 : vector<1x4x4x4x32xbf16> to vector<64x32xbf16>
    %c5 = arith.constant 5 : index
    %c0_100 = arith.constant 0 : index
    %c0_101 = arith.constant 0 : index
    %206 = vector.load %arg4[%c5, %c0_100, %c0_101] : memref<9x32x32xbf16, #tpu.memory_space<vmem>>, vector<1x32x32xbf16>
    %207 = vector.shape_cast %206 : vector<1x32x32xbf16> to vector<32x32xbf16>
    %cst_102 = arith.constant dense<0.000000e+00> : vector<64x32xf32>
    %208 = tpu.matmul %205, %207, %cst_102 {dimension_numbers = #tpu.dot_dimension_numbers<[1], [0], [0], [1], [0, 0, 1, 1], [], []>} : vector<64x32xbf16>, vector<32x32xbf16>, vector<64x32xf32> -> vector<64x32xf32>
    %209 = arith.addf %203, %208 : vector<64x32xf32>
    %210 = vector.extract_strided_slice %172 {offsets = [0, 0, 2, 0, 0], sizes = [1, 4, 4, 4, 32], strides = [1, 1, 1, 1, 1]} : vector<1x4x6x6x32xbf16> to vector<1x4x4x4x32xbf16>
    %211 = vector.shape_cast %210 : vector<1x4x4x4x32xbf16> to vector<64x32xbf16>
    %c6 = arith.constant 6 : index
    %c0_103 = arith.constant 0 : index
    %c0_104 = arith.constant 0 : index
    %212 = vector.load %arg4[%c6, %c0_103, %c0_104] : memref<9x32x32xbf16, #tpu.memory_space<vmem>>, vector<1x32x32xbf16>
    %213 = vector.shape_cast %212 : vector<1x32x32xbf16> to vector<32x32xbf16>
    %cst_105 = arith.constant dense<0.000000e+00> : vector<64x32xf32>
    %214 = tpu.matmul %211, %213, %cst_105 {dimension_numbers = #tpu.dot_dimension_numbers<[1], [0], [0], [1], [0, 0, 1, 1], [], []>} : vector<64x32xbf16>, vector<32x32xbf16>, vector<64x32xf32> -> vector<64x32xf32>
    %215 = arith.addf %209, %214 : vector<64x32xf32>
    %216 = vector.extract_strided_slice %172 {offsets = [0, 0, 2, 1, 0], sizes = [1, 4, 4, 4, 32], strides = [1, 1, 1, 1, 1]} : vector<1x4x6x6x32xbf16> to vector<1x4x4x4x32xbf16>
    %217 = vector.shape_cast %216 : vector<1x4x4x4x32xbf16> to vector<64x32xbf16>
    %c7 = arith.constant 7 : index
    %c0_106 = arith.constant 0 : index
    %c0_107 = arith.constant 0 : index
    %218 = vector.load %arg4[%c7, %c0_106, %c0_107] : memref<9x32x32xbf16, #tpu.memory_space<vmem>>, vector<1x32x32xbf16>
    %219 = vector.shape_cast %218 : vector<1x32x32xbf16> to vector<32x32xbf16>
    %cst_108 = arith.constant dense<0.000000e+00> : vector<64x32xf32>
    %220 = tpu.matmul %217, %219, %cst_108 {dimension_numbers = #tpu.dot_dimension_numbers<[1], [0], [0], [1], [0, 0, 1, 1], [], []>} : vector<64x32xbf16>, vector<32x32xbf16>, vector<64x32xf32> -> vector<64x32xf32>
    %221 = arith.addf %215, %220 : vector<64x32xf32>
    %222 = vector.extract_strided_slice %172 {offsets = [0, 0, 2, 2, 0], sizes = [1, 4, 4, 4, 32], strides = [1, 1, 1, 1, 1]} : vector<1x4x6x6x32xbf16> to vector<1x4x4x4x32xbf16>
    %223 = vector.shape_cast %222 : vector<1x4x4x4x32xbf16> to vector<64x32xbf16>
    %c8 = arith.constant 8 : index
    %c0_109 = arith.constant 0 : index
    %c0_110 = arith.constant 0 : index
    %224 = vector.load %arg4[%c8, %c0_109, %c0_110] : memref<9x32x32xbf16, #tpu.memory_space<vmem>>, vector<1x32x32xbf16>
    %225 = vector.shape_cast %224 : vector<1x32x32xbf16> to vector<32x32xbf16>
    %cst_111 = arith.constant dense<0.000000e+00> : vector<64x32xf32>
    %226 = tpu.matmul %223, %225, %cst_111 {dimension_numbers = #tpu.dot_dimension_numbers<[1], [0], [0], [1], [0, 0, 1, 1], [], []>} : vector<64x32xbf16>, vector<32x32xbf16>, vector<64x32xf32> -> vector<64x32xf32>
    %227 = arith.addf %221, %226 : vector<64x32xf32>
    %c0_112 = arith.constant 0 : index
    %c0_113 = arith.constant 0 : index
    %228 = vector.load %arg5[%c0_112, %c0_113] : memref<1x32xf32, #tpu.memory_space<vmem>>, vector<1x32xf32>
    %229 = vector.broadcast %228 : vector<1x32xf32> to vector<64x32xf32>
    %230 = arith.addf %227, %229 : vector<64x32xf32>
    %231 = vector.shape_cast %230 : vector<64x32xf32> to vector<1x4x4x4x32xf32>
    %232 = vector.extract_strided_slice %172 {offsets = [0, 0, 1, 1, 0], sizes = [1, 4, 4, 4, 32], strides = [1, 1, 1, 1, 1]} : vector<1x4x6x6x32xbf16> to vector<1x4x4x4x32xbf16>
    %233 = arith.extf %232 : vector<1x4x4x4x32xbf16> to vector<1x4x4x4x32xf32>
    %234 = vector.extract_strided_slice %231 {offsets = [0, 0, 0, 0, 0], sizes = [1, 1, 4, 4, 32], strides = [1, 1, 1, 1, 1]} : vector<1x4x4x4x32xf32> to vector<1x1x4x4x32xf32>
    %235 = vector.shape_cast %234 : vector<1x1x4x4x32xf32> to vector<1x4x4x32xf32>
    %cst_114 = arith.constant 5.000000e-01 : f32
    %236 = vector.broadcast %cst_114 : f32 to vector<1x4x4x32xf32>
    %237 = arith.cmpf ogt, %235, %236 : vector<1x4x4x32xf32>
    %238 = arith.extui %237 : vector<1x4x4x32xi1> to vector<1x4x4x32xi32>
    %239 = arith.sitofp %238 : vector<1x4x4x32xi32> to vector<1x4x4x32xf32>
    %240 = vector.extract_strided_slice %233 {offsets = [0, 0, 0, 0, 0], sizes = [1, 1, 4, 4, 32], strides = [1, 1, 1, 1, 1]} : vector<1x4x4x4x32xf32> to vector<1x1x4x4x32xf32>
    %241 = vector.shape_cast %240 : vector<1x1x4x4x32xf32> to vector<1x4x4x32xf32>
    %242 = arith.addf %239, %241 : vector<1x4x4x32xf32>
    %243 = vector.shape_cast %242 : vector<1x4x4x32xf32> to vector<1x4x128xf32>
    %c0_115 = arith.constant 0 : index
    %c0_116 = arith.constant 0 : index
    %c0_117 = arith.constant 0 : index
    %c0_118 = arith.constant 0 : index
    %244 = vector.load %arg6[%c0_115, %c0_116, %c0_117, %c0_118] : memref<1x4x4x128xf32, #tpu.memory_space<vmem>>, vector<1x1x4x128xf32>
    %245 = vector.shape_cast %244 : vector<1x1x4x128xf32> to vector<1x4x128xf32>
    %246 = vector.shape_cast %243 : vector<1x4x128xf32> to vector<1x1x4x128xf32>
    tpu.vector_store %arg6[%c0_115, %c0_116, %c0_117, %c0_118], %246 {strides = array<i32>} : memref<1x4x4x128xf32, #tpu.memory_space<vmem>>, vector<1x1x4x128xf32>,
    %cst_119 = arith.constant 1.000000e+00 : f32
    %247 = vector.broadcast %cst_119 : f32 to vector<1x4x4x32xf32>
    %248 = arith.subf %247, %239 : vector<1x4x4x32xf32>
    %cst_120 = arith.constant 2.500000e-01 : f32
    %249 = vector.broadcast %cst_120 : f32 to vector<1x4x4x32xf32>
    %250 = arith.mulf %249, %248 : vector<1x4x4x32xf32>
    %251 = arith.mulf %235, %250 : vector<1x4x4x32xf32>
    %252 = vector.extract_strided_slice %231 {offsets = [0, 1, 0, 0, 0], sizes = [1, 1, 4, 4, 32], strides = [1, 1, 1, 1, 1]} : vector<1x4x4x4x32xf32> to vector<1x1x4x4x32xf32>
    %253 = vector.shape_cast %252 : vector<1x1x4x4x32xf32> to vector<1x4x4x32xf32>
    %254 = arith.addf %251, %253 : vector<1x4x4x32xf32>
    %cst_121 = arith.constant 5.000000e-01 : f32
    %255 = vector.broadcast %cst_121 : f32 to vector<1x4x4x32xf32>
    %256 = arith.cmpf ogt, %254, %255 : vector<1x4x4x32xf32>
    %257 = arith.extui %256 : vector<1x4x4x32xi1> to vector<1x4x4x32xi32>
    %258 = arith.sitofp %257 : vector<1x4x4x32xi32> to vector<1x4x4x32xf32>
    %259 = vector.extract_strided_slice %233 {offsets = [0, 1, 0, 0, 0], sizes = [1, 1, 4, 4, 32], strides = [1, 1, 1, 1, 1]} : vector<1x4x4x4x32xf32> to vector<1x1x4x4x32xf32>
    %260 = vector.shape_cast %259 : vector<1x1x4x4x32xf32> to vector<1x4x4x32xf32>
    %261 = arith.addf %258, %260 : vector<1x4x4x32xf32>
    %262 = vector.shape_cast %261 : vector<1x4x4x32xf32> to vector<1x4x128xf32>
    %c0_122 = arith.constant 0 : index
    %c1_123 = arith.constant 1 : index
    %c0_124 = arith.constant 0 : index
    %c0_125 = arith.constant 0 : index
    %263 = vector.load %arg6[%c0_122, %c1_123, %c0_124, %c0_125] : memref<1x4x4x128xf32, #tpu.memory_space<vmem>>, vector<1x1x4x128xf32>
    %264 = vector.shape_cast %263 : vector<1x1x4x128xf32> to vector<1x4x128xf32>
    %265 = vector.shape_cast %262 : vector<1x4x128xf32> to vector<1x1x4x128xf32>
    tpu.vector_store %arg6[%c0_122, %c1_123, %c0_124, %c0_125], %265 {strides = array<i32>} : memref<1x4x4x128xf32, #tpu.memory_space<vmem>>, vector<1x1x4x128xf32>,
    %cst_126 = arith.constant 1.000000e+00 : f32
    %266 = vector.broadcast %cst_126 : f32 to vector<1x4x4x32xf32>
    %267 = arith.subf %266, %258 : vector<1x4x4x32xf32>
    %cst_127 = arith.constant 2.500000e-01 : f32
    %268 = vector.broadcast %cst_127 : f32 to vector<1x4x4x32xf32>
    %269 = arith.mulf %268, %267 : vector<1x4x4x32xf32>
    %270 = arith.mulf %254, %269 : vector<1x4x4x32xf32>
    %271 = vector.extract_strided_slice %231 {offsets = [0, 2, 0, 0, 0], sizes = [1, 1, 4, 4, 32], strides = [1, 1, 1, 1, 1]} : vector<1x4x4x4x32xf32> to vector<1x1x4x4x32xf32>
    %272 = vector.shape_cast %271 : vector<1x1x4x4x32xf32> to vector<1x4x4x32xf32>
    %273 = arith.addf %270, %272 : vector<1x4x4x32xf32>
    %cst_128 = arith.constant 5.000000e-01 : f32
    %274 = vector.broadcast %cst_128 : f32 to vector<1x4x4x32xf32>
    %275 = arith.cmpf ogt, %273, %274 : vector<1x4x4x32xf32>
    %276 = arith.extui %275 : vector<1x4x4x32xi1> to vector<1x4x4x32xi32>
    %277 = arith.sitofp %276 : vector<1x4x4x32xi32> to vector<1x4x4x32xf32>
    %278 = vector.extract_strided_slice %233 {offsets = [0, 2, 0, 0, 0], sizes = [1, 1, 4, 4, 32], strides = [1, 1, 1, 1, 1]} : vector<1x4x4x4x32xf32> to vector<1x1x4x4x32xf32>
    %279 = vector.shape_cast %278 : vector<1x1x4x4x32xf32> to vector<1x4x4x32xf32>
    %280 = arith.addf %277, %279 : vector<1x4x4x32xf32>
    %281 = vector.shape_cast %280 : vector<1x4x4x32xf32> to vector<1x4x128xf32>
    %c0_129 = arith.constant 0 : index
    %c2_130 = arith.constant 2 : index
    %c0_131 = arith.constant 0 : index
    %c0_132 = arith.constant 0 : index
    %282 = vector.load %arg6[%c0_129, %c2_130, %c0_131, %c0_132] : memref<1x4x4x128xf32, #tpu.memory_space<vmem>>, vector<1x1x4x128xf32>
    %283 = vector.shape_cast %282 : vector<1x1x4x128xf32> to vector<1x4x128xf32>
    %284 = vector.shape_cast %281 : vector<1x4x128xf32> to vector<1x1x4x128xf32>
    tpu.vector_store %arg6[%c0_129, %c2_130, %c0_131, %c0_132], %284 {strides = array<i32>} : memref<1x4x4x128xf32, #tpu.memory_space<vmem>>, vector<1x1x4x128xf32>,
    %cst_133 = arith.constant 1.000000e+00 : f32
    %285 = vector.broadcast %cst_133 : f32 to vector<1x4x4x32xf32>
    %286 = arith.subf %285, %277 : vector<1x4x4x32xf32>
    %cst_134 = arith.constant 2.500000e-01 : f32
    %287 = vector.broadcast %cst_134 : f32 to vector<1x4x4x32xf32>
    %288 = arith.mulf %287, %286 : vector<1x4x4x32xf32>
    %289 = arith.mulf %273, %288 : vector<1x4x4x32xf32>
    %290 = vector.extract_strided_slice %231 {offsets = [0, 3, 0, 0, 0], sizes = [1, 1, 4, 4, 32], strides = [1, 1, 1, 1, 1]} : vector<1x4x4x4x32xf32> to vector<1x1x4x4x32xf32>
    %291 = vector.shape_cast %290 : vector<1x1x4x4x32xf32> to vector<1x4x4x32xf32>
    %292 = arith.addf %289, %291 : vector<1x4x4x32xf32>
    %cst_135 = arith.constant 5.000000e-01 : f32
    %293 = vector.broadcast %cst_135 : f32 to vector<1x4x4x32xf32>
    %294 = arith.cmpf ogt, %292, %293 : vector<1x4x4x32xf32>
    %295 = arith.extui %294 : vector<1x4x4x32xi1> to vector<1x4x4x32xi32>
    %296 = arith.sitofp %295 : vector<1x4x4x32xi32> to vector<1x4x4x32xf32>
    %297 = vector.extract_strided_slice %233 {offsets = [0, 3, 0, 0, 0], sizes = [1, 1, 4, 4, 32], strides = [1, 1, 1, 1, 1]} : vector<1x4x4x4x32xf32> to vector<1x1x4x4x32xf32>
    %298 = vector.shape_cast %297 : vector<1x1x4x4x32xf32> to vector<1x4x4x32xf32>
    %299 = arith.addf %296, %298 : vector<1x4x4x32xf32>
    %300 = vector.shape_cast %299 : vector<1x4x4x32xf32> to vector<1x4x128xf32>
    %c0_136 = arith.constant 0 : index
    %c3_137 = arith.constant 3 : index
    %c0_138 = arith.constant 0 : index
    %c0_139 = arith.constant 0 : index
    %301 = vector.load %arg6[%c0_136, %c3_137, %c0_138, %c0_139] : memref<1x4x4x128xf32, #tpu.memory_space<vmem>>, vector<1x1x4x128xf32>
    %302 = vector.shape_cast %301 : vector<1x1x4x128xf32> to vector<1x4x128xf32>
    %303 = vector.shape_cast %300 : vector<1x4x128xf32> to vector<1x1x4x128xf32>
    tpu.vector_store %arg6[%c0_136, %c3_137, %c0_138, %c0_139], %303 {strides = array<i32>} : memref<1x4x4x128xf32, #tpu.memory_space<vmem>>, vector<1x1x4x128xf32>,
    return
  }
  func.func @transform_0(%arg0: i32) -> (i32, i32, i32, i32) {
    %c0_i32 = arith.constant 0 : i32
    %c0_i32_0 = arith.constant 0 : i32
    %c0_i32_1 = arith.constant 0 : i32
    %c0_i32_2 = arith.constant 0 : i32
    return %arg0, %c0_i32, %c0_i32_0, %c0_i32_1 : i32, i32, i32, i32
  }
  func.func @transform_1(%arg0: i32) -> (i32, i32) {
    %c0_i32 = arith.constant 0 : i32
    %c0_i32_0 = arith.constant 0 : i32
    %c0_i32_1 = arith.constant 0 : i32
    return %c0_i32, %c0_i32_0 : i32, i32
  }
  func.func @transform_2(%arg0: i32) -> (i32, i32) {
    %c0_i32 = arith.constant 0 : i32
    %c0_i32_0 = arith.constant 0 : i32
    %c0_i32_1 = arith.constant 0 : i32
    return %c0_i32, %c0_i32_0 : i32, i32
  }
  func.func @transform_3(%arg0: i32) -> (i32, i32, i32) {
    %c0_i32 = arith.constant 0 : i32
    %c0_i32_0 = arith.constant 0 : i32
    %c0_i32_1 = arith.constant 0 : i32
    %c0_i32_2 = arith.constant 0 : i32
    return %c0_i32, %c0_i32_0, %c0_i32_1 : i32, i32, i32
  }
  func.func @transform_4(%arg0: i32) -> (i32, i32) {
    %c0_i32 = arith.constant 0 : i32
    %c0_i32_0 = arith.constant 0 : i32
    %c0_i32_1 = arith.constant 0 : i32
    return %c0_i32, %c0_i32_0 : i32, i32
  }
  func.func @transform_5(%arg0: i32) -> (i32, i32, i32, i32) {
    %c0_i32 = arith.constant 0 : i32
    %c0_i32_0 = arith.constant 0 : i32
    %c0_i32_1 = arith.constant 0 : i32
    %c0_i32_2 = arith.constant 0 : i32
    return %arg0, %c0_i32, %c0_i32_0, %c0_i32_1 : i32, i32, i32, i32
  }
}

</mosaic_0001>

<llo_original>
// kernel: tpu_custom_call.1
$region0: #{tpu_custom_call.1}
  #allocation0 [shape = 'u32[]', space=smem, size = 0x4, offset = 0x4, fixed_abs, tag = 'smem constant byte address 0x4 - core index']
  #allocation1 [shape = 'u32[144,128]{1,0:T(1,128)}', space=vmem, size = 0x12000, scoped, tag = 'internal scratch']
  #allocation2 [shape = 'bf16[1,4,6,6,32]{4,3,2,1,0:T(8,128)(2,1)}', space=vmem, size = 0xc000, scoped, tag = 'scratch operand']
  %s0 = inlined_call_operand.vmem [shape: bf16[2,4,256,18], index: 0, kind: input, shape index: {}]
  %s1 = inlined_call_operand.vmem [shape: bf16[18,32], index: 1, kind: input, shape index: {}]
  %s2 = inlined_call_operand.vmem [shape: f32[1,32], index: 2, kind: input, shape index: {}]
  %s3 = inlined_call_operand.vmem [shape: bf16[9,32,32], index: 3, kind: input, shape index: {}]
  %s4 = inlined_call_operand.vmem [shape: f32[1,32], index: 4, kind: input, shape index: {}]
  %s5 = inlined_call_operand.hbm [shape: f32[2,4,4,128], index: 5, kind: output, shape index: {}]
  %s6 = sld [smem:[#allocation0]]
  $region53: #{tpu_custom_call.1} parent=0
    _
  %s8 = ssub.s32 1, %s6
  %s9 = scalar_select 0, %s8, %s6
  $region1: #{tpu_custom_call.1} parent=0
    #allocation3 [shape = 'u8[16384]{0}', space=vmem, size = 0x4000, scoped, tag = 'output window, operand 0']
    #allocation4 [shape = 's32[2]{0}', space=sflag, size = 0x8, scoped, tag = 'scoped memory for tpu_custom_call.1']
    %10 = vsyncpa [#allocation4], 0
    %s11 = scalar_lea.sflag [#allocation4], 1
    %12 = vsyncpa %s11, 0
    loop: start=0, step=1, limit=4
    $region2: #{tpu_custom_call.1} parent=1 // loop_pre_header
      _
    $region3: #{tpu_custom_call.1} parent=1 // loop_header
      %s14 = sphi 0, %s18
      %p15 = scmp.ge.s32.totalorder %s14, 4
      %s24 = sphi 0, %s26
      %s27 = sphi 0, %s24
      %s28 = sphi 0, %s27
      %s44 = sphi 0, %s28
      %s48 = sphi 0, %s48
      %s50 = sphi 0, %s48
      %s51 = sphi 0, %s50
      %s65 = sphi 0, %s51
      %s69 = sphi 0, %s69
      %s71 = sphi 0, %s69
      %s72 = sphi 0, %s71
      %s86 = sphi 0, %s72
      %s90 = sphi 0, %s90
      %s92 = sphi 0, %s90
      %s93 = sphi 0, %s92
      %s107 = sphi 0, %s93
      %s111 = sphi 0, %s111
      %s113 = sphi 0, %s111
      %s114 = sphi 0, %s113
      %s128 = sphi 0, %s114
      %s134 = sphi 0, %s136
      %s137 = sphi 0, %s134
      %s138 = sphi 0, %s137
      %s154 = sphi 0, %s138
    $region4: #{tpu_custom_call.1} parent=1 // loop_header_branch
      %17 = sbr.rel (%p15) target = $region8
    $region5: #{tpu_custom_call.1} parent=1 // loop_body
      %s19 = ssub.s32 %s14, 1
      %s20 = ssub.s32 %s14, 2
      %s21 = sadd.s32 %s14, 1
      %s22 = ssub.s32 %s14, %s21
      %p23 = scmp.eq.s32.totalorder %s22, 0
      %s25 = sadd.s32 %s24, 1
      %s26 = scalar_select %p23, %s24, %s25
      %p29 = pneg %p23
      %p30 = scmp.eq.s32.totalorder %s14, 1
      %p31 = por %p29, %p30
      %p32 = scmp.ne.s32.totalorder %s24, %s27
      %p33 = scmp.eq.s32.totalorder %s14, 0
      %p34 = por %p32, %p33
      %p35 = scmp.ne.s32.totalorder %s24, %s27
      %p36 = scmp.eq.s32.totalorder %s19, 1
      %p37 = por %p35, %p36
      %p38 = scmp.ne.s32.totalorder %s27, %s28
      %p39 = scmp.eq.s32.totalorder %s19, 0
      %p40 = por %p38, %p39
      %p41 = scmp.ne.s32.totalorder %s27, %s28
      %p42 = scmp.eq.s32.totalorder %s20, 1
      %p43 = por %p41, %p42
      %p45 = scmp.ne.s32.totalorder %s28, %s44
      %p46 = scmp.eq.s32.totalorder %s20, 0
      %p47 = por %p45, %p46
      %s49 = sadd.s32 %s48, 1
      %p52 = scmp.eq.s32.totalorder %s14, 1
      %p53 = scmp.ne.s32.totalorder %s48, %s50
      %p54 = scmp.eq.s32.totalorder %s14, 0
      %p55 = por %p53, %p54
      %p56 = scmp.ne.s32.totalorder %s48, %s50
      %p57 = scmp.eq.s32.totalorder %s19, 1
      %p58 = por %p56, %p57
      %p59 = scmp.ne.s32.totalorder %s50, %s51
      %p60 = scmp.eq.s32.totalorder %s19, 0
      %p61 = por %p59, %p60
      %p62 = scmp.ne.s32.totalorder %s50, %s51
      %p63 = scmp.eq.s32.totalorder %s20, 1
      %p64 = por %p62, %p63
      %p66 = scmp.ne.s32.totalorder %s51, %s65
      %p67 = scmp.eq.s32.totalorder %s20, 0
      %p68 = por %p66, %p67
      %s70 = sadd.s32 %s69, 1
      %p73 = scmp.eq.s32.totalorder %s14, 1
      %p74 = scmp.ne.s32.totalorder %s69, %s71
      %p75 = scmp.eq.s32.totalorder %s14, 0
      %p76 = por %p74, %p75
      %p77 = scmp.ne.s32.totalorder %s69, %s71
      %p78 = scmp.eq.s32.totalorder %s19, 1
      %p79 = por %p77, %p78
      %p80 = scmp.ne.s32.totalorder %s71, %s72
      %p81 = scmp.eq.s32.totalorder %s19, 0
      %p82 = por %p80, %p81
      %p83 = scmp.ne.s32.totalorder %s71, %s72
      %p84 = scmp.eq.s32.totalorder %s20, 1
      %p85 = por %p83, %p84
      %p87 = scmp.ne.s32.totalorder %s72, %s86
      %p88 = scmp.eq.s32.totalorder %s20, 0
      %p89 = por %p87, %p88
      %s91 = sadd.s32 %s90, 1
      %p94 = scmp.eq.s32.totalorder %s14, 1
      %p95 = scmp.ne.s32.totalorder %s90, %s92
      %p96 = scmp.eq.s32.totalorder %s14, 0
      %p97 = por %p95, %p96
      %p98 = scmp.ne.s32.totalorder %s90, %s92
      %p99 = scmp.eq.s32.totalorder %s19, 1
      %p100 = por %p98, %p99
      %p101 = scmp.ne.s32.totalorder %s92, %s93
      %p102 = scmp.eq.s32.totalorder %s19, 0
      %p103 = por %p101, %p102
      %p104 = scmp.ne.s32.totalorder %s92, %s93
      %p105 = scmp.eq.s32.totalorder %s20, 1
      %p106 = por %p104, %p105
      %p108 = scmp.ne.s32.totalorder %s93, %s107
      %p109 = scmp.eq.s32.totalorder %s20, 0
      %p110 = por %p108, %p109
      %s112 = sadd.s32 %s111, 1
      %p115 = scmp.eq.s32.totalorder %s14, 1
      %p116 = scmp.ne.s32.totalorder %s111, %s113
      %p117 = scmp.eq.s32.totalorder %s14, 0
      %p118 = por %p116, %p117
      %p119 = scmp.ne.s32.totalorder %s111, %s113
      %p120 = scmp.eq.s32.totalorder %s19, 1
      %p121 = por %p119, %p120
      %p122 = scmp.ne.s32.totalorder %s113, %s114
      %p123 = scmp.eq.s32.totalorder %s19, 0
      %p124 = por %p122, %p123
      %p125 = scmp.ne.s32.totalorder %s113, %s114
      %p126 = scmp.eq.s32.totalorder %s20, 1
      %p127 = por %p125, %p126
      %p129 = scmp.ne.s32.totalorder %s114, %s128
      %p130 = scmp.eq.s32.totalorder %s20, 0
      %p131 = por %p129, %p130
      %s132 = ssub.s32 %s14, %s21
      %p133 = scmp.eq.s32.totalorder %s132, 0
      %s135 = sadd.s32 %s134, 1
      %s136 = scalar_select %p133, %s134, %s135
      %p139 = pneg %p133
      %p140 = scmp.eq.s32.totalorder %s14, 1
      %p141 = por %p139, %p140
      %p142 = scmp.ne.s32.totalorder %s134, %s137
      %p143 = scmp.eq.s32.totalorder %s14, 0
      %p144 = por %p142, %p143
      %p145 = scmp.ne.s32.totalorder %s134, %s137
      %p146 = scmp.eq.s32.totalorder %s19, 1
      %p147 = por %p145, %p146
      %p148 = scmp.ne.s32.totalorder %s137, %s138
      %p149 = scmp.eq.s32.totalorder %s19, 0
      %p150 = por %p148, %p149
      %p151 = scmp.ne.s32.totalorder %s137, %s138
      %p152 = scmp.eq.s32.totalorder %s20, 1
      %p153 = por %p151, %p152
      %p155 = scmp.ne.s32.totalorder %s138, %s154
      %p156 = scmp.eq.s32.totalorder %s20, 0
      %p157 = por %p155, %p156
      %p158 = scmp.le.s32.totalorder 1, %s14
      %p159 = scmp.lt.s32.totalorder %s14, 3
      %p160 = pnand %p158, %p159
      %p161 = pneg %p160
      // Predicated region
      $region9: #{tpu_custom_call.1} parent=5 // pred_check
        _
      $region10: #{tpu_custom_call.1} parent=5 // pred_check_branch
        %163 = sbr.rel (%p160) target = $region12
      $region11: #{tpu_custom_call.1} parent=5 // pred_region
        %s164 = ssub.s32 %s14, 1
        // Predicated region
        $region13: #{tpu_custom_call.1} parent=11 // pred_check
          %p165 = pneg %p61
        $region14: #{tpu_custom_call.1} parent=11 // pred_check_branch
          %167 = sbr.rel (%p165) target = $region16
        $region15: #{tpu_custom_call.1} parent=11 // pred_region
          _
        $region16: #{tpu_custom_call.1} parent=11 // pred_fallthru
          _
        // Predicated region
        $region17: #{tpu_custom_call.1} parent=11 // pred_check
          %p168 = pneg %p82
        $region18: #{tpu_custom_call.1} parent=11 // pred_check_branch
          %170 = sbr.rel (%p168) target = $region20
        $region19: #{tpu_custom_call.1} parent=11 // pred_region
          _
        $region20: #{tpu_custom_call.1} parent=11 // pred_fallthru
          _
        // Predicated region
        $region21: #{tpu_custom_call.1} parent=11 // pred_check
          %p171 = pneg %p103
        $region22: #{tpu_custom_call.1} parent=11 // pred_check_branch
          %173 = sbr.rel (%p171) target = $region24
        $region23: #{tpu_custom_call.1} parent=11 // pred_region
          _
        $region24: #{tpu_custom_call.1} parent=11 // pred_fallthru
          _
        // Predicated region
        $region25: #{tpu_custom_call.1} parent=11 // pred_check
          %p174 = pneg %p124
        $region26: #{tpu_custom_call.1} parent=11 // pred_check_branch
          %176 = sbr.rel (%p174) target = $region28
        $region27: #{tpu_custom_call.1} parent=11 // pred_region
          _
        $region28: #{tpu_custom_call.1} parent=11 // pred_fallthru
          _
      $region12: #{tpu_custom_call.1} parent=5 // pred_fallthru
        _
      %p177 = scmp.lt.s32.totalorder %s14, 2
      // Predicated region
      $region29: #{tpu_custom_call.1} parent=5 // pred_check
        %p178 = pneg %p177
      $region30: #{tpu_custom_call.1} parent=5 // pred_check_branch
        %180 = sbr.rel (%p178) target = $region32
      $region31: #{tpu_custom_call.1} parent=5 // pred_region
        // Predicated region
        $region33: #{tpu_custom_call.1} parent=31 // pred_check
          %p181 = pneg %p34
        $region34: #{tpu_custom_call.1} parent=31 // pred_check_branch
          %183 = sbr.rel (%p181) target = $region36
        $region35: #{tpu_custom_call.1} parent=31 // pred_region
          %p184 = scmp.lt.s32.totalorder %s14, 1
          %s185 = scalar_select %p184, %s14, 1
          %s186 = smul.addr %s185, 128
          %s187 = smul.addr %s186, 4
          %s188 = scalar_lea.vmem %s0, %s187
        $region36: #{tpu_custom_call.1} parent=31 // pred_fallthru
          _
      $region32: #{tpu_custom_call.1} parent=5 // pred_fallthru
        _
      %p189 = scmp.le.s32.totalorder 1, %s14
      %p190 = scmp.lt.s32.totalorder %s14, 3
      %p191 = pnand %p189, %p190
      %p192 = pneg %p191
      // Predicated region
      $region37: #{tpu_custom_call.1} parent=5 // pred_check
        _
      $region38: #{tpu_custom_call.1} parent=5 // pred_check_branch
        %194 = sbr.rel (%p191) target = $region40
      $region39: #{tpu_custom_call.1} parent=5 // pred_region
        %s195 = ssub.s32 %s14, 1
        %p196 = scmp.lt.s32.totalorder %s19, 1
        %s197 = scalar_select %p196, %s19, 1
        %s198 = smul.addr %s197, 128
        %s199 = smul.addr %s198, 4
        %s200 = scalar_lea.vmem %s0, %s199
        %p201 = pneg %p40
        %p202 = pneg %p37
        %p203 = pneg %p61
        %p204 = pneg %p58
        %p205 = pneg %p82
        %p206 = pneg %p79
        %p207 = pneg %p103
        %p208 = pneg %p100
        %p209 = pneg %p124
        %p210 = pneg %p121
        %p211 = pneg %p150
        %p212 = pneg %p147
        %s213 = sand.u32 %s137, 1
        %s214 = scalar_lea.sflag [#allocation4], %s213
        %s215 = sand.u32 %s137, 1
        %s216 = smul.addr %s215, 16
        %s217 = scalar_lea.vmem [#allocation3], %s216
        %p218 = scmp.lt.s32.totalorder %s19, 1
        %s219 = scalar_select %p218, %s19, 1
        %s220 = smul.addr %s219, 128
        %s221 = smul.addr %s220, 4
        %s222 = scalar_lea.vmem %s0, %s221
        %vm224 = vcmask 256000
        %225 = vst.msk [vmem:[#allocation2] sm:$0x7] %vm224, 0
        %226 = vst.msk [vmem:[#allocation2 + $0x4] sm:$0x7] %vm224, 0
        %227 = vst.msk [vmem:[#allocation2 + $0x8] sm:$0x7] %vm224, 0
        %228 = vst.msk [vmem:[#allocation2 + $0xc] sm:$0x7] %vm224, 0
        %229 = vst.msk [vmem:[#allocation2 + $0x10] sm:$0x7] %vm224, 0
        %230 = vst.msk [vmem:[#allocation2 + $0x14] sm:$0x7] %vm224, 0
        %231 = vst.msk [vmem:[#allocation2 + $0x18] sm:$0x7] %vm224, 0
        %232 = vst.msk [vmem:[#allocation2 + $0x1c] sm:$0x7] %vm224, 0
        %233 = vst.msk [vmem:[#allocation2 + $0x20] sm:$0x7] %vm224, 0
        %234 = vst.msk [vmem:[#allocation2 + $0x24] sm:$0x7] %vm224, 0
        %235 = vst.msk [vmem:[#allocation2 + $0x28] sm:$0x7] %vm224, 0
        %236 = vst.msk [vmem:[#allocation2 + $0x2c] sm:$0x7] %vm224, 0
        %237 = vst.msk [vmem:[#allocation2 + $0x30] sm:$0x7] %vm224, 0
        %238 = vst.msk [vmem:[#allocation2 + $0x34] sm:$0x7] %vm224, 0
        %239 = vst.msk [vmem:[#allocation2 + $0x38] sm:$0x7] %vm224, 0
        %240 = vst.msk [vmem:[#allocation2 + $0x3c] sm:$0x7] %vm224, 0
        %241 = vst.msk [vmem:[#allocation2 + $0x40] sm:$0x7] %vm224, 0
        %242 = vst.msk [vmem:[#allocation2 + $0x44] sm:$0x7] %vm224, 0
        %243 = vst.msk [vmem:[#allocation2 + $0x48] sm:$0x7] %vm224, 0
        %244 = vst.msk [vmem:[#allocation2 + $0x4c] sm:$0x7] %vm224, 0
        %245 = vst.msk [vmem:[#allocation2 + $0x50] sm:$0x7] %vm224, 0
        %246 = vst.msk [vmem:[#allocation2 + $0x54] sm:$0x7] %vm224, 0
        %247 = vst.msk [vmem:[#allocation2 + $0x58] sm:$0x7] %vm224, 0
        %248 = vst.msk [vmem:[#allocation2 + $0x5c] sm:$0x7] %vm224, 0
        %v249 = vld [vmem:[%s222] sm:$0xf]
        %v250 = vld [vmem:[%s222 + $0x4] sm:$0xf]
        %v251 = vld [vmem:[%s222 + $0x8] sm:$0xf]
        %v252 = vld [vmem:[%s222 + $0xc] sm:$0xf]
        %v253 = vld [vmem:[%s222 + $0x10] sm:$0xf]
        %v254 = vld [vmem:[%s222 + $0x14] sm:$0xf]
        %v255 = vld [vmem:[%s222 + $0x18] sm:$0xf]
        %v256 = vld [vmem:[%s222 + $0x1c] sm:$0xf]
        %v257 = vld [vmem:[%s222 + $0x20] sm:$0xf]
        %v258 = vld [vmem:[%s222 + $0x24] sm:$0xf]
        %v259 = vld [vmem:[%s222 + $0x28] sm:$0xf]
        %v260 = vld [vmem:[%s222 + $0x2c] sm:$0xf]
        %v261 = vld [vmem:[%s222 + $0x30] sm:$0xf]
        %v262 = vld [vmem:[%s222 + $0x34] sm:$0xf]
        %v263 = vld [vmem:[%s222 + $0x38] sm:$0xf]
        %v264 = vld [vmem:[%s222 + $0x3c] sm:$0xf]
        %v265 = vld [vmem:[%s222 + $0x40] sm:$0xf]
        %v266 = vld [vmem:[%s222 + $0x44] sm:$0xf]
        %v267 = vld [vmem:[%s222 + $0x48] sm:$0xf]
        %v268 = vld [vmem:[%s222 + $0x4c] sm:$0xf]
        %v269 = vld [vmem:[%s222 + $0x50] sm:$0xf]
        %v270 = vld [vmem:[%s222 + $0x54] sm:$0xf]
        %v271 = vld [vmem:[%s222 + $0x58] sm:$0xf]
        %v272 = vld [vmem:[%s222 + $0x5c] sm:$0xf]
        %v273 = vld [vmem:[%s222 + $0x60] sm:$0xf]
        %v274 = vld [vmem:[%s222 + $0x64] sm:$0xf]
        %v275 = vld [vmem:[%s222 + $0x68] sm:$0xf]
        %v276 = vld [vmem:[%s222 + $0x6c] sm:$0xf]
        %v277 = vld [vmem:[%s222 + $0x70] sm:$0xf]
        %v278 = vld [vmem:[%s222 + $0x74] sm:$0xf]
        %v279 = vld [vmem:[%s222 + $0x78] sm:$0xf]
        %v280 = vld [vmem:[%s222 + $0x7c] sm:$0xf]
        %v281 = vld [vmem:[%s1] sm:$0xf]
        %v282 = vld [vmem:[%s1 + $0x4] sm:$0xf]
        %v283 = vld [vmem:[%s1 + $0x8] sm:$0x1]
        %v284 = vld [vmem:[%s2] sm:$0x1]
        %v286 = vlaneseq
        %v287 = vshrl.u32 %v286, 7
        %v288 = vsub.s32 0, %v287
        %v289 = vrot.slane %v284, %v288
        %v323 = vunpack.c.l.b16 %v249
        %v324 = vunpack.c.l.b16 %v250
        %v325 = vunpack.c.l.b16 %v251
        %v326 = vunpack.c.l.b16 %v252
        %v327 = vunpack.c.l.b16 %v253
        %v328 = vunpack.c.l.b16 %v254
        %v329 = vunpack.c.l.b16 %v255
        %v330 = vunpack.c.l.b16 %v256
        %v331 = vunpack.c.l.b16 %v257
        %v332 = vunpack.c.l.b16 %v258
        %v333 = vunpack.c.l.b16 %v259
        %v334 = vunpack.c.l.b16 %v260
        %v335 = vunpack.c.l.b16 %v261
        %v336 = vunpack.c.l.b16 %v262
        %v337 = vunpack.c.l.b16 %v263
        %v338 = vunpack.c.l.b16 %v264
        %v339 = vunpack.c.l.b16 %v265
        %v340 = vunpack.c.l.b16 %v266
        %v341 = vunpack.c.l.b16 %v267
        %v342 = vunpack.c.l.b16 %v268
        %v343 = vunpack.c.l.b16 %v269
        %v344 = vunpack.c.l.b16 %v270
        %v345 = vunpack.c.l.b16 %v271
        %v346 = vunpack.c.l.b16 %v272
        %v347 = vunpack.c.l.b16 %v273
        %v348 = vunpack.c.l.b16 %v274
        %v349 = vunpack.c.l.b16 %v275
        %v350 = vunpack.c.l.b16 %v276
        %v351 = vunpack.c.l.b16 %v277
        %v352 = vunpack.c.l.b16 %v278
        %v353 = vunpack.c.l.b16 %v279
        %v354 = vunpack.c.l.b16 %v280
        %v355 = vpack.c.b16 %v324, %v323
        %v356 = vpack.c.b16 %v326, %v325
        %v357 = vpack.c.b16 %v328, %v327
        %v358 = vpack.c.b16 %v330, %v329
        %v359 = vpack.c.b16 %v332, %v331
        %v360 = vpack.c.b16 %v334, %v333
        %v361 = vpack.c.b16 %v336, %v335
        %v362 = vpack.c.b16 %v338, %v337
        %v363 = vpack.c.b16 %v340, %v339
        %v364 = vpack.c.b16 %v342, %v341
        %v365 = vpack.c.b16 %v344, %v343
        %v366 = vpack.c.b16 %v346, %v345
        %v367 = vpack.c.b16 %v348, %v347
        %v368 = vpack.c.b16 %v350, %v349
        %v369 = vpack.c.b16 %v352, %v351
        %v370 = vpack.c.b16 %v354, %v353
        %v374 = vunpack.c.l.b16 %v281
        %v375 = vunpack.c.l.b16 %v282
        %v376 = vunpack.c.l.b16 %v283
        %v377 = vpack.c.b16 %v375, %v374
        %v378 = vpack.c.b16 %v376, %v376
        %vm380 = vcmask 146432
        %v382 = vsel %vm380, %v355, 0
        %v385 = vsel %vm380, %v356, 0
        %v388 = vsel %vm380, %v357, 0
        %v391 = vsel %vm380, %v358, 0
        %v394 = vsel %vm380, %v359, 0
        %v397 = vsel %vm380, %v360, 0
        %v400 = vsel %vm380, %v361, 0
        %v403 = vsel %vm380, %v362, 0
        %v406 = vsel %vm380, %v363, 0
        %v409 = vsel %vm380, %v364, 0
        %v412 = vsel %vm380, %v365, 0
        %v415 = vsel %vm380, %v366, 0
        %v418 = vsel %vm380, %v367, 0
        %v421 = vsel %vm380, %v368, 0
        %v424 = vsel %vm380, %v369, 0
        %v427 = vsel %vm380, %v370, 0
        %vm429 = vcmask 1040384
        %v431 = vsel %vm429, %v378, 0
        %433 = vmatprep.subr.bf16.mxu0 0
        %434 = vmatpush1.bf16.msra.mxu0 %v377
        %435 = vmatprep.subr.bf16.mxu0 0
        %436 = vmatpush1.bf16.msra.mxu0 %v431
        %437 = vmatprep.subr.bf16.mxu0 0
        %438 = vmatpush1.bf16.msra.mxu0 0
        %439 = vmatprep.subr.bf16.mxu0 0
        %440 = vmatpush1.bf16.msra.mxu0 0
        %441 = vmatprep.subr.bf16.mxu0 0
        %442 = vmatpush1.bf16.msra.mxu0 0
        %443 = vmatprep.subr.bf16.mxu0 0
        %444 = vmatpush1.bf16.msra.mxu0 0
        %445 = vmatprep.subr.bf16.mxu0 0
        %446 = vmatpush1.bf16.msra.mxu0 0
        %447 = vmatprep.subr.bf16.mxu0 0
        %448 = vmatpush1.bf16.msra.mxu0 0
        %449 = vmatprep.subr.bf16.mxu0 0
        %450 = vmatpush1.bf16.msra.mxu0 0
        %451 = vmatprep.subr.bf16.mxu0 0
        %452 = vmatpush1.bf16.msra.mxu0 0
        %453 = vmatprep.subr.bf16.mxu0 0
        %454 = vmatpush1.bf16.msra.mxu0 0
        %455 = vmatprep.subr.bf16.mxu0 0
        %456 = vmatpush1.bf16.msra.mxu0 0
        %457 = vmatprep.subr.bf16.mxu0 0
        %458 = vmatpush1.bf16.msra.mxu0 0
        %459 = vmatprep.subr.bf16.mxu0 0
        %460 = vmatpush1.bf16.msra.mxu0 0
        %461 = vmatprep.subr.bf16.mxu0 0
        %462 = vmatpush1.bf16.msra.mxu0 0
        %463 = vmatprep.subr.bf16.mxu0 0
        %464 = vmatpush1.bf16.msra.mxu0 0
        %465 = vmatprep.mubr.bf16.mxu0 0
        %466 = vmatmul.mubr.bf16.gmra.mrb[0].mxu0 %v382
        %v467 = vpop.f32.mrb[0].mxu0
        %v468 = vadd.f32 %v289, %v467
        %v469 = vpop.f32.mrb[0].mxu0
        %v470 = vpop.f32.mrb[0].mxu0
        %v471 = vadd.f32 %v289, %v470
        %v472 = vpop.f32.mrb[0].mxu0
        %473 = vmatprep.mubr.bf16.mxu0 0
        %474 = vmatmul.mubr.bf16.gmra.mrb[0].mxu0 %v385
        %v475 = vpop.f32.mrb[0].mxu0
        %v476 = vadd.f32 %v289, %v475
        %v477 = vpop.f32.mrb[0].mxu0
        %v478 = vpop.f32.mrb[0].mxu0
        %v479 = vadd.f32 %v289, %v478
        %v480 = vpop.f32.mrb[0].mxu0
        %481 = vmatprep.mubr.bf16.mxu0 0
        %482 = vmatmul.mubr.bf16.gmra.mrb[0].mxu0 %v388
        %v483 = vpop.f32.mrb[0].mxu0
        %v484 = vpop.f32.mrb[0].mxu0
        %v485 = vpop.f32.mrb[0].mxu0
        %v486 = vpop.f32.mrb[0].mxu0
        %487 = vmatprep.mubr.bf16.mxu0 0
        %488 = vmatmul.mubr.bf16.gmra.mrb[0].mxu0 %v391
        %v489 = vpop.f32.mrb[0].mxu0
        %v490 = vadd.f32 %v289, %v489
        %v491 = vpop.f32.mrb[0].mxu0
        %v492 = vpop.f32.mrb[0].mxu0
        %v493 = vadd.f32 %v289, %v492
        %v494 = vpop.f32.mrb[0].mxu0
        %495 = vmatprep.mubr.bf16.mxu0 0
        %496 = vmatmul.mubr.bf16.gmra.mrb[0].mxu0 %v394
        %v497 = vpop.f32.mrb[0].mxu0
        %v498 = vadd.f32 %v289, %v497
        %v499 = vpop.f32.mrb[0].mxu0
        %v500 = vpop.f32.mrb[0].mxu0
        %v501 = vadd.f32 %v289, %v500
        %v502 = vpop.f32.mrb[0].mxu0
        %503 = vmatprep.mubr.bf16.mxu0 0
        %504 = vmatmul.mubr.bf16.gmra.mrb[0].mxu0 %v397
        %v505 = vpop.f32.mrb[0].mxu0
        %v506 = vadd.f32 %v289, %v505
        %v507 = vpop.f32.mrb[0].mxu0
        %v508 = vpop.f32.mrb[0].mxu0
        %v509 = vadd.f32 %v289, %v508
        %v510 = vpop.f32.mrb[0].mxu0
        %511 = vmatprep.mubr.bf16.mxu0 0
        %512 = vmatmul.mubr.bf16.gmra.mrb[0].mxu0 %v400
        %v513 = vpop.f32.mrb[0].mxu0
        %v514 = vpop.f32.mrb[0].mxu0
        %v515 = vpop.f32.mrb[0].mxu0
        %v516 = vpop.f32.mrb[0].mxu0
        %517 = vmatprep.mubr.bf16.mxu0 0
        %518 = vmatmul.mubr.bf16.gmra.mrb[0].mxu0 %v403
        %v519 = vpop.f32.mrb[0].mxu0
        %v520 = vadd.f32 %v289, %v519
        %v521 = vpop.f32.mrb[0].mxu0
        %v522 = vpop.f32.mrb[0].mxu0
        %v523 = vadd.f32 %v289, %v522
        %v524 = vpop.f32.mrb[0].mxu0
        %525 = vmatprep.mubr.bf16.mxu0 0
        %526 = vmatmul.mubr.bf16.gmra.mrb[0].mxu0 %v406
        %v527 = vpop.f32.mrb[0].mxu0
        %v528 = vadd.f32 %v289, %v527
        %v529 = vpop.f32.mrb[0].mxu0
        %v530 = vpop.f32.mrb[0].mxu0
        %v531 = vadd.f32 %v289, %v530
        %v532 = vpop.f32.mrb[0].mxu0
        %533 = vmatprep.mubr.bf16.mxu0 0
        %534 = vmatmul.mubr.bf16.gmra.mrb[0].mxu0 %v409
        %v535 = vpop.f32.mrb[0].mxu0
        %v536 = vadd.f32 %v289, %v535
        %v537 = vpop.f32.mrb[0].mxu0
        %v538 = vpop.f32.mrb[0].mxu0
        %v539 = vadd.f32 %v289, %v538
        %v540 = vpop.f32.mrb[0].mxu0
        %541 = vmatprep.mubr.bf16.mxu0 0
        %542 = vmatmul.mubr.bf16.gmra.mrb[0].mxu0 %v412
        %v543 = vpop.f32.mrb[0].mxu0
        %v544 = vpop.f32.mrb[0].mxu0
        %v545 = vpop.f32.mrb[0].mxu0
        %v546 = vpop.f32.mrb[0].mxu0
        %547 = vmatprep.mubr.bf16.mxu0 0
        %548 = vmatmul.mubr.bf16.gmra.mrb[0].mxu0 %v415
        %v549 = vpop.f32.mrb[0].mxu0
        %v550 = vadd.f32 %v289, %v549
        %v551 = vpop.f32.mrb[0].mxu0
        %v552 = vpop.f32.mrb[0].mxu0
        %v553 = vadd.f32 %v289, %v552
        %v554 = vpop.f32.mrb[0].mxu0
        %555 = vmatprep.mubr.bf16.mxu0 0
        %556 = vmatmul.mubr.bf16.gmra.mrb[0].mxu0 %v418
        %v557 = vpop.f32.mrb[0].mxu0
        %v558 = vadd.f32 %v289, %v557
        %v559 = vpop.f32.mrb[0].mxu0
        %v560 = vpop.f32.mrb[0].mxu0
        %v561 = vadd.f32 %v289, %v560
        %v562 = vpop.f32.mrb[0].mxu0
        %563 = vmatprep.mubr.bf16.mxu0 0
        %564 = vmatmul.mubr.bf16.gmra.mrb[0].mxu0 %v421
        %v565 = vpop.f32.mrb[0].mxu0
        %v566 = vadd.f32 %v289, %v565
        %v567 = vpop.f32.mrb[0].mxu0
        %v568 = vpop.f32.mrb[0].mxu0
        %v569 = vadd.f32 %v289, %v568
        %v570 = vpop.f32.mrb[0].mxu0
        %571 = vmatprep.mubr.bf16.mxu0 0
        %572 = vmatmul.mubr.bf16.gmra.mrb[0].mxu0 %v424
        %v573 = vpop.f32.mrb[0].mxu0
        %v574 = vpop.f32.mrb[0].mxu0
        %v575 = vpop.f32.mrb[0].mxu0
        %v576 = vpop.f32.mrb[0].mxu0
        %577 = vmatprep.mubr.bf16.mxu0 0
        %578 = vmatmul.mubr.bf16.gmra.mrb[0].mxu0 %v427
        %v579 = vpop.f32.mrb[0].mxu0
        %v580 = vpop.f32.mrb[0].mxu0
        %v581 = vpop.f32.mrb[0].mxu0
        %v582 = vpop.f32.mrb[0].mxu0
        %583 = vdwg.mxu0
        %vm584 = vcmp.gt.f32.partialorder %v468, 0.5
        %vm585 = vcmp.gt.f32.partialorder %v471, 0.5
        %vm586 = vcmp.gt.f32.partialorder %v476, 0.5
        %vm587 = vcmp.gt.f32.partialorder %v479, 0.5
        %vm588 = vcmp.gt.f32.partialorder %v490, 0.5
        %vm589 = vcmp.gt.f32.partialorder %v493, 0.5
        %vm590 = vcmp.gt.f32.partialorder %v498, 0.5
        %vm591 = vcmp.gt.f32.partialorder %v501, 0.5
        %vm592 = vcmp.gt.f32.partialorder %v506, 0.5
        %vm593 = vcmp.gt.f32.partialorder %v509, 0.5
        %vm594 = vcmp.gt.f32.partialorder %v520, 0.5
        %vm595 = vcmp.gt.f32.partialorder %v523, 0.5
        %vm596 = vcmp.gt.f32.partialorder %v528, 0.5
        %vm597 = vcmp.gt.f32.partialorder %v531, 0.5
        %vm598 = vcmp.gt.f32.partialorder %v536, 0.5
        %vm599 = vcmp.gt.f32.partialorder %v539, 0.5
        %vm600 = vcmp.gt.f32.partialorder %v550, 0.5
        %vm601 = vcmp.gt.f32.partialorder %v553, 0.5
        %vm602 = vcmp.gt.f32.partialorder %v558, 0.5
        %vm603 = vcmp.gt.f32.partialorder %v561, 0.5
        %vm604 = vcmp.gt.f32.partialorder %v566, 0.5
        %vm605 = vcmp.gt.f32.partialorder %v569, 0.5
        %v606 = vsel %vm584, 1, 0
        %v607 = vsel %vm585, 1, 0
        %v608 = vsel %vm586, 1, 0
        %v609 = vsel %vm587, 1, 0
        %v610 = vsel %vm588, 1, 0
        %v611 = vsel %vm589, 1, 0
        %v612 = vsel %vm590, 1, 0
        %v613 = vsel %vm591, 1, 0
        %v614 = vsel %vm592, 1, 0
        %v615 = vsel %vm593, 1, 0
        %v616 = vsel %vm594, 1, 0
        %v617 = vsel %vm595, 1, 0
        %v618 = vsel %vm596, 1, 0
        %v619 = vsel %vm597, 1, 0
        %v620 = vsel %vm598, 1, 0
        %v621 = vsel %vm599, 1, 0
        %v622 = vsel %vm600, 1, 0
        %v623 = vsel %vm601, 1, 0
        %v624 = vsel %vm602, 1, 0
        %v625 = vsel %vm603, 1, 0
        %v626 = vsel %vm604, 1, 0
        %v627 = vsel %vm605, 1, 0
        %v628 = vcvt.s32.f32 %v606
        %v629 = vcvt.s32.f32 %v607
        %v630 = vcvt.s32.f32 %v608
        %v631 = vcvt.s32.f32 %v609
        %v632 = vcvt.s32.f32 %v610
        %v633 = vcvt.s32.f32 %v611
        %v634 = vcvt.s32.f32 %v612
        %v635 = vcvt.s32.f32 %v613
        %v636 = vcvt.s32.f32 %v614
        %v637 = vcvt.s32.f32 %v615
        %v638 = vcvt.s32.f32 %v616
        %v639 = vcvt.s32.f32 %v617
        %v640 = vcvt.s32.f32 %v618
        %v641 = vcvt.s32.f32 %v619
        %v642 = vcvt.s32.f32 %v620
        %v643 = vcvt.s32.f32 %v621
        %v644 = vcvt.s32.f32 %v622
        %v645 = vcvt.s32.f32 %v623
        %v646 = vcvt.s32.f32 %v624
        %v647 = vcvt.s32.f32 %v625
        %v648 = vcvt.s32.f32 %v626
        %v649 = vcvt.s32.f32 %v627
        %v672 = vcombine.high %v628, %v628
        %v673 = vcombine.high %v629, %v629
        %v674 = vcombine.high %v630, %v630
        %v675 = vcombine.high %v631, %v631
        %v676 = vcombine.high %v632, %v632
        %v677 = vcombine.high %v633, %v633
        %v678 = vcombine.high %v634, %v634
        %v679 = vcombine.high %v635, %v635
        %v680 = vcombine.high %v636, %v636
        %v681 = vcombine.high %v637, %v637
        %v682 = vcombine.high %v638, %v638
        %v683 = vcombine.high %v639, %v639
        %v684 = vcombine.high %v640, %v640
        %v685 = vcombine.high %v641, %v641
        %v686 = vcombine.high %v642, %v642
        %v687 = vcombine.high %v643, %v643
        %v688 = vcombine.high %v644, %v644
        %v689 = vcombine.high %v645, %v645
        %v690 = vcombine.high %v646, %v646
        %v691 = vcombine.high %v647, %v647
        %v692 = vcombine.high %v648, %v648
        %v693 = vcombine.high %v649, %v649
        %v716 = vrot.slane %v628, 5
        %v717 = vrot.slane %v716, 4
        %v718 = vrot.slane %v672, 5
        %v719 = vrot.slane %v718, 4
        %v720 = vrot.slane %v629, 5
        %v721 = vrot.slane %v720, 4
        %v722 = vrot.slane %v673, 5
        %v723 = vrot.slane %v722, 4
        %v724 = vrot.slane %v630, 5
        %v725 = vrot.slane %v724, 4
        %v726 = vrot.slane %v674, 5
        %v727 = vrot.slane %v726, 4
        %v728 = vrot.slane %v631, 5
        %v729 = vrot.slane %v728, 4
        %v730 = vrot.slane %v675, 5
        %v731 = vrot.slane %v730, 4
        %v732 = vrot.slane %v632, 5
        %v733 = vrot.slane %v732, 4
        %v734 = vrot.slane %v676, 5
        %v735 = vrot.slane %v734, 4
        %v736 = vrot.slane %v633, 5
        %v737 = vrot.slane %v736, 4
        %v738 = vrot.slane %v677, 5
        %v739 = vrot.slane %v738, 4
        %v740 = vrot.slane %v634, 5
        %v741 = vrot.slane %v740, 4
        %v742 = vrot.slane %v678, 5
        %v743 = vrot.slane %v742, 4
        %v744 = vrot.slane %v635, 5
        %v745 = vrot.slane %v744, 4
        %v746 = vrot.slane %v679, 5
        %v747 = vrot.slane %v746, 4
        %v748 = vrot.slane %v636, 5
        %v749 = vrot.slane %v748, 4
        %v750 = vrot.slane %v680, 5
        %v751 = vrot.slane %v750, 4
        %v752 = vrot.slane %v637, 5
        %v753 = vrot.slane %v752, 4
        %v754 = vrot.slane %v681, 5
        %v755 = vrot.slane %v754, 4
        %v756 = vrot.slane %v638, 5
        %v757 = vrot.slane %v756, 4
        %v758 = vrot.slane %v682, 5
        %v759 = vrot.slane %v758, 4
        %v760 = vrot.slane %v639, 5
        %v761 = vrot.slane %v760, 4
        %v762 = vrot.slane %v683, 5
        %v763 = vrot.slane %v762, 4
        %v764 = vrot.slane %v640, 5
        %v765 = vrot.slane %v764, 4
        %v766 = vrot.slane %v684, 5
        %v767 = vrot.slane %v766, 4
        %v768 = vrot.slane %v641, 5
        %v769 = vrot.slane %v768, 4
        %v770 = vrot.slane %v685, 5
        %v771 = vrot.slane %v770, 4
        %v772 = vrot.slane %v642, 5
        %v773 = vrot.slane %v772, 4
        %v774 = vrot.slane %v686, 5
        %v775 = vrot.slane %v774, 4
        %v776 = vrot.slane %v643, 5
        %v777 = vrot.slane %v776, 4
        %v778 = vrot.slane %v687, 5
        %v779 = vrot.slane %v778, 4
        %v780 = vrot.slane %v644, 5
        %v781 = vrot.slane %v780, 4
        %v782 = vrot.slane %v688, 5
        %v783 = vrot.slane %v782, 4
        %v784 = vrot.slane %v645, 5
        %v785 = vrot.slane %v784, 4
        %v786 = vrot.slane %v689, 5
        %v787 = vrot.slane %v786, 4
        %v788 = vrot.slane %v646, 5
        %v789 = vrot.slane %v788, 4
        %v790 = vrot.slane %v690, 5
        %v791 = vrot.slane %v790, 4
        %v792 = vrot.slane %v647, 5
        %v793 = vrot.slane %v792, 4
        %v794 = vrot.slane %v691, 5
        %v795 = vrot.slane %v794, 4
        %v796 = vrot.slane %v648, 5
        %v797 = vrot.slane %v796, 4
        %v798 = vrot.slane %v692, 5
        %v799 = vrot.slane %v798, 4
        %v800 = vrot.slane %v649, 5
        %v801 = vrot.slane %v800, 4
        %v802 = vrot.slane %v693, 5
        %v803 = vrot.slane %v802, 4
        %v848 = vmax.f32 %v628, %v717
        %v849 = vmax.f32 %v672, %v719
        %v850 = vmax.f32 %v629, %v721
        %v851 = vmax.f32 %v673, %v723
        %v852 = vmax.f32 %v630, %v725
        %v853 = vmax.f32 %v674, %v727
        %v854 = vmax.f32 %v631, %v729
        %v855 = vmax.f32 %v675, %v731
        %v856 = vmax.f32 %v632, %v733
        %v857 = vmax.f32 %v676, %v735
        %v858 = vmax.f32 %v633, %v737
        %v859 = vmax.f32 %v677, %v739
        %v860 = vmax.f32 %v634, %v741
        %v861 = vmax.f32 %v678, %v743
        %v862 = vmax.f32 %v635, %v745
        %v863 = vmax.f32 %v679, %v747
        %v864 = vmax.f32 %v636, %v749
        %v865 = vmax.f32 %v680, %v751
        %v866 = vmax.f32 %v637, %v753
        %v867 = vmax.f32 %v681, %v755
        %v868 = vmax.f32 %v638, %v757
        %v869 = vmax.f32 %v682, %v759
        %v870 = vmax.f32 %v639, %v761
        %v871 = vmax.f32 %v683, %v763
        %v872 = vmax.f32 %v640, %v765
        %v873 = vmax.f32 %v684, %v767
        %v874 = vmax.f32 %v641, %v769
        %v875 = vmax.f32 %v685, %v771
        %v876 = vmax.f32 %v642, %v773
        %v877 = vmax.f32 %v686, %v775
        %v878 = vmax.f32 %v643, %v777
        %v879 = vmax.f32 %v687, %v779
        %v880 = vmax.f32 %v644, %v781
        %v881 = vmax.f32 %v688, %v783
        %v882 = vmax.f32 %v645, %v785
        %v883 = vmax.f32 %v689, %v787
        %v884 = vmax.f32 %v646, %v789
        %v885 = vmax.f32 %v690, %v791
        %v886 = vmax.f32 %v647, %v793
        %v887 = vmax.f32 %v691, %v795
        %v888 = vmax.f32 %v648, %v797
        %v889 = vmax.f32 %v692, %v799
        %v890 = vmax.f32 %v649, %v801
        %v891 = vmax.f32 %v693, %v803
        %v892 = vlaneseq
        %v893 = vshrl.u32 %v892, 7
        %v894 = vsub.s32 3, %v893
        %v895 = vrot.slane %v628, %v894
        %v896 = vlaneseq
        %v897 = vshrl.u32 %v896, 7
        %v898 = vsub.s32 3, %v897
        %v899 = vrot.slane %v672, %v898
        %v900 = vlaneseq
        %v901 = vshrl.u32 %v900, 7
        %v902 = vsub.s32 3, %v901
        %v903 = vrot.slane %v629, %v902
        %v904 = vlaneseq
        %v905 = vshrl.u32 %v904, 7
        %v906 = vsub.s32 3, %v905
        %v907 = vrot.slane %v630, %v906
        %v908 = vlaneseq
        %v909 = vshrl.u32 %v908, 7
        %v910 = vsub.s32 3, %v909
        %v911 = vrot.slane %v674, %v910
        %v912 = vlaneseq
        %v913 = vshrl.u32 %v912, 7
        %v914 = vsub.s32 3, %v913
        %v915 = vrot.slane %v631, %v914
        %v916 = vlaneseq
        %v917 = vshrl.u32 %v916, 7
        %v918 = vsub.s32 3, %v917
        %v919 = vrot.slane %v632, %v918
        %v920 = vlaneseq
        %v921 = vshrl.u32 %v920, 7
        %v922 = vsub.s32 3, %v921
        %v923 = vrot.slane %v676, %v922
        %v924 = vlaneseq
        %v925 = vshrl.u32 %v924, 7
        %v926 = vsub.s32 3, %v925
        %v927 = vrot.slane %v633, %v926
        %v928 = vlaneseq
        %v929 = vshrl.u32 %v928, 7
        %v930 = vsub.s32 3, %v929
        %v931 = vrot.slane %v634, %v930
        %v932 = vlaneseq
        %v933 = vshrl.u32 %v932, 7
        %v934 = vsub.s32 3, %v933
        %v935 = vrot.slane %v678, %v934
        %v936 = vlaneseq
        %v937 = vshrl.u32 %v936, 7
        %v938 = vsub.s32 3, %v937
        %v939 = vrot.slane %v635, %v938
        %v940 = vlaneseq
        %v941 = vshrl.u32 %v940, 7
        %v942 = vsub.s32 3, %v941
        %v943 = vrot.slane %v636, %v942
        %v944 = vlaneseq
        %v945 = vshrl.u32 %v944, 7
        %v946 = vsub.s32 3, %v945
        %v947 = vrot.slane %v680, %v946
        %v948 = vlaneseq
        %v949 = vshrl.u32 %v948, 7
        %v950 = vsub.s32 3, %v949
        %v951 = vrot.slane %v637, %v950
        %v952 = vlaneseq
        %v953 = vshrl.u32 %v952, 7
        %v954 = vsub.s32 3, %v953
        %v955 = vrot.slane %v638, %v954
        %v956 = vlaneseq
        %v957 = vshrl.u32 %v956, 7
        %v958 = vsub.s32 3, %v957
        %v959 = vrot.slane %v682, %v958
        %v960 = vlaneseq
        %v961 = vshrl.u32 %v960, 7
        %v962 = vsub.s32 3, %v961
        %v963 = vrot.slane %v639, %v962
        %v964 = vlaneseq
        %v965 = vshrl.u32 %v964, 7
        %v966 = vsub.s32 3, %v965
        %v967 = vrot.slane %v640, %v966
        %v968 = vlaneseq
        %v969 = vshrl.u32 %v968, 7
        %v970 = vsub.s32 3, %v969
        %v971 = vrot.slane %v684, %v970
        %v972 = vlaneseq
        %v973 = vshrl.u32 %v972, 7
        %v974 = vsub.s32 3, %v973
        %v975 = vrot.slane %v641, %v974
        %v976 = vlaneseq
        %v977 = vshrl.u32 %v976, 7
        %v978 = vsub.s32 3, %v977
        %v979 = vrot.slane %v642, %v978
        %v980 = vlaneseq
        %v981 = vshrl.u32 %v980, 7
        %v982 = vsub.s32 3, %v981
        %v983 = vrot.slane %v686, %v982
        %v984 = vlaneseq
        %v985 = vshrl.u32 %v984, 7
        %v986 = vsub.s32 3, %v985
        %v987 = vrot.slane %v643, %v986
        %v988 = vlaneseq
        %v989 = vshrl.u32 %v988, 7
        %v990 = vsub.s32 3, %v989
        %v991 = vrot.slane %v644, %v990
        %v992 = vlaneseq
        %v993 = vshrl.u32 %v992, 7
        %v994 = vsub.s32 3, %v993
        %v995 = vrot.slane %v688, %v994
        %v996 = vlaneseq
        %v997 = vshrl.u32 %v996, 7
        %v998 = vsub.s32 3, %v997
        %v999 = vrot.slane %v645, %v998
        %v1000 = vlaneseq
        %v1001 = vshrl.u32 %v1000, 7
        %v1002 = vsub.s32 3, %v1001
        %v1003 = vrot.slane %v646, %v1002
        %v1004 = vlaneseq
        %v1005 = vshrl.u32 %v1004, 7
        %v1006 = vsub.s32 3, %v1005
        %v1007 = vrot.slane %v690, %v1006
        %v1008 = vlaneseq
        %v1009 = vshrl.u32 %v1008, 7
        %v1010 = vsub.s32 3, %v1009
        %v1011 = vrot.slane %v647, %v1010
        %v1012 = vlaneseq
        %v1013 = vshrl.u32 %v1012, 7
        %v1014 = vsub.s32 3, %v1013
        %v1015 = vrot.slane %v648, %v1014
        %v1016 = vlaneseq
        %v1017 = vshrl.u32 %v1016, 7
        %v1018 = vsub.s32 3, %v1017
        %v1019 = vrot.slane %v692, %v1018
        %v1020 = vlaneseq
        %v1021 = vshrl.u32 %v1020, 7
        %v1022 = vsub.s32 3, %v1021
        %v1023 = vrot.slane %v649, %v1022
        %vm1024 = vcmask 1042434
        %v1025 = vsel %vm1024, %v899, %v895
        %vm1026 = vcmask 1043459
        %v1027 = vsel %vm1026, %v903, %v1025
        %v1028 = vsel %vm1024, %v911, %v907
        %v1029 = vsel %vm1026, %v915, %v1028
        %v1030 = vsel %vm1024, %v923, %v919
        %v1031 = vsel %vm1026, %v927, %v1030
        %v1032 = vsel %vm1024, %v935, %v931
        %v1033 = vsel %vm1026, %v939, %v1032
        %v1034 = vsel %vm1024, %v947, %v943
        %v1035 = vsel %vm1026, %v951, %v1034
        %v1036 = vsel %vm1024, %v959, %v955
        %v1037 = vsel %vm1026, %v963, %v1036
        %v1038 = vsel %vm1024, %v971, %v967
        %v1039 = vsel %vm1026, %v975, %v1038
        %v1040 = vsel %vm1024, %v983, %v979
        %v1041 = vsel %vm1026, %v987, %v1040
        %v1042 = vsel %vm1024, %v995, %v991
        %v1043 = vsel %vm1026, %v999, %v1042
        %v1044 = vsel %vm1024, %v1007, %v1003
        %v1045 = vsel %vm1026, %v1011, %v1044
        %v1046 = vsel %vm1024, %v1019, %v1015
        %v1047 = vsel %vm1026, %v1023, %v1046
        %v1059 = vsel %vm429, 0.0, %v1027
        %v1060 = vsel %vm429, 0.0, %v1029
        %v1061 = vsel %vm429, 0.0, %v1031
        %v1062 = vsel %vm429, 0.0, %v1033
        %v1063 = vsel %vm429, 0.0, %v1035
        %v1064 = vsel %vm429, 0.0, %v1037
        %v1065 = vsel %vm429, 0.0, %v1039
        %v1066 = vsel %vm429, 0.0, %v1041
        %v1067 = vsel %vm429, 0.0, %v1043
        %v1068 = vsel %vm429, 0.0, %v1045
        %v1069 = vsel %vm429, 0.0, %v1047
        %v1081 = vrot.slane %v1059, 1
        %v1082 = vrot.slane %v1059, 2
        %v1083 = vrot.slane %v1059, 3
        %v1084 = vrot.slane %v1060, 1
        %v1085 = vrot.slane %v1060, 2
        %v1086 = vrot.slane %v1060, 3
        %v1087 = vrot.slane %v1061, 1
        %v1088 = vrot.slane %v1061, 2
        %v1089 = vrot.slane %v1061, 3
        %v1090 = vrot.slane %v1062, 1
        %v1091 = vrot.slane %v1062, 2
        %v1092 = vrot.slane %v1062, 3
        %v1093 = vrot.slane %v1063, 1
        %v1094 = vrot.slane %v1063, 2
        %v1095 = vrot.slane %v1063, 3
        %v1096 = vrot.slane %v1064, 1
        %v1097 = vrot.slane %v1064, 2
        %v1098 = vrot.slane %v1064, 3
        %v1099 = vrot.slane %v1065, 1
        %v1100 = vrot.slane %v1065, 2
        %v1101 = vrot.slane %v1065, 3
        %v1102 = vrot.slane %v1066, 1
        %v1103 = vrot.slane %v1066, 2
        %v1104 = vrot.slane %v1066, 3
        %v1105 = vrot.slane %v1067, 1
        %v1106 = vrot.slane %v1067, 2
        %v1107 = vrot.slane %v1067, 3
        %v1108 = vrot.slane %v1068, 1
        %v1109 = vrot.slane %v1068, 2
        %v1110 = vrot.slane %v1068, 3
        %v1111 = vrot.slane %v1069, 1
        %v1112 = vrot.slane %v1069, 2
        %v1113 = vrot.slane %v1069, 3
        %v1158 = vmax.f32 %v848, %v1059
        %v1159 = vmax.f32 %v849, %v1081
        %v1160 = vmax.f32 %v850, %v1082
        %v1161 = vmax.f32 %v851, %v1083
        %v1162 = vmax.f32 %v852, %v1060
        %v1163 = vmax.f32 %v853, %v1084
        %v1164 = vmax.f32 %v854, %v1085
        %v1165 = vmax.f32 %v855, %v1086
        %v1166 = vmax.f32 %v856, %v1061
        %v1167 = vmax.f32 %v857, %v1087
        %v1168 = vmax.f32 %v858, %v1088
        %v1169 = vmax.f32 %v859, %v1089
        %v1170 = vmax.f32 %v860, %v1062
        %v1171 = vmax.f32 %v861, %v1090
        %v1172 = vmax.f32 %v862, %v1091
        %v1173 = vmax.f32 %v863, %v1092
        %v1174 = vmax.f32 %v864, %v1063
        %v1175 = vmax.f32 %v865, %v1093
        %v1176 = vmax.f32 %v866, %v1094
        %v1177 = vmax.f32 %v867, %v1095
        %v1178 = vmax.f32 %v868, %v1064
        %v1179 = vmax.f32 %v869, %v1096
        %v1180 = vmax.f32 %v870, %v1097
        %v1181 = vmax.f32 %v871, %v1098
        %v1182 = vmax.f32 %v872, %v1065
        %v1183 = vmax.f32 %v873, %v1099
        %v1184 = vmax.f32 %v874, %v1100
        %v1185 = vmax.f32 %v875, %v1101
        %v1186 = vmax.f32 %v876, %v1066
        %v1187 = vmax.f32 %v877, %v1102
        %v1188 = vmax.f32 %v878, %v1103
        %v1189 = vmax.f32 %v879, %v1104
        %v1190 = vmax.f32 %v880, %v1067
        %v1191 = vmax.f32 %v881, %v1105
        %v1192 = vmax.f32 %v882, %v1106
        %v1193 = vmax.f32 %v883, %v1107
        %v1194 = vmax.f32 %v884, %v1068
        %v1195 = vmax.f32 %v885, %v1108
        %v1196 = vmax.f32 %v886, %v1109
        %v1197 = vmax.f32 %v887, %v1110
        %v1198 = vmax.f32 %v888, %v1069
        %v1199 = vmax.f32 %v889, %v1111
        %v1200 = vmax.f32 %v890, %v1112
        %v1201 = vmax.f32 %v891, %v1113
        %v1202 = vmax.f32 %v1158, %v1162
        %v1203 = vmax.f32 %v1159, %v1163
        %v1204 = vmax.f32 %v1160, %v1164
        %v1205 = vmax.f32 %v1161, %v1165
        %v1206 = vmax.f32 %v1170, %v1174
        %v1207 = vmax.f32 %v1171, %v1175
        %v1208 = vmax.f32 %v1172, %v1176
        %v1209 = vmax.f32 %v1173, %v1177
        %v1210 = vmax.f32 %v1182, %v1186
        %v1211 = vmax.f32 %v1183, %v1187
        %v1212 = vmax.f32 %v1184, %v1188
        %v1213 = vmax.f32 %v1185, %v1189
        %v1214 = vmax.f32 %v1194, %v1198
        %v1215 = vmax.f32 %v1195, %v1199
        %v1216 = vmax.f32 %v1196, %v1200
        %v1217 = vmax.f32 %v1197, %v1201
        %v1230 = vlaneseq
        %v1231 = vshrl.u32 %v1230, 7
        %v1232 = vsub.s32 0, %v1231
        %v1233 = vrot.slane %v1166, %v1232
        %v1234 = vlaneseq
        %v1235 = vshrl.u32 %v1234, 7
        %v1236 = vsub.s32 0, %v1235
        %v1237 = vrot.slane %v1167, %v1236
        %v1238 = vlaneseq
        %v1239 = vshrl.u32 %v1238, 7
        %v1240 = vsub.s32 0, %v1239
        %v1241 = vrot.slane %v1168, %v1240
        %v1242 = vlaneseq
        %v1243 = vshrl.u32 %v1242, 7
        %v1244 = vsub.s32 0, %v1243
        %v1245 = vrot.slane %v1169, %v1244
        %v1246 = vlaneseq
        %v1247 = vshrl.u32 %v1246, 7
        %v1248 = vsub.s32 0, %v1247
        %v1249 = vrot.slane %v1178, %v1248
        %v1250 = vlaneseq
        %v1251 = vshrl.u32 %v1250, 7
        %v1252 = vsub.s32 0, %v1251
        %v1253 = vrot.slane %v1179, %v1252
        %v1254 = vlaneseq
        %v1255 = vshrl.u32 %v1254, 7
        %v1256 = vsub.s32 0, %v1255
        %v1257 = vrot.slane %v1180, %v1256
        %v1258 = vlaneseq
        %v1259 = vshrl.u32 %v1258, 7
        %v1260 = vsub.s32 0, %v1259
        %v1261 = vrot.slane %v1181, %v1260
        %v1262 = vlaneseq
        %v1263 = vshrl.u32 %v1262, 7
        %v1264 = vsub.s32 0, %v1263
        %v1265 = vrot.slane %v1190, %v1264
        %v1266 = vlaneseq
        %v1267 = vshrl.u32 %v1266, 7
        %v1268 = vsub.s32 0, %v1267
        %v1269 = vrot.slane %v1191, %v1268
        %v1270 = vlaneseq
        %v1271 = vshrl.u32 %v1270, 7
        %v1272 = vsub.s32 0, %v1271
        %v1273 = vrot.slane %v1192, %v1272
        %v1274 = vlaneseq
        %v1275 = vshrl.u32 %v1274, 7
        %v1276 = vsub.s32 0, %v1275
        %v1277 = vrot.slane %v1193, %v1276
        %vm1278 = vcmask 1041409
        %v1279 = vsel %vm1278, %v1237, %v1233
        %v1280 = vsel %vm1024, %v1241, %v1279
        %v1281 = vsel %vm1026, %v1245, %v1280
        %v1282 = vsel %vm1278, %v1253, %v1249
        %v1283 = vsel %vm1024, %v1257, %v1282
        %v1284 = vsel %vm1026, %v1261, %v1283
        %v1285 = vsel %vm1278, %v1269, %v1265
        %v1286 = vsel %vm1024, %v1273, %v1285
        %v1287 = vsel %vm1026, %v1277, %v1286
        %v1289 = vrot.slane 0.0, 1
        %v1290 = vrot.slane 0.0, 2
        %v1291 = vrot.slane 0.0, 3
        %v1292 = vrot.slane %v1281, 1
        %v1293 = vrot.slane %v1281, 2
        %v1294 = vrot.slane %v1281, 3
        %v1295 = vrot.slane %v1284, 1
        %v1296 = vrot.slane %v1284, 2
        %v1297 = vrot.slane %v1284, 3
        %v1298 = vrot.slane %v1287, 1
        %v1299 = vrot.slane %v1287, 2
        %v1300 = vrot.slane %v1287, 3
        %v1317 = vmax.f32 %v1202, 0.0
        %v1318 = vmax.f32 %v1203, %v1289
        %v1319 = vmax.f32 %v1204, %v1290
        %v1320 = vmax.f32 %v1205, %v1291
        %v1321 = vmax.f32 %v1206, %v1281
        %v1322 = vmax.f32 %v1207, %v1292
        %v1323 = vmax.f32 %v1208, %v1293
        %v1324 = vmax.f32 %v1209, %v1294
        %v1325 = vmax.f32 %v1210, %v1284
        %v1326 = vmax.f32 %v1211, %v1295
        %v1327 = vmax.f32 %v1212, %v1296
        %v1328 = vmax.f32 %v1213, %v1297
        %v1329 = vmax.f32 %v1214, %v1287
        %v1330 = vmax.f32 %v1215, %v1298
        %v1331 = vmax.f32 %v1216, %v1299
        %v1332 = vmax.f32 %v1217, %v1300
        %v1333 = vpack.c.bf16 %v1317, %v1317
        %v1334 = vpack.c.bf16 %v1318, %v1318
        %v1335 = vpack.c.bf16 %v1319, %v1319
        %v1336 = vpack.c.bf16 %v1320, %v1320
        %v1337 = vpack.c.bf16 %v1321, %v1321
        %v1338 = vpack.c.bf16 %v1322, %v1322
        %v1339 = vpack.c.bf16 %v1323, %v1323
        %v1340 = vpack.c.bf16 %v1324, %v1324
        %v1341 = vpack.c.bf16 %v1325, %v1325
        %v1342 = vpack.c.bf16 %v1326, %v1326
        %v1343 = vpack.c.bf16 %v1327, %v1327
        %v1344 = vpack.c.bf16 %v1328, %v1328
        %v1345 = vpack.c.bf16 %v1329, %v1329
        %v1346 = vpack.c.bf16 %v1330, %v1330
        %v1347 = vpack.c.bf16 %v1331, %v1331
        %v1348 = vpack.c.bf16 %v1332, %v1332
        %v1365 = vunpack.c.l.b16 %v1333
        %v1366 = vunpack.c.l.b16 %v1334
        %v1367 = vunpack.c.l.b16 %v1335
        %v1368 = vunpack.c.l.b16 %v1336
        %v1369 = vunpack.c.l.b16 %v1337
        %v1370 = vunpack.c.l.b16 %v1338
        %v1371 = vunpack.c.l.b16 %v1339
        %v1372 = vunpack.c.l.b16 %v1340
        %v1373 = vunpack.c.l.b16 %v1341
        %v1374 = vunpack.c.l.b16 %v1342
        %v1375 = vunpack.c.l.b16 %v1343
        %v1376 = vunpack.c.l.b16 %v1344
        %v1377 = vunpack.c.l.b16 %v1345
        %v1378 = vunpack.c.l.b16 %v1346
        %v1379 = vunpack.c.l.b16 %v1347
        %v1380 = vunpack.c.l.b16 %v1348
        %v1381 = vpack.c.b16 %v1365, %v1365
        %v1382 = vpack.c.b16 %v1366, %v1366
        %v1383 = vpack.c.b16 %v1367, %v1367
        %v1384 = vpack.c.b16 %v1368, %v1368
        %v1385 = vpack.c.b16 %v1369, %v1369
        %v1386 = vpack.c.b16 %v1370, %v1370
        %v1387 = vpack.c.b16 %v1371, %v1371
        %v1388 = vpack.c.b16 %v1372, %v1372
        %v1389 = vpack.c.b16 %v1373, %v1373
        %v1390 = vpack.c.b16 %v1374, %v1374
        %v1391 = vpack.c.b16 %v1375, %v1375
        %v1392 = vpack.c.b16 %v1376, %v1376
        %v1393 = vpack.c.b16 %v1377, %v1377
        %v1394 = vpack.c.b16 %v1378, %v1378
        %v1395 = vpack.c.b16 %v1379, %v1379
        %v1396 = vpack.c.b16 %v1380, %v1380
        %v1397 = vunpack.c.l.b16 %v1381
        %v1398 = vunpack.c.l.b16 %v1382
        %v1399 = vunpack.c.l.b16 %v1383
        %v1400 = vunpack.c.l.b16 %v1384
        %v1401 = vunpack.c.l.b16 %v1385
        %v1402 = vunpack.c.l.b16 %v1386
        %v1403 = vunpack.c.l.b16 %v1387
        %v1404 = vunpack.c.l.b16 %v1388
        %v1405 = vunpack.c.l.b16 %v1389
        %v1406 = vunpack.c.l.b16 %v1390
        %v1407 = vunpack.c.l.b16 %v1391
        %v1408 = vunpack.c.l.b16 %v1392
        %v1409 = vunpack.c.l.b16 %v1393
        %v1410 = vunpack.c.l.b16 %v1394
        %v1411 = vunpack.c.l.b16 %v1395
        %v1412 = vunpack.c.l.b16 %v1396
        %v1413 = vrot.slane %v1397, 7
        %v1414 = vrot.slane %v1398, 6
        %v1415 = vsel %vm1024, %v1414, %v1413
        %v1416 = vrot.slane %v1399, 5
        %v1417 = vsel %vm1026, %v1416, %v1415
        %v1418 = vrot.slane %v1400, 4
        %vm1419 = vcmask 1044484
        %v1420 = vsel %vm1419, %v1418, %v1417
        %v1421 = vrot.slane %v1401, 7
        %v1422 = vrot.slane %v1402, 6
        %v1423 = vsel %vm1024, %v1422, %v1421
        %v1424 = vrot.slane %v1403, 5
        %v1425 = vsel %vm1026, %v1424, %v1423
        %v1426 = vrot.slane %v1404, 4
        %v1427 = vsel %vm1419, %v1426, %v1425
        %v1428 = vrot.slane %v1405, 7
        %v1429 = vrot.slane %v1406, 6
        %v1430 = vsel %vm1024, %v1429, %v1428
        %v1431 = vrot.slane %v1407, 5
        %v1432 = vsel %vm1026, %v1431, %v1430
        %v1433 = vrot.slane %v1408, 4
        %v1434 = vsel %vm1419, %v1433, %v1432
        %v1435 = vrot.slane %v1409, 7
        %v1436 = vrot.slane %v1410, 6
        %v1437 = vsel %vm1024, %v1436, %v1435
        %v1438 = vrot.slane %v1411, 5
        %v1439 = vsel %vm1026, %v1438, %v1437
        %v1440 = vrot.slane %v1412, 4
        %v1441 = vsel %vm1419, %v1440, %v1439
        %v1442 = vpack.c.b16 %v1420, %v1420
        %v1443 = vpack.c.b16 %v1427, %v1427
        %v1444 = vpack.c.b16 %v1434, %v1434
        %v1445 = vpack.c.b16 %v1441, %v1441
        %s1450 = scalar_lea.vmem [#allocation2], 4
        %vm1451 = vcmask 256000
        %vm1452 = vsmask.f32 2306
        %vm1453 = vmand %vm1451, %vm1452
        %v1454 = vld [vmem:[%s1450] sm:$0x7]
        %v1455 = vsel %vm1453, %v1442, %v1454
        %1456 = vst [vmem:[%s1450] sm:$0x7] %v1455
        %v1457 = vld [vmem:[%s1450 + $0x4] sm:$0x7]
        %v1458 = vsel %vm1453, %v1443, %v1457
        %1459 = vst [vmem:[%s1450 + $0x4] sm:$0x7] %v1458
        %v1460 = vld [vmem:[%s1450 + $0x8] sm:$0x7]
        %v1461 = vsel %vm1453, %v1444, %v1460
        %1462 = vst [vmem:[%s1450 + $0x8] sm:$0x7] %v1461
        %v1463 = vld [vmem:[%s1450 + $0xc] sm:$0x7]
        %v1464 = vsel %vm1453, %v1445, %v1463
        %1465 = vst [vmem:[%s1450 + $0xc] sm:$0x7] %v1464
        %s1466 = scalar_lea.vmem %s222, 128
        %v1467 = vld [vmem:[%s1466] sm:$0xf]
        %v1468 = vld [vmem:[%s1466 + $0x4] sm:$0xf]
        %v1469 = vld [vmem:[%s1466 + $0x8] sm:$0xf]
        %v1470 = vld [vmem:[%s1466 + $0xc] sm:$0xf]
        %v1471 = vld [vmem:[%s1466 + $0x10] sm:$0xf]
        %v1472 = vld [vmem:[%s1466 + $0x14] sm:$0xf]
        %v1473 = vld [vmem:[%s1466 + $0x18] sm:$0xf]
        %v1474 = vld [vmem:[%s1466 + $0x1c] sm:$0xf]
        %v1475 = vld [vmem:[%s1466 + $0x20] sm:$0xf]
        %v1476 = vld [vmem:[%s1466 + $0x24] sm:$0xf]
        %v1477 = vld [vmem:[%s1466 + $0x28] sm:$0xf]
        %v1478 = vld [vmem:[%s1466 + $0x2c] sm:$0xf]
        %v1479 = vld [vmem:[%s1466 + $0x30] sm:$0xf]
        %v1480 = vld [vmem:[%s1466 + $0x34] sm:$0xf]
        %v1481 = vld [vmem:[%s1466 + $0x38] sm:$0xf]
        %v1482 = vld [vmem:[%s1466 + $0x3c] sm:$0xf]
        %v1483 = vld [vmem:[%s1466 + $0x40] sm:$0xf]
        %v1484 = vld [vmem:[%s1466 + $0x44] sm:$0xf]
        %v1485 = vld [vmem:[%s1466 + $0x48] sm:$0xf]
        %v1486 = vld [vmem:[%s1466 + $0x4c] sm:$0xf]
        %v1487 = vld [vmem:[%s1466 + $0x50] sm:$0xf]
        %v1488 = vld [vmem:[%s1466 + $0x54] sm:$0xf]
        %v1489 = vld [vmem:[%s1466 + $0x58] sm:$0xf]
        %v1490 = vld [vmem:[%s1466 + $0x5c] sm:$0xf]
        %v1491 = vld [vmem:[%s1466 + $0x60] sm:$0xf]
        %v1492 = vld [vmem:[%s1466 + $0x64] sm:$0xf]
        %v1493 = vld [vmem:[%s1466 + $0x68] sm:$0xf]
        %v1494 = vld [vmem:[%s1466 + $0x6c] sm:$0xf]
        %v1495 = vld [vmem:[%s1466 + $0x70] sm:$0xf]
        %v1496 = vld [vmem:[%s1466 + $0x74] sm:$0xf]
        %v1497 = vld [vmem:[%s1466 + $0x78] sm:$0xf]
        %v1498 = vld [vmem:[%s1466 + $0x7c] sm:$0xf]
        %v1499 = vld [vmem:[%s1] sm:$0xf]
        %v1500 = vld [vmem:[%s1 + $0x4] sm:$0xf]
        %v1501 = vld [vmem:[%s1 + $0x8] sm:$0x1]
        %v1502 = vld [vmem:[%s2] sm:$0x1]
        %v1504 = vlaneseq
        %v1505 = vshrl.u32 %v1504, 7
        %v1506 = vsub.s32 0, %v1505
        %v1507 = vrot.slane %v1502, %v1506
        %v1541 = vunpack.c.l.b16 %v1467
        %v1542 = vunpack.c.l.b16 %v1468
        %v1543 = vunpack.c.l.b16 %v1469
        %v1544 = vunpack.c.l.b16 %v1470
        %v1545 = vunpack.c.l.b16 %v1471
        %v1546 = vunpack.c.l.b16 %v1472
        %v1547 = vunpack.c.l.b16 %v1473
        %v1548 = vunpack.c.l.b16 %v1474
        %v1549 = vunpack.c.l.b16 %v1475
        %v1550 = vunpack.c.l.b16 %v1476
        %v1551 = vunpack.c.l.b16 %v1477
        %v1552 = vunpack.c.l.b16 %v1478
        %v1553 = vunpack.c.l.b16 %v1479
        %v1554 = vunpack.c.l.b16 %v1480
        %v1555 = vunpack.c.l.b16 %v1481
        %v1556 = vunpack.c.l.b16 %v1482
        %v1557 = vunpack.c.l.b16 %v1483
        %v1558 = vunpack.c.l.b16 %v1484
        %v1559 = vunpack.c.l.b16 %v1485
        %v1560 = vunpack.c.l.b16 %v1486
        %v1561 = vunpack.c.l.b16 %v1487
        %v1562 = vunpack.c.l.b16 %v1488
        %v1563 = vunpack.c.l.b16 %v1489
        %v1564 = vunpack.c.l.b16 %v1490
        %v1565 = vunpack.c.l.b16 %v1491
        %v1566 = vunpack.c.l.b16 %v1492
        %v1567 = vunpack.c.l.b16 %v1493
        %v1568 = vunpack.c.l.b16 %v1494
        %v1569 = vunpack.c.l.b16 %v1495
        %v1570 = vunpack.c.l.b16 %v1496
        %v1571 = vunpack.c.l.b16 %v1497
        %v1572 = vunpack.c.l.b16 %v1498
        %v1573 = vpack.c.b16 %v1542, %v1541
        %v1574 = vpack.c.b16 %v1544, %v1543
        %v1575 = vpack.c.b16 %v1546, %v1545
        %v1576 = vpack.c.b16 %v1548, %v1547
        %v1577 = vpack.c.b16 %v1550, %v1549
        %v1578 = vpack.c.b16 %v1552, %v1551
        %v1579 = vpack.c.b16 %v1554, %v1553
        %v1580 = vpack.c.b16 %v1556, %v1555
        %v1581 = vpack.c.b16 %v1558, %v1557
        %v1582 = vpack.c.b16 %v1560, %v1559
        %v1583 = vpack.c.b16 %v1562, %v1561
        %v1584 = vpack.c.b16 %v1564, %v1563
        %v1585 = vpack.c.b16 %v1566, %v1565
        %v1586 = vpack.c.b16 %v1568, %v1567
        %v1587 = vpack.c.b16 %v1570, %v1569
        %v1588 = vpack.c.b16 %v1572, %v1571
        %v1592 = vunpack.c.l.b16 %v1499
        %v1593 = vunpack.c.l.b16 %v1500
        %v1594 = vunpack.c.l.b16 %v1501
        %v1595 = vpack.c.b16 %v1593, %v1592
        %v1596 = vpack.c.b16 %v1594, %v1594
        %v1599 = vsel %vm380, %v1573, 0
        %v1602 = vsel %vm380, %v1574, 0
        %v1605 = vsel %vm380, %v1575, 0
        %v1608 = vsel %vm380, %v1576, 0
        %v1611 = vsel %vm380, %v1577, 0
        %v1614 = vsel %vm380, %v1578, 0
        %v1617 = vsel %vm380, %v1579, 0
        %v1620 = vsel %vm380, %v1580, 0
        %v1623 = vsel %vm380, %v1581, 0
        %v1626 = vsel %vm380, %v1582, 0
        %v1629 = vsel %vm380, %v1583, 0
        %v1632 = vsel %vm380, %v1584, 0
        %v1635 = vsel %vm380, %v1585, 0
        %v1638 = vsel %vm380, %v1586, 0
        %v1641 = vsel %vm380, %v1587, 0
        %v1644 = vsel %vm380, %v1588, 0
        %v1647 = vsel %vm429, %v1596, 0
        %1649 = vmatprep.subr.bf16.mxu0 0
        %1650 = vmatpush1.bf16.msra.mxu0 %v1595
        %1651 = vmatprep.subr.bf16.mxu0 0
        %1652 = vmatpush1.bf16.msra.mxu0 %v1647
        %1653 = vmatprep.subr.bf16.mxu0 0
        %1654 = vmatpush1.bf16.msra.mxu0 0
        %1655 = vmatprep.subr.bf16.mxu0 0
        %1656 = vmatpush1.bf16.msra.mxu0 0
        %1657 = vmatprep.subr.bf16.mxu0 0
        %1658 = vmatpush1.bf16.msra.mxu0 0
        %1659 = vmatprep.subr.bf16.mxu0 0
        %1660 = vmatpush1.bf16.msra.mxu0 0
        %1661 = vmatprep.subr.bf16.mxu0 0
        %1662 = vmatpush1.bf16.msra.mxu0 0
        %1663 = vmatprep.subr.bf16.mxu0 0
        %1664 = vmatpush1.bf16.msra.mxu0 0
        %1665 = vmatprep.subr.bf16.mxu0 0
        %1666 = vmatpush1.bf16.msra.mxu0 0
        %1667 = vmatprep.subr.bf16.mxu0 0
        %1668 = vmatpush1.bf16.msra.mxu0 0
        %1669 = vmatprep.subr.bf16.mxu0 0
        %1670 = vmatpush1.bf16.msra.mxu0 0
        %1671 = vmatprep.subr.bf16.mxu0 0
        %1672 = vmatpush1.bf16.msra.mxu0 0
        %1673 = vmatprep.subr.bf16.mxu0 0
        %1674 = vmatpush1.bf16.msra.mxu0 0
        %1675 = vmatprep.subr.bf16.mxu0 0
        %1676 = vmatpush1.bf16.msra.mxu0 0
        %1677 = vmatprep.subr.bf16.mxu0 0
        %1678 = vmatpush1.bf16.msra.mxu0 0
        %1679 = vmatprep.subr.bf16.mxu0 0
        %1680 = vmatpush1.bf16.msra.mxu0 0
        %1681 = vmatprep.mubr.bf16.mxu0 0
        %1682 = vmatmul.mubr.bf16.gmra.mrb[0].mxu0 %v1599
        %v1683 = vpop.f32.mrb[0].mxu0
        %v1684 = vadd.f32 %v1507, %v1683
        %v1685 = vpop.f32.mrb[0].mxu0
        %v1686 = vpop.f32.mrb[0].mxu0
        %v1687 = vadd.f32 %v1507, %v1686
        %v1688 = vpop.f32.mrb[0].mxu0
        %1689 = vmatprep.mubr.bf16.mxu0 0
        %1690 = vmatmul.mubr.bf16.gmra.mrb[0].mxu0 %v1602
        %v1691 = vpop.f32.mrb[0].mxu0
        %v1692 = vadd.f32 %v1507, %v1691
        %v1693 = vpop.f32.mrb[0].mxu0
        %v1694 = vpop.f32.mrb[0].mxu0
        %v1695 = vadd.f32 %v1507, %v1694
        %v1696 = vpop.f32.mrb[0].mxu0
        %1697 = vmatprep.mubr.bf16.mxu0 0
        %1698 = vmatmul.mubr.bf16.gmra.mrb[0].mxu0 %v1605
        %v1699 = vpop.f32.mrb[0].mxu0
        %v1700 = vpop.f32.mrb[0].mxu0
        %v1701 = vpop.f32.mrb[0].mxu0
        %v1702 = vpop.f32.mrb[0].mxu0
        %1703 = vmatprep.mubr.bf16.mxu0 0
        %1704 = vmatmul.mubr.bf16.gmra.mrb[0].mxu0 %v1608
        %v1705 = vpop.f32.mrb[0].mxu0
        %v1706 = vadd.f32 %v1507, %v1705
        %v1707 = vpop.f32.mrb[0].mxu0
        %v1708 = vpop.f32.mrb[0].mxu0
        %v1709 = vadd.f32 %v1507, %v1708
        %v1710 = vpop.f32.mrb[0].mxu0
        %1711 = vmatprep.mubr.bf16.mxu0 0
        %1712 = vmatmul.mubr.bf16.gmra.mrb[0].mxu0 %v1611
        %v1713 = vpop.f32.mrb[0].mxu0
        %v1714 = vadd.f32 %v1507, %v1713
        %v1715 = vpop.f32.mrb[0].mxu0
        %v1716 = vpop.f32.mrb[0].mxu0
        %v1717 = vadd.f32 %v1507, %v1716
        %v1718 = vpop.f32.mrb[0].mxu0
        %1719 = vmatprep.mubr.bf16.mxu0 0
        %1720 = vmatmul.mubr.bf16.gmra.mrb[0].mxu0 %v1614
        %v1721 = vpop.f32.mrb[0].mxu0
        %v1722 = vadd.f32 %v1507, %v1721
        %v1723 = vpop.f32.mrb[0].mxu0
        %v1724 = vpop.f32.mrb[0].mxu0
        %v1725 = vadd.f32 %v1507, %v1724
        %v1726 = vpop.f32.mrb[0].mxu0
        %1727 = vmatprep.mubr.bf16.mxu0 0
        %1728 = vmatmul.mubr.bf16.gmra.mrb[0].mxu0 %v1617
        %v1729 = vpop.f32.mrb[0].mxu0
        %v1730 = vpop.f32.mrb[0].mxu0
        %v1731 = vpop.f32.mrb[0].mxu0
        %v1732 = vpop.f32.mrb[0].mxu0
        %1733 = vmatprep.mubr.bf16.mxu0 0
        %1734 = vmatmul.mubr.bf16.gmra.mrb[0].mxu0 %v1620
        %v1735 = vpop.f32.mrb[0].mxu0
        %v1736 = vadd.f32 %v1507, %v1735
        %v1737 = vpop.f32.mrb[0].mxu0
        %v1738 = vpop.f32.mrb[0].mxu0
        %v1739 = vadd.f32 %v1507, %v1738
        %v1740 = vpop.f32.mrb[0].mxu0
        %1741 = vmatprep.mubr.bf16.mxu0 0
        %1742 = vmatmul.mubr.bf16.gmra.mrb[0].mxu0 %v1623
        %v1743 = vpop.f32.mrb[0].mxu0
        %v1744 = vadd.f32 %v1507, %v1743
        %v1745 = vpop.f32.mrb[0].mxu0
        %v1746 = vpop.f32.mrb[0].mxu0
        %v1747 = vadd.f32 %v1507, %v1746
        %v1748 = vpop.f32.mrb[0].mxu0
        %1749 = vmatprep.mubr.bf16.mxu0 0
        %1750 = vmatmul.mubr.bf16.gmra.mrb[0].mxu0 %v1626
        %v1751 = vpop.f32.mrb[0].mxu0
        %v1752 = vadd.f32 %v1507, %v1751
        %v1753 = vpop.f32.mrb[0].mxu0
        %v1754 = vpop.f32.mrb[0].mxu0
        %v1755 = vadd.f32 %v1507, %v1754
        %v1756 = vpop.f32.mrb[0].mxu0
        %1757 = vmatprep.mubr.bf16.mxu0 0
        %1758 = vmatmul.mubr.bf16.gmra.mrb[0].mxu0 %v1629
        %v1759 = vpop.f32.mrb[0].mxu0
        %v1760 = vpop.f32.mrb[0].mxu0
        %v1761 = vpop.f32.mrb[0].mxu0
        %v1762 = vpop.f32.mrb[0].mxu0
        %1763 = vmatprep.mubr.bf16.mxu0 0
        %1764 = vmatmul.mubr.bf16.gmra.mrb[0].mxu0 %v1632
        %v1765 = vpop.f32.mrb[0].mxu0
        %v1766 = vadd.f32 %v1507, %v1765
        %v1767 = vpop.f32.mrb[0].mxu0
        %v1768 = vpop.f32.mrb[0].mxu0
        %v1769 = vadd.f32 %v1507, %v1768
        %v1770 = vpop.f32.mrb[0].mxu0
        %1771 = vmatprep.mubr.bf16.mxu0 0
        %1772 = vmatmul.mubr.bf16.gmra.mrb[0].mxu0 %v1635
        %v1773 = vpop.f32.mrb[0].mxu0
        %v1774 = vadd.f32 %v1507, %v1773
        %v1775 = vpop.f32.mrb[0].mxu0
        %v1776 = vpop.f32.mrb[0].mxu0
        %v1777 = vadd.f32 %v1507, %v1776
        %v1778 = vpop.f32.mrb[0].mxu0
        %1779 = vmatprep.mubr.bf16.mxu0 0
        %1780 = vmatmul.mubr.bf16.gmra.mrb[0].mxu0 %v1638
        %v1781 = vpop.f32.mrb[0].mxu0
        %v1782 = vadd.f32 %v1507, %v1781
        %v1783 = vpop.f32.mrb[0].mxu0
        %v1784 = vpop.f32.mrb[0].mxu0
        %v1785 = vadd.f32 %v1507, %v1784
        %v1786 = vpop.f32.mrb[0].mxu0
        %1787 = vmatprep.mubr.bf16.mxu0 0
        %1788 = vmatmul.mubr.bf16.gmra.mrb[0].mxu0 %v1641
        %v1789 = vpop.f32.mrb[0].mxu0
        %v1790 = vpop.f32.mrb[0].mxu0
        %v1791 = vpop.f32.mrb[0].mxu0
        %v1792 = vpop.f32.mrb[0].mxu0
        %1793 = vmatprep.mubr.bf16.mxu0 0
        %1794 = vmatmul.mubr.bf16.gmra.mrb[0].mxu0 %v1644
        %v1795 = vpop.f32.mrb[0].mxu0
        %v1796 = vpop.f32.mrb[0].mxu0
        %v1797 = vpop.f32.mrb[0].mxu0
        %v1798 = vpop.f32.mrb[0].mxu0
        %1799 = vdwg.mxu0
        %v1800 = vsub.f32 1.0, %v628
        %v1801 = vsub.f32 1.0, %v629
        %v1802 = vsub.f32 1.0, %v630
        %v1803 = vsub.f32 1.0, %v631
        %v1804 = vsub.f32 1.0, %v632
        %v1805 = vsub.f32 1.0, %v633
        %v1806 = vsub.f32 1.0, %v634
        %v1807 = vsub.f32 1.0, %v635
        %v1808 = vsub.f32 1.0, %v636
        %v1809 = vsub.f32 1.0, %v637
        %v1810 = vsub.f32 1.0, %v638
        %v1811 = vsub.f32 1.0, %v639
        %v1812 = vsub.f32 1.0, %v640
        %v1813 = vsub.f32 1.0, %v641
        %v1814 = vsub.f32 1.0, %v642
        %v1815 = vsub.f32 1.0, %v643
        %v1816 = vsub.f32 1.0, %v644
        %v1817 = vsub.f32 1.0, %v645
        %v1818 = vsub.f32 1.0, %v646
        %v1819 = vsub.f32 1.0, %v647
        %v1820 = vsub.f32 1.0, %v648
        %v1821 = vsub.f32 1.0, %v649
        %v1822 = vmul.f32 %v1800, 0.25
        %v1823 = vmul.f32 %v1801, 0.25
        %v1824 = vmul.f32 %v1802, 0.25
        %v1825 = vmul.f32 %v1803, 0.25
        %v1826 = vmul.f32 %v1804, 0.25
        %v1827 = vmul.f32 %v1805, 0.25
        %v1828 = vmul.f32 %v1806, 0.25
        %v1829 = vmul.f32 %v1807, 0.25
        %v1830 = vmul.f32 %v1808, 0.25
        %v1831 = vmul.f32 %v1809, 0.25
        %v1832 = vmul.f32 %v1810, 0.25
        %v1833 = vmul.f32 %v1811, 0.25
        %v1834 = vmul.f32 %v1812, 0.25
        %v1835 = vmul.f32 %v1813, 0.25
        %v1836 = vmul.f32 %v1814, 0.25
        %v1837 = vmul.f32 %v1815, 0.25
        %v1838 = vmul.f32 %v1816, 0.25
        %v1839 = vmul.f32 %v1817, 0.25
        %v1840 = vmul.f32 %v1818, 0.25
        %v1841 = vmul.f32 %v1819, 0.25
        %v1842 = vmul.f32 %v1820, 0.25
        %v1843 = vmul.f32 %v1821, 0.25
        %v1844 = vmul.f32 %v468, %v1822
        %v1845 = vmul.f32 %v471, %v1823
        %v1846 = vmul.f32 %v476, %v1824
        %v1847 = vmul.f32 %v479, %v1825
        %v1848 = vmul.f32 %v490, %v1826
        %v1849 = vmul.f32 %v493, %v1827
        %v1850 = vmul.f32 %v498, %v1828
        %v1851 = vmul.f32 %v501, %v1829
        %v1852 = vmul.f32 %v506, %v1830
        %v1853 = vmul.f32 %v509, %v1831
        %v1854 = vmul.f32 %v520, %v1832
        %v1855 = vmul.f32 %v523, %v1833
        %v1856 = vmul.f32 %v528, %v1834
        %v1857 = vmul.f32 %v531, %v1835
        %v1858 = vmul.f32 %v536, %v1836
        %v1859 = vmul.f32 %v539, %v1837
        %v1860 = vmul.f32 %v550, %v1838
        %v1861 = vmul.f32 %v553, %v1839
        %v1862 = vmul.f32 %v558, %v1840
        %v1863 = vmul.f32 %v561, %v1841
        %v1864 = vmul.f32 %v566, %v1842
        %v1865 = vmul.f32 %v569, %v1843
        %v1866 = vadd.f32 %v1844, %v1684
        %v1867 = vadd.f32 %v1845, %v1687
        %v1868 = vadd.f32 %v1846, %v1692
        %v1869 = vadd.f32 %v1847, %v1695
        %v1870 = vadd.f32 %v1848, %v1706
        %v1871 = vadd.f32 %v1849, %v1709
        %v1872 = vadd.f32 %v1850, %v1714
        %v1873 = vadd.f32 %v1851, %v1717
        %v1874 = vadd.f32 %v1852, %v1722
        %v1875 = vadd.f32 %v1853, %v1725
        %v1876 = vadd.f32 %v1854, %v1736
        %v1877 = vadd.f32 %v1855, %v1739
        %v1878 = vadd.f32 %v1856, %v1744
        %v1879 = vadd.f32 %v1857, %v1747
        %v1880 = vadd.f32 %v1858, %v1752
        %v1881 = vadd.f32 %v1859, %v1755
        %v1882 = vadd.f32 %v1860, %v1766
        %v1883 = vadd.f32 %v1861, %v1769
        %v1884 = vadd.f32 %v1862, %v1774
        %v1885 = vadd.f32 %v1863, %v1777
        %v1886 = vadd.f32 %v1864, %v1782
        %v1887 = vadd.f32 %v1865, %v1785
        %vm1888 = vcmp.gt.f32.partialorder %v1866, 0.5
        %vm1889 = vcmp.gt.f32.partialorder %v1867, 0.5
        %vm1890 = vcmp.gt.f32.partialorder %v1868, 0.5
        %vm1891 = vcmp.gt.f32.partialorder %v1869, 0.5
        %vm1892 = vcmp.gt.f32.partialorder %v1870, 0.5
        %vm1893 = vcmp.gt.f32.partialorder %v1871, 0.5
        %vm1894 = vcmp.gt.f32.partialorder %v1872, 0.5
        %vm1895 = vcmp.gt.f32.partialorder %v1873, 0.5
        %vm1896 = vcmp.gt.f32.partialorder %v1874, 0.5
        %vm1897 = vcmp.gt.f32.partialorder %v1875, 0.5
        %vm1898 = vcmp.gt.f32.partialorder %v1876, 0.5
        %vm1899 = vcmp.gt.f32.partialorder %v1877, 0.5
        %vm1900 = vcmp.gt.f32.partialorder %v1878, 0.5
        %vm1901 = vcmp.gt.f32.partialorder %v1879, 0.5
        %vm1902 = vcmp.gt.f32.partialorder %v1880, 0.5
        %vm1903 = vcmp.gt.f32.partialorder %v1881, 0.5
        %vm1904 = vcmp.gt.f32.partialorder %v1882, 0.5
        %vm1905 = vcmp.gt.f32.partialorder %v1883, 0.5
        %vm1906 = vcmp.gt.f32.partialorder %v1884, 0.5
        %vm1907 = vcmp.gt.f32.partialorder %v1885, 0.5
        %vm1908 = vcmp.gt.f32.partialorder %v1886, 0.5
        %vm1909 = vcmp.gt.f32.partialorder %v1887, 0.5
        %v1910 = vsel %vm1888, 1, 0
        %v1911 = vsel %vm1889, 1, 0
        %v1912 = vsel %vm1890, 1, 0
        %v1913 = vsel %vm1891, 1, 0
        %v1914 = vsel %vm1892, 1, 0
        %v1915 = vsel %vm1893, 1, 0
        %v1916 = vsel %vm1894, 1, 0
        %v1917 = vsel %vm1895, 1, 0
        %v1918 = vsel %vm1896, 1, 0
        %v1919 = vsel %vm1897, 1, 0
        %v1920 = vsel %vm1898, 1, 0
        %v1921 = vsel %vm1899, 1, 0
        %v1922 = vsel %vm1900, 1, 0
        %v1923 = vsel %vm1901, 1, 0
        %v1924 = vsel %vm1902, 1, 0
        %v1925 = vsel %vm1903, 1, 0
        %v1926 = vsel %vm1904, 1, 0
        %v1927 = vsel %vm1905, 1, 0
        %v1928 = vsel %vm1906, 1, 0
        %v1929 = vsel %vm1907, 1, 0
        %v1930 = vsel %vm1908, 1, 0
        %v1931 = vsel %vm1909, 1, 0
        %v1932 = vcvt.s32.f32 %v1910
        %v1933 = vcvt.s32.f32 %v1911
        %v1934 = vcvt.s32.f32 %v1912
        %v1935 = vcvt.s32.f32 %v1913
        %v1936 = vcvt.s32.f32 %v1914
        %v1937 = vcvt.s32.f32 %v1915
        %v1938 = vcvt.s32.f32 %v1916
        %v1939 = vcvt.s32.f32 %v1917
        %v1940 = vcvt.s32.f32 %v1918
        %v1941 = vcvt.s32.f32 %v1919
        %v1942 = vcvt.s32.f32 %v1920
        %v1943 = vcvt.s32.f32 %v1921
        %v1944 = vcvt.s32.f32 %v1922
        %v1945 = vcvt.s32.f32 %v1923
        %v1946 = vcvt.s32.f32 %v1924
        %v1947 = vcvt.s32.f32 %v1925
        %v1948 = vcvt.s32.f32 %v1926
        %v1949 = vcvt.s32.f32 %v1927
        %v1950 = vcvt.s32.f32 %v1928
        %v1951 = vcvt.s32.f32 %v1929
        %v1952 = vcvt.s32.f32 %v1930
        %v1953 = vcvt.s32.f32 %v1931
        %v1976 = vcombine.high %v1932, %v1932
        %v1977 = vcombine.high %v1933, %v1933
        %v1978 = vcombine.high %v1934, %v1934
        %v1979 = vcombine.high %v1935, %v1935
        %v1980 = vcombine.high %v1936, %v1936
        %v1981 = vcombine.high %v1937, %v1937
        %v1982 = vcombine.high %v1938, %v1938
        %v1983 = vcombine.high %v1939, %v1939
        %v1984 = vcombine.high %v1940, %v1940
        %v1985 = vcombine.high %v1941, %v1941
        %v1986 = vcombine.high %v1942, %v1942
        %v1987 = vcombine.high %v1943, %v1943
        %v1988 = vcombine.high %v1944, %v1944
        %v1989 = vcombine.high %v1945, %v1945
        %v1990 = vcombine.high %v1946, %v1946
        %v1991 = vcombine.high %v1947, %v1947
        %v1992 = vcombine.high %v1948, %v1948
        %v1993 = vcombine.high %v1949, %v1949
        %v1994 = vcombine.high %v1950, %v1950
        %v1995 = vcombine.high %v1951, %v1951
        %v1996 = vcombine.high %v1952, %v1952
        %v1997 = vcombine.high %v1953, %v1953
        %v2020 = vrot.slane %v1932, 5
        %v2021 = vrot.slane %v2020, 4
        %v2022 = vrot.slane %v1976, 5
        %v2023 = vrot.slane %v2022, 4
        %v2024 = vrot.slane %v1933, 5
        %v2025 = vrot.slane %v2024, 4
        %v2026 = vrot.slane %v1977, 5
        %v2027 = vrot.slane %v2026, 4
        %v2028 = vrot.slane %v1934, 5
        %v2029 = vrot.slane %v2028, 4
        %v2030 = vrot.slane %v1978, 5
        %v2031 = vrot.slane %v2030, 4
        %v2032 = vrot.slane %v1935, 5
        %v2033 = vrot.slane %v2032, 4
        %v2034 = vrot.slane %v1979, 5
        %v2035 = vrot.slane %v2034, 4
        %v2036 = vrot.slane %v1936, 5
        %v2037 = vrot.slane %v2036, 4
        %v2038 = vrot.slane %v1980, 5
        %v2039 = vrot.slane %v2038, 4
        %v2040 = vrot.slane %v1937, 5
        %v2041 = vrot.slane %v2040, 4
        %v2042 = vrot.slane %v1981, 5
        %v2043 = vrot.slane %v2042, 4
        %v2044 = vrot.slane %v1938, 5
        %v2045 = vrot.slane %v2044, 4
        %v2046 = vrot.slane %v1982, 5
        %v2047 = vrot.slane %v2046, 4
        %v2048 = vrot.slane %v1939, 5
        %v2049 = vrot.slane %v2048, 4
        %v2050 = vrot.slane %v1983, 5
        %v2051 = vrot.slane %v2050, 4
        %v2052 = vrot.slane %v1940, 5
        %v2053 = vrot.slane %v2052, 4
        %v2054 = vrot.slane %v1984, 5
        %v2055 = vrot.slane %v2054, 4
        %v2056 = vrot.slane %v1941, 5
        %v2057 = vrot.slane %v2056, 4
        %v2058 = vrot.slane %v1985, 5
        %v2059 = vrot.slane %v2058, 4
        %v2060 = vrot.slane %v1942, 5
        %v2061 = vrot.slane %v2060, 4
        %v2062 = vrot.slane %v1986, 5
        %v2063 = vrot.slane %v2062, 4
        %v2064 = vrot.slane %v1943, 5
        %v2065 = vrot.slane %v2064, 4
        %v2066 = vrot.slane %v1987, 5
        %v2067 = vrot.slane %v2066, 4
        %v2068 = vrot.slane %v1944, 5
        %v2069 = vrot.slane %v2068, 4
        %v2070 = vrot.slane %v1988, 5
        %v2071 = vrot.slane %v2070, 4
        %v2072 = vrot.slane %v1945, 5
        %v2073 = vrot.slane %v2072, 4
        %v2074 = vrot.slane %v1989, 5
        %v2075 = vrot.slane %v2074, 4
        %v2076 = vrot.slane %v1946, 5
        %v2077 = vrot.slane %v2076, 4
        %v2078 = vrot.slane %v1990, 5
        %v2079 = vrot.slane %v2078, 4
        %v2080 = vrot.slane %v1947, 5
        %v2081 = vrot.slane %v2080, 4
        %v2082 = vrot.slane %v1991, 5
        %v2083 = vrot.slane %v2082, 4
        %v2084 = vrot.slane %v1948, 5
        %v2085 = vrot.slane %v2084, 4
        %v2086 = vrot.slane %v1992, 5
        %v2087 = vrot.slane %v2086, 4
        %v2088 = vrot.slane %v1949, 5
        %v2089 = vrot.slane %v2088, 4
        %v2090 = vrot.slane %v1993, 5
        %v2091 = vrot.slane %v2090, 4
        %v2092 = vrot.slane %v1950, 5
        %v2093 = vrot.slane %v2092, 4
        %v2094 = vrot.slane %v1994, 5
        %v2095 = vrot.slane %v2094, 4
        %v2096 = vrot.slane %v1951, 5
        %v2097 = vrot.slane %v2096, 4
        %v2098 = vrot.slane %v1995, 5
        %v2099 = vrot.slane %v2098, 4
        %v2100 = vrot.slane %v1952, 5
        %v2101 = vrot.slane %v2100, 4
        %v2102 = vrot.slane %v1996, 5
        %v2103 = vrot.slane %v2102, 4
        %v2104 = vrot.slane %v1953, 5
        %v2105 = vrot.slane %v2104, 4
        %v2106 = vrot.slane %v1997, 5
        %v2107 = vrot.slane %v2106, 4
        %v2152 = vmax.f32 %v1932, %v2021
        %v2153 = vmax.f32 %v1976, %v2023
        %v2154 = vmax.f32 %v1933, %v2025
        %v2155 = vmax.f32 %v1977, %v2027
        %v2156 = vmax.f32 %v1934, %v2029
        %v2157 = vmax.f32 %v1978, %v2031
        %v2158 = vmax.f32 %v1935, %v2033
        %v2159 = vmax.f32 %v1979, %v2035
        %v2160 = vmax.f32 %v1936, %v2037
        %v2161 = vmax.f32 %v1980, %v2039
        %v2162 = vmax.f32 %v1937, %v2041
        %v2163 = vmax.f32 %v1981, %v2043
        %v2164 = vmax.f32 %v1938, %v2045
        %v2165 = vmax.f32 %v1982, %v2047
        %v2166 = vmax.f32 %v1939, %v2049
        %v2167 = vmax.f32 %v1983, %v2051
        %v2168 = vmax.f32 %v1940, %v2053
        %v2169 = vmax.f32 %v1984, %v2055
        %v2170 = vmax.f32 %v1941, %v2057
        %v2171 = vmax.f32 %v1985, %v2059
        %v2172 = vmax.f32 %v1942, %v2061
        %v2173 = vmax.f32 %v1986, %v2063
        %v2174 = vmax.f32 %v1943, %v2065
        %v2175 = vmax.f32 %v1987, %v2067
        %v2176 = vmax.f32 %v1944, %v2069
        %v2177 = vmax.f32 %v1988, %v2071
        %v2178 = vmax.f32 %v1945, %v2073
        %v2179 = vmax.f32 %v1989, %v2075
        %v2180 = vmax.f32 %v1946, %v2077
        %v2181 = vmax.f32 %v1990, %v2079
        %v2182 = vmax.f32 %v1947, %v2081
        %v2183 = vmax.f32 %v1991, %v2083
        %v2184 = vmax.f32 %v1948, %v2085
        %v2185 = vmax.f32 %v1992, %v2087
        %v2186 = vmax.f32 %v1949, %v2089
        %v2187 = vmax.f32 %v1993, %v2091
        %v2188 = vmax.f32 %v1950, %v2093
        %v2189 = vmax.f32 %v1994, %v2095
        %v2190 = vmax.f32 %v1951, %v2097
        %v2191 = vmax.f32 %v1995, %v2099
        %v2192 = vmax.f32 %v1952, %v2101
        %v2193 = vmax.f32 %v1996, %v2103
        %v2194 = vmax.f32 %v1953, %v2105
        %v2195 = vmax.f32 %v1997, %v2107
        %v2196 = vlaneseq
        %v2197 = vshrl.u32 %v2196, 7
        %v2198 = vsub.s32 3, %v2197
        %v2199 = vrot.slane %v1932, %v2198
        %v2200 = vlaneseq
        %v2201 = vshrl.u32 %v2200, 7
        %v2202 = vsub.s32 3, %v2201
        %v2203 = vrot.slane %v1976, %v2202
        %v2204 = vlaneseq
        %v2205 = vshrl.u32 %v2204, 7
        %v2206 = vsub.s32 3, %v2205
        %v2207 = vrot.slane %v1933, %v2206
        %v2208 = vlaneseq
        %v2209 = vshrl.u32 %v2208, 7
        %v2210 = vsub.s32 3, %v2209
        %v2211 = vrot.slane %v1934, %v2210
        %v2212 = vlaneseq
        %v2213 = vshrl.u32 %v2212, 7
        %v2214 = vsub.s32 3, %v2213
        %v2215 = vrot.slane %v1978, %v2214
        %v2216 = vlaneseq
        %v2217 = vshrl.u32 %v2216, 7
        %v2218 = vsub.s32 3, %v2217
        %v2219 = vrot.slane %v1935, %v2218
        %v2220 = vlaneseq
        %v2221 = vshrl.u32 %v2220, 7
        %v2222 = vsub.s32 3, %v2221
        %v2223 = vrot.slane %v1936, %v2222
        %v2224 = vlaneseq
        %v2225 = vshrl.u32 %v2224, 7
        %v2226 = vsub.s32 3, %v2225
        %v2227 = vrot.slane %v1980, %v2226
        %v2228 = vlaneseq
        %v2229 = vshrl.u32 %v2228, 7
        %v2230 = vsub.s32 3, %v2229
        %v2231 = vrot.slane %v1937, %v2230
        %v2232 = vlaneseq
        %v2233 = vshrl.u32 %v2232, 7
        %v2234 = vsub.s32 3, %v2233
        %v2235 = vrot.slane %v1938, %v2234
        %v2236 = vlaneseq
        %v2237 = vshrl.u32 %v2236, 7
        %v2238 = vsub.s32 3, %v2237
        %v2239 = vrot.slane %v1982, %v2238
        %v2240 = vlaneseq
        %v2241 = vshrl.u32 %v2240, 7
        %v2242 = vsub.s32 3, %v2241
        %v2243 = vrot.slane %v1939, %v2242
        %v2244 = vlaneseq
        %v2245 = vshrl.u32 %v2244, 7
        %v2246 = vsub.s32 3, %v2245
        %v2247 = vrot.slane %v1940, %v2246
        %v2248 = vlaneseq
        %v2249 = vshrl.u32 %v2248, 7
        %v2250 = vsub.s32 3, %v2249
        %v2251 = vrot.slane %v1984, %v2250
        %v2252 = vlaneseq
        %v2253 = vshrl.u32 %v2252, 7
        %v2254 = vsub.s32 3, %v2253
        %v2255 = vrot.slane %v1941, %v2254
        %v2256 = vlaneseq
        %v2257 = vshrl.u32 %v2256, 7
        %v2258 = vsub.s32 3, %v2257
        %v2259 = vrot.slane %v1942, %v2258
        %v2260 = vlaneseq
        %v2261 = vshrl.u32 %v2260, 7
        %v2262 = vsub.s32 3, %v2261
        %v2263 = vrot.slane %v1986, %v2262
        %v2264 = vlaneseq
        %v2265 = vshrl.u32 %v2264, 7
        %v2266 = vsub.s32 3, %v2265
        %v2267 = vrot.slane %v1943, %v2266
        %v2268 = vlaneseq
        %v2269 = vshrl.u32 %v2268, 7
        %v2270 = vsub.s32 3, %v2269
        %v2271 = vrot.slane %v1944, %v2270
        %v2272 = vlaneseq
        %v2273 = vshrl.u32 %v2272, 7
        %v2274 = vsub.s32 3, %v2273
        %v2275 = vrot.slane %v1988, %v2274
        %v2276 = vlaneseq
        %v2277 = vshrl.u32 %v2276, 7
        %v2278 = vsub.s32 3, %v2277
        %v2279 = vrot.slane %v1945, %v2278
        %v2280 = vlaneseq
        %v2281 = vshrl.u32 %v2280, 7
        %v2282 = vsub.s32 3, %v2281
        %v2283 = vrot.slane %v1946, %v2282
        %v2284 = vlaneseq
        %v2285 = vshrl.u32 %v2284, 7
        %v2286 = vsub.s32 3, %v2285
        %v2287 = vrot.slane %v1990, %v2286
        %v2288 = vlaneseq
        %v2289 = vshrl.u32 %v2288, 7
        %v2290 = vsub.s32 3, %v2289
        %v2291 = vrot.slane %v1947, %v2290
        %v2292 = vlaneseq
        %v2293 = vshrl.u32 %v2292, 7
        %v2294 = vsub.s32 3, %v2293
        %v2295 = vrot.slane %v1948, %v2294
        %v2296 = vlaneseq
        %v2297 = vshrl.u32 %v2296, 7
        %v2298 = vsub.s32 3, %v2297
        %v2299 = vrot.slane %v1992, %v2298
        %v2300 = vlaneseq
        %v2301 = vshrl.u32 %v2300, 7
        %v2302 = vsub.s32 3, %v2301
        %v2303 = vrot.slane %v1949, %v2302
        %v2304 = vlaneseq
        %v2305 = vshrl.u32 %v2304, 7
        %v2306 = vsub.s32 3, %v2305
        %v2307 = vrot.slane %v1950, %v2306
        %v2308 = vlaneseq
        %v2309 = vshrl.u32 %v2308, 7
        %v2310 = vsub.s32 3, %v2309
        %v2311 = vrot.slane %v1994, %v2310
        %v2312 = vlaneseq
        %v2313 = vshrl.u32 %v2312, 7
        %v2314 = vsub.s32 3, %v2313
        %v2315 = vrot.slane %v1951, %v2314
        %v2316 = vlaneseq
        %v2317 = vshrl.u32 %v2316, 7
        %v2318 = vsub.s32 3, %v2317
        %v2319 = vrot.slane %v1952, %v2318
        %v2320 = vlaneseq
        %v2321 = vshrl.u32 %v2320, 7
        %v2322 = vsub.s32 3, %v2321
        %v2323 = vrot.slane %v1996, %v2322
        %v2324 = vlaneseq
        %v2325 = vshrl.u32 %v2324, 7
        %v2326 = vsub.s32 3, %v2325
        %v2327 = vrot.slane %v1953, %v2326
        %v2328 = vsel %vm1024, %v2203, %v2199
        %v2329 = vsel %vm1026, %v2207, %v2328
        %v2330 = vsel %vm1024, %v2215, %v2211
        %v2331 = vsel %vm1026, %v2219, %v2330
        %v2332 = vsel %vm1024, %v2227, %v2223
        %v2333 = vsel %vm1026, %v2231, %v2332
        %v2334 = vsel %vm1024, %v2239, %v2235
        %v2335 = vsel %vm1026, %v2243, %v2334
        %v2336 = vsel %vm1024, %v2251, %v2247
        %v2337 = vsel %vm1026, %v2255, %v2336
        %v2338 = vsel %vm1024, %v2263, %v2259
        %v2339 = vsel %vm1026, %v2267, %v2338
        %v2340 = vsel %vm1024, %v2275, %v2271
        %v2341 = vsel %vm1026, %v2279, %v2340
        %v2342 = vsel %vm1024, %v2287, %v2283
        %v2343 = vsel %vm1026, %v2291, %v2342
        %v2344 = vsel %vm1024, %v2299, %v2295
        %v2345 = vsel %vm1026, %v2303, %v2344
        %v2346 = vsel %vm1024, %v2311, %v2307
        %v2347 = vsel %vm1026, %v2315, %v2346
        %v2348 = vsel %vm1024, %v2323, %v2319
        %v2349 = vsel %vm1026, %v2327, %v2348
        %v2361 = vsel %vm429, 0.0, %v2329
        %v2362 = vsel %vm429, 0.0, %v2331
        %v2363 = vsel %vm429, 0.0, %v2333
        %v2364 = vsel %vm429, 0.0, %v2335
        %v2365 = vsel %vm429, 0.0, %v2337
        %v2366 = vsel %vm429, 0.0, %v2339
        %v2367 = vsel %vm429, 0.0, %v2341
        %v2368 = vsel %vm429, 0.0, %v2343
        %v2369 = vsel %vm429, 0.0, %v2345
        %v2370 = vsel %vm429, 0.0, %v2347
        %v2371 = vsel %vm429, 0.0, %v2349
        %v2383 = vrot.slane %v2361, 1
        %v2384 = vrot.slane %v2361, 2
        %v2385 = vrot.slane %v2361, 3
        %v2386 = vrot.slane %v2362, 1
        %v2387 = vrot.slane %v2362, 2
        %v2388 = vrot.slane %v2362, 3
        %v2389 = vrot.slane %v2363, 1
        %v2390 = vrot.slane %v2363, 2
        %v2391 = vrot.slane %v2363, 3
        %v2392 = vrot.slane %v2364, 1
        %v2393 = vrot.slane %v2364, 2
        %v2394 = vrot.slane %v2364, 3
        %v2395 = vrot.slane %v2365, 1
        %v2396 = vrot.slane %v2365, 2
        %v2397 = vrot.slane %v2365, 3
        %v2398 = vrot.slane %v2366, 1
        %v2399 = vrot.slane %v2366, 2
        %v2400 = vrot.slane %v2366, 3
        %v2401 = vrot.slane %v2367, 1
        %v2402 = vrot.slane %v2367, 2
        %v2403 = vrot.slane %v2367, 3
        %v2404 = vrot.slane %v2368, 1
        %v2405 = vrot.slane %v2368, 2
        %v2406 = vrot.slane %v2368, 3
        %v2407 = vrot.slane %v2369, 1
        %v2408 = vrot.slane %v2369, 2
        %v2409 = vrot.slane %v2369, 3
        %v2410 = vrot.slane %v2370, 1
        %v2411 = vrot.slane %v2370, 2
        %v2412 = vrot.slane %v2370, 3
        %v2413 = vrot.slane %v2371, 1
        %v2414 = vrot.slane %v2371, 2
        %v2415 = vrot.slane %v2371, 3
        %v2460 = vmax.f32 %v2152, %v2361
        %v2461 = vmax.f32 %v2153, %v2383
        %v2462 = vmax.f32 %v2154, %v2384
        %v2463 = vmax.f32 %v2155, %v2385
        %v2464 = vmax.f32 %v2156, %v2362
        %v2465 = vmax.f32 %v2157, %v2386
        %v2466 = vmax.f32 %v2158, %v2387
        %v2467 = vmax.f32 %v2159, %v2388
        %v2468 = vmax.f32 %v2160, %v2363
        %v2469 = vmax.f32 %v2161, %v2389
        %v2470 = vmax.f32 %v2162, %v2390
        %v2471 = vmax.f32 %v2163, %v2391
        %v2472 = vmax.f32 %v2164, %v2364
        %v2473 = vmax.f32 %v2165, %v2392
        %v2474 = vmax.f32 %v2166, %v2393
        %v2475 = vmax.f32 %v2167, %v2394
        %v2476 = vmax.f32 %v2168, %v2365
        %v2477 = vmax.f32 %v2169, %v2395
        %v2478 = vmax.f32 %v2170, %v2396
        %v2479 = vmax.f32 %v2171, %v2397
        %v2480 = vmax.f32 %v2172, %v2366
        %v2481 = vmax.f32 %v2173, %v2398
        %v2482 = vmax.f32 %v2174, %v2399
        %v2483 = vmax.f32 %v2175, %v2400
        %v2484 = vmax.f32 %v2176, %v2367
        %v2485 = vmax.f32 %v2177, %v2401
        %v2486 = vmax.f32 %v2178, %v2402
        %v2487 = vmax.f32 %v2179, %v2403
        %v2488 = vmax.f32 %v2180, %v2368
        %v2489 = vmax.f32 %v2181, %v2404
        %v2490 = vmax.f32 %v2182, %v2405
        %v2491 = vmax.f32 %v2183, %v2406
        %v2492 = vmax.f32 %v2184, %v2369
        %v2493 = vmax.f32 %v2185, %v2407
        %v2494 = vmax.f32 %v2186, %v2408
        %v2495 = vmax.f32 %v2187, %v2409
        %v2496 = vmax.f32 %v2188, %v2370
        %v2497 = vmax.f32 %v2189, %v2410
        %v2498 = vmax.f32 %v2190, %v2411
        %v2499 = vmax.f32 %v2191, %v2412
        %v2500 = vmax.f32 %v2192, %v2371
        %v2501 = vmax.f32 %v2193, %v2413
        %v2502 = vmax.f32 %v2194, %v2414
        %v2503 = vmax.f32 %v2195, %v2415
        %v2504 = vmax.f32 %v2460, %v2464
        %v2505 = vmax.f32 %v2461, %v2465
        %v2506 = vmax.f32 %v2462, %v2466
        %v2507 = vmax.f32 %v2463, %v2467
        %v2508 = vmax.f32 %v2472, %v2476
        %v2509 = vmax.f32 %v2473, %v2477
        %v2510 = vmax.f32 %v2474, %v2478
        %v2511 = vmax.f32 %v2475, %v2479
        %v2512 = vmax.f32 %v2484, %v2488
        %v2513 = vmax.f32 %v2485, %v2489
        %v2514 = vmax.f32 %v2486, %v2490
        %v2515 = vmax.f32 %v2487, %v2491
        %v2516 = vmax.f32 %v2496, %v2500
        %v2517 = vmax.f32 %v2497, %v2501
        %v2518 = vmax.f32 %v2498, %v2502
        %v2519 = vmax.f32 %v2499, %v2503
        %v2532 = vlaneseq
        %v2533 = vshrl.u32 %v2532, 7
        %v2534 = vsub.s32 0, %v2533
        %v2535 = vrot.slane %v2468, %v2534
        %v2536 = vlaneseq
        %v2537 = vshrl.u32 %v2536, 7
        %v2538 = vsub.s32 0, %v2537
        %v2539 = vrot.slane %v2469, %v2538
        %v2540 = vlaneseq
        %v2541 = vshrl.u32 %v2540, 7
        %v2542 = vsub.s32 0, %v2541
        %v2543 = vrot.slane %v2470, %v2542
        %v2544 = vlaneseq
        %v2545 = vshrl.u32 %v2544, 7
        %v2546 = vsub.s32 0, %v2545
        %v2547 = vrot.slane %v2471, %v2546
        %v2548 = vlaneseq
        %v2549 = vshrl.u32 %v2548, 7
        %v2550 = vsub.s32 0, %v2549
        %v2551 = vrot.slane %v2480, %v2550
        %v2552 = vlaneseq
        %v2553 = vshrl.u32 %v2552, 7
        %v2554 = vsub.s32 0, %v2553
        %v2555 = vrot.slane %v2481, %v2554
        %v2556 = vlaneseq
        %v2557 = vshrl.u32 %v2556, 7
        %v2558 = vsub.s32 0, %v2557
        %v2559 = vrot.slane %v2482, %v2558
        %v2560 = vlaneseq
        %v2561 = vshrl.u32 %v2560, 7
        %v2562 = vsub.s32 0, %v2561
        %v2563 = vrot.slane %v2483, %v2562
        %v2564 = vlaneseq
        %v2565 = vshrl.u32 %v2564, 7
        %v2566 = vsub.s32 0, %v2565
        %v2567 = vrot.slane %v2492, %v2566
        %v2568 = vlaneseq
        %v2569 = vshrl.u32 %v2568, 7
        %v2570 = vsub.s32 0, %v2569
        %v2571 = vrot.slane %v2493, %v2570
        %v2572 = vlaneseq
        %v2573 = vshrl.u32 %v2572, 7
        %v2574 = vsub.s32 0, %v2573
        %v2575 = vrot.slane %v2494, %v2574
        %v2576 = vlaneseq
        %v2577 = vshrl.u32 %v2576, 7
        %v2578 = vsub.s32 0, %v2577
        %v2579 = vrot.slane %v2495, %v2578
        %v2580 = vsel %vm1278, %v2539, %v2535
        %v2581 = vsel %vm1024, %v2543, %v2580
        %v2582 = vsel %vm1026, %v2547, %v2581
        %v2583 = vsel %vm1278, %v2555, %v2551
        %v2584 = vsel %vm1024, %v2559, %v2583
        %v2585 = vsel %vm1026, %v2563, %v2584
        %v2586 = vsel %vm1278, %v2571, %v2567
        %v2587 = vsel %vm1024, %v2575, %v2586
        %v2588 = vsel %vm1026, %v2579, %v2587
        %v2589 = vrot.slane %v2582, 1
        %v2590 = vrot.slane %v2582, 2
        %v2591 = vrot.slane %v2582, 3
        %v2592 = vrot.slane %v2585, 1
        %v2593 = vrot.slane %v2585, 2
        %v2594 = vrot.slane %v2585, 3
        %v2595 = vrot.slane %v2588, 1
        %v2596 = vrot.slane %v2588, 2
        %v2597 = vrot.slane %v2588, 3
        %v2610 = vmax.f32 %v2504, 0.0
        %v2611 = vmax.f32 %v2505, %v1289
        %v2612 = vmax.f32 %v2506, %v1290
        %v2613 = vmax.f32 %v2507, %v1291
        %v2614 = vmax.f32 %v2508, %v2582
        %v2615 = vmax.f32 %v2509, %v2589
        %v2616 = vmax.f32 %v2510, %v2590
        %v2617 = vmax.f32 %v2511, %v2591
        %v2618 = vmax.f32 %v2512, %v2585
        %v2619 = vmax.f32 %v2513, %v2592
        %v2620 = vmax.f32 %v2514, %v2593
        %v2621 = vmax.f32 %v2515, %v2594
        %v2622 = vmax.f32 %v2516, %v2588
        %v2623 = vmax.f32 %v2517, %v2595
        %v2624 = vmax.f32 %v2518, %v2596
        %v2625 = vmax.f32 %v2519, %v2597
        %v2626 = vpack.c.bf16 %v2610, %v2610
        %v2627 = vpack.c.bf16 %v2611, %v2611
        %v2628 = vpack.c.bf16 %v2612, %v2612
        %v2629 = vpack.c.bf16 %v2613, %v2613
        %v2630 = vpack.c.bf16 %v2614, %v2614
        %v2631 = vpack.c.bf16 %v2615, %v2615
        %v2632 = vpack.c.bf16 %v2616, %v2616
        %v2633 = vpack.c.bf16 %v2617, %v2617
        %v2634 = vpack.c.bf16 %v2618, %v2618
        %v2635 = vpack.c.bf16 %v2619, %v2619
        %v2636 = vpack.c.bf16 %v2620, %v2620
        %v2637 = vpack.c.bf16 %v2621, %v2621
        %v2638 = vpack.c.bf16 %v2622, %v2622
        %v2639 = vpack.c.bf16 %v2623, %v2623
        %v2640 = vpack.c.bf16 %v2624, %v2624
        %v2641 = vpack.c.bf16 %v2625, %v2625
        %v2658 = vunpack.c.l.b16 %v2626
        %v2659 = vunpack.c.l.b16 %v2627
        %v2660 = vunpack.c.l.b16 %v2628
        %v2661 = vunpack.c.l.b16 %v2629
        %v2662 = vunpack.c.l.b16 %v2630
        %v2663 = vunpack.c.l.b16 %v2631
        %v2664 = vunpack.c.l.b16 %v2632
        %v2665 = vunpack.c.l.b16 %v2633
        %v2666 = vunpack.c.l.b16 %v2634
        %v2667 = vunpack.c.l.b16 %v2635
        %v2668 = vunpack.c.l.b16 %v2636
        %v2669 = vunpack.c.l.b16 %v2637
        %v2670 = vunpack.c.l.b16 %v2638
        %v2671 = vunpack.c.l.b16 %v2639
        %v2672 = vunpack.c.l.b16 %v2640
        %v2673 = vunpack.c.l.b16 %v2641
        %v2674 = vpack.c.b16 %v2658, %v2658
        %v2675 = vpack.c.b16 %v2659, %v2659
        %v2676 = vpack.c.b16 %v2660, %v2660
        %v2677 = vpack.c.b16 %v2661, %v2661
        %v2678 = vpack.c.b16 %v2662, %v2662
        %v2679 = vpack.c.b16 %v2663, %v2663
        %v2680 = vpack.c.b16 %v2664, %v2664
        %v2681 = vpack.c.b16 %v2665, %v2665
        %v2682 = vpack.c.b16 %v2666, %v2666
        %v2683 = vpack.c.b16 %v2667, %v2667
        %v2684 = vpack.c.b16 %v2668, %v2668
        %v2685 = vpack.c.b16 %v2669, %v2669
        %v2686 = vpack.c.b16 %v2670, %v2670
        %v2687 = vpack.c.b16 %v2671, %v2671
        %v2688 = vpack.c.b16 %v2672, %v2672
        %v2689 = vpack.c.b16 %v2673, %v2673
        %v2690 = vunpack.c.l.b16 %v2674
        %v2691 = vunpack.c.l.b16 %v2675
        %v2692 = vunpack.c.l.b16 %v2676
        %v2693 = vunpack.c.l.b16 %v2677
        %v2694 = vunpack.c.l.b16 %v2678
        %v2695 = vunpack.c.l.b16 %v2679
        %v2696 = vunpack.c.l.b16 %v2680
        %v2697 = vunpack.c.l.b16 %v2681
        %v2698 = vunpack.c.l.b16 %v2682
        %v2699 = vunpack.c.l.b16 %v2683
        %v2700 = vunpack.c.l.b16 %v2684
        %v2701 = vunpack.c.l.b16 %v2685
        %v2702 = vunpack.c.l.b16 %v2686
        %v2703 = vunpack.c.l.b16 %v2687
        %v2704 = vunpack.c.l.b16 %v2688
        %v2705 = vunpack.c.l.b16 %v2689
        %v2706 = vrot.slane %v2690, 7
        %v2707 = vrot.slane %v2691, 6
        %v2708 = vsel %vm1024, %v2707, %v2706
        %v2709 = vrot.slane %v2692, 5
        %v2710 = vsel %vm1026, %v2709, %v2708
        %v2711 = vrot.slane %v2693, 4
        %v2712 = vsel %vm1419, %v2711, %v2710
        %v2713 = vrot.slane %v2694, 7
        %v2714 = vrot.slane %v2695, 6
        %v2715 = vsel %vm1024, %v2714, %v2713
        %v2716 = vrot.slane %v2696, 5
        %v2717 = vsel %vm1026, %v2716, %v2715
        %v2718 = vrot.slane %v2697, 4
        %v2719 = vsel %vm1419, %v2718, %v2717
        %v2720 = vrot.slane %v2698, 7
        %v2721 = vrot.slane %v2699, 6
        %v2722 = vsel %vm1024, %v2721, %v2720
        %v2723 = vrot.slane %v2700, 5
        %v2724 = vsel %vm1026, %v2723, %v2722
        %v2725 = vrot.slane %v2701, 4
        %v2726 = vsel %vm1419, %v2725, %v2724
        %v2727 = vrot.slane %v2702, 7
        %v2728 = vrot.slane %v2703, 6
        %v2729 = vsel %vm1024, %v2728, %v2727
        %v2730 = vrot.slane %v2704, 5
        %v2731 = vsel %vm1026, %v2730, %v2729
        %v2732 = vrot.slane %v2705, 4
        %v2733 = vsel %vm1419, %v2732, %v2731
        %v2734 = vpack.c.b16 %v2712, %v2712
        %v2735 = vpack.c.b16 %v2719, %v2719
        %v2736 = vpack.c.b16 %v2726, %v2726
        %v2737 = vpack.c.b16 %v2733, %v2733
        %s2742 = scalar_lea.vmem [#allocation2], 28
        %v2743 = vld [vmem:[%s2742] sm:$0x7]
        %v2744 = vsel %vm1453, %v2734, %v2743
        %2745 = vst [vmem:[%s2742] sm:$0x7] %v2744
        %v2746 = vld [vmem:[%s2742 + $0x4] sm:$0x7]
        %v2747 = vsel %vm1453, %v2735, %v2746
        %2748 = vst [vmem:[%s2742 + $0x4] sm:$0x7] %v2747
        %v2749 = vld [vmem:[%s2742 + $0x8] sm:$0x7]
        %v2750 = vsel %vm1453, %v2736, %v2749
        %2751 = vst [vmem:[%s2742 + $0x8] sm:$0x7] %v2750
        %v2752 = vld [vmem:[%s2742 + $0xc] sm:$0x7]
        %v2753 = vsel %vm1453, %v2737, %v2752
        %2754 = vst [vmem:[%s2742 + $0xc] sm:$0x7] %v2753
        %s2755 = scalar_lea.vmem %s222, 256
        %v2756 = vld [vmem:[%s2755] sm:$0xf]
        %v2757 = vld [vmem:[%s2755 + $0x4] sm:$0xf]
        %v2758 = vld [vmem:[%s2755 + $0x8] sm:$0xf]
        %v2759 = vld [vmem:[%s2755 + $0xc] sm:$0xf]
        %v2760 = vld [vmem:[%s2755 + $0x10] sm:$0xf]
        %v2761 = vld [vmem:[%s2755 + $0x14] sm:$0xf]
        %v2762 = vld [vmem:[%s2755 + $0x18] sm:$0xf]
        %v2763 = vld [vmem:[%s2755 + $0x1c] sm:$0xf]
        %v2764 = vld [vmem:[%s2755 + $0x20] sm:$0xf]
        %v2765 = vld [vmem:[%s2755 + $0x24] sm:$0xf]
        %v2766 = vld [vmem:[%s2755 + $0x28] sm:$0xf]
        %v2767 = vld [vmem:[%s2755 + $0x2c] sm:$0xf]
        %v2768 = vld [vmem:[%s2755 + $0x30] sm:$0xf]
        %v2769 = vld [vmem:[%s2755 + $0x34] sm:$0xf]
        %v2770 = vld [vmem:[%s2755 + $0x38] sm:$0xf]
        %v2771 = vld [vmem:[%s2755 + $0x3c] sm:$0xf]
        %v2772 = vld [vmem:[%s2755 + $0x40] sm:$0xf]
        %v2773 = vld [vmem:[%s2755 + $0x44] sm:$0xf]
        %v2774 = vld [vmem:[%s2755 + $0x48] sm:$0xf]
        %v2775 = vld [vmem:[%s2755 + $0x4c] sm:$0xf]
        %v2776 = vld [vmem:[%s2755 + $0x50] sm:$0xf]
        %v2777 = vld [vmem:[%s2755 + $0x54] sm:$0xf]
        %v2778 = vld [vmem:[%s2755 + $0x58] sm:$0xf]
        %v2779 = vld [vmem:[%s2755 + $0x5c] sm:$0xf]
        %v2780 = vld [vmem:[%s2755 + $0x60] sm:$0xf]
        %v2781 = vld [vmem:[%s2755 + $0x64] sm:$0xf]
        %v2782 = vld [vmem:[%s2755 + $0x68] sm:$0xf]
        %v2783 = vld [vmem:[%s2755 + $0x6c] sm:$0xf]
        %v2784 = vld [vmem:[%s2755 + $0x70] sm:$0xf]
        %v2785 = vld [vmem:[%s2755 + $0x74] sm:$0xf]
        %v2786 = vld [vmem:[%s2755 + $0x78] sm:$0xf]
        %v2787 = vld [vmem:[%s2755 + $0x7c] sm:$0xf]
        %v2788 = vld [vmem:[%s1] sm:$0xf]
        %v2789 = vld [vmem:[%s1 + $0x4] sm:$0xf]
        %v2790 = vld [vmem:[%s1 + $0x8] sm:$0x1]
        %v2791 = vld [vmem:[%s2] sm:$0x1]
        %v2793 = vlaneseq
        %v2794 = vshrl.u32 %v2793, 7
        %v2795 = vsub.s32 0, %v2794
        %v2796 = vrot.slane %v2791, %v2795
        %v2830 = vunpack.c.l.b16 %v2756
        %v2831 = vunpack.c.l.b16 %v2757
        %v2832 = vunpack.c.l.b16 %v2758
        %v2833 = vunpack.c.l.b16 %v2759
        %v2834 = vunpack.c.l.b16 %v2760
        %v2835 = vunpack.c.l.b16 %v2761
        %v2836 = vunpack.c.l.b16 %v2762
        %v2837 = vunpack.c.l.b16 %v2763
        %v2838 = vunpack.c.l.b16 %v2764
        %v2839 = vunpack.c.l.b16 %v2765
        %v2840 = vunpack.c.l.b16 %v2766
        %v2841 = vunpack.c.l.b16 %v2767
        %v2842 = vunpack.c.l.b16 %v2768
        %v2843 = vunpack.c.l.b16 %v2769
        %v2844 = vunpack.c.l.b16 %v2770
        %v2845 = vunpack.c.l.b16 %v2771
        %v2846 = vunpack.c.l.b16 %v2772
        %v2847 = vunpack.c.l.b16 %v2773
        %v2848 = vunpack.c.l.b16 %v2774
        %v2849 = vunpack.c.l.b16 %v2775
        %v2850 = vunpack.c.l.b16 %v2776
        %v2851 = vunpack.c.l.b16 %v2777
        %v2852 = vunpack.c.l.b16 %v2778
        %v2853 = vunpack.c.l.b16 %v2779
        %v2854 = vunpack.c.l.b16 %v2780
        %v2855 = vunpack.c.l.b16 %v2781
        %v2856 = vunpack.c.l.b16 %v2782
        %v2857 = vunpack.c.l.b16 %v2783
        %v2858 = vunpack.c.l.b16 %v2784
        %v2859 = vunpack.c.l.b16 %v2785
        %v2860 = vunpack.c.l.b16 %v2786
        %v2861 = vunpack.c.l.b16 %v2787
        %v2862 = vpack.c.b16 %v2831, %v2830
        %v2863 = vpack.c.b16 %v2833, %v2832
        %v2864 = vpack.c.b16 %v2835, %v2834
        %v2865 = vpack.c.b16 %v2837, %v2836
        %v2866 = vpack.c.b16 %v2839, %v2838
        %v2867 = vpack.c.b16 %v2841, %v2840
        %v2868 = vpack.c.b16 %v2843, %v2842
        %v2869 = vpack.c.b16 %v2845, %v2844
        %v2870 = vpack.c.b16 %v2847, %v2846
        %v2871 = vpack.c.b16 %v2849, %v2848
        %v2872 = vpack.c.b16 %v2851, %v2850
        %v2873 = vpack.c.b16 %v2853, %v2852
        %v2874 = vpack.c.b16 %v2855, %v2854
        %v2875 = vpack.c.b16 %v2857, %v2856
        %v2876 = vpack.c.b16 %v2859, %v2858
        %v2877 = vpack.c.b16 %v2861, %v2860
        %v2881 = vunpack.c.l.b16 %v2788
        %v2882 = vunpack.c.l.b16 %v2789
        %v2883 = vunpack.c.l.b16 %v2790
        %v2884 = vpack.c.b16 %v2882, %v2881
        %v2885 = vpack.c.b16 %v2883, %v2883
        %v2888 = vsel %vm380, %v2862, 0
        %v2891 = vsel %vm380, %v2863, 0
        %v2894 = vsel %vm380, %v2864, 0
        %v2897 = vsel %vm380, %v2865, 0
        %v2900 = vsel %vm380, %v2866, 0
        %v2903 = vsel %vm380, %v2867, 0
        %v2906 = vsel %vm380, %v2868, 0
        %v2909 = vsel %vm380, %v2869, 0
        %v2912 = vsel %vm380, %v2870, 0
        %v2915 = vsel %vm380, %v2871, 0
        %v2918 = vsel %vm380, %v2872, 0
        %v2921 = vsel %vm380, %v2873, 0
        %v2924 = vsel %vm380, %v2874, 0
        %v2927 = vsel %vm380, %v2875, 0
        %v2930 = vsel %vm380, %v2876, 0
        %v2933 = vsel %vm380, %v2877, 0
        %v2936 = vsel %vm429, %v2885, 0
        %2938 = vmatprep.subr.bf16.mxu0 0
        %2939 = vmatpush1.bf16.msra.mxu0 %v2884
        %2940 = vmatprep.subr.bf16.mxu0 0
        %2941 = vmatpush1.bf16.msra.mxu0 %v2936
        %2942 = vmatprep.subr.bf16.mxu0 0
        %2943 = vmatpush1.bf16.msra.mxu0 0
        %2944 = vmatprep.subr.bf16.mxu0 0
        %2945 = vmatpush1.bf16.msra.mxu0 0
        %2946 = vmatprep.subr.bf16.mxu0 0
        %2947 = vmatpush1.bf16.msra.mxu0 0
        %2948 = vmatprep.subr.bf16.mxu0 0
        %2949 = vmatpush1.bf16.msra.mxu0 0
        %2950 = vmatprep.subr.bf16.mxu0 0
        %2951 = vmatpush1.bf16.msra.mxu0 0
        %2952 = vmatprep.subr.bf16.mxu0 0
        %2953 = vmatpush1.bf16.msra.mxu0 0
        %2954 = vmatprep.subr.bf16.mxu0 0
        %2955 = vmatpush1.bf16.msra.mxu0 0
        %2956 = vmatprep.subr.bf16.mxu0 0
        %2957 = vmatpush1.bf16.msra.mxu0 0
        %2958 = vmatprep.subr.bf16.mxu0 0
        %2959 = vmatpush1.bf16.msra.mxu0 0
        %2960 = vmatprep.subr.bf16.mxu0 0
        %2961 = vmatpush1.bf16.msra.mxu0 0
        %2962 = vmatprep.subr.bf16.mxu0 0
        %2963 = vmatpush1.bf16.msra.mxu0 0
        %2964 = vmatprep.subr.bf16.mxu0 0
        %2965 = vmatpush1.bf16.msra.mxu0 0
        %2966 = vmatprep.subr.bf16.mxu0 0
        %2967 = vmatpush1.bf16.msra.mxu0 0
        %2968 = vmatprep.subr.bf16.mxu0 0
        %2969 = vmatpush1.bf16.msra.mxu0 0
        %2970 = vmatprep.mubr.bf16.mxu0 0
        %2971 = vmatmul.mubr.bf16.gmra.mrb[0].mxu0 %v2888
        %v2972 = vpop.f32.mrb[0].mxu0
        %v2973 = vadd.f32 %v2796, %v2972
        %v2974 = vpop.f32.mrb[0].mxu0
        %v2975 = vpop.f32.mrb[0].mxu0
        %v2976 = vadd.f32 %v2796, %v2975
        %v2977 = vpop.f32.mrb[0].mxu0
        %2978 = vmatprep.mubr.bf16.mxu0 0
        %2979 = vmatmul.mubr.bf16.gmra.mrb[0].mxu0 %v2891
        %v2980 = vpop.f32.mrb[0].mxu0
        %v2981 = vadd.f32 %v2796, %v2980
        %v2982 = vpop.f32.mrb[0].mxu0
        %v2983 = vpop.f32.mrb[0].mxu0
        %v2984 = vadd.f32 %v2796, %v2983
        %v2985 = vpop.f32.mrb[0].mxu0
        %2986 = vmatprep.mubr.bf16.mxu0 0
        %2987 = vmatmul.mubr.bf16.gmra.mrb[0].mxu0 %v2894
        %v2988 = vpop.f32.mrb[0].mxu0
        %v2989 = vpop.f32.mrb[0].mxu0
        %v2990 = vpop.f32.mrb[0].mxu0
        %v2991 = vpop.f32.mrb[0].mxu0
        %2992 = vmatprep.mubr.bf16.mxu0 0
        %2993 = vmatmul.mubr.bf16.gmra.mrb[0].mxu0 %v2897
        %v2994 = vpop.f32.mrb[0].mxu0
        %v2995 = vadd.f32 %v2796, %v2994
        %v2996 = vpop.f32.mrb[0].mxu0
        %v2997 = vpop.f32.mrb[0].mxu0
        %v2998 = vadd.f32 %v2796, %v2997
        %v2999 = vpop.f32.mrb[0].mxu0
        %3000 = vmatprep.mubr.bf16.mxu0 0
        %3001 = vmatmul.mubr.bf16.gmra.mrb[0].mxu0 %v2900
        %v3002 = vpop.f32.mrb[0].mxu0
        %v3003 = vadd.f32 %v2796, %v3002
        %v3004 = vpop.f32.mrb[0].mxu0
        %v3005 = vpop.f32.mrb[0].mxu0
        %v3006 = vadd.f32 %v2796, %v3005
        %v3007 = vpop.f32.mrb[0].mxu0
        %3008 = vmatprep.mubr.bf16.mxu0 0
        %3009 = vmatmul.mubr.bf16.gmra.mrb[0].mxu0 %v2903
        %v3010 = vpop.f32.mrb[0].mxu0
        %v3011 = vadd.f32 %v2796, %v3010
        %v3012 = vpop.f32.mrb[0].mxu0
        %v3013 = vpop.f32.mrb[0].mxu0
        %v3014 = vadd.f32 %v2796, %v3013
        %v3015 = vpop.f32.mrb[0].mxu0
        %3016 = vmatprep.mubr.bf16.mxu0 0
        %3017 = vmatmul.mubr.bf16.gmra.mrb[0].mxu0 %v2906
        %v3018 = vpop.f32.mrb[0].mxu0
        %v3019 = vpop.f32.mrb[0].mxu0
        %v3020 = vpop.f32.mrb[0].mxu0
        %v3021 = vpop.f32.mrb[0].mxu0
        %3022 = vmatprep.mubr.bf16.mxu0 0
        %3023 = vmatmul.mubr.bf16.gmra.mrb[0].mxu0 %v2909
        %v3024 = vpop.f32.mrb[0].mxu0
        %v3025 = vadd.f32 %v2796, %v3024
        %v3026 = vpop.f32.mrb[0].mxu0
        %v3027 = vpop.f32.mrb[0].mxu0
        %v3028 = vadd.f32 %v2796, %v3027
        %v3029 = vpop.f32.mrb[0].mxu0
        %3030 = vmatprep.mubr.bf16.mxu0 0
        %3031 = vmatmul.mubr.bf16.gmra.mrb[0].mxu0 %v2912
        %v3032 = vpop.f32.mrb[0].mxu0
        %v3033 = vadd.f32 %v2796, %v3032
        %v3034 = vpop.f32.mrb[0].mxu0
        %v3035 = vpop.f32.mrb[0].mxu0
        %v3036 = vadd.f32 %v2796, %v3035
        %v3037 = vpop.f32.mrb[0].mxu0
        %3038 = vmatprep.mubr.bf16.mxu0 0
        %3039 = vmatmul.mubr.bf16.gmra.mrb[0].mxu0 %v2915
        %v3040 = vpop.f32.mrb[0].mxu0
        %v3041 = vadd.f32 %v2796, %v3040
        %v3042 = vpop.f32.mrb[0].mxu0
        %v3043 = vpop.f32.mrb[0].mxu0
        %v3044 = vadd.f32 %v2796, %v3043
        %v3045 = vpop.f32.mrb[0].mxu0
        %3046 = vmatprep.mubr.bf16.mxu0 0
        %3047 = vmatmul.mubr.bf16.gmra.mrb[0].mxu0 %v2918
        %v3048 = vpop.f32.mrb[0].mxu0
        %v3049 = vpop.f32.mrb[0].mxu0
        %v3050 = vpop.f32.mrb[0].mxu0
        %v3051 = vpop.f32.mrb[0].mxu0
        %3052 = vmatprep.mubr.bf16.mxu0 0
        %3053 = vmatmul.mubr.bf16.gmra.mrb[0].mxu0 %v2921
        %v3054 = vpop.f32.mrb[0].mxu0
        %v3055 = vadd.f32 %v2796, %v3054
        %v3056 = vpop.f32.mrb[0].mxu0
        %v3057 = vpop.f32.mrb[0].mxu0
        %v3058 = vadd.f32 %v2796, %v3057
        %v3059 = vpop.f32.mrb[0].mxu0
        %3060 = vmatprep.mubr.bf16.mxu0 0
        %3061 = vmatmul.mubr.bf16.gmra.mrb[0].mxu0 %v2924
        %v3062 = vpop.f32.mrb[0].mxu0
        %v3063 = vadd.f32 %v2796, %v3062
        %v3064 = vpop.f32.mrb[0].mxu0
        %v3065 = vpop.f32.mrb[0].mxu0
        %v3066 = vadd.f32 %v2796, %v3065
        %v3067 = vpop.f32.mrb[0].mxu0
        %3068 = vmatprep.mubr.bf16.mxu0 0
        %3069 = vmatmul.mubr.bf16.gmra.mrb[0].mxu0 %v2927
        %v3070 = vpop.f32.mrb[0].mxu0
        %v3071 = vadd.f32 %v2796, %v3070
        %v3072 = vpop.f32.mrb[0].mxu0
        %v3073 = vpop.f32.mrb[0].mxu0
        %v3074 = vadd.f32 %v2796, %v3073
        %v3075 = vpop.f32.mrb[0].mxu0
        %3076 = vmatprep.mubr.bf16.mxu0 0
        %3077 = vmatmul.mubr.bf16.gmra.mrb[0].mxu0 %v2930
        %v3078 = vpop.f32.mrb[0].mxu0
        %v3079 = vpop.f32.mrb[0].mxu0
        %v3080 = vpop.f32.mrb[0].mxu0
        %v3081 = vpop.f32.mrb[0].mxu0
        %3082 = vmatprep.mubr.bf16.mxu0 0
        %3083 = vmatmul.mubr.bf16.gmra.mrb[0].mxu0 %v2933
        %v3084 = vpop.f32.mrb[0].mxu0
        %v3085 = vpop.f32.mrb[0].mxu0
        %v3086 = vpop.f32.mrb[0].mxu0
        %v3087 = vpop.f32.mrb[0].mxu0
        %3088 = vdwg.mxu0
        %v3089 = vsub.f32 1.0, %v1932
        %v3090 = vsub.f32 1.0, %v1933
        %v3091 = vsub.f32 1.0, %v1934
        %v3092 = vsub.f32 1.0, %v1935
        %v3093 = vsub.f32 1.0, %v1936
        %v3094 = vsub.f32 1.0, %v1937
        %v3095 = vsub.f32 1.0, %v1938
        %v3096 = vsub.f32 1.0, %v1939
        %v3097 = vsub.f32 1.0, %v1940
        %v3098 = vsub.f32 1.0, %v1941
        %v3099 = vsub.f32 1.0, %v1942
        %v3100 = vsub.f32 1.0, %v1943
        %v3101 = vsub.f32 1.0, %v1944
        %v3102 = vsub.f32 1.0, %v1945
        %v3103 = vsub.f32 1.0, %v1946
        %v3104 = vsub.f32 1.0, %v1947
        %v3105 = vsub.f32 1.0, %v1948
        %v3106 = vsub.f32 1.0, %v1949
        %v3107 = vsub.f32 1.0, %v1950
        %v3108 = vsub.f32 1.0, %v1951
        %v3109 = vsub.f32 1.0, %v1952
        %v3110 = vsub.f32 1.0, %v1953
        %v3111 = vmul.f32 %v3089, 0.25
        %v3112 = vmul.f32 %v3090, 0.25
        %v3113 = vmul.f32 %v3091, 0.25
        %v3114 = vmul.f32 %v3092, 0.25
        %v3115 = vmul.f32 %v3093, 0.25
        %v3116 = vmul.f32 %v3094, 0.25
        %v3117 = vmul.f32 %v3095, 0.25
        %v3118 = vmul.f32 %v3096, 0.25
        %v3119 = vmul.f32 %v3097, 0.25
        %v3120 = vmul.f32 %v3098, 0.25
        %v3121 = vmul.f32 %v3099, 0.25
        %v3122 = vmul.f32 %v3100, 0.25
        %v3123 = vmul.f32 %v3101, 0.25
        %v3124 = vmul.f32 %v3102, 0.25
        %v3125 = vmul.f32 %v3103, 0.25
        %v3126 = vmul.f32 %v3104, 0.25
        %v3127 = vmul.f32 %v3105, 0.25
        %v3128 = vmul.f32 %v3106, 0.25
        %v3129 = vmul.f32 %v3107, 0.25
        %v3130 = vmul.f32 %v3108, 0.25
        %v3131 = vmul.f32 %v3109, 0.25
        %v3132 = vmul.f32 %v3110, 0.25
        %v3133 = vmul.f32 %v1866, %v3111
        %v3134 = vmul.f32 %v1867, %v3112
        %v3135 = vmul.f32 %v1868, %v3113
        %v3136 = vmul.f32 %v1869, %v3114
        %v3137 = vmul.f32 %v1870, %v3115
        %v3138 = vmul.f32 %v1871, %v3116
        %v3139 = vmul.f32 %v1872, %v3117
        %v3140 = vmul.f32 %v1873, %v3118
        %v3141 = vmul.f32 %v1874, %v3119
        %v3142 = vmul.f32 %v1875, %v3120
        %v3143 = vmul.f32 %v1876, %v3121
        %v3144 = vmul.f32 %v1877, %v3122
        %v3145 = vmul.f32 %v1878, %v3123
        %v3146 = vmul.f32 %v1879, %v3124
        %v3147 = vmul.f32 %v1880, %v3125
        %v3148 = vmul.f32 %v1881, %v3126
        %v3149 = vmul.f32 %v1882, %v3127
        %v3150 = vmul.f32 %v1883, %v3128
        %v3151 = vmul.f32 %v1884, %v3129
        %v3152 = vmul.f32 %v1885, %v3130
        %v3153 = vmul.f32 %v1886, %v3131
        %v3154 = vmul.f32 %v1887, %v3132
        %v3155 = vadd.f32 %v3133, %v2973
        %v3156 = vadd.f32 %v3134, %v2976
        %v3157 = vadd.f32 %v3135, %v2981
        %v3158 = vadd.f32 %v3136, %v2984
        %v3159 = vadd.f32 %v3137, %v2995
        %v3160 = vadd.f32 %v3138, %v2998
        %v3161 = vadd.f32 %v3139, %v3003
        %v3162 = vadd.f32 %v3140, %v3006
        %v3163 = vadd.f32 %v3141, %v3011
        %v3164 = vadd.f32 %v3142, %v3014
        %v3165 = vadd.f32 %v3143, %v3025
        %v3166 = vadd.f32 %v3144, %v3028
        %v3167 = vadd.f32 %v3145, %v3033
        %v3168 = vadd.f32 %v3146, %v3036
        %v3169 = vadd.f32 %v3147, %v3041
        %v3170 = vadd.f32 %v3148, %v3044
        %v3171 = vadd.f32 %v3149, %v3055
        %v3172 = vadd.f32 %v3150, %v3058
        %v3173 = vadd.f32 %v3151, %v3063
        %v3174 = vadd.f32 %v3152, %v3066
        %v3175 = vadd.f32 %v3153, %v3071
        %v3176 = vadd.f32 %v3154, %v3074
        %vm3177 = vcmp.gt.f32.partialorder %v3155, 0.5
        %vm3178 = vcmp.gt.f32.partialorder %v3156, 0.5
        %vm3179 = vcmp.gt.f32.partialorder %v3157, 0.5
        %vm3180 = vcmp.gt.f32.partialorder %v3158, 0.5
        %vm3181 = vcmp.gt.f32.partialorder %v3159, 0.5
        %vm3182 = vcmp.gt.f32.partialorder %v3160, 0.5
        %vm3183 = vcmp.gt.f32.partialorder %v3161, 0.5
        %vm3184 = vcmp.gt.f32.partialorder %v3162, 0.5
        %vm3185 = vcmp.gt.f32.partialorder %v3163, 0.5
        %vm3186 = vcmp.gt.f32.partialorder %v3164, 0.5
        %vm3187 = vcmp.gt.f32.partialorder %v3165, 0.5
        %vm3188 = vcmp.gt.f32.partialorder %v3166, 0.5
        %vm3189 = vcmp.gt.f32.partialorder %v3167, 0.5
        %vm3190 = vcmp.gt.f32.partialorder %v3168, 0.5
        %vm3191 = vcmp.gt.f32.partialorder %v3169, 0.5
        %vm3192 = vcmp.gt.f32.partialorder %v3170, 0.5
        %vm3193 = vcmp.gt.f32.partialorder %v3171, 0.5
        %vm3194 = vcmp.gt.f32.partialorder %v3172, 0.5
        %vm3195 = vcmp.gt.f32.partialorder %v3173, 0.5
        %vm3196 = vcmp.gt.f32.partialorder %v3174, 0.5
        %vm3197 = vcmp.gt.f32.partialorder %v3175, 0.5
        %vm3198 = vcmp.gt.f32.partialorder %v3176, 0.5
        %v3199 = vsel %vm3177, 1, 0
        %v3200 = vsel %vm3178, 1, 0
        %v3201 = vsel %vm3179, 1, 0
        %v3202 = vsel %vm3180, 1, 0
        %v3203 = vsel %vm3181, 1, 0
        %v3204 = vsel %vm3182, 1, 0
        %v3205 = vsel %vm3183, 1, 0
        %v3206 = vsel %vm3184, 1, 0
        %v3207 = vsel %vm3185, 1, 0
        %v3208 = vsel %vm3186, 1, 0
        %v3209 = vsel %vm3187, 1, 0
        %v3210 = vsel %vm3188, 1, 0
        %v3211 = vsel %vm3189, 1, 0
        %v3212 = vsel %vm3190, 1, 0
        %v3213 = vsel %vm3191, 1, 0
        %v3214 = vsel %vm3192, 1, 0
        %v3215 = vsel %vm3193, 1, 0
        %v3216 = vsel %vm3194, 1, 0
        %v3217 = vsel %vm3195, 1, 0
        %v3218 = vsel %vm3196, 1, 0
        %v3219 = vsel %vm3197, 1, 0
        %v3220 = vsel %vm3198, 1, 0
        %v3221 = vcvt.s32.f32 %v3199
        %v3222 = vcvt.s32.f32 %v3200
        %v3223 = vcvt.s32.f32 %v3201
        %v3224 = vcvt.s32.f32 %v3202
        %v3225 = vcvt.s32.f32 %v3203
        %v3226 = vcvt.s32.f32 %v3204
        %v3227 = vcvt.s32.f32 %v3205
        %v3228 = vcvt.s32.f32 %v3206
        %v3229 = vcvt.s32.f32 %v3207
        %v3230 = vcvt.s32.f32 %v3208
        %v3231 = vcvt.s32.f32 %v3209
        %v3232 = vcvt.s32.f32 %v3210
        %v3233 = vcvt.s32.f32 %v3211
        %v3234 = vcvt.s32.f32 %v3212
        %v3235 = vcvt.s32.f32 %v3213
        %v3236 = vcvt.s32.f32 %v3214
        %v3237 = vcvt.s32.f32 %v3215
        %v3238 = vcvt.s32.f32 %v3216
        %v3239 = vcvt.s32.f32 %v3217
        %v3240 = vcvt.s32.f32 %v3218
        %v3241 = vcvt.s32.f32 %v3219
        %v3242 = vcvt.s32.f32 %v3220
        %v3265 = vcombine.high %v3221, %v3221
        %v3266 = vcombine.high %v3222, %v3222
        %v3267 = vcombine.high %v3223, %v3223
        %v3268 = vcombine.high %v3224, %v3224
        %v3269 = vcombine.high %v3225, %v3225
        %v3270 = vcombine.high %v3226, %v3226
        %v3271 = vcombine.high %v3227, %v3227
        %v3272 = vcombine.high %v3228, %v3228
        %v3273 = vcombine.high %v3229, %v3229
        %v3274 = vcombine.high %v3230, %v3230
        %v3275 = vcombine.high %v3231, %v3231
        %v3276 = vcombine.high %v3232, %v3232
        %v3277 = vcombine.high %v3233, %v3233
        %v3278 = vcombine.high %v3234, %v3234
        %v3279 = vcombine.high %v3235, %v3235
        %v3280 = vcombine.high %v3236, %v3236
        %v3281 = vcombine.high %v3237, %v3237
        %v3282 = vcombine.high %v3238, %v3238
        %v3283 = vcombine.high %v3239, %v3239
        %v3284 = vcombine.high %v3240, %v3240
        %v3285 = vcombine.high %v3241, %v3241
        %v3286 = vcombine.high %v3242, %v3242
        %v3309 = vrot.slane %v3221, 5
        %v3310 = vrot.slane %v3309, 4
        %v3311 = vrot.slane %v3265, 5
        %v3312 = vrot.slane %v3311, 4
        %v3313 = vrot.slane %v3222, 5
        %v3314 = vrot.slane %v3313, 4
        %v3315 = vrot.slane %v3266, 5
        %v3316 = vrot.slane %v3315, 4
        %v3317 = vrot.slane %v3223, 5
        %v3318 = vrot.slane %v3317, 4
        %v3319 = vrot.slane %v3267, 5
        %v3320 = vrot.slane %v3319, 4
        %v3321 = vrot.slane %v3224, 5
        %v3322 = vrot.slane %v3321, 4
        %v3323 = vrot.slane %v3268, 5
        %v3324 = vrot.slane %v3323, 4
        %v3325 = vrot.slane %v3225, 5
        %v3326 = vrot.slane %v3325, 4
        %v3327 = vrot.slane %v3269, 5
        %v3328 = vrot.slane %v3327, 4
        %v3329 = vrot.slane %v3226, 5
        %v3330 = vrot.slane %v3329, 4
        %v3331 = vrot.slane %v3270, 5
        %v3332 = vrot.slane %v3331, 4
        %v3333 = vrot.slane %v3227, 5
        %v3334 = vrot.slane %v3333, 4
        %v3335 = vrot.slane %v3271, 5
        %v3336 = vrot.slane %v3335, 4
        %v3337 = vrot.slane %v3228, 5
        %v3338 = vrot.slane %v3337, 4
        %v3339 = vrot.slane %v3272, 5
        %v3340 = vrot.slane %v3339, 4
        %v3341 = vrot.slane %v3229, 5
        %v3342 = vrot.slane %v3341, 4
        %v3343 = vrot.slane %v3273, 5
        %v3344 = vrot.slane %v3343, 4
        %v3345 = vrot.slane %v3230, 5
        %v3346 = vrot.slane %v3345, 4
        %v3347 = vrot.slane %v3274, 5
        %v3348 = vrot.slane %v3347, 4
        %v3349 = vrot.slane %v3231, 5
        %v3350 = vrot.slane %v3349, 4
        %v3351 = vrot.slane %v3275, 5
        %v3352 = vrot.slane %v3351, 4
        %v3353 = vrot.slane %v3232, 5
        %v3354 = vrot.slane %v3353, 4
        %v3355 = vrot.slane %v3276, 5
        %v3356 = vrot.slane %v3355, 4
        %v3357 = vrot.slane %v3233, 5
        %v3358 = vrot.slane %v3357, 4
        %v3359 = vrot.slane %v3277, 5
        %v3360 = vrot.slane %v3359, 4
        %v3361 = vrot.slane %v3234, 5
        %v3362 = vrot.slane %v3361, 4
        %v3363 = vrot.slane %v3278, 5
        %v3364 = vrot.slane %v3363, 4
        %v3365 = vrot.slane %v3235, 5
        %v3366 = vrot.slane %v3365, 4
        %v3367 = vrot.slane %v3279, 5
        %v3368 = vrot.slane %v3367, 4
        %v3369 = vrot.slane %v3236, 5
        %v3370 = vrot.slane %v3369, 4
        %v3371 = vrot.slane %v3280, 5
        %v3372 = vrot.slane %v3371, 4
        %v3373 = vrot.slane %v3237, 5
        %v3374 = vrot.slane %v3373, 4
        %v3375 = vrot.slane %v3281, 5
        %v3376 = vrot.slane %v3375, 4
        %v3377 = vrot.slane %v3238, 5
        %v3378 = vrot.slane %v3377, 4
        %v3379 = vrot.slane %v3282, 5
        %v3380 = vrot.slane %v3379, 4
        %v3381 = vrot.slane %v3239, 5
        %v3382 = vrot.slane %v3381, 4
        %v3383 = vrot.slane %v3283, 5
        %v3384 = vrot.slane %v3383, 4
        %v3385 = vrot.slane %v3240, 5
        %v3386 = vrot.slane %v3385, 4
        %v3387 = vrot.slane %v3284, 5
        %v3388 = vrot.slane %v3387, 4
        %v3389 = vrot.slane %v3241, 5
        %v3390 = vrot.slane %v3389, 4
        %v3391 = vrot.slane %v3285, 5
        %v3392 = vrot.slane %v3391, 4
        %v3393 = vrot.slane %v3242, 5
        %v3394 = vrot.slane %v3393, 4
        %v3395 = vrot.slane %v3286, 5
        %v3396 = vrot.slane %v3395, 4
        %v3441 = vmax.f32 %v3221, %v3310
        %v3442 = vmax.f32 %v3265, %v3312
        %v3443 = vmax.f32 %v3222, %v3314
        %v3444 = vmax.f32 %v3266, %v3316
        %v3445 = vmax.f32 %v3223, %v3318
        %v3446 = vmax.f32 %v3267, %v3320
        %v3447 = vmax.f32 %v3224, %v3322
        %v3448 = vmax.f32 %v3268, %v3324
        %v3449 = vmax.f32 %v3225, %v3326
        %v3450 = vmax.f32 %v3269, %v3328
        %v3451 = vmax.f32 %v3226, %v3330
        %v3452 = vmax.f32 %v3270, %v3332
        %v3453 = vmax.f32 %v3227, %v3334
        %v3454 = vmax.f32 %v3271, %v3336
        %v3455 = vmax.f32 %v3228, %v3338
        %v3456 = vmax.f32 %v3272, %v3340
        %v3457 = vmax.f32 %v3229, %v3342
        %v3458 = vmax.f32 %v3273, %v3344
        %v3459 = vmax.f32 %v3230, %v3346
        %v3460 = vmax.f32 %v3274, %v3348
        %v3461 = vmax.f32 %v3231, %v3350
        %v3462 = vmax.f32 %v3275, %v3352
        %v3463 = vmax.f32 %v3232, %v3354
        %v3464 = vmax.f32 %v3276, %v3356
        %v3465 = vmax.f32 %v3233, %v3358
        %v3466 = vmax.f32 %v3277, %v3360
        %v3467 = vmax.f32 %v3234, %v3362
        %v3468 = vmax.f32 %v3278, %v3364
        %v3469 = vmax.f32 %v3235, %v3366
        %v3470 = vmax.f32 %v3279, %v3368
        %v3471 = vmax.f32 %v3236, %v3370
        %v3472 = vmax.f32 %v3280, %v3372
        %v3473 = vmax.f32 %v3237, %v3374
        %v3474 = vmax.f32 %v3281, %v3376
        %v3475 = vmax.f32 %v3238, %v3378
        %v3476 = vmax.f32 %v3282, %v3380
        %v3477 = vmax.f32 %v3239, %v3382
        %v3478 = vmax.f32 %v3283, %v3384
        %v3479 = vmax.f32 %v3240, %v3386
        %v3480 = vmax.f32 %v3284, %v3388
        %v3481 = vmax.f32 %v3241, %v3390
        %v3482 = vmax.f32 %v3285, %v3392
        %v3483 = vmax.f32 %v3242, %v3394
        %v3484 = vmax.f32 %v3286, %v3396
        %v3485 = vlaneseq
        %v3486 = vshrl.u32 %v3485, 7
        %v3487 = vsub.s32 3, %v3486
        %v3488 = vrot.slane %v3221, %v3487
        %v3489 = vlaneseq
        %v3490 = vshrl.u32 %v3489, 7
        %v3491 = vsub.s32 3, %v3490
        %v3492 = vrot.slane %v3265, %v3491
        %v3493 = vlaneseq
        %v3494 = vshrl.u32 %v3493, 7
        %v3495 = vsub.s32 3, %v3494
        %v3496 = vrot.slane %v3222, %v3495
        %v3497 = vlaneseq
        %v3498 = vshrl.u32 %v3497, 7
        %v3499 = vsub.s32 3, %v3498
        %v3500 = vrot.slane %v3223, %v3499
        %v3501 = vlaneseq
        %v3502 = vshrl.u32 %v3501, 7
        %v3503 = vsub.s32 3, %v3502
        %v3504 = vrot.slane %v3267, %v3503
        %v3505 = vlaneseq
        %v3506 = vshrl.u32 %v3505, 7
        %v3507 = vsub.s32 3, %v3506
        %v3508 = vrot.slane %v3224, %v3507
        %v3509 = vlaneseq
        %v3510 = vshrl.u32 %v3509, 7
        %v3511 = vsub.s32 3, %v3510
        %v3512 = vrot.slane %v3225, %v3511
        %v3513 = vlaneseq
        %v3514 = vshrl.u32 %v3513, 7
        %v3515 = vsub.s32 3, %v3514
        %v3516 = vrot.slane %v3269, %v3515
        %v3517 = vlaneseq
        %v3518 = vshrl.u32 %v3517, 7
        %v3519 = vsub.s32 3, %v3518
        %v3520 = vrot.slane %v3226, %v3519
        %v3521 = vlaneseq
        %v3522 = vshrl.u32 %v3521, 7
        %v3523 = vsub.s32 3, %v3522
        %v3524 = vrot.slane %v3227, %v3523
        %v3525 = vlaneseq
        %v3526 = vshrl.u32 %v3525, 7
        %v3527 = vsub.s32 3, %v3526
        %v3528 = vrot.slane %v3271, %v3527
        %v3529 = vlaneseq
        %v3530 = vshrl.u32 %v3529, 7
        %v3531 = vsub.s32 3, %v3530
        %v3532 = vrot.slane %v3228, %v3531
        %v3533 = vlaneseq
        %v3534 = vshrl.u32 %v3533, 7
        %v3535 = vsub.s32 3, %v3534
        %v3536 = vrot.slane %v3229, %v3535
        %v3537 = vlaneseq
        %v3538 = vshrl.u32 %v3537, 7
        %v3539 = vsub.s32 3, %v3538
        %v3540 = vrot.slane %v3273, %v3539
        %v3541 = vlaneseq
        %v3542 = vshrl.u32 %v3541, 7
        %v3543 = vsub.s32 3, %v3542
        %v3544 = vrot.slane %v3230, %v3543
        %v3545 = vlaneseq
        %v3546 = vshrl.u32 %v3545, 7
        %v3547 = vsub.s32 3, %v3546
        %v3548 = vrot.slane %v3231, %v3547
        %v3549 = vlaneseq
        %v3550 = vshrl.u32 %v3549, 7
        %v3551 = vsub.s32 3, %v3550
        %v3552 = vrot.slane %v3275, %v3551
        %v3553 = vlaneseq
        %v3554 = vshrl.u32 %v3553, 7
        %v3555 = vsub.s32 3, %v3554
        %v3556 = vrot.slane %v3232, %v3555
        %v3557 = vlaneseq
        %v3558 = vshrl.u32 %v3557, 7
        %v3559 = vsub.s32 3, %v3558
        %v3560 = vrot.slane %v3233, %v3559
        %v3561 = vlaneseq
        %v3562 = vshrl.u32 %v3561, 7
        %v3563 = vsub.s32 3, %v3562
        %v3564 = vrot.slane %v3277, %v3563
        %v3565 = vlaneseq
        %v3566 = vshrl.u32 %v3565, 7
        %v3567 = vsub.s32 3, %v3566
        %v3568 = vrot.slane %v3234, %v3567
        %v3569 = vlaneseq
        %v3570 = vshrl.u32 %v3569, 7
        %v3571 = vsub.s32 3, %v3570
        %v3572 = vrot.slane %v3235, %v3571
        %v3573 = vlaneseq
        %v3574 = vshrl.u32 %v3573, 7
        %v3575 = vsub.s32 3, %v3574
        %v3576 = vrot.slane %v3279, %v3575
        %v3577 = vlaneseq
        %v3578 = vshrl.u32 %v3577, 7
        %v3579 = vsub.s32 3, %v3578
        %v3580 = vrot.slane %v3236, %v3579
        %v3581 = vlaneseq
        %v3582 = vshrl.u32 %v3581, 7
        %v3583 = vsub.s32 3, %v3582
        %v3584 = vrot.slane %v3237, %v3583
        %v3585 = vlaneseq
        %v3586 = vshrl.u32 %v3585, 7
        %v3587 = vsub.s32 3, %v3586
        %v3588 = vrot.slane %v3281, %v3587
        %v3589 = vlaneseq
        %v3590 = vshrl.u32 %v3589, 7
        %v3591 = vsub.s32 3, %v3590
        %v3592 = vrot.slane %v3238, %v3591
        %v3593 = vlaneseq
        %v3594 = vshrl.u32 %v3593, 7
        %v3595 = vsub.s32 3, %v3594
        %v3596 = vrot.slane %v3239, %v3595
        %v3597 = vlaneseq
        %v3598 = vshrl.u32 %v3597, 7
        %v3599 = vsub.s32 3, %v3598
        %v3600 = vrot.slane %v3283, %v3599
        %v3601 = vlaneseq
        %v3602 = vshrl.u32 %v3601, 7
        %v3603 = vsub.s32 3, %v3602
        %v3604 = vrot.slane %v3240, %v3603
        %v3605 = vlaneseq
        %v3606 = vshrl.u32 %v3605, 7
        %v3607 = vsub.s32 3, %v3606
        %v3608 = vrot.slane %v3241, %v3607
        %v3609 = vlaneseq
        %v3610 = vshrl.u32 %v3609, 7
        %v3611 = vsub.s32 3, %v3610
        %v3612 = vrot.slane %v3285, %v3611
        %v3613 = vlaneseq
        %v3614 = vshrl.u32 %v3613, 7
        %v3615 = vsub.s32 3, %v3614
        %v3616 = vrot.slane %v3242, %v3615
        %v3617 = vsel %vm1024, %v3492, %v3488
        %v3618 = vsel %vm1026, %v3496, %v3617
        %v3619 = vsel %vm1024, %v3504, %v3500
        %v3620 = vsel %vm1026, %v3508, %v3619
        %v3621 = vsel %vm1024, %v3516, %v3512
        %v3622 = vsel %vm1026, %v3520, %v3621
        %v3623 = vsel %vm1024, %v3528, %v3524
        %v3624 = vsel %vm1026, %v3532, %v3623
        %v3625 = vsel %vm1024, %v3540, %v3536
        %v3626 = vsel %vm1026, %v3544, %v3625
        %v3627 = vsel %vm1024, %v3552, %v3548
        %v3628 = vsel %vm1026, %v3556, %v3627
        %v3629 = vsel %vm1024, %v3564, %v3560
        %v3630 = vsel %vm1026, %v3568, %v3629
        %v3631 = vsel %vm1024, %v3576, %v3572
        %v3632 = vsel %vm1026, %v3580, %v3631
        %v3633 = vsel %vm1024, %v3588, %v3584
        %v3634 = vsel %vm1026, %v3592, %v3633
        %v3635 = vsel %vm1024, %v3600, %v3596
        %v3636 = vsel %vm1026, %v3604, %v3635
        %v3637 = vsel %vm1024, %v3612, %v3608
        %v3638 = vsel %vm1026, %v3616, %v3637
        %v3650 = vsel %vm429, 0.0, %v3618
        %v3651 = vsel %vm429, 0.0, %v3620
        %v3652 = vsel %vm429, 0.0, %v3622
        %v3653 = vsel %vm429, 0.0, %v3624
        %v3654 = vsel %vm429, 0.0, %v3626
        %v3655 = vsel %vm429, 0.0, %v3628
        %v3656 = vsel %vm429, 0.0, %v3630
        %v3657 = vsel %vm429, 0.0, %v3632
        %v3658 = vsel %vm429, 0.0, %v3634
        %v3659 = vsel %vm429, 0.0, %v3636
        %v3660 = vsel %vm429, 0.0, %v3638
        %v3672 = vrot.slane %v3650, 1
        %v3673 = vrot.slane %v3650, 2
        %v3674 = vrot.slane %v3650, 3
        %v3675 = vrot.slane %v3651, 1
        %v3676 = vrot.slane %v3651, 2
        %v3677 = vrot.slane %v3651, 3
        %v3678 = vrot.slane %v3652, 1
        %v3679 = vrot.slane %v3652, 2
        %v3680 = vrot.slane %v3652, 3
        %v3681 = vrot.slane %v3653, 1
        %v3682 = vrot.slane %v3653, 2
        %v3683 = vrot.slane %v3653, 3
        %v3684 = vrot.slane %v3654, 1
        %v3685 = vrot.slane %v3654, 2
        %v3686 = vrot.slane %v3654, 3
        %v3687 = vrot.slane %v3655, 1
        %v3688 = vrot.slane %v3655, 2
        %v3689 = vrot.slane %v3655, 3
        %v3690 = vrot.slane %v3656, 1
        %v3691 = vrot.slane %v3656, 2
        %v3692 = vrot.slane %v3656, 3
        %v3693 = vrot.slane %v3657, 1
        %v3694 = vrot.slane %v3657, 2
        %v3695 = vrot.slane %v3657, 3
        %v3696 = vrot.slane %v3658, 1
        %v3697 = vrot.slane %v3658, 2
        %v3698 = vrot.slane %v3658, 3
        %v3699 = vrot.slane %v3659, 1
        %v3700 = vrot.slane %v3659, 2
        %v3701 = vrot.slane %v3659, 3
        %v3702 = vrot.slane %v3660, 1
        %v3703 = vrot.slane %v3660, 2
        %v3704 = vrot.slane %v3660, 3
        %v3749 = vmax.f32 %v3441, %v3650
        %v3750 = vmax.f32 %v3442, %v3672
        %v3751 = vmax.f32 %v3443, %v3673
        %v3752 = vmax.f32 %v3444, %v3674
        %v3753 = vmax.f32 %v3445, %v3651
        %v3754 = vmax.f32 %v3446, %v3675
        %v3755 = vmax.f32 %v3447, %v3676
        %v3756 = vmax.f32 %v3448, %v3677
        %v3757 = vmax.f32 %v3449, %v3652
        %v3758 = vmax.f32 %v3450, %v3678
        %v3759 = vmax.f32 %v3451, %v3679
        %v3760 = vmax.f32 %v3452, %v3680
        %v3761 = vmax.f32 %v3453, %v3653
        %v3762 = vmax.f32 %v3454, %v3681
        %v3763 = vmax.f32 %v3455, %v3682
        %v3764 = vmax.f32 %v3456, %v3683
        %v3765 = vmax.f32 %v3457, %v3654
        %v3766 = vmax.f32 %v3458, %v3684
        %v3767 = vmax.f32 %v3459, %v3685
        %v3768 = vmax.f32 %v3460, %v3686
        %v3769 = vmax.f32 %v3461, %v3655
        %v3770 = vmax.f32 %v3462, %v3687
        %v3771 = vmax.f32 %v3463, %v3688
        %v3772 = vmax.f32 %v3464, %v3689
        %v3773 = vmax.f32 %v3465, %v3656
        %v3774 = vmax.f32 %v3466, %v3690
        %v3775 = vmax.f32 %v3467, %v3691
        %v3776 = vmax.f32 %v3468, %v3692
        %v3777 = vmax.f32 %v3469, %v3657
        %v3778 = vmax.f32 %v3470, %v3693
        %v3779 = vmax.f32 %v3471, %v3694
        %v3780 = vmax.f32 %v3472, %v3695
        %v3781 = vmax.f32 %v3473, %v3658
        %v3782 = vmax.f32 %v3474, %v3696
        %v3783 = vmax.f32 %v3475, %v3697
        %v3784 = vmax.f32 %v3476, %v3698
        %v3785 = vmax.f32 %v3477, %v3659
        %v3786 = vmax.f32 %v3478, %v3699
        %v3787 = vmax.f32 %v3479, %v3700
        %v3788 = vmax.f32 %v3480, %v3701
        %v3789 = vmax.f32 %v3481, %v3660
        %v3790 = vmax.f32 %v3482, %v3702
        %v3791 = vmax.f32 %v3483, %v3703
        %v3792 = vmax.f32 %v3484, %v3704
        %v3793 = vmax.f32 %v3749, %v3753
        %v3794 = vmax.f32 %v3750, %v3754
        %v3795 = vmax.f32 %v3751, %v3755
        %v3796 = vmax.f32 %v3752, %v3756
        %v3797 = vmax.f32 %v3761, %v3765
        %v3798 = vmax.f32 %v3762, %v3766
        %v3799 = vmax.f32 %v3763, %v3767
        %v3800 = vmax.f32 %v3764, %v3768
        %v3801 = vmax.f32 %v3773, %v3777
        %v3802 = vmax.f32 %v3774, %v3778
        %v3803 = vmax.f32 %v3775, %v3779
        %v3804 = vmax.f32 %v3776, %v3780
        %v3805 = vmax.f32 %v3785, %v3789
        %v3806 = vmax.f32 %v3786, %v3790
        %v3807 = vmax.f32 %v3787, %v3791
        %v3808 = vmax.f32 %v3788, %v3792
        %v3821 = vlaneseq
        %v3822 = vshrl.u32 %v3821, 7
        %v3823 = vsub.s32 0, %v3822
        %v3824 = vrot.slane %v3757, %v3823
        %v3825 = vlaneseq
        %v3826 = vshrl.u32 %v3825, 7
        %v3827 = vsub.s32 0, %v3826
        %v3828 = vrot.slane %v3758, %v3827
        %v3829 = vlaneseq
        %v3830 = vshrl.u32 %v3829, 7
        %v3831 = vsub.s32 0, %v3830
        %v3832 = vrot.slane %v3759, %v3831
        %v3833 = vlaneseq
        %v3834 = vshrl.u32 %v3833, 7
        %v3835 = vsub.s32 0, %v3834
        %v3836 = vrot.slane %v3760, %v3835
        %v3837 = vlaneseq
        %v3838 = vshrl.u32 %v3837, 7
        %v3839 = vsub.s32 0, %v3838
        %v3840 = vrot.slane %v3769, %v3839
        %v3841 = vlaneseq
        %v3842 = vshrl.u32 %v3841, 7
        %v3843 = vsub.s32 0, %v3842
        %v3844 = vrot.slane %v3770, %v3843
        %v3845 = vlaneseq
        %v3846 = vshrl.u32 %v3845, 7
        %v3847 = vsub.s32 0, %v3846
        %v3848 = vrot.slane %v3771, %v3847
        %v3849 = vlaneseq
        %v3850 = vshrl.u32 %v3849, 7
        %v3851 = vsub.s32 0, %v3850
        %v3852 = vrot.slane %v3772, %v3851
        %v3853 = vlaneseq
        %v3854 = vshrl.u32 %v3853, 7
        %v3855 = vsub.s32 0, %v3854
        %v3856 = vrot.slane %v3781, %v3855
        %v3857 = vlaneseq
        %v3858 = vshrl.u32 %v3857, 7
        %v3859 = vsub.s32 0, %v3858
        %v3860 = vrot.slane %v3782, %v3859
        %v3861 = vlaneseq
        %v3862 = vshrl.u32 %v3861, 7
        %v3863 = vsub.s32 0, %v3862
        %v3864 = vrot.slane %v3783, %v3863
        %v3865 = vlaneseq
        %v3866 = vshrl.u32 %v3865, 7
        %v3867 = vsub.s32 0, %v3866
        %v3868 = vrot.slane %v3784, %v3867
        %v3869 = vsel %vm1278, %v3828, %v3824
        %v3870 = vsel %vm1024, %v3832, %v3869
        %v3871 = vsel %vm1026, %v3836, %v3870
        %v3872 = vsel %vm1278, %v3844, %v3840
        %v3873 = vsel %vm1024, %v3848, %v3872
        %v3874 = vsel %vm1026, %v3852, %v3873
        %v3875 = vsel %vm1278, %v3860, %v3856
        %v3876 = vsel %vm1024, %v3864, %v3875
        %v3877 = vsel %vm1026, %v3868, %v3876
        %v3878 = vrot.slane %v3871, 1
        %v3879 = vrot.slane %v3871, 2
        %v3880 = vrot.slane %v3871, 3
        %v3881 = vrot.slane %v3874, 1
        %v3882 = vrot.slane %v3874, 2
        %v3883 = vrot.slane %v3874, 3
        %v3884 = vrot.slane %v3877, 1
        %v3885 = vrot.slane %v3877, 2
        %v3886 = vrot.slane %v3877, 3
        %v3899 = vmax.f32 %v3793, 0.0
        %v3900 = vmax.f32 %v3794, %v1289
        %v3901 = vmax.f32 %v3795, %v1290
        %v3902 = vmax.f32 %v3796, %v1291
        %v3903 = vmax.f32 %v3797, %v3871
        %v3904 = vmax.f32 %v3798, %v3878
        %v3905 = vmax.f32 %v3799, %v3879
        %v3906 = vmax.f32 %v3800, %v3880
        %v3907 = vmax.f32 %v3801, %v3874
        %v3908 = vmax.f32 %v3802, %v3881
        %v3909 = vmax.f32 %v3803, %v3882
        %v3910 = vmax.f32 %v3804, %v3883
        %v3911 = vmax.f32 %v3805, %v3877
        %v3912 = vmax.f32 %v3806, %v3884
        %v3913 = vmax.f32 %v3807, %v3885
        %v3914 = vmax.f32 %v3808, %v3886
        %v3915 = vpack.c.bf16 %v3899, %v3899
        %v3916 = vpack.c.bf16 %v3900, %v3900
        %v3917 = vpack.c.bf16 %v3901, %v3901
        %v3918 = vpack.c.bf16 %v3902, %v3902
        %v3919 = vpack.c.bf16 %v3903, %v3903
        %v3920 = vpack.c.bf16 %v3904, %v3904
        %v3921 = vpack.c.bf16 %v3905, %v3905
        %v3922 = vpack.c.bf16 %v3906, %v3906
        %v3923 = vpack.c.bf16 %v3907, %v3907
        %v3924 = vpack.c.bf16 %v3908, %v3908
        %v3925 = vpack.c.bf16 %v3909, %v3909
        %v3926 = vpack.c.bf16 %v3910, %v3910
        %v3927 = vpack.c.bf16 %v3911, %v3911
        %v3928 = vpack.c.bf16 %v3912, %v3912
        %v3929 = vpack.c.bf16 %v3913, %v3913
        %v3930 = vpack.c.bf16 %v3914, %v3914
        %v3947 = vunpack.c.l.b16 %v3915
        %v3948 = vunpack.c.l.b16 %v3916
        %v3949 = vunpack.c.l.b16 %v3917
        %v3950 = vunpack.c.l.b16 %v3918
        %v3951 = vunpack.c.l.b16 %v3919
        %v3952 = vunpack.c.l.b16 %v3920
        %v3953 = vunpack.c.l.b16 %v3921
        %v3954 = vunpack.c.l.b16 %v3922
        %v3955 = vunpack.c.l.b16 %v3923
        %v3956 = vunpack.c.l.b16 %v3924
        %v3957 = vunpack.c.l.b16 %v3925
        %v3958 = vunpack.c.l.b16 %v3926
        %v3959 = vunpack.c.l.b16 %v3927
        %v3960 = vunpack.c.l.b16 %v3928
        %v3961 = vunpack.c.l.b16 %v3929
        %v3962 = vunpack.c.l.b16 %v3930
        %v3963 = vpack.c.b16 %v3947, %v3947
        %v3964 = vpack.c.b16 %v3948, %v3948
        %v3965 = vpack.c.b16 %v3949, %v3949
        %v3966 = vpack.c.b16 %v3950, %v3950
        %v3967 = vpack.c.b16 %v3951, %v3951
        %v3968 = vpack.c.b16 %v3952, %v3952
        %v3969 = vpack.c.b16 %v3953, %v3953
        %v3970 = vpack.c.b16 %v3954, %v3954
        %v3971 = vpack.c.b16 %v3955, %v3955
        %v3972 = vpack.c.b16 %v3956, %v3956
        %v3973 = vpack.c.b16 %v3957, %v3957
        %v3974 = vpack.c.b16 %v3958, %v3958
        %v3975 = vpack.c.b16 %v3959, %v3959
        %v3976 = vpack.c.b16 %v3960, %v3960
        %v3977 = vpack.c.b16 %v3961, %v3961
        %v3978 = vpack.c.b16 %v3962, %v3962
        %v3979 = vunpack.c.l.b16 %v3963
        %v3980 = vunpack.c.l.b16 %v3964
        %v3981 = vunpack.c.l.b16 %v3965
        %v3982 = vunpack.c.l.b16 %v3966
        %v3983 = vunpack.c.l.b16 %v3967
        %v3984 = vunpack.c.l.b16 %v3968
        %v3985 = vunpack.c.l.b16 %v3969
        %v3986 = vunpack.c.l.b16 %v3970
        %v3987 = vunpack.c.l.b16 %v3971
        %v3988 = vunpack.c.l.b16 %v3972
        %v3989 = vunpack.c.l.b16 %v3973
        %v3990 = vunpack.c.l.b16 %v3974
        %v3991 = vunpack.c.l.b16 %v3975
        %v3992 = vunpack.c.l.b16 %v3976
        %v3993 = vunpack.c.l.b16 %v3977
        %v3994 = vunpack.c.l.b16 %v3978
        %v3995 = vrot.slane %v3979, 7
        %v3996 = vrot.slane %v3980, 6
        %v3997 = vsel %vm1024, %v3996, %v3995
        %v3998 = vrot.slane %v3981, 5
        %v3999 = vsel %vm1026, %v3998, %v3997
        %v4000 = vrot.slane %v3982, 4
        %v4001 = vsel %vm1419, %v4000, %v3999
        %v4002 = vrot.slane %v3983, 7
        %v4003 = vrot.slane %v3984, 6
        %v4004 = vsel %vm1024, %v4003, %v4002
        %v4005 = vrot.slane %v3985, 5
        %v4006 = vsel %vm1026, %v4005, %v4004
        %v4007 = vrot.slane %v3986, 4
        %v4008 = vsel %vm1419, %v4007, %v4006
        %v4009 = vrot.slane %v3987, 7
        %v4010 = vrot.slane %v3988, 6
        %v4011 = vsel %vm1024, %v4010, %v4009
        %v4012 = vrot.slane %v3989, 5
        %v4013 = vsel %vm1026, %v4012, %v4011
        %v4014 = vrot.slane %v3990, 4
        %v4015 = vsel %vm1419, %v4014, %v4013
        %v4016 = vrot.slane %v3991, 7
        %v4017 = vrot.slane %v3992, 6
        %v4018 = vsel %vm1024, %v4017, %v4016
        %v4019 = vrot.slane %v3993, 5
        %v4020 = vsel %vm1026, %v4019, %v4018
        %v4021 = vrot.slane %v3994, 4
        %v4022 = vsel %vm1419, %v4021, %v4020
        %v4023 = vpack.c.b16 %v4001, %v4001
        %v4024 = vpack.c.b16 %v4008, %v4008
        %v4025 = vpack.c.b16 %v4015, %v4015
        %v4026 = vpack.c.b16 %v4022, %v4022
        %s4031 = scalar_lea.vmem [#allocation2], 52
        %v4032 = vld [vmem:[%s4031] sm:$0x7]
        %v4033 = vsel %vm1453, %v4023, %v4032
        %4034 = vst [vmem:[%s4031] sm:$0x7] %v4033
        %v4035 = vld [vmem:[%s4031 + $0x4] sm:$0x7]
        %v4036 = vsel %vm1453, %v4024, %v4035
        %4037 = vst [vmem:[%s4031 + $0x4] sm:$0x7] %v4036
        %v4038 = vld [vmem:[%s4031 + $0x8] sm:$0x7]
        %v4039 = vsel %vm1453, %v4025, %v4038
        %4040 = vst [vmem:[%s4031 + $0x8] sm:$0x7] %v4039
        %v4041 = vld [vmem:[%s4031 + $0xc] sm:$0x7]
        %v4042 = vsel %vm1453, %v4026, %v4041
        %4043 = vst [vmem:[%s4031 + $0xc] sm:$0x7] %v4042
        %s4044 = scalar_lea.vmem %s222, 384
        %v4045 = vld [vmem:[%s4044] sm:$0xf]
        %v4046 = vld [vmem:[%s4044 + $0x4] sm:$0xf]
        %v4047 = vld [vmem:[%s4044 + $0x8] sm:$0xf]
        %v4048 = vld [vmem:[%s4044 + $0xc] sm:$0xf]
        %v4049 = vld [vmem:[%s4044 + $0x10] sm:$0xf]
        %v4050 = vld [vmem:[%s4044 + $0x14] sm:$0xf]
        %v4051 = vld [vmem:[%s4044 + $0x18] sm:$0xf]
        %v4052 = vld [vmem:[%s4044 + $0x1c] sm:$0xf]
        %v4053 = vld [vmem:[%s4044 + $0x20] sm:$0xf]
        %v4054 = vld [vmem:[%s4044 + $0x24] sm:$0xf]
        %v4055 = vld [vmem:[%s4044 + $0x28] sm:$0xf]
        %v4056 = vld [vmem:[%s4044 + $0x2c] sm:$0xf]
        %v4057 = vld [vmem:[%s4044 + $0x30] sm:$0xf]
        %v4058 = vld [vmem:[%s4044 + $0x34] sm:$0xf]
        %v4059 = vld [vmem:[%s4044 + $0x38] sm:$0xf]
        %v4060 = vld [vmem:[%s4044 + $0x3c] sm:$0xf]
        %v4061 = vld [vmem:[%s4044 + $0x40] sm:$0xf]
        %v4062 = vld [vmem:[%s4044 + $0x44] sm:$0xf]
        %v4063 = vld [vmem:[%s4044 + $0x48] sm:$0xf]
        %v4064 = vld [vmem:[%s4044 + $0x4c] sm:$0xf]
        %v4065 = vld [vmem:[%s4044 + $0x50] sm:$0xf]
        %v4066 = vld [vmem:[%s4044 + $0x54] sm:$0xf]
        %v4067 = vld [vmem:[%s4044 + $0x58] sm:$0xf]
        %v4068 = vld [vmem:[%s4044 + $0x5c] sm:$0xf]
        %v4069 = vld [vmem:[%s4044 + $0x60] sm:$0xf]
        %v4070 = vld [vmem:[%s4044 + $0x64] sm:$0xf]
        %v4071 = vld [vmem:[%s4044 + $0x68] sm:$0xf]
        %v4072 = vld [vmem:[%s4044 + $0x6c] sm:$0xf]
        %v4073 = vld [vmem:[%s4044 + $0x70] sm:$0xf]
        %v4074 = vld [vmem:[%s4044 + $0x74] sm:$0xf]
        %v4075 = vld [vmem:[%s4044 + $0x78] sm:$0xf]
        %v4076 = vld [vmem:[%s4044 + $0x7c] sm:$0xf]
        %v4077 = vld [vmem:[%s1] sm:$0xf]
        %v4078 = vld [vmem:[%s1 + $0x4] sm:$0xf]
        %v4079 = vld [vmem:[%s1 + $0x8] sm:$0x1]
        %v4080 = vld [vmem:[%s2] sm:$0x1]
        %v4082 = vlaneseq
        %v4083 = vshrl.u32 %v4082, 7
        %v4084 = vsub.s32 0, %v4083
        %v4085 = vrot.slane %v4080, %v4084
        %v4119 = vunpack.c.l.b16 %v4045
        %v4120 = vunpack.c.l.b16 %v4046
        %v4121 = vunpack.c.l.b16 %v4047
        %v4122 = vunpack.c.l.b16 %v4048
        %v4123 = vunpack.c.l.b16 %v4049
        %v4124 = vunpack.c.l.b16 %v4050
        %v4125 = vunpack.c.l.b16 %v4051
        %v4126 = vunpack.c.l.b16 %v4052
        %v4127 = vunpack.c.l.b16 %v4053
        %v4128 = vunpack.c.l.b16 %v4054
        %v4129 = vunpack.c.l.b16 %v4055
        %v4130 = vunpack.c.l.b16 %v4056
        %v4131 = vunpack.c.l.b16 %v4057
        %v4132 = vunpack.c.l.b16 %v4058
        %v4133 = vunpack.c.l.b16 %v4059
        %v4134 = vunpack.c.l.b16 %v4060
        %v4135 = vunpack.c.l.b16 %v4061
        %v4136 = vunpack.c.l.b16 %v4062
        %v4137 = vunpack.c.l.b16 %v4063
        %v4138 = vunpack.c.l.b16 %v4064
        %v4139 = vunpack.c.l.b16 %v4065
        %v4140 = vunpack.c.l.b16 %v4066
        %v4141 = vunpack.c.l.b16 %v4067
        %v4142 = vunpack.c.l.b16 %v4068
        %v4143 = vunpack.c.l.b16 %v4069
        %v4144 = vunpack.c.l.b16 %v4070
        %v4145 = vunpack.c.l.b16 %v4071
        %v4146 = vunpack.c.l.b16 %v4072
        %v4147 = vunpack.c.l.b16 %v4073
        %v4148 = vunpack.c.l.b16 %v4074
        %v4149 = vunpack.c.l.b16 %v4075
        %v4150 = vunpack.c.l.b16 %v4076
        %v4151 = vpack.c.b16 %v4120, %v4119
        %v4152 = vpack.c.b16 %v4122, %v4121
        %v4153 = vpack.c.b16 %v4124, %v4123
        %v4154 = vpack.c.b16 %v4126, %v4125
        %v4155 = vpack.c.b16 %v4128, %v4127
        %v4156 = vpack.c.b16 %v4130, %v4129
        %v4157 = vpack.c.b16 %v4132, %v4131
        %v4158 = vpack.c.b16 %v4134, %v4133
        %v4159 = vpack.c.b16 %v4136, %v4135
        %v4160 = vpack.c.b16 %v4138, %v4137
        %v4161 = vpack.c.b16 %v4140, %v4139
        %v4162 = vpack.c.b16 %v4142, %v4141
        %v4163 = vpack.c.b16 %v4144, %v4143
        %v4164 = vpack.c.b16 %v4146, %v4145
        %v4165 = vpack.c.b16 %v4148, %v4147
        %v4166 = vpack.c.b16 %v4150, %v4149
        %v4170 = vunpack.c.l.b16 %v4077
        %v4171 = vunpack.c.l.b16 %v4078
        %v4172 = vunpack.c.l.b16 %v4079
        %v4173 = vpack.c.b16 %v4171, %v4170
        %v4174 = vpack.c.b16 %v4172, %v4172
        %v4177 = vsel %vm380, %v4151, 0
        %v4180 = vsel %vm380, %v4152, 0
        %v4183 = vsel %vm380, %v4153, 0
        %v4186 = vsel %vm380, %v4154, 0
        %v4189 = vsel %vm380, %v4155, 0
        %v4192 = vsel %vm380, %v4156, 0
        %v4195 = vsel %vm380, %v4157, 0
        %v4198 = vsel %vm380, %v4158, 0
        %v4201 = vsel %vm380, %v4159, 0
        %v4204 = vsel %vm380, %v4160, 0
        %v4207 = vsel %vm380, %v4161, 0
        %v4210 = vsel %vm380, %v4162, 0
        %v4213 = vsel %vm380, %v4163, 0
        %v4216 = vsel %vm380, %v4164, 0
        %v4219 = vsel %vm380, %v4165, 0
        %v4222 = vsel %vm380, %v4166, 0
        %v4225 = vsel %vm429, %v4174, 0
        %4227 = vmatprep.subr.bf16.mxu0 0
        %4228 = vmatpush1.bf16.msra.mxu0 %v4173
        %4229 = vmatprep.subr.bf16.mxu0 0
        %4230 = vmatpush1.bf16.msra.mxu0 %v4225
        %4231 = vmatprep.subr.bf16.mxu0 0
        %4232 = vmatpush1.bf16.msra.mxu0 0
        %4233 = vmatprep.subr.bf16.mxu0 0
        %4234 = vmatpush1.bf16.msra.mxu0 0
        %4235 = vmatprep.subr.bf16.mxu0 0
        %4236 = vmatpush1.bf16.msra.mxu0 0
        %4237 = vmatprep.subr.bf16.mxu0 0
        %4238 = vmatpush1.bf16.msra.mxu0 0
        %4239 = vmatprep.subr.bf16.mxu0 0
        %4240 = vmatpush1.bf16.msra.mxu0 0
        %4241 = vmatprep.subr.bf16.mxu0 0
        %4242 = vmatpush1.bf16.msra.mxu0 0
        %4243 = vmatprep.subr.bf16.mxu0 0
        %4244 = vmatpush1.bf16.msra.mxu0 0
        %4245 = vmatprep.subr.bf16.mxu0 0
        %4246 = vmatpush1.bf16.msra.mxu0 0
        %4247 = vmatprep.subr.bf16.mxu0 0
        %4248 = vmatpush1.bf16.msra.mxu0 0
        %4249 = vmatprep.subr.bf16.mxu0 0
        %4250 = vmatpush1.bf16.msra.mxu0 0
        %4251 = vmatprep.subr.bf16.mxu0 0
        %4252 = vmatpush1.bf16.msra.mxu0 0
        %4253 = vmatprep.subr.bf16.mxu0 0
        %4254 = vmatpush1.bf16.msra.mxu0 0
        %4255 = vmatprep.subr.bf16.mxu0 0
        %4256 = vmatpush1.bf16.msra.mxu0 0
        %4257 = vmatprep.subr.bf16.mxu0 0
        %4258 = vmatpush1.bf16.msra.mxu0 0
        %4259 = vmatprep.mubr.bf16.mxu0 0
        %4260 = vmatmul.mubr.bf16.gmra.mrb[0].mxu0 %v4177
        %v4261 = vpop.f32.mrb[0].mxu0
        %v4262 = vadd.f32 %v4085, %v4261
        %v4263 = vpop.f32.mrb[0].mxu0
        %v4264 = vpop.f32.mrb[0].mxu0
        %v4265 = vadd.f32 %v4085, %v4264
        %v4266 = vpop.f32.mrb[0].mxu0
        %4267 = vmatprep.mubr.bf16.mxu0 0
        %4268 = vmatmul.mubr.bf16.gmra.mrb[0].mxu0 %v4180
        %v4269 = vpop.f32.mrb[0].mxu0
        %v4270 = vadd.f32 %v4085, %v4269
        %v4271 = vpop.f32.mrb[0].mxu0
        %v4272 = vpop.f32.mrb[0].mxu0
        %v4273 = vadd.f32 %v4085, %v4272
        %v4274 = vpop.f32.mrb[0].mxu0
        %4275 = vmatprep.mubr.bf16.mxu0 0
        %4276 = vmatmul.mubr.bf16.gmra.mrb[0].mxu0 %v4183
        %v4277 = vpop.f32.mrb[0].mxu0
        %v4278 = vpop.f32.mrb[0].mxu0
        %v4279 = vpop.f32.mrb[0].mxu0
        %v4280 = vpop.f32.mrb[0].mxu0
        %4281 = vmatprep.mubr.bf16.mxu0 0
        %4282 = vmatmul.mubr.bf16.gmra.mrb[0].mxu0 %v4186
        %v4283 = vpop.f32.mrb[0].mxu0
        %v4284 = vadd.f32 %v4085, %v4283
        %v4285 = vpop.f32.mrb[0].mxu0
        %v4286 = vpop.f32.mrb[0].mxu0
        %v4287 = vadd.f32 %v4085, %v4286
        %v4288 = vpop.f32.mrb[0].mxu0
        %4289 = vmatprep.mubr.bf16.mxu0 0
        %4290 = vmatmul.mubr.bf16.gmra.mrb[0].mxu0 %v4189
        %v4291 = vpop.f32.mrb[0].mxu0
        %v4292 = vadd.f32 %v4085, %v4291
        %v4293 = vpop.f32.mrb[0].mxu0
        %v4294 = vpop.f32.mrb[0].mxu0
        %v4295 = vadd.f32 %v4085, %v4294
        %v4296 = vpop.f32.mrb[0].mxu0
        %4297 = vmatprep.mubr.bf16.mxu0 0
        %4298 = vmatmul.mubr.bf16.gmra.mrb[0].mxu0 %v4192
        %v4299 = vpop.f32.mrb[0].mxu0
        %v4300 = vadd.f32 %v4085, %v4299
        %v4301 = vpop.f32.mrb[0].mxu0
        %v4302 = vpop.f32.mrb[0].mxu0
        %v4303 = vadd.f32 %v4085, %v4302
        %v4304 = vpop.f32.mrb[0].mxu0
        %4305 = vmatprep.mubr.bf16.mxu0 0
        %4306 = vmatmul.mubr.bf16.gmra.mrb[0].mxu0 %v4195
        %v4307 = vpop.f32.mrb[0].mxu0
        %v4308 = vpop.f32.mrb[0].mxu0
        %v4309 = vpop.f32.mrb[0].mxu0
        %v4310 = vpop.f32.mrb[0].mxu0
        %4311 = vmatprep.mubr.bf16.mxu0 0
        %4312 = vmatmul.mubr.bf16.gmra.mrb[0].mxu0 %v4198
        %v4313 = vpop.f32.mrb[0].mxu0
        %v4314 = vadd.f32 %v4085, %v4313
        %v4315 = vpop.f32.mrb[0].mxu0
        %v4316 = vpop.f32.mrb[0].mxu0
        %v4317 = vadd.f32 %v4085, %v4316
        %v4318 = vpop.f32.mrb[0].mxu0
        %4319 = vmatprep.mubr.bf16.mxu0 0
        %4320 = vmatmul.mubr.bf16.gmra.mrb[0].mxu0 %v4201
        %v4321 = vpop.f32.mrb[0].mxu0
        %v4322 = vadd.f32 %v4085, %v4321
        %v4323 = vpop.f32.mrb[0].mxu0
        %v4324 = vpop.f32.mrb[0].mxu0
        %v4325 = vadd.f32 %v4085, %v4324
        %v4326 = vpop.f32.mrb[0].mxu0
        %4327 = vmatprep.mubr.bf16.mxu0 0
        %4328 = vmatmul.mubr.bf16.gmra.mrb[0].mxu0 %v4204
        %v4329 = vpop.f32.mrb[0].mxu0
        %v4330 = vadd.f32 %v4085, %v4329
        %v4331 = vpop.f32.mrb[0].mxu0
        %v4332 = vpop.f32.mrb[0].mxu0
        %v4333 = vadd.f32 %v4085, %v4332
        %v4334 = vpop.f32.mrb[0].mxu0
        %4335 = vmatprep.mubr.bf16.mxu0 0
        %4336 = vmatmul.mubr.bf16.gmra.mrb[0].mxu0 %v4207
        %v4337 = vpop.f32.mrb[0].mxu0
        %v4338 = vpop.f32.mrb[0].mxu0
        %v4339 = vpop.f32.mrb[0].mxu0
        %v4340 = vpop.f32.mrb[0].mxu0
        %4341 = vmatprep.mubr.bf16.mxu0 0
        %4342 = vmatmul.mubr.bf16.gmra.mrb[0].mxu0 %v4210
        %v4343 = vpop.f32.mrb[0].mxu0
        %v4344 = vadd.f32 %v4085, %v4343
        %v4345 = vpop.f32.mrb[0].mxu0
        %v4346 = vpop.f32.mrb[0].mxu0
        %v4347 = vadd.f32 %v4085, %v4346
        %v4348 = vpop.f32.mrb[0].mxu0
        %4349 = vmatprep.mubr.bf16.mxu0 0
        %4350 = vmatmul.mubr.bf16.gmra.mrb[0].mxu0 %v4213
        %v4351 = vpop.f32.mrb[0].mxu0
        %v4352 = vadd.f32 %v4085, %v4351
        %v4353 = vpop.f32.mrb[0].mxu0
        %v4354 = vpop.f32.mrb[0].mxu0
        %v4355 = vadd.f32 %v4085, %v4354
        %v4356 = vpop.f32.mrb[0].mxu0
        %4357 = vmatprep.mubr.bf16.mxu0 0
        %4358 = vmatmul.mubr.bf16.gmra.mrb[0].mxu0 %v4216
        %v4359 = vpop.f32.mrb[0].mxu0
        %v4360 = vadd.f32 %v4085, %v4359
        %v4361 = vpop.f32.mrb[0].mxu0
        %v4362 = vpop.f32.mrb[0].mxu0
        %v4363 = vadd.f32 %v4085, %v4362
        %v4364 = vpop.f32.mrb[0].mxu0
        %4365 = vmatprep.mubr.bf16.mxu0 0
        %4366 = vmatmul.mubr.bf16.gmra.mrb[0].mxu0 %v4219
        %v4367 = vpop.f32.mrb[0].mxu0
        %v4368 = vpop.f32.mrb[0].mxu0
        %v4369 = vpop.f32.mrb[0].mxu0
        %v4370 = vpop.f32.mrb[0].mxu0
        %4371 = vmatprep.mubr.bf16.mxu0 0
        %4372 = vmatmul.mubr.bf16.gmra.mrb[0].mxu0 %v4222
        %v4373 = vpop.f32.mrb[0].mxu0
        %v4374 = vpop.f32.mrb[0].mxu0
        %v4375 = vpop.f32.mrb[0].mxu0
        %v4376 = vpop.f32.mrb[0].mxu0
        %4377 = vdwg.mxu0
        %v4378 = vsub.f32 1.0, %v3221
        %v4379 = vsub.f32 1.0, %v3222
        %v4380 = vsub.f32 1.0, %v3223
        %v4381 = vsub.f32 1.0, %v3224
        %v4382 = vsub.f32 1.0, %v3225
        %v4383 = vsub.f32 1.0, %v3226
        %v4384 = vsub.f32 1.0, %v3227
        %v4385 = vsub.f32 1.0, %v3228
        %v4386 = vsub.f32 1.0, %v3229
        %v4387 = vsub.f32 1.0, %v3230
        %v4388 = vsub.f32 1.0, %v3231
        %v4389 = vsub.f32 1.0, %v3232
        %v4390 = vsub.f32 1.0, %v3233
        %v4391 = vsub.f32 1.0, %v3234
        %v4392 = vsub.f32 1.0, %v3235
        %v4393 = vsub.f32 1.0, %v3236
        %v4394 = vsub.f32 1.0, %v3237
        %v4395 = vsub.f32 1.0, %v3238
        %v4396 = vsub.f32 1.0, %v3239
        %v4397 = vsub.f32 1.0, %v3240
        %v4398 = vsub.f32 1.0, %v3241
        %v4399 = vsub.f32 1.0, %v3242
        %v4400 = vmul.f32 %v4378, 0.25
        %v4401 = vmul.f32 %v4379, 0.25
        %v4402 = vmul.f32 %v4380, 0.25
        %v4403 = vmul.f32 %v4381, 0.25
        %v4404 = vmul.f32 %v4382, 0.25
        %v4405 = vmul.f32 %v4383, 0.25
        %v4406 = vmul.f32 %v4384, 0.25
        %v4407 = vmul.f32 %v4385, 0.25
        %v4408 = vmul.f32 %v4386, 0.25
        %v4409 = vmul.f32 %v4387, 0.25
        %v4410 = vmul.f32 %v4388, 0.25
        %v4411 = vmul.f32 %v4389, 0.25
        %v4412 = vmul.f32 %v4390, 0.25
        %v4413 = vmul.f32 %v4391, 0.25
        %v4414 = vmul.f32 %v4392, 0.25
        %v4415 = vmul.f32 %v4393, 0.25
        %v4416 = vmul.f32 %v4394, 0.25
        %v4417 = vmul.f32 %v4395, 0.25
        %v4418 = vmul.f32 %v4396, 0.25
        %v4419 = vmul.f32 %v4397, 0.25
        %v4420 = vmul.f32 %v4398, 0.25
        %v4421 = vmul.f32 %v4399, 0.25
        %v4422 = vmul.f32 %v3155, %v4400
        %v4423 = vmul.f32 %v3156, %v4401
        %v4424 = vmul.f32 %v3157, %v4402
        %v4425 = vmul.f32 %v3158, %v4403
        %v4426 = vmul.f32 %v3159, %v4404
        %v4427 = vmul.f32 %v3160, %v4405
        %v4428 = vmul.f32 %v3161, %v4406
        %v4429 = vmul.f32 %v3162, %v4407
        %v4430 = vmul.f32 %v3163, %v4408
        %v4431 = vmul.f32 %v3164, %v4409
        %v4432 = vmul.f32 %v3165, %v4410
        %v4433 = vmul.f32 %v3166, %v4411
        %v4434 = vmul.f32 %v3167, %v4412
        %v4435 = vmul.f32 %v3168, %v4413
        %v4436 = vmul.f32 %v3169, %v4414
        %v4437 = vmul.f32 %v3170, %v4415
        %v4438 = vmul.f32 %v3171, %v4416
        %v4439 = vmul.f32 %v3172, %v4417
        %v4440 = vmul.f32 %v3173, %v4418
        %v4441 = vmul.f32 %v3174, %v4419
        %v4442 = vmul.f32 %v3175, %v4420
        %v4443 = vmul.f32 %v3176, %v4421
        %v4444 = vadd.f32 %v4422, %v4262
        %v4445 = vadd.f32 %v4423, %v4265
        %v4446 = vadd.f32 %v4424, %v4270
        %v4447 = vadd.f32 %v4425, %v4273
        %v4448 = vadd.f32 %v4426, %v4284
        %v4449 = vadd.f32 %v4427, %v4287
        %v4450 = vadd.f32 %v4428, %v4292
        %v4451 = vadd.f32 %v4429, %v4295
        %v4452 = vadd.f32 %v4430, %v4300
        %v4453 = vadd.f32 %v4431, %v4303
        %v4454 = vadd.f32 %v4432, %v4314
        %v4455 = vadd.f32 %v4433, %v4317
        %v4456 = vadd.f32 %v4434, %v4322
        %v4457 = vadd.f32 %v4435, %v4325
        %v4458 = vadd.f32 %v4436, %v4330
        %v4459 = vadd.f32 %v4437, %v4333
        %v4460 = vadd.f32 %v4438, %v4344
        %v4461 = vadd.f32 %v4439, %v4347
        %v4462 = vadd.f32 %v4440, %v4352
        %v4463 = vadd.f32 %v4441, %v4355
        %v4464 = vadd.f32 %v4442, %v4360
        %v4465 = vadd.f32 %v4443, %v4363
        %vm4466 = vcmp.gt.f32.partialorder %v4444, 0.5
        %vm4467 = vcmp.gt.f32.partialorder %v4445, 0.5
        %vm4468 = vcmp.gt.f32.partialorder %v4446, 0.5
        %vm4469 = vcmp.gt.f32.partialorder %v4447, 0.5
        %vm4470 = vcmp.gt.f32.partialorder %v4448, 0.5
        %vm4471 = vcmp.gt.f32.partialorder %v4449, 0.5
        %vm4472 = vcmp.gt.f32.partialorder %v4450, 0.5
        %vm4473 = vcmp.gt.f32.partialorder %v4451, 0.5
        %vm4474 = vcmp.gt.f32.partialorder %v4452, 0.5
        %vm4475 = vcmp.gt.f32.partialorder %v4453, 0.5
        %vm4476 = vcmp.gt.f32.partialorder %v4454, 0.5
        %vm4477 = vcmp.gt.f32.partialorder %v4455, 0.5
        %vm4478 = vcmp.gt.f32.partialorder %v4456, 0.5
        %vm4479 = vcmp.gt.f32.partialorder %v4457, 0.5
        %vm4480 = vcmp.gt.f32.partialorder %v4458, 0.5
        %vm4481 = vcmp.gt.f32.partialorder %v4459, 0.5
        %vm4482 = vcmp.gt.f32.partialorder %v4460, 0.5
        %vm4483 = vcmp.gt.f32.partialorder %v4461, 0.5
        %vm4484 = vcmp.gt.f32.partialorder %v4462, 0.5
        %vm4485 = vcmp.gt.f32.partialorder %v4463, 0.5
        %vm4486 = vcmp.gt.f32.partialorder %v4464, 0.5
        %vm4487 = vcmp.gt.f32.partialorder %v4465, 0.5
        %v4488 = vsel %vm4466, 1, 0
        %v4489 = vsel %vm4467, 1, 0
        %v4490 = vsel %vm4468, 1, 0
        %v4491 = vsel %vm4469, 1, 0
        %v4492 = vsel %vm4470, 1, 0
        %v4493 = vsel %vm4471, 1, 0
        %v4494 = vsel %vm4472, 1, 0
        %v4495 = vsel %vm4473, 1, 0
        %v4496 = vsel %vm4474, 1, 0
        %v4497 = vsel %vm4475, 1, 0
        %v4498 = vsel %vm4476, 1, 0
        %v4499 = vsel %vm4477, 1, 0
        %v4500 = vsel %vm4478, 1, 0
        %v4501 = vsel %vm4479, 1, 0
        %v4502 = vsel %vm4480, 1, 0
        %v4503 = vsel %vm4481, 1, 0
        %v4504 = vsel %vm4482, 1, 0
        %v4505 = vsel %vm4483, 1, 0
        %v4506 = vsel %vm4484, 1, 0
        %v4507 = vsel %vm4485, 1, 0
        %v4508 = vsel %vm4486, 1, 0
        %v4509 = vsel %vm4487, 1, 0
        %v4510 = vcvt.s32.f32 %v4488
        %v4511 = vcvt.s32.f32 %v4489
        %v4512 = vcvt.s32.f32 %v4490
        %v4513 = vcvt.s32.f32 %v4491
        %v4514 = vcvt.s32.f32 %v4492
        %v4515 = vcvt.s32.f32 %v4493
        %v4516 = vcvt.s32.f32 %v4494
        %v4517 = vcvt.s32.f32 %v4495
        %v4518 = vcvt.s32.f32 %v4496
        %v4519 = vcvt.s32.f32 %v4497
        %v4520 = vcvt.s32.f32 %v4498
        %v4521 = vcvt.s32.f32 %v4499
        %v4522 = vcvt.s32.f32 %v4500
        %v4523 = vcvt.s32.f32 %v4501
        %v4524 = vcvt.s32.f32 %v4502
        %v4525 = vcvt.s32.f32 %v4503
        %v4526 = vcvt.s32.f32 %v4504
        %v4527 = vcvt.s32.f32 %v4505
        %v4528 = vcvt.s32.f32 %v4506
        %v4529 = vcvt.s32.f32 %v4507
        %v4530 = vcvt.s32.f32 %v4508
        %v4531 = vcvt.s32.f32 %v4509
        %v4554 = vcombine.high %v4510, %v4510
        %v4555 = vcombine.high %v4511, %v4511
        %v4556 = vcombine.high %v4512, %v4512
        %v4557 = vcombine.high %v4513, %v4513
        %v4558 = vcombine.high %v4514, %v4514
        %v4559 = vcombine.high %v4515, %v4515
        %v4560 = vcombine.high %v4516, %v4516
        %v4561 = vcombine.high %v4517, %v4517
        %v4562 = vcombine.high %v4518, %v4518
        %v4563 = vcombine.high %v4519, %v4519
        %v4564 = vcombine.high %v4520, %v4520
        %v4565 = vcombine.high %v4521, %v4521
        %v4566 = vcombine.high %v4522, %v4522
        %v4567 = vcombine.high %v4523, %v4523
        %v4568 = vcombine.high %v4524, %v4524
        %v4569 = vcombine.high %v4525, %v4525
        %v4570 = vcombine.high %v4526, %v4526
        %v4571 = vcombine.high %v4527, %v4527
        %v4572 = vcombine.high %v4528, %v4528
        %v4573 = vcombine.high %v4529, %v4529
        %v4574 = vcombine.high %v4530, %v4530
        %v4575 = vcombine.high %v4531, %v4531
        %v4598 = vrot.slane %v4510, 5
        %v4599 = vrot.slane %v4598, 4
        %v4600 = vrot.slane %v4554, 5
        %v4601 = vrot.slane %v4600, 4
        %v4602 = vrot.slane %v4511, 5
        %v4603 = vrot.slane %v4602, 4
        %v4604 = vrot.slane %v4555, 5
        %v4605 = vrot.slane %v4604, 4
        %v4606 = vrot.slane %v4512, 5
        %v4607 = vrot.slane %v4606, 4
        %v4608 = vrot.slane %v4556, 5
        %v4609 = vrot.slane %v4608, 4
        %v4610 = vrot.slane %v4513, 5
        %v4611 = vrot.slane %v4610, 4
        %v4612 = vrot.slane %v4557, 5
        %v4613 = vrot.slane %v4612, 4
        %v4614 = vrot.slane %v4514, 5
        %v4615 = vrot.slane %v4614, 4
        %v4616 = vrot.slane %v4558, 5
        %v4617 = vrot.slane %v4616, 4
        %v4618 = vrot.slane %v4515, 5
        %v4619 = vrot.slane %v4618, 4
        %v4620 = vrot.slane %v4559, 5
        %v4621 = vrot.slane %v4620, 4
        %v4622 = vrot.slane %v4516, 5
        %v4623 = vrot.slane %v4622, 4
        %v4624 = vrot.slane %v4560, 5
        %v4625 = vrot.slane %v4624, 4
        %v4626 = vrot.slane %v4517, 5
        %v4627 = vrot.slane %v4626, 4
        %v4628 = vrot.slane %v4561, 5
        %v4629 = vrot.slane %v4628, 4
        %v4630 = vrot.slane %v4518, 5
        %v4631 = vrot.slane %v4630, 4
        %v4632 = vrot.slane %v4562, 5
        %v4633 = vrot.slane %v4632, 4
        %v4634 = vrot.slane %v4519, 5
        %v4635 = vrot.slane %v4634, 4
        %v4636 = vrot.slane %v4563, 5
        %v4637 = vrot.slane %v4636, 4
        %v4638 = vrot.slane %v4520, 5
        %v4639 = vrot.slane %v4638, 4
        %v4640 = vrot.slane %v4564, 5
        %v4641 = vrot.slane %v4640, 4
        %v4642 = vrot.slane %v4521, 5
        %v4643 = vrot.slane %v4642, 4
        %v4644 = vrot.slane %v4565, 5
        %v4645 = vrot.slane %v4644, 4
        %v4646 = vrot.slane %v4522, 5
        %v4647 = vrot.slane %v4646, 4
        %v4648 = vrot.slane %v4566, 5
        %v4649 = vrot.slane %v4648, 4
        %v4650 = vrot.slane %v4523, 5
        %v4651 = vrot.slane %v4650, 4
        %v4652 = vrot.slane %v4567, 5
        %v4653 = vrot.slane %v4652, 4
        %v4654 = vrot.slane %v4524, 5
        %v4655 = vrot.slane %v4654, 4
        %v4656 = vrot.slane %v4568, 5
        %v4657 = vrot.slane %v4656, 4
        %v4658 = vrot.slane %v4525, 5
        %v4659 = vrot.slane %v4658, 4
        %v4660 = vrot.slane %v4569, 5
        %v4661 = vrot.slane %v4660, 4
        %v4662 = vrot.slane %v4526, 5
        %v4663 = vrot.slane %v4662, 4
        %v4664 = vrot.slane %v4570, 5
        %v4665 = vrot.slane %v4664, 4
        %v4666 = vrot.slane %v4527, 5
        %v4667 = vrot.slane %v4666, 4
        %v4668 = vrot.slane %v4571, 5
        %v4669 = vrot.slane %v4668, 4
        %v4670 = vrot.slane %v4528, 5
        %v4671 = vrot.slane %v4670, 4
        %v4672 = vrot.slane %v4572, 5
        %v4673 = vrot.slane %v4672, 4
        %v4674 = vrot.slane %v4529, 5
        %v4675 = vrot.slane %v4674, 4
        %v4676 = vrot.slane %v4573, 5
        %v4677 = vrot.slane %v4676, 4
        %v4678 = vrot.slane %v4530, 5
        %v4679 = vrot.slane %v4678, 4
        %v4680 = vrot.slane %v4574, 5
        %v4681 = vrot.slane %v4680, 4
        %v4682 = vrot.slane %v4531, 5
        %v4683 = vrot.slane %v4682, 4
        %v4684 = vrot.slane %v4575, 5
        %v4685 = vrot.slane %v4684, 4
        %v4730 = vmax.f32 %v4510, %v4599
        %v4731 = vmax.f32 %v4554, %v4601
        %v4732 = vmax.f32 %v4511, %v4603
        %v4733 = vmax.f32 %v4555, %v4605
        %v4734 = vmax.f32 %v4512, %v4607
        %v4735 = vmax.f32 %v4556, %v4609
        %v4736 = vmax.f32 %v4513, %v4611
        %v4737 = vmax.f32 %v4557, %v4613
        %v4738 = vmax.f32 %v4514, %v4615
        %v4739 = vmax.f32 %v4558, %v4617
        %v4740 = vmax.f32 %v4515, %v4619
        %v4741 = vmax.f32 %v4559, %v4621
        %v4742 = vmax.f32 %v4516, %v4623
        %v4743 = vmax.f32 %v4560, %v4625
        %v4744 = vmax.f32 %v4517, %v4627
        %v4745 = vmax.f32 %v4561, %v4629
        %v4746 = vmax.f32 %v4518, %v4631
        %v4747 = vmax.f32 %v4562, %v4633
        %v4748 = vmax.f32 %v4519, %v4635
        %v4749 = vmax.f32 %v4563, %v4637
        %v4750 = vmax.f32 %v4520, %v4639
        %v4751 = vmax.f32 %v4564, %v4641
        %v4752 = vmax.f32 %v4521, %v4643
        %v4753 = vmax.f32 %v4565, %v4645
        %v4754 = vmax.f32 %v4522, %v4647
        %v4755 = vmax.f32 %v4566, %v4649
        %v4756 = vmax.f32 %v4523, %v4651
        %v4757 = vmax.f32 %v4567, %v4653
        %v4758 = vmax.f32 %v4524, %v4655
        %v4759 = vmax.f32 %v4568, %v4657
        %v4760 = vmax.f32 %v4525, %v4659
        %v4761 = vmax.f32 %v4569, %v4661
        %v4762 = vmax.f32 %v4526, %v4663
        %v4763 = vmax.f32 %v4570, %v4665
        %v4764 = vmax.f32 %v4527, %v4667
        %v4765 = vmax.f32 %v4571, %v4669
        %v4766 = vmax.f32 %v4528, %v4671
        %v4767 = vmax.f32 %v4572, %v4673
        %v4768 = vmax.f32 %v4529, %v4675
        %v4769 = vmax.f32 %v4573, %v4677
        %v4770 = vmax.f32 %v4530, %v4679
        %v4771 = vmax.f32 %v4574, %v4681
        %v4772 = vmax.f32 %v4531, %v4683
        %v4773 = vmax.f32 %v4575, %v4685
        %v4774 = vlaneseq
        %v4775 = vshrl.u32 %v4774, 7
        %v4776 = vsub.s32 3, %v4775
        %v4777 = vrot.slane %v4510, %v4776
        %v4778 = vlaneseq
        %v4779 = vshrl.u32 %v4778, 7
        %v4780 = vsub.s32 3, %v4779
        %v4781 = vrot.slane %v4554, %v4780
        %v4782 = vlaneseq
        %v4783 = vshrl.u32 %v4782, 7
        %v4784 = vsub.s32 3, %v4783
        %v4785 = vrot.slane %v4511, %v4784
        %v4786 = vlaneseq
        %v4787 = vshrl.u32 %v4786, 7
        %v4788 = vsub.s32 3, %v4787
        %v4789 = vrot.slane %v4512, %v4788
        %v4790 = vlaneseq
        %v4791 = vshrl.u32 %v4790, 7
        %v4792 = vsub.s32 3, %v4791
        %v4793 = vrot.slane %v4556, %v4792
        %v4794 = vlaneseq
        %v4795 = vshrl.u32 %v4794, 7
        %v4796 = vsub.s32 3, %v4795
        %v4797 = vrot.slane %v4513, %v4796
        %v4798 = vlaneseq
        %v4799 = vshrl.u32 %v4798, 7
        %v4800 = vsub.s32 3, %v4799
        %v4801 = vrot.slane %v4514, %v4800
        %v4802 = vlaneseq
        %v4803 = vshrl.u32 %v4802, 7
        %v4804 = vsub.s32 3, %v4803
        %v4805 = vrot.slane %v4558, %v4804
        %v4806 = vlaneseq
        %v4807 = vshrl.u32 %v4806, 7
        %v4808 = vsub.s32 3, %v4807
        %v4809 = vrot.slane %v4515, %v4808
        %v4810 = vlaneseq
        %v4811 = vshrl.u32 %v4810, 7
        %v4812 = vsub.s32 3, %v4811
        %v4813 = vrot.slane %v4516, %v4812
        %v4814 = vlaneseq
        %v4815 = vshrl.u32 %v4814, 7
        %v4816 = vsub.s32 3, %v4815
        %v4817 = vrot.slane %v4560, %v4816
        %v4818 = vlaneseq
        %v4819 = vshrl.u32 %v4818, 7
        %v4820 = vsub.s32 3, %v4819
        %v4821 = vrot.slane %v4517, %v4820
        %v4822 = vlaneseq
        %v4823 = vshrl.u32 %v4822, 7
        %v4824 = vsub.s32 3, %v4823
        %v4825 = vrot.slane %v4518, %v4824
        %v4826 = vlaneseq
        %v4827 = vshrl.u32 %v4826, 7
        %v4828 = vsub.s32 3, %v4827
        %v4829 = vrot.slane %v4562, %v4828
        %v4830 = vlaneseq
        %v4831 = vshrl.u32 %v4830, 7
        %v4832 = vsub.s32 3, %v4831
        %v4833 = vrot.slane %v4519, %v4832
        %v4834 = vlaneseq
        %v4835 = vshrl.u32 %v4834, 7
        %v4836 = vsub.s32 3, %v4835
        %v4837 = vrot.slane %v4520, %v4836
        %v4838 = vlaneseq
        %v4839 = vshrl.u32 %v4838, 7
        %v4840 = vsub.s32 3, %v4839
        %v4841 = vrot.slane %v4564, %v4840
        %v4842 = vlaneseq
        %v4843 = vshrl.u32 %v4842, 7
        %v4844 = vsub.s32 3, %v4843
        %v4845 = vrot.slane %v4521, %v4844
        %v4846 = vlaneseq
        %v4847 = vshrl.u32 %v4846, 7
        %v4848 = vsub.s32 3, %v4847
        %v4849 = vrot.slane %v4522, %v4848
        %v4850 = vlaneseq
        %v4851 = vshrl.u32 %v4850, 7
        %v4852 = vsub.s32 3, %v4851
        %v4853 = vrot.slane %v4566, %v4852
        %v4854 = vlaneseq
        %v4855 = vshrl.u32 %v4854, 7
        %v4856 = vsub.s32 3, %v4855
        %v4857 = vrot.slane %v4523, %v4856
        %v4858 = vlaneseq
        %v4859 = vshrl.u32 %v4858, 7
        %v4860 = vsub.s32 3, %v4859
        %v4861 = vrot.slane %v4524, %v4860
        %v4862 = vlaneseq
        %v4863 = vshrl.u32 %v4862, 7
        %v4864 = vsub.s32 3, %v4863
        %v4865 = vrot.slane %v4568, %v4864
        %v4866 = vlaneseq
        %v4867 = vshrl.u32 %v4866, 7
        %v4868 = vsub.s32 3, %v4867
        %v4869 = vrot.slane %v4525, %v4868
        %v4870 = vlaneseq
        %v4871 = vshrl.u32 %v4870, 7
        %v4872 = vsub.s32 3, %v4871
        %v4873 = vrot.slane %v4526, %v4872
        %v4874 = vlaneseq
        %v4875 = vshrl.u32 %v4874, 7
        %v4876 = vsub.s32 3, %v4875
        %v4877 = vrot.slane %v4570, %v4876
        %v4878 = vlaneseq
        %v4879 = vshrl.u32 %v4878, 7
        %v4880 = vsub.s32 3, %v4879
        %v4881 = vrot.slane %v4527, %v4880
        %v4882 = vlaneseq
        %v4883 = vshrl.u32 %v4882, 7
        %v4884 = vsub.s32 3, %v4883
        %v4885 = vrot.slane %v4528, %v4884
        %v4886 = vlaneseq
        %v4887 = vshrl.u32 %v4886, 7
        %v4888 = vsub.s32 3, %v4887
        %v4889 = vrot.slane %v4572, %v4888
        %v4890 = vlaneseq
        %v4891 = vshrl.u32 %v4890, 7
        %v4892 = vsub.s32 3, %v4891
        %v4893 = vrot.slane %v4529, %v4892
        %v4894 = vlaneseq
        %v4895 = vshrl.u32 %v4894, 7
        %v4896 = vsub.s32 3, %v4895
        %v4897 = vrot.slane %v4530, %v4896
        %v4898 = vlaneseq
        %v4899 = vshrl.u32 %v4898, 7
        %v4900 = vsub.s32 3, %v4899
        %v4901 = vrot.slane %v4574, %v4900
        %v4902 = vlaneseq
        %v4903 = vshrl.u32 %v4902, 7
        %v4904 = vsub.s32 3, %v4903
        %v4905 = vrot.slane %v4531, %v4904
        %v4906 = vsel %vm1024, %v4781, %v4777
        %v4907 = vsel %vm1026, %v4785, %v4906
        %v4908 = vsel %vm1024, %v4793, %v4789
        %v4909 = vsel %vm1026, %v4797, %v4908
        %v4910 = vsel %vm1024, %v4805, %v4801
        %v4911 = vsel %vm1026, %v4809, %v4910
        %v4912 = vsel %vm1024, %v4817, %v4813
        %v4913 = vsel %vm1026, %v4821, %v4912
        %v4914 = vsel %vm1024, %v4829, %v4825
        %v4915 = vsel %vm1026, %v4833, %v4914
        %v4916 = vsel %vm1024, %v4841, %v4837
        %v4917 = vsel %vm1026, %v4845, %v4916
        %v4918 = vsel %vm1024, %v4853, %v4849
        %v4919 = vsel %vm1026, %v4857, %v4918
        %v4920 = vsel %vm1024, %v4865, %v4861
        %v4921 = vsel %vm1026, %v4869, %v4920
        %v4922 = vsel %vm1024, %v4877, %v4873
        %v4923 = vsel %vm1026, %v4881, %v4922
        %v4924 = vsel %vm1024, %v4889, %v4885
        %v4925 = vsel %vm1026, %v4893, %v4924
        %v4926 = vsel %vm1024, %v4901, %v4897
        %v4927 = vsel %vm1026, %v4905, %v4926
        %v4939 = vsel %vm429, 0.0, %v4907
        %v4940 = vsel %vm429, 0.0, %v4909
        %v4941 = vsel %vm429, 0.0, %v4911
        %v4942 = vsel %vm429, 0.0, %v4913
        %v4943 = vsel %vm429, 0.0, %v4915
        %v4944 = vsel %vm429, 0.0, %v4917
        %v4945 = vsel %vm429, 0.0, %v4919
        %v4946 = vsel %vm429, 0.0, %v4921
        %v4947 = vsel %vm429, 0.0, %v4923
        %v4948 = vsel %vm429, 0.0, %v4925
        %v4949 = vsel %vm429, 0.0, %v4927
        %v4961 = vrot.slane %v4939, 1
        %v4962 = vrot.slane %v4939, 2
        %v4963 = vrot.slane %v4939, 3
        %v4964 = vrot.slane %v4940, 1
        %v4965 = vrot.slane %v4940, 2
        %v4966 = vrot.slane %v4940, 3
        %v4967 = vrot.slane %v4941, 1
        %v4968 = vrot.slane %v4941, 2
        %v4969 = vrot.slane %v4941, 3
        %v4970 = vrot.slane %v4942, 1
        %v4971 = vrot.slane %v4942, 2
        %v4972 = vrot.slane %v4942, 3
        %v4973 = vrot.slane %v4943, 1
        %v4974 = vrot.slane %v4943, 2
        %v4975 = vrot.slane %v4943, 3
        %v4976 = vrot.slane %v4944, 1
        %v4977 = vrot.slane %v4944, 2
        %v4978 = vrot.slane %v4944, 3
        %v4979 = vrot.slane %v4945, 1
        %v4980 = vrot.slane %v4945, 2
        %v4981 = vrot.slane %v4945, 3
        %v4982 = vrot.slane %v4946, 1
        %v4983 = vrot.slane %v4946, 2
        %v4984 = vrot.slane %v4946, 3
        %v4985 = vrot.slane %v4947, 1
        %v4986 = vrot.slane %v4947, 2
        %v4987 = vrot.slane %v4947, 3
        %v4988 = vrot.slane %v4948, 1
        %v4989 = vrot.slane %v4948, 2
        %v4990 = vrot.slane %v4948, 3
        %v4991 = vrot.slane %v4949, 1
        %v4992 = vrot.slane %v4949, 2
        %v4993 = vrot.slane %v4949, 3
        %v5038 = vmax.f32 %v4730, %v4939
        %v5039 = vmax.f32 %v4731, %v4961
        %v5040 = vmax.f32 %v4732, %v4962
        %v5041 = vmax.f32 %v4733, %v4963
        %v5042 = vmax.f32 %v4734, %v4940
        %v5043 = vmax.f32 %v4735, %v4964
        %v5044 = vmax.f32 %v4736, %v4965
        %v5045 = vmax.f32 %v4737, %v4966
        %v5046 = vmax.f32 %v4738, %v4941
        %v5047 = vmax.f32 %v4739, %v4967
        %v5048 = vmax.f32 %v4740, %v4968
        %v5049 = vmax.f32 %v4741, %v4969
        %v5050 = vmax.f32 %v4742, %v4942
        %v5051 = vmax.f32 %v4743, %v4970
        %v5052 = vmax.f32 %v4744, %v4971
        %v5053 = vmax.f32 %v4745, %v4972
        %v5054 = vmax.f32 %v4746, %v4943
        %v5055 = vmax.f32 %v4747, %v4973
        %v5056 = vmax.f32 %v4748, %v4974
        %v5057 = vmax.f32 %v4749, %v4975
        %v5058 = vmax.f32 %v4750, %v4944
        %v5059 = vmax.f32 %v4751, %v4976
        %v5060 = vmax.f32 %v4752, %v4977
        %v5061 = vmax.f32 %v4753, %v4978
        %v5062 = vmax.f32 %v4754, %v4945
        %v5063 = vmax.f32 %v4755, %v4979
        %v5064 = vmax.f32 %v4756, %v4980
        %v5065 = vmax.f32 %v4757, %v4981
        %v5066 = vmax.f32 %v4758, %v4946
        %v5067 = vmax.f32 %v4759, %v4982
        %v5068 = vmax.f32 %v4760, %v4983
        %v5069 = vmax.f32 %v4761, %v4984
        %v5070 = vmax.f32 %v4762, %v4947
        %v5071 = vmax.f32 %v4763, %v4985
        %v5072 = vmax.f32 %v4764, %v4986
        %v5073 = vmax.f32 %v4765, %v4987
        %v5074 = vmax.f32 %v4766, %v4948
        %v5075 = vmax.f32 %v4767, %v4988
        %v5076 = vmax.f32 %v4768, %v4989
        %v5077 = vmax.f32 %v4769, %v4990
        %v5078 = vmax.f32 %v4770, %v4949
        %v5079 = vmax.f32 %v4771, %v4991
        %v5080 = vmax.f32 %v4772, %v4992
        %v5081 = vmax.f32 %v4773, %v4993
        %v5082 = vmax.f32 %v5038, %v5042
        %v5083 = vmax.f32 %v5039, %v5043
        %v5084 = vmax.f32 %v5040, %v5044
        %v5085 = vmax.f32 %v5041, %v5045
        %v5086 = vmax.f32 %v5050, %v5054
        %v5087 = vmax.f32 %v5051, %v5055
        %v5088 = vmax.f32 %v5052, %v5056
        %v5089 = vmax.f32 %v5053, %v5057
        %v5090 = vmax.f32 %v5062, %v5066
        %v5091 = vmax.f32 %v5063, %v5067
        %v5092 = vmax.f32 %v5064, %v5068
        %v5093 = vmax.f32 %v5065, %v5069
        %v5094 = vmax.f32 %v5074, %v5078
        %v5095 = vmax.f32 %v5075, %v5079
        %v5096 = vmax.f32 %v5076, %v5080
        %v5097 = vmax.f32 %v5077, %v5081
        %v5110 = vlaneseq
        %v5111 = vshrl.u32 %v5110, 7
        %v5112 = vsub.s32 0, %v5111
        %v5113 = vrot.slane %v5046, %v5112
        %v5114 = vlaneseq
        %v5115 = vshrl.u32 %v5114, 7
        %v5116 = vsub.s32 0, %v5115
        %v5117 = vrot.slane %v5047, %v5116
        %v5118 = vlaneseq
        %v5119 = vshrl.u32 %v5118, 7
        %v5120 = vsub.s32 0, %v5119
        %v5121 = vrot.slane %v5048, %v5120
        %v5122 = vlaneseq
        %v5123 = vshrl.u32 %v5122, 7
        %v5124 = vsub.s32 0, %v5123
        %v5125 = vrot.slane %v5049, %v5124
        %v5126 = vlaneseq
        %v5127 = vshrl.u32 %v5126, 7
        %v5128 = vsub.s32 0, %v5127
        %v5129 = vrot.slane %v5058, %v5128
        %v5130 = vlaneseq
        %v5131 = vshrl.u32 %v5130, 7
        %v5132 = vsub.s32 0, %v5131
        %v5133 = vrot.slane %v5059, %v5132
        %v5134 = vlaneseq
        %v5135 = vshrl.u32 %v5134, 7
        %v5136 = vsub.s32 0, %v5135
        %v5137 = vrot.slane %v5060, %v5136
        %v5138 = vlaneseq
        %v5139 = vshrl.u32 %v5138, 7
        %v5140 = vsub.s32 0, %v5139
        %v5141 = vrot.slane %v5061, %v5140
        %v5142 = vlaneseq
        %v5143 = vshrl.u32 %v5142, 7
        %v5144 = vsub.s32 0, %v5143
        %v5145 = vrot.slane %v5070, %v5144
        %v5146 = vlaneseq
        %v5147 = vshrl.u32 %v5146, 7
        %v5148 = vsub.s32 0, %v5147
        %v5149 = vrot.slane %v5071, %v5148
        %v5150 = vlaneseq
        %v5151 = vshrl.u32 %v5150, 7
        %v5152 = vsub.s32 0, %v5151
        %v5153 = vrot.slane %v5072, %v5152
        %v5154 = vlaneseq
        %v5155 = vshrl.u32 %v5154, 7
        %v5156 = vsub.s32 0, %v5155
        %v5157 = vrot.slane %v5073, %v5156
        %v5158 = vsel %vm1278, %v5117, %v5113
        %v5159 = vsel %vm1024, %v5121, %v5158
        %v5160 = vsel %vm1026, %v5125, %v5159
        %v5161 = vsel %vm1278, %v5133, %v5129
        %v5162 = vsel %vm1024, %v5137, %v5161
        %v5163 = vsel %vm1026, %v5141, %v5162
        %v5164 = vsel %vm1278, %v5149, %v5145
        %v5165 = vsel %vm1024, %v5153, %v5164
        %v5166 = vsel %vm1026, %v5157, %v5165
        %v5167 = vrot.slane %v5160, 1
        %v5168 = vrot.slane %v5160, 2
        %v5169 = vrot.slane %v5160, 3
        %v5170 = vrot.slane %v5163, 1
        %v5171 = vrot.slane %v5163, 2
        %v5172 = vrot.slane %v5163, 3
        %v5173 = vrot.slane %v5166, 1
        %v5174 = vrot.slane %v5166, 2
        %v5175 = vrot.slane %v5166, 3
        %v5188 = vmax.f32 %v5082, 0.0
        %v5189 = vmax.f32 %v5083, %v1289
        %v5190 = vmax.f32 %v5084, %v1290
        %v5191 = vmax.f32 %v5085, %v1291
        %v5192 = vmax.f32 %v5086, %v5160
        %v5193 = vmax.f32 %v5087, %v5167
        %v5194 = vmax.f32 %v5088, %v5168
        %v5195 = vmax.f32 %v5089, %v5169
        %v5196 = vmax.f32 %v5090, %v5163
        %v5197 = vmax.f32 %v5091, %v5170
        %v5198 = vmax.f32 %v5092, %v5171
        %v5199 = vmax.f32 %v5093, %v5172
        %v5200 = vmax.f32 %v5094, %v5166
        %v5201 = vmax.f32 %v5095, %v5173
        %v5202 = vmax.f32 %v5096, %v5174
        %v5203 = vmax.f32 %v5097, %v5175
        %v5204 = vpack.c.bf16 %v5188, %v5188
        %v5205 = vpack.c.bf16 %v5189, %v5189
        %v5206 = vpack.c.bf16 %v5190, %v5190
        %v5207 = vpack.c.bf16 %v5191, %v5191
        %v5208 = vpack.c.bf16 %v5192, %v5192
        %v5209 = vpack.c.bf16 %v5193, %v5193
        %v5210 = vpack.c.bf16 %v5194, %v5194
        %v5211 = vpack.c.bf16 %v5195, %v5195
        %v5212 = vpack.c.bf16 %v5196, %v5196
        %v5213 = vpack.c.bf16 %v5197, %v5197
        %v5214 = vpack.c.bf16 %v5198, %v5198
        %v5215 = vpack.c.bf16 %v5199, %v5199
        %v5216 = vpack.c.bf16 %v5200, %v5200
        %v5217 = vpack.c.bf16 %v5201, %v5201
        %v5218 = vpack.c.bf16 %v5202, %v5202
        %v5219 = vpack.c.bf16 %v5203, %v5203
        %v5236 = vunpack.c.l.b16 %v5204
        %v5237 = vunpack.c.l.b16 %v5205
        %v5238 = vunpack.c.l.b16 %v5206
        %v5239 = vunpack.c.l.b16 %v5207
        %v5240 = vunpack.c.l.b16 %v5208
        %v5241 = vunpack.c.l.b16 %v5209
        %v5242 = vunpack.c.l.b16 %v5210
        %v5243 = vunpack.c.l.b16 %v5211
        %v5244 = vunpack.c.l.b16 %v5212
        %v5245 = vunpack.c.l.b16 %v5213
        %v5246 = vunpack.c.l.b16 %v5214
        %v5247 = vunpack.c.l.b16 %v5215
        %v5248 = vunpack.c.l.b16 %v5216
        %v5249 = vunpack.c.l.b16 %v5217
        %v5250 = vunpack.c.l.b16 %v5218
        %v5251 = vunpack.c.l.b16 %v5219
        %v5252 = vpack.c.b16 %v5236, %v5236
        %v5253 = vpack.c.b16 %v5237, %v5237
        %v5254 = vpack.c.b16 %v5238, %v5238
        %v5255 = vpack.c.b16 %v5239, %v5239
        %v5256 = vpack.c.b16 %v5240, %v5240
        %v5257 = vpack.c.b16 %v5241, %v5241
        %v5258 = vpack.c.b16 %v5242, %v5242
        %v5259 = vpack.c.b16 %v5243, %v5243
        %v5260 = vpack.c.b16 %v5244, %v5244
        %v5261 = vpack.c.b16 %v5245, %v5245
        %v5262 = vpack.c.b16 %v5246, %v5246
        %v5263 = vpack.c.b16 %v5247, %v5247
        %v5264 = vpack.c.b16 %v5248, %v5248
        %v5265 = vpack.c.b16 %v5249, %v5249
        %v5266 = vpack.c.b16 %v5250, %v5250
        %v5267 = vpack.c.b16 %v5251, %v5251
        %v5268 = vunpack.c.l.b16 %v5252
        %v5269 = vunpack.c.l.b16 %v5253
        %v5270 = vunpack.c.l.b16 %v5254
        %v5271 = vunpack.c.l.b16 %v5255
        %v5272 = vunpack.c.l.b16 %v5256
        %v5273 = vunpack.c.l.b16 %v5257
        %v5274 = vunpack.c.l.b16 %v5258
        %v5275 = vunpack.c.l.b16 %v5259
        %v5276 = vunpack.c.l.b16 %v5260
        %v5277 = vunpack.c.l.b16 %v5261
        %v5278 = vunpack.c.l.b16 %v5262
        %v5279 = vunpack.c.l.b16 %v5263
        %v5280 = vunpack.c.l.b16 %v5264
        %v5281 = vunpack.c.l.b16 %v5265
        %v5282 = vunpack.c.l.b16 %v5266
        %v5283 = vunpack.c.l.b16 %v5267
        %v5284 = vrot.slane %v5268, 7
        %v5285 = vrot.slane %v5269, 6
        %v5286 = vsel %vm1024, %v5285, %v5284
        %v5287 = vrot.slane %v5270, 5
        %v5288 = vsel %vm1026, %v5287, %v5286
        %v5289 = vrot.slane %v5271, 4
        %v5290 = vsel %vm1419, %v5289, %v5288
        %v5291 = vrot.slane %v5272, 7
        %v5292 = vrot.slane %v5273, 6
        %v5293 = vsel %vm1024, %v5292, %v5291
        %v5294 = vrot.slane %v5274, 5
        %v5295 = vsel %vm1026, %v5294, %v5293
        %v5296 = vrot.slane %v5275, 4
        %v5297 = vsel %vm1419, %v5296, %v5295
        %v5298 = vrot.slane %v5276, 7
        %v5299 = vrot.slane %v5277, 6
        %v5300 = vsel %vm1024, %v5299, %v5298
        %v5301 = vrot.slane %v5278, 5
        %v5302 = vsel %vm1026, %v5301, %v5300
        %v5303 = vrot.slane %v5279, 4
        %v5304 = vsel %vm1419, %v5303, %v5302
        %v5305 = vrot.slane %v5280, 7
        %v5306 = vrot.slane %v5281, 6
        %v5307 = vsel %vm1024, %v5306, %v5305
        %v5308 = vrot.slane %v5282, 5
        %v5309 = vsel %vm1026, %v5308, %v5307
        %v5310 = vrot.slane %v5283, 4
        %v5311 = vsel %vm1419, %v5310, %v5309
        %v5312 = vpack.c.b16 %v5290, %v5290
        %v5313 = vpack.c.b16 %v5297, %v5297
        %v5314 = vpack.c.b16 %v5304, %v5304
        %v5315 = vpack.c.b16 %v5311, %v5311
        %s5320 = scalar_lea.vmem [#allocation2], 76
        %v5321 = vld [vmem:[%s5320] sm:$0x7]
        %v5322 = vsel %vm1453, %v5312, %v5321
        %5323 = vst [vmem:[%s5320] sm:$0x7] %v5322
        %v5324 = vld [vmem:[%s5320 + $0x4] sm:$0x7]
        %v5325 = vsel %vm1453, %v5313, %v5324
        %5326 = vst [vmem:[%s5320 + $0x4] sm:$0x7] %v5325
        %v5327 = vld [vmem:[%s5320 + $0x8] sm:$0x7]
        %v5328 = vsel %vm1453, %v5314, %v5327
        %5329 = vst [vmem:[%s5320 + $0x8] sm:$0x7] %v5328
        %v5330 = vld [vmem:[%s5320 + $0xc] sm:$0x7]
        %v5331 = vsel %vm1453, %v5315, %v5330
        %5332 = vst [vmem:[%s5320 + $0xc] sm:$0x7] %v5331
        %v5333 = vld [vmem:[#allocation2] sm:$0x7]
        %v5334 = vld [vmem:[#allocation2 + $0x4] sm:$0x7]
        %v5335 = vld [vmem:[#allocation2 + $0x8] sm:$0x7]
        %v5336 = vld [vmem:[#allocation2 + $0xc] sm:$0x7]
        %v5337 = vld [vmem:[#allocation2 + $0x10] sm:$0x7]
        %v5338 = vld [vmem:[#allocation2 + $0x14] sm:$0x7]
        %v5339 = vld [vmem:[#allocation2 + $0x18] sm:$0x7]
        %v5340 = vld [vmem:[#allocation2 + $0x1c] sm:$0x7]
        %v5341 = vld [vmem:[#allocation2 + $0x20] sm:$0x7]
        %v5342 = vld [vmem:[#allocation2 + $0x24] sm:$0x7]
        %v5343 = vld [vmem:[#allocation2 + $0x28] sm:$0x7]
        %v5344 = vld [vmem:[#allocation2 + $0x2c] sm:$0x7]
        %v5345 = vld [vmem:[#allocation2 + $0x30] sm:$0x7]
        %v5346 = vld [vmem:[#allocation2 + $0x34] sm:$0x7]
        %v5347 = vld [vmem:[#allocation2 + $0x38] sm:$0x7]
        %v5348 = vld [vmem:[#allocation2 + $0x3c] sm:$0x7]
        %v5349 = vld [vmem:[#allocation2 + $0x40] sm:$0x7]
        %v5350 = vld [vmem:[#allocation2 + $0x44] sm:$0x7]
        %v5351 = vld [vmem:[#allocation2 + $0x48] sm:$0x7]
        %v5352 = vld [vmem:[#allocation2 + $0x4c] sm:$0x7]
        %v5353 = vld [vmem:[#allocation2 + $0x50] sm:$0x7]
        %v5354 = vld [vmem:[#allocation2 + $0x54] sm:$0x7]
        %v5355 = vld [vmem:[#allocation2 + $0x58] sm:$0x7]
        %v5356 = vld [vmem:[#allocation2 + $0x5c] sm:$0x7]
        %v5357 = vld [vmem:[%s3] sm:$0xf]
        %v5358 = vld [vmem:[%s3 + $0x4] sm:$0xf]
        %v5359 = vld [vmem:[%s3 + $0x8] sm:$0xf]
        %v5360 = vld [vmem:[%s3 + $0xc] sm:$0xf]
        %v5378 = vunpack.c.l.s4 1983009808
        %v5379 = vunpack.c.0.s8 %v5378
        %v5380 = vlaneseq
        %v5381 = vshrl.u32 %v5380, 7
        %v5382 = vsub.s32 %v5379, %v5381
        %v5383 = vrot.slane %v5333, %v5382
        %v5384 = vcombine.high %v5383, %v5383
        %v5386 = vunpack.c.l.s4 1983009808
        %v5387 = vunpack.c.0.s8 %v5386
        %v5388 = vlaneseq
        %v5389 = vshrl.u32 %v5388, 7
        %v5390 = vsub.s32 %v5387, %v5389
        %v5391 = vrot.slane %v5334, %v5390
        %v5392 = vcombine.high %v5391, %v5391
        %v5394 = vunpack.c.l.s4 1983009808
        %v5395 = vunpack.c.0.s8 %v5394
        %v5396 = vlaneseq
        %v5397 = vshrl.u32 %v5396, 7
        %v5398 = vsub.s32 %v5395, %v5397
        %v5399 = vrot.slane %v5335, %v5398
        %v5400 = vcombine.high %v5399, %v5399
        %v5402 = vunpack.c.l.s4 1983009808
        %v5403 = vunpack.c.0.s8 %v5402
        %v5404 = vlaneseq
        %v5405 = vshrl.u32 %v5404, 7
        %v5406 = vsub.s32 %v5403, %v5405
        %v5407 = vrot.slane %v5336, %v5406
        %v5408 = vcombine.high %v5407, %v5407
        %v5410 = vunpack.c.l.s4 1983009808
        %v5411 = vunpack.c.0.s8 %v5410
        %v5412 = vlaneseq
        %v5413 = vshrl.u32 %v5412, 7
        %v5414 = vsub.s32 %v5411, %v5413
        %v5415 = vrot.slane %v5339, %v5414
        %v5416 = vcombine.high %v5415, %v5415
        %v5418 = vunpack.c.l.s4 1983009808
        %v5419 = vunpack.c.0.s8 %v5418
        %v5420 = vlaneseq
        %v5421 = vshrl.u32 %v5420, 7
        %v5422 = vsub.s32 %v5419, %v5421
        %v5423 = vrot.slane %v5340, %v5422
        %v5424 = vcombine.high %v5423, %v5423
        %v5426 = vunpack.c.l.s4 1983009808
        %v5427 = vunpack.c.0.s8 %v5426
        %v5428 = vlaneseq
        %v5429 = vshrl.u32 %v5428, 7
        %v5430 = vsub.s32 %v5427, %v5429
        %v5431 = vrot.slane %v5341, %v5430
        %v5432 = vcombine.high %v5431, %v5431
        %v5434 = vunpack.c.l.s4 1983009808
        %v5435 = vunpack.c.0.s8 %v5434
        %v5436 = vlaneseq
        %v5437 = vshrl.u32 %v5436, 7
        %v5438 = vsub.s32 %v5435, %v5437
        %v5439 = vrot.slane %v5342, %v5438
        %v5440 = vcombine.high %v5439, %v5439
        %v5442 = vunpack.c.l.s4 1983009808
        %v5443 = vunpack.c.0.s8 %v5442
        %v5444 = vlaneseq
        %v5445 = vshrl.u32 %v5444, 7
        %v5446 = vsub.s32 %v5443, %v5445
        %v5447 = vrot.slane %v5345, %v5446
        %v5448 = vcombine.high %v5447, %v5447
        %v5450 = vunpack.c.l.s4 1983009808
        %v5451 = vunpack.c.0.s8 %v5450
        %v5452 = vlaneseq
        %v5453 = vshrl.u32 %v5452, 7
        %v5454 = vsub.s32 %v5451, %v5453
        %v5455 = vrot.slane %v5346, %v5454
        %v5456 = vcombine.high %v5455, %v5455
        %v5458 = vunpack.c.l.s4 1983009808
        %v5459 = vunpack.c.0.s8 %v5458
        %v5460 = vlaneseq
        %v5461 = vshrl.u32 %v5460, 7
        %v5462 = vsub.s32 %v5459, %v5461
        %v5463 = vrot.slane %v5347, %v5462
        %v5464 = vcombine.high %v5463, %v5463
        %v5466 = vunpack.c.l.s4 1983009808
        %v5467 = vunpack.c.0.s8 %v5466
        %v5468 = vlaneseq
        %v5469 = vshrl.u32 %v5468, 7
        %v5470 = vsub.s32 %v5467, %v5469
        %v5471 = vrot.slane %v5348, %v5470
        %v5472 = vcombine.high %v5471, %v5471
        %v5474 = vunpack.c.l.s4 1983009808
        %v5475 = vunpack.c.0.s8 %v5474
        %v5476 = vlaneseq
        %v5477 = vshrl.u32 %v5476, 7
        %v5478 = vsub.s32 %v5475, %v5477
        %v5479 = vrot.slane %v5351, %v5478
        %v5480 = vcombine.high %v5479, %v5479
        %v5482 = vunpack.c.l.s4 1983009808
        %v5483 = vunpack.c.0.s8 %v5482
        %v5484 = vlaneseq
        %v5485 = vshrl.u32 %v5484, 7
        %v5486 = vsub.s32 %v5483, %v5485
        %v5487 = vrot.slane %v5352, %v5486
        %v5488 = vcombine.high %v5487, %v5487
        %v5490 = vunpack.c.l.s4 1983009808
        %v5491 = vunpack.c.0.s8 %v5490
        %v5492 = vlaneseq
        %v5493 = vshrl.u32 %v5492, 7
        %v5494 = vsub.s32 %v5491, %v5493
        %v5495 = vrot.slane %v5353, %v5494
        %v5496 = vcombine.high %v5495, %v5495
        %v5498 = vunpack.c.l.s4 1983009808
        %v5499 = vunpack.c.0.s8 %v5498
        %v5500 = vlaneseq
        %v5501 = vshrl.u32 %v5500, 7
        %v5502 = vsub.s32 %v5499, %v5501
        %v5503 = vrot.slane %v5354, %v5502
        %v5504 = vcombine.high %v5503, %v5503
        %vm5505 = vsmask.f32 1280
        %vm5506 = vsmask.f32 3336
        %vm5507 = vmor %vm5505, %vm5506
        %vm5508 = vsmask.f32 5392
        %vm5509 = vmor %vm5507, %vm5508
        %vm5510 = vsmask.f32 7448
        %vm5511 = vmor %vm5509, %vm5510
        %v5513 = vshrl.u32 %v5383, 16
        %v5515 = vrot.slane %v5513, 6
        %v5516 = vshll.u32 %v5383, 16
        %v5518 = vrot.slane %v5516, 7
        %v5519 = vor.u32 %v5515, %v5518
        %v5520 = vrot.slane %v5519, 2
        %v5522 = vshll.u32 %v5384, 16
        %v5524 = vrot.slane %v5522, 7
        %v5525 = vsel %vm5511, %v5520, %v5524
        %v5527 = vshrl.u32 %v5391, 16
        %v5529 = vrot.slane %v5527, 6
        %v5530 = vshll.u32 %v5391, 16
        %v5532 = vrot.slane %v5530, 7
        %v5533 = vor.u32 %v5529, %v5532
        %v5534 = vrot.slane %v5533, 2
        %v5536 = vshll.u32 %v5392, 16
        %v5538 = vrot.slane %v5536, 7
        %v5539 = vsel %vm5511, %v5534, %v5538
        %v5541 = vshrl.u32 %v5399, 16
        %v5543 = vrot.slane %v5541, 6
        %v5544 = vshll.u32 %v5399, 16
        %v5546 = vrot.slane %v5544, 7
        %v5547 = vor.u32 %v5543, %v5546
        %v5548 = vrot.slane %v5547, 2
        %v5550 = vshll.u32 %v5400, 16
        %v5552 = vrot.slane %v5550, 7
        %v5553 = vsel %vm5511, %v5548, %v5552
        %v5555 = vshrl.u32 %v5407, 16
        %v5557 = vrot.slane %v5555, 6
        %v5558 = vshll.u32 %v5407, 16
        %v5560 = vrot.slane %v5558, 7
        %v5561 = vor.u32 %v5557, %v5560
        %v5562 = vrot.slane %v5561, 2
        %v5564 = vshll.u32 %v5408, 16
        %v5566 = vrot.slane %v5564, 7
        %v5567 = vsel %vm5511, %v5562, %v5566
        %v5569 = vshrl.u32 %v5415, 16
        %v5571 = vrot.slane %v5569, 6
        %v5572 = vshll.u32 %v5415, 16
        %v5574 = vrot.slane %v5572, 7
        %v5575 = vor.u32 %v5571, %v5574
        %v5576 = vrot.slane %v5575, 2
        %v5578 = vshll.u32 %v5416, 16
        %v5580 = vrot.slane %v5578, 7
        %v5581 = vsel %vm5511, %v5576, %v5580
        %v5583 = vshrl.u32 %v5423, 16
        %v5585 = vrot.slane %v5583, 6
        %v5586 = vshll.u32 %v5423, 16
        %v5588 = vrot.slane %v5586, 7
        %v5589 = vor.u32 %v5585, %v5588
        %v5590 = vrot.slane %v5589, 2
        %v5592 = vshll.u32 %v5424, 16
        %v5594 = vrot.slane %v5592, 7
        %v5595 = vsel %vm5511, %v5590, %v5594
        %v5597 = vshrl.u32 %v5431, 16
        %v5599 = vrot.slane %v5597, 6
        %v5600 = vshll.u32 %v5431, 16
        %v5602 = vrot.slane %v5600, 7
        %v5603 = vor.u32 %v5599, %v5602
        %v5604 = vrot.slane %v5603, 2
        %v5606 = vshll.u32 %v5432, 16
        %v5608 = vrot.slane %v5606, 7
        %v5609 = vsel %vm5511, %v5604, %v5608
        %v5611 = vshrl.u32 %v5439, 16
        %v5613 = vrot.slane %v5611, 6
        %v5614 = vshll.u32 %v5439, 16
        %v5616 = vrot.slane %v5614, 7
        %v5617 = vor.u32 %v5613, %v5616
        %v5618 = vrot.slane %v5617, 2
        %v5620 = vshll.u32 %v5440, 16
        %v5622 = vrot.slane %v5620, 7
        %v5623 = vsel %vm5511, %v5618, %v5622
        %v5625 = vshrl.u32 %v5447, 16
        %v5627 = vrot.slane %v5625, 6
        %v5628 = vshll.u32 %v5447, 16
        %v5630 = vrot.slane %v5628, 7
        %v5631 = vor.u32 %v5627, %v5630
        %v5632 = vrot.slane %v5631, 2
        %v5634 = vshll.u32 %v5448, 16
        %v5636 = vrot.slane %v5634, 7
        %v5637 = vsel %vm5511, %v5632, %v5636
        %v5639 = vshrl.u32 %v5455, 16
        %v5641 = vrot.slane %v5639, 6
        %v5642 = vshll.u32 %v5455, 16
        %v5644 = vrot.slane %v5642, 7
        %v5645 = vor.u32 %v5641, %v5644
        %v5646 = vrot.slane %v5645, 2
        %v5648 = vshll.u32 %v5456, 16
        %v5650 = vrot.slane %v5648, 7
        %v5651 = vsel %vm5511, %v5646, %v5650
        %v5653 = vshrl.u32 %v5463, 16
        %v5655 = vrot.slane %v5653, 6
        %v5656 = vshll.u32 %v5463, 16
        %v5658 = vrot.slane %v5656, 7
        %v5659 = vor.u32 %v5655, %v5658
        %v5660 = vrot.slane %v5659, 2
        %v5662 = vshll.u32 %v5464, 16
        %v5664 = vrot.slane %v5662, 7
        %v5665 = vsel %vm5511, %v5660, %v5664
        %v5667 = vshrl.u32 %v5471, 16
        %v5669 = vrot.slane %v5667, 6
        %v5670 = vshll.u32 %v5471, 16
        %v5672 = vrot.slane %v5670, 7
        %v5673 = vor.u32 %v5669, %v5672
        %v5674 = vrot.slane %v5673, 2
        %v5676 = vshll.u32 %v5472, 16
        %v5678 = vrot.slane %v5676, 7
        %v5679 = vsel %vm5511, %v5674, %v5678
        %v5681 = vshrl.u32 %v5479, 16
        %v5683 = vrot.slane %v5681, 6
        %v5684 = vshll.u32 %v5479, 16
        %v5686 = vrot.slane %v5684, 7
        %v5687 = vor.u32 %v5683, %v5686
        %v5688 = vrot.slane %v5687, 2
        %v5690 = vshll.u32 %v5480, 16
        %v5692 = vrot.slane %v5690, 7
        %v5693 = vsel %vm5511, %v5688, %v5692
        %v5695 = vshrl.u32 %v5487, 16
        %v5697 = vrot.slane %v5695, 6
        %v5698 = vshll.u32 %v5487, 16
        %v5700 = vrot.slane %v5698, 7
        %v5701 = vor.u32 %v5697, %v5700
        %v5702 = vrot.slane %v5701, 2
        %v5704 = vshll.u32 %v5488, 16
        %v5706 = vrot.slane %v5704, 7
        %v5707 = vsel %vm5511, %v5702, %v5706
        %v5709 = vshrl.u32 %v5495, 16
        %v5711 = vrot.slane %v5709, 6
        %v5712 = vshll.u32 %v5495, 16
        %v5714 = vrot.slane %v5712, 7
        %v5715 = vor.u32 %v5711, %v5714
        %v5716 = vrot.slane %v5715, 2
        %v5718 = vshll.u32 %v5496, 16
        %v5720 = vrot.slane %v5718, 7
        %v5721 = vsel %vm5511, %v5716, %v5720
        %v5723 = vshrl.u32 %v5503, 16
        %v5725 = vrot.slane %v5723, 6
        %v5726 = vshll.u32 %v5503, 16
        %v5728 = vrot.slane %v5726, 7
        %v5729 = vor.u32 %v5725, %v5728
        %v5730 = vrot.slane %v5729, 2
        %v5732 = vshll.u32 %v5504, 16
        %v5734 = vrot.slane %v5732, 7
        %v5735 = vsel %vm5511, %v5730, %v5734
        %s5736 = scalar_lea.vmem %s3, 16
        %v5737 = vld [vmem:[%s5736] sm:$0xf]
        %v5738 = vld [vmem:[%s5736 + $0x4] sm:$0xf]
        %v5739 = vld [vmem:[%s5736 + $0x8] sm:$0xf]
        %v5740 = vld [vmem:[%s5736 + $0xc] sm:$0xf]
        %v5741 = vcombine.low %v5525, %v5539
        %v5742 = vcombine.low %v5553, %v5567
        %v5744 = vunpack.c.l.s4 1983009808
        %v5745 = vunpack.c.0.s8 %v5744
        %v5746 = vlaneseq
        %v5747 = vshrl.u32 %v5746, 7
        %v5748 = vsub.s32 %v5745, %v5747
        %v5749 = vrot.slane %v5741, %v5748
        %v5751 = vunpack.c.l.s4 1983009808
        %v5752 = vunpack.c.0.s8 %v5751
        %v5753 = vlaneseq
        %v5754 = vshrl.u32 %v5753, 7
        %v5755 = vsub.s32 %v5752, %v5754
        %v5756 = vrot.slane %v5742, %v5755
        %v5757 = vcombine.low %v5749, %v5756
        %v5758 = vcombine.low %v5581, %v5595
        %v5759 = vcombine.low %v5609, %v5623
        %v5761 = vunpack.c.l.s4 1983009808
        %v5762 = vunpack.c.0.s8 %v5761
        %v5763 = vlaneseq
        %v5764 = vshrl.u32 %v5763, 7
        %v5765 = vsub.s32 %v5762, %v5764
        %v5766 = vrot.slane %v5758, %v5765
        %v5768 = vunpack.c.l.s4 1983009808
        %v5769 = vunpack.c.0.s8 %v5768
        %v5770 = vlaneseq
        %v5771 = vshrl.u32 %v5770, 7
        %v5772 = vsub.s32 %v5769, %v5771
        %v5773 = vrot.slane %v5759, %v5772
        %v5774 = vcombine.low %v5766, %v5773
        %v5775 = vcombine.low %v5637, %v5651
        %v5776 = vcombine.low %v5665, %v5679
        %v5778 = vunpack.c.l.s4 1983009808
        %v5779 = vunpack.c.0.s8 %v5778
        %v5780 = vlaneseq
        %v5781 = vshrl.u32 %v5780, 7
        %v5782 = vsub.s32 %v5779, %v5781
        %v5783 = vrot.slane %v5775, %v5782
        %v5785 = vunpack.c.l.s4 1983009808
        %v5786 = vunpack.c.0.s8 %v5785
        %v5787 = vlaneseq
        %v5788 = vshrl.u32 %v5787, 7
        %v5789 = vsub.s32 %v5786, %v5788
        %v5790 = vrot.slane %v5776, %v5789
        %v5791 = vcombine.low %v5783, %v5790
        %v5792 = vcombine.low %v5693, %v5707
        %v5793 = vcombine.low %v5721, %v5735
        %v5795 = vunpack.c.l.s4 1983009808
        %v5796 = vunpack.c.0.s8 %v5795
        %v5797 = vlaneseq
        %v5798 = vshrl.u32 %v5797, 7
        %v5799 = vsub.s32 %v5796, %v5798
        %v5800 = vrot.slane %v5792, %v5799
        %v5802 = vunpack.c.l.s4 1983009808
        %v5803 = vunpack.c.0.s8 %v5802
        %v5804 = vlaneseq
        %v5805 = vshrl.u32 %v5804, 7
        %v5806 = vsub.s32 %v5803, %v5805
        %v5807 = vrot.slane %v5793, %v5806
        %v5808 = vcombine.low %v5800, %v5807
        %v5813 = vunpack.c.l.b16 %v5737
        %v5814 = vunpack.c.l.b16 %v5738
        %v5815 = vunpack.c.l.b16 %v5739
        %v5816 = vunpack.c.l.b16 %v5740
        %v5817 = vpack.c.b16 %v5814, %v5813
        %v5818 = vpack.c.b16 %v5816, %v5815
        %vm5821 = vcmask 261120
        %v5823 = vsel %vm5821, %v5757, 0
        %v5826 = vsel %vm5821, %v5774, 0
        %v5829 = vsel %vm5821, %v5791, 0
        %v5832 = vsel %vm5821, %v5808, 0
        %5834 = vmatprep.subr.bf16.mxu0 0
        %5835 = vmatpush1.bf16.msra.mxu0 %v5817
        %5836 = vmatprep.subr.bf16.mxu0 0
        %5837 = vmatpush1.bf16.msra.mxu0 %v5818
        %5838 = vmatprep.subr.bf16.mxu0 0
        %5839 = vmatpush1.bf16.msra.mxu0 0
        %5840 = vmatprep.subr.bf16.mxu0 0
        %5841 = vmatpush1.bf16.msra.mxu0 0
        %5842 = vmatprep.subr.bf16.mxu0 0
        %5843 = vmatpush1.bf16.msra.mxu0 0
        %5844 = vmatprep.subr.bf16.mxu0 0
        %5845 = vmatpush1.bf16.msra.mxu0 0
        %5846 = vmatprep.subr.bf16.mxu0 0
        %5847 = vmatpush1.bf16.msra.mxu0 0
        %5848 = vmatprep.subr.bf16.mxu0 0
        %5849 = vmatpush1.bf16.msra.mxu0 0
        %5850 = vmatprep.subr.bf16.mxu0 0
        %5851 = vmatpush1.bf16.msra.mxu0 0
        %5852 = vmatprep.subr.bf16.mxu0 0
        %5853 = vmatpush1.bf16.msra.mxu0 0
        %5854 = vmatprep.subr.bf16.mxu0 0
        %5855 = vmatpush1.bf16.msra.mxu0 0
        %5856 = vmatprep.subr.bf16.mxu0 0
        %5857 = vmatpush1.bf16.msra.mxu0 0
        %5858 = vmatprep.subr.bf16.mxu0 0
        %5859 = vmatpush1.bf16.msra.mxu0 0
        %5860 = vmatprep.subr.bf16.mxu0 0
        %5861 = vmatpush1.bf16.msra.mxu0 0
        %5862 = vmatprep.subr.bf16.mxu0 0
        %5863 = vmatpush1.bf16.msra.mxu0 0
        %5864 = vmatprep.subr.bf16.mxu0 0
        %5865 = vmatpush1.bf16.msra.mxu0 0
        %5866 = vmatprep.mubr.bf16.mxu0 0
        %5867 = vmatmul.mubr.bf16.gmra.mrb[0].mxu0 %v5823
        %v5868 = vpop.f32.mrb[0].mxu0
        %v5869 = vadd.f32 0.0, %v5868
        %v5870 = vpop.f32.mrb[0].mxu0
        %v5871 = vpop.f32.mrb[0].mxu0
        %v5872 = vadd.f32 0.0, %v5871
        %v5873 = vpop.f32.mrb[0].mxu0
        %5874 = vmatprep.mubr.bf16.mxu0 0
        %5875 = vmatmul.mubr.bf16.gmra.mrb[0].mxu0 %v5826
        %v5876 = vpop.f32.mrb[0].mxu0
        %v5877 = vadd.f32 0.0, %v5876
        %v5878 = vpop.f32.mrb[0].mxu0
        %v5879 = vpop.f32.mrb[0].mxu0
        %v5880 = vadd.f32 0.0, %v5879
        %v5881 = vpop.f32.mrb[0].mxu0
        %5882 = vmatprep.mubr.bf16.mxu0 0
        %5883 = vmatmul.mubr.bf16.gmra.mrb[0].mxu0 %v5829
        %v5884 = vpop.f32.mrb[0].mxu0
        %v5885 = vadd.f32 0.0, %v5884
        %v5886 = vpop.f32.mrb[0].mxu0
        %v5887 = vpop.f32.mrb[0].mxu0
        %v5888 = vadd.f32 0.0, %v5887
        %v5889 = vpop.f32.mrb[0].mxu0
        %5890 = vmatprep.mubr.bf16.mxu0 0
        %5891 = vmatmul.mubr.bf16.gmra.mrb[0].mxu0 %v5832
        %v5892 = vpop.f32.mrb[0].mxu0
        %v5893 = vadd.f32 0.0, %v5892
        %v5894 = vpop.f32.mrb[0].mxu0
        %v5895 = vpop.f32.mrb[0].mxu0
        %v5896 = vadd.f32 0.0, %v5895
        %v5897 = vpop.f32.mrb[0].mxu0
        %5898 = vdwg.mxu0
        %v5899 = vcombine.low %v5333, %v5334
        %v5900 = vcombine.low %v5335, %v5336
        %v5902 = vunpack.c.l.s4 1983009808
        %v5903 = vunpack.c.0.s8 %v5902
        %v5904 = vlaneseq
        %v5905 = vshrl.u32 %v5904, 7
        %v5906 = vsub.s32 %v5903, %v5905
        %v5907 = vrot.slane %v5899, %v5906
        %v5909 = vunpack.c.l.s4 1983009808
        %v5910 = vunpack.c.0.s8 %v5909
        %v5911 = vlaneseq
        %v5912 = vshrl.u32 %v5911, 7
        %v5913 = vsub.s32 %v5910, %v5912
        %v5914 = vrot.slane %v5900, %v5913
        %v5915 = vcombine.low %v5907, %v5914
        %v5916 = vcombine.low %v5339, %v5340
        %v5917 = vcombine.low %v5341, %v5342
        %v5919 = vunpack.c.l.s4 1983009808
        %v5920 = vunpack.c.0.s8 %v5919
        %v5921 = vlaneseq
        %v5922 = vshrl.u32 %v5921, 7
        %v5923 = vsub.s32 %v5920, %v5922
        %v5924 = vrot.slane %v5916, %v5923
        %v5926 = vunpack.c.l.s4 1983009808
        %v5927 = vunpack.c.0.s8 %v5926
        %v5928 = vlaneseq
        %v5929 = vshrl.u32 %v5928, 7
        %v5930 = vsub.s32 %v5927, %v5929
        %v5931 = vrot.slane %v5917, %v5930
        %v5932 = vcombine.low %v5924, %v5931
        %v5933 = vcombine.low %v5345, %v5346
        %v5934 = vcombine.low %v5347, %v5348
        %v5936 = vunpack.c.l.s4 1983009808
        %v5937 = vunpack.c.0.s8 %v5936
        %v5938 = vlaneseq
        %v5939 = vshrl.u32 %v5938, 7
        %v5940 = vsub.s32 %v5937, %v5939
        %v5941 = vrot.slane %v5933, %v5940
        %v5943 = vunpack.c.l.s4 1983009808
        %v5944 = vunpack.c.0.s8 %v5943
        %v5945 = vlaneseq
        %v5946 = vshrl.u32 %v5945, 7
        %v5947 = vsub.s32 %v5944, %v5946
        %v5948 = vrot.slane %v5934, %v5947
        %v5949 = vcombine.low %v5941, %v5948
        %v5950 = vcombine.low %v5351, %v5352
        %v5951 = vcombine.low %v5353, %v5354
        %v5953 = vunpack.c.l.s4 1983009808
        %v5954 = vunpack.c.0.s8 %v5953
        %v5955 = vlaneseq
        %v5956 = vshrl.u32 %v5955, 7
        %v5957 = vsub.s32 %v5954, %v5956
        %v5958 = vrot.slane %v5950, %v5957
        %v5960 = vunpack.c.l.s4 1983009808
        %v5961 = vunpack.c.0.s8 %v5960
        %v5962 = vlaneseq
        %v5963 = vshrl.u32 %v5962, 7
        %v5964 = vsub.s32 %v5961, %v5963
        %v5965 = vrot.slane %v5951, %v5964
        %v5966 = vcombine.low %v5958, %v5965
        %v5971 = vunpack.c.l.b16 %v5357
        %v5972 = vunpack.c.l.b16 %v5358
        %v5973 = vunpack.c.l.b16 %v5359
        %v5974 = vunpack.c.l.b16 %v5360
        %v5975 = vpack.c.b16 %v5972, %v5971
        %v5976 = vpack.c.b16 %v5974, %v5973
        %v5980 = vsel %vm5821, %v5915, 0
        %v5983 = vsel %vm5821, %v5932, 0
        %v5986 = vsel %vm5821, %v5949, 0
        %v5989 = vsel %vm5821, %v5966, 0
        %5991 = vmatprep.subr.bf16.mxu0 0
        %5992 = vmatpush1.bf16.msra.mxu0 %v5975
        %5993 = vmatprep.subr.bf16.mxu0 0
        %5994 = vmatpush1.bf16.msra.mxu0 %v5976
        %5995 = vmatprep.subr.bf16.mxu0 0
        %5996 = vmatpush1.bf16.msra.mxu0 0
        %5997 = vmatprep.subr.bf16.mxu0 0
        %5998 = vmatpush1.bf16.msra.mxu0 0
        %5999 = vmatprep.subr.bf16.mxu0 0
        %6000 = vmatpush1.bf16.msra.mxu0 0
        %6001 = vmatprep.subr.bf16.mxu0 0
        %6002 = vmatpush1.bf16.msra.mxu0 0
        %6003 = vmatprep.subr.bf16.mxu0 0
        %6004 = vmatpush1.bf16.msra.mxu0 0
        %6005 = vmatprep.subr.bf16.mxu0 0
        %6006 = vmatpush1.bf16.msra.mxu0 0
        %6007 = vmatprep.subr.bf16.mxu0 0
        %6008 = vmatpush1.bf16.msra.mxu0 0
        %6009 = vmatprep.subr.bf16.mxu0 0
        %6010 = vmatpush1.bf16.msra.mxu0 0
        %6011 = vmatprep.subr.bf16.mxu0 0
        %6012 = vmatpush1.bf16.msra.mxu0 0
        %6013 = vmatprep.subr.bf16.mxu0 0
        %6014 = vmatpush1.bf16.msra.mxu0 0
        %6015 = vmatprep.subr.bf16.mxu0 0
        %6016 = vmatpush1.bf16.msra.mxu0 0
        %6017 = vmatprep.subr.bf16.mxu0 0
        %6018 = vmatpush1.bf16.msra.mxu0 0
        %6019 = vmatprep.subr.bf16.mxu0 0
        %6020 = vmatpush1.bf16.msra.mxu0 0
        %6021 = vmatprep.subr.bf16.mxu0 0
        %6022 = vmatpush1.bf16.msra.mxu0 0
        %6023 = vmatprep.mubr.bf16.mxu0 0
        %6024 = vmatmul.mubr.bf16.gmra.mrb[0].mxu0 %v5980
        %v6025 = vpop.f32.mrb[0].mxu0
        %v6026 = vadd.f32 %v5869, %v6025
        %v6027 = vpop.f32.mrb[0].mxu0
        %v6028 = vpop.f32.mrb[0].mxu0
        %v6029 = vadd.f32 %v5872, %v6028
        %v6030 = vpop.f32.mrb[0].mxu0
        %6031 = vmatprep.mubr.bf16.mxu0 0
        %6032 = vmatmul.mubr.bf16.gmra.mrb[0].mxu0 %v5983
        %v6033 = vpop.f32.mrb[0].mxu0
        %v6034 = vadd.f32 %v5877, %v6033
        %v6035 = vpop.f32.mrb[0].mxu0
        %v6036 = vpop.f32.mrb[0].mxu0
        %v6037 = vadd.f32 %v5880, %v6036
        %v6038 = vpop.f32.mrb[0].mxu0
        %6039 = vmatprep.mubr.bf16.mxu0 0
        %6040 = vmatmul.mubr.bf16.gmra.mrb[0].mxu0 %v5986
        %v6041 = vpop.f32.mrb[0].mxu0
        %v6042 = vadd.f32 %v5885, %v6041
        %v6043 = vpop.f32.mrb[0].mxu0
        %v6044 = vpop.f32.mrb[0].mxu0
        %v6045 = vadd.f32 %v5888, %v6044
        %v6046 = vpop.f32.mrb[0].mxu0
        %6047 = vmatprep.mubr.bf16.mxu0 0
        %6048 = vmatmul.mubr.bf16.gmra.mrb[0].mxu0 %v5989
        %v6049 = vpop.f32.mrb[0].mxu0
        %v6050 = vadd.f32 %v5893, %v6049
        %v6051 = vpop.f32.mrb[0].mxu0
        %v6052 = vpop.f32.mrb[0].mxu0
        %v6053 = vadd.f32 %v5896, %v6052
        %v6054 = vpop.f32.mrb[0].mxu0
        %6055 = vdwg.mxu0
        %vm6056 = vcmask 1040384
        %vm6057 = vcmask 1042434
        %vm6058 = vmor %vm6056, %vm6057
        %vm6059 = vcmask 1044484
        %vm6060 = vmor %vm6058, %vm6059
        %vm6061 = vcmask 1046534
        %vm6062 = vmor %vm6060, %vm6061
        %v6063 = vrot.slane %v5383, 7
        %v6064 = vrot.slane %v6063, 2
        %v6065 = vrot.slane %v5384, 7
        %v6066 = vsel %vm6062, %v6064, %v6065
        %v6067 = vrot.slane %v5391, 7
        %v6068 = vrot.slane %v6067, 2
        %v6069 = vrot.slane %v5392, 7
        %v6070 = vsel %vm6062, %v6068, %v6069
        %v6071 = vrot.slane %v5399, 7
        %v6072 = vrot.slane %v6071, 2
        %v6073 = vrot.slane %v5400, 7
        %v6074 = vsel %vm6062, %v6072, %v6073
        %v6075 = vrot.slane %v5407, 7
        %v6076 = vrot.slane %v6075, 2
        %v6077 = vrot.slane %v5408, 7
        %v6078 = vsel %vm6062, %v6076, %v6077
        %v6079 = vrot.slane %v5415, 7
        %v6080 = vrot.slane %v6079, 2
        %v6081 = vrot.slane %v5416, 7
        %v6082 = vsel %vm6062, %v6080, %v6081
        %v6083 = vrot.slane %v5423, 7
        %v6084 = vrot.slane %v6083, 2
        %v6085 = vrot.slane %v5424, 7
        %v6086 = vsel %vm6062, %v6084, %v6085
        %v6087 = vrot.slane %v5431, 7
        %v6088 = vrot.slane %v6087, 2
        %v6089 = vrot.slane %v5432, 7
        %v6090 = vsel %vm6062, %v6088, %v6089
        %v6091 = vrot.slane %v5439, 7
        %v6092 = vrot.slane %v6091, 2
        %v6093 = vrot.slane %v5440, 7
        %v6094 = vsel %vm6062, %v6092, %v6093
        %v6095 = vrot.slane %v5447, 7
        %v6096 = vrot.slane %v6095, 2
        %v6097 = vrot.slane %v5448, 7
        %v6098 = vsel %vm6062, %v6096, %v6097
        %v6099 = vrot.slane %v5455, 7
        %v6100 = vrot.slane %v6099, 2
        %v6101 = vrot.slane %v5456, 7
        %v6102 = vsel %vm6062, %v6100, %v6101
        %v6103 = vrot.slane %v5463, 7
        %v6104 = vrot.slane %v6103, 2
        %v6105 = vrot.slane %v5464, 7
        %v6106 = vsel %vm6062, %v6104, %v6105
        %v6107 = vrot.slane %v5471, 7
        %v6108 = vrot.slane %v6107, 2
        %v6109 = vrot.slane %v5472, 7
        %v6110 = vsel %vm6062, %v6108, %v6109
        %v6111 = vrot.slane %v5479, 7
        %v6112 = vrot.slane %v6111, 2
        %v6113 = vrot.slane %v5480, 7
        %v6114 = vsel %vm6062, %v6112, %v6113
        %v6115 = vrot.slane %v5487, 7
        %v6116 = vrot.slane %v6115, 2
        %v6117 = vrot.slane %v5488, 7
        %v6118 = vsel %vm6062, %v6116, %v6117
        %v6119 = vrot.slane %v5495, 7
        %v6120 = vrot.slane %v6119, 2
        %v6121 = vrot.slane %v5496, 7
        %v6122 = vsel %vm6062, %v6120, %v6121
        %v6123 = vrot.slane %v5503, 7
        %v6124 = vrot.slane %v6123, 2
        %v6125 = vrot.slane %v5504, 7
        %v6126 = vsel %vm6062, %v6124, %v6125
        %s6127 = scalar_lea.vmem %s3, 32
        %v6128 = vld [vmem:[%s6127] sm:$0xf]
        %v6129 = vld [vmem:[%s6127 + $0x4] sm:$0xf]
        %v6130 = vld [vmem:[%s6127 + $0x8] sm:$0xf]
        %v6131 = vld [vmem:[%s6127 + $0xc] sm:$0xf]
        %v6132 = vcombine.low %v6066, %v6070
        %v6133 = vcombine.low %v6074, %v6078
        %v6135 = vunpack.c.l.s4 1983009808
        %v6136 = vunpack.c.0.s8 %v6135
        %v6137 = vlaneseq
        %v6138 = vshrl.u32 %v6137, 7
        %v6139 = vsub.s32 %v6136, %v6138
        %v6140 = vrot.slane %v6132, %v6139
        %v6142 = vunpack.c.l.s4 1983009808
        %v6143 = vunpack.c.0.s8 %v6142
        %v6144 = vlaneseq
        %v6145 = vshrl.u32 %v6144, 7
        %v6146 = vsub.s32 %v6143, %v6145
        %v6147 = vrot.slane %v6133, %v6146
        %v6148 = vcombine.low %v6140, %v6147
        %v6149 = vcombine.low %v6082, %v6086
        %v6150 = vcombine.low %v6090, %v6094
        %v6152 = vunpack.c.l.s4 1983009808
        %v6153 = vunpack.c.0.s8 %v6152
        %v6154 = vlaneseq
        %v6155 = vshrl.u32 %v6154, 7
        %v6156 = vsub.s32 %v6153, %v6155
        %v6157 = vrot.slane %v6149, %v6156
        %v6159 = vunpack.c.l.s4 1983009808
        %v6160 = vunpack.c.0.s8 %v6159
        %v6161 = vlaneseq
        %v6162 = vshrl.u32 %v6161, 7
        %v6163 = vsub.s32 %v6160, %v6162
        %v6164 = vrot.slane %v6150, %v6163
        %v6165 = vcombine.low %v6157, %v6164
        %v6166 = vcombine.low %v6098, %v6102
        %v6167 = vcombine.low %v6106, %v6110
        %v6169 = vunpack.c.l.s4 1983009808
        %v6170 = vunpack.c.0.s8 %v6169
        %v6171 = vlaneseq
        %v6172 = vshrl.u32 %v6171, 7
        %v6173 = vsub.s32 %v6170, %v6172
        %v6174 = vrot.slane %v6166, %v6173
        %v6176 = vunpack.c.l.s4 1983009808
        %v6177 = vunpack.c.0.s8 %v6176
        %v6178 = vlaneseq
        %v6179 = vshrl.u32 %v6178, 7
        %v6180 = vsub.s32 %v6177, %v6179
        %v6181 = vrot.slane %v6167, %v6180
        %v6182 = vcombine.low %v6174, %v6181
        %v6183 = vcombine.low %v6114, %v6118
        %v6184 = vcombine.low %v6122, %v6126
        %v6186 = vunpack.c.l.s4 1983009808
        %v6187 = vunpack.c.0.s8 %v6186
        %v6188 = vlaneseq
        %v6189 = vshrl.u32 %v6188, 7
        %v6190 = vsub.s32 %v6187, %v6189
        %v6191 = vrot.slane %v6183, %v6190
        %v6193 = vunpack.c.l.s4 1983009808
        %v6194 = vunpack.c.0.s8 %v6193
        %v6195 = vlaneseq
        %v6196 = vshrl.u32 %v6195, 7
        %v6197 = vsub.s32 %v6194, %v6196
        %v6198 = vrot.slane %v6184, %v6197
        %v6199 = vcombine.low %v6191, %v6198
        %v6204 = vunpack.c.l.b16 %v6128
        %v6205 = vunpack.c.l.b16 %v6129
        %v6206 = vunpack.c.l.b16 %v6130
        %v6207 = vunpack.c.l.b16 %v6131
        %v6208 = vpack.c.b16 %v6205, %v6204
        %v6209 = vpack.c.b16 %v6207, %v6206
        %v6213 = vsel %vm5821, %v6148, 0
        %v6216 = vsel %vm5821, %v6165, 0
        %v6219 = vsel %vm5821, %v6182, 0
        %v6222 = vsel %vm5821, %v6199, 0
        %6224 = vmatprep.subr.bf16.mxu0 0
        %6225 = vmatpush1.bf16.msra.mxu0 %v6208
        %6226 = vmatprep.subr.bf16.mxu0 0
        %6227 = vmatpush1.bf16.msra.mxu0 %v6209
        %6228 = vmatprep.subr.bf16.mxu0 0
        %6229 = vmatpush1.bf16.msra.mxu0 0
        %6230 = vmatprep.subr.bf16.mxu0 0
        %6231 = vmatpush1.bf16.msra.mxu0 0
        %6232 = vmatprep.subr.bf16.mxu0 0
        %6233 = vmatpush1.bf16.msra.mxu0 0
        %6234 = vmatprep.subr.bf16.mxu0 0
        %6235 = vmatpush1.bf16.msra.mxu0 0
        %6236 = vmatprep.subr.bf16.mxu0 0
        %6237 = vmatpush1.bf16.msra.mxu0 0
        %6238 = vmatprep.subr.bf16.mxu0 0
        %6239 = vmatpush1.bf16.msra.mxu0 0
        %6240 = vmatprep.subr.bf16.mxu0 0
        %6241 = vmatpush1.bf16.msra.mxu0 0
        %6242 = vmatprep.subr.bf16.mxu0 0
        %6243 = vmatpush1.bf16.msra.mxu0 0
        %6244 = vmatprep.subr.bf16.mxu0 0
        %6245 = vmatpush1.bf16.msra.mxu0 0
        %6246 = vmatprep.subr.bf16.mxu0 0
        %6247 = vmatpush1.bf16.msra.mxu0 0
        %6248 = vmatprep.subr.bf16.mxu0 0
        %6249 = vmatpush1.bf16.msra.mxu0 0
        %6250 = vmatprep.subr.bf16.mxu0 0
        %6251 = vmatpush1.bf16.msra.mxu0 0
        %6252 = vmatprep.subr.bf16.mxu0 0
        %6253 = vmatpush1.bf16.msra.mxu0 0
        %6254 = vmatprep.subr.bf16.mxu0 0
        %6255 = vmatpush1.bf16.msra.mxu0 0
        %6256 = vmatprep.mubr.bf16.mxu0 0
        %6257 = vmatmul.mubr.bf16.gmra.mrb[0].mxu0 %v6213
        %v6258 = vpop.f32.mrb[0].mxu0
        %v6259 = vadd.f32 0.0, %v6258
        %v6260 = vpop.f32.mrb[0].mxu0
        %v6261 = vpop.f32.mrb[0].mxu0
        %v6262 = vadd.f32 0.0, %v6261
        %v6263 = vpop.f32.mrb[0].mxu0
        %6264 = vmatprep.mubr.bf16.mxu0 0
        %6265 = vmatmul.mubr.bf16.gmra.mrb[0].mxu0 %v6216
        %v6266 = vpop.f32.mrb[0].mxu0
        %v6267 = vadd.f32 0.0, %v6266
        %v6268 = vpop.f32.mrb[0].mxu0
        %v6269 = vpop.f32.mrb[0].mxu0
        %v6270 = vadd.f32 0.0, %v6269
        %v6271 = vpop.f32.mrb[0].mxu0
        %6272 = vmatprep.mubr.bf16.mxu0 0
        %6273 = vmatmul.mubr.bf16.gmra.mrb[0].mxu0 %v6219
        %v6274 = vpop.f32.mrb[0].mxu0
        %v6275 = vadd.f32 0.0, %v6274
        %v6276 = vpop.f32.mrb[0].mxu0
        %v6277 = vpop.f32.mrb[0].mxu0
        %v6278 = vadd.f32 0.0, %v6277
        %v6279 = vpop.f32.mrb[0].mxu0
        %6280 = vmatprep.mubr.bf16.mxu0 0
        %6281 = vmatmul.mubr.bf16.gmra.mrb[0].mxu0 %v6222
        %v6282 = vpop.f32.mrb[0].mxu0
        %v6283 = vadd.f32 0.0, %v6282
        %v6284 = vpop.f32.mrb[0].mxu0
        %v6285 = vpop.f32.mrb[0].mxu0
        %v6286 = vadd.f32 0.0, %v6285
        %v6287 = vpop.f32.mrb[0].mxu0
        %6288 = vdwg.mxu0
        %v6289 = vadd.f32 %v6026, %v6259
        %v6290 = vadd.f32 %v6029, %v6262
        %v6291 = vadd.f32 %v6034, %v6267
        %v6292 = vadd.f32 %v6037, %v6270
        %v6293 = vadd.f32 %v6042, %v6275
        %v6294 = vadd.f32 %v6045, %v6278
        %v6295 = vadd.f32 %v6050, %v6283
        %v6296 = vadd.f32 %v6053, %v6286
        %s6297 = scalar_lea.vmem %s3, 48
        %v6298 = vld [vmem:[%s6297] sm:$0xf]
        %v6299 = vld [vmem:[%s6297 + $0x4] sm:$0xf]
        %v6300 = vld [vmem:[%s6297 + $0x8] sm:$0xf]
        %v6301 = vld [vmem:[%s6297 + $0xc] sm:$0xf]
        %v6306 = vcombine.low %v5334, %v5335
        %v6307 = vcombine.low %v5336, %v5337
        %v6309 = vunpack.c.l.s4 1983009808
        %v6310 = vunpack.c.0.s8 %v6309
        %v6311 = vlaneseq
        %v6312 = vshrl.u32 %v6311, 7
        %v6313 = vsub.s32 %v6310, %v6312
        %v6314 = vrot.slane %v6306, %v6313
        %v6316 = vunpack.c.l.s4 1983009808
        %v6317 = vunpack.c.0.s8 %v6316
        %v6318 = vlaneseq
        %v6319 = vshrl.u32 %v6318, 7
        %v6320 = vsub.s32 %v6317, %v6319
        %v6321 = vrot.slane %v6307, %v6320
        %v6322 = vcombine.low %v6314, %v6321
        %v6323 = vcombine.low %v5340, %v5341
        %v6324 = vcombine.low %v5342, %v5343
        %v6326 = vunpack.c.l.s4 1983009808
        %v6327 = vunpack.c.0.s8 %v6326
        %v6328 = vlaneseq
        %v6329 = vshrl.u32 %v6328, 7
        %v6330 = vsub.s32 %v6327, %v6329
        %v6331 = vrot.slane %v6323, %v6330
        %v6333 = vunpack.c.l.s4 1983009808
        %v6334 = vunpack.c.0.s8 %v6333
        %v6335 = vlaneseq
        %v6336 = vshrl.u32 %v6335, 7
        %v6337 = vsub.s32 %v6334, %v6336
        %v6338 = vrot.slane %v6324, %v6337
        %v6339 = vcombine.low %v6331, %v6338
        %v6340 = vcombine.low %v5346, %v5347
        %v6341 = vcombine.low %v5348, %v5349
        %v6343 = vunpack.c.l.s4 1983009808
        %v6344 = vunpack.c.0.s8 %v6343
        %v6345 = vlaneseq
        %v6346 = vshrl.u32 %v6345, 7
        %v6347 = vsub.s32 %v6344, %v6346
        %v6348 = vrot.slane %v6340, %v6347
        %v6350 = vunpack.c.l.s4 1983009808
        %v6351 = vunpack.c.0.s8 %v6350
        %v6352 = vlaneseq
        %v6353 = vshrl.u32 %v6352, 7
        %v6354 = vsub.s32 %v6351, %v6353
        %v6355 = vrot.slane %v6341, %v6354
        %v6356 = vcombine.low %v6348, %v6355
        %v6357 = vcombine.low %v5352, %v5353
        %v6358 = vcombine.low %v5354, %v5355
        %v6360 = vunpack.c.l.s4 1983009808
        %v6361 = vunpack.c.0.s8 %v6360
        %v6362 = vlaneseq
        %v6363 = vshrl.u32 %v6362, 7
        %v6364 = vsub.s32 %v6361, %v6363
        %v6365 = vrot.slane %v6357, %v6364
        %v6367 = vunpack.c.l.s4 1983009808
        %v6368 = vunpack.c.0.s8 %v6367
        %v6369 = vlaneseq
        %v6370 = vshrl.u32 %v6369, 7
        %v6371 = vsub.s32 %v6368, %v6370
        %v6372 = vrot.slane %v6358, %v6371
        %v6373 = vcombine.low %v6365, %v6372
        %v6378 = vunpack.c.l.b16 %v6298
        %v6379 = vunpack.c.l.b16 %v6299
        %v6380 = vunpack.c.l.b16 %v6300
        %v6381 = vunpack.c.l.b16 %v6301
        %v6382 = vpack.c.b16 %v6379, %v6378
        %v6383 = vpack.c.b16 %v6381, %v6380
        %v6387 = vsel %vm5821, %v6322, 0
        %v6390 = vsel %vm5821, %v6339, 0
        %v6393 = vsel %vm5821, %v6356, 0
        %v6396 = vsel %vm5821, %v6373, 0
        %6398 = vmatprep.subr.bf16.mxu0 0
        %6399 = vmatpush1.bf16.msra.mxu0 %v6382
        %6400 = vmatprep.subr.bf16.mxu0 0
        %6401 = vmatpush1.bf16.msra.mxu0 %v6383
        %6402 = vmatprep.subr.bf16.mxu0 0
        %6403 = vmatpush1.bf16.msra.mxu0 0
        %6404 = vmatprep.subr.bf16.mxu0 0
        %6405 = vmatpush1.bf16.msra.mxu0 0
        %6406 = vmatprep.subr.bf16.mxu0 0
        %6407 = vmatpush1.bf16.msra.mxu0 0
        %6408 = vmatprep.subr.bf16.mxu0 0
        %6409 = vmatpush1.bf16.msra.mxu0 0
        %6410 = vmatprep.subr.bf16.mxu0 0
        %6411 = vmatpush1.bf16.msra.mxu0 0
        %6412 = vmatprep.subr.bf16.mxu0 0
        %6413 = vmatpush1.bf16.msra.mxu0 0
        %6414 = vmatprep.subr.bf16.mxu0 0
        %6415 = vmatpush1.bf16.msra.mxu0 0
        %6416 = vmatprep.subr.bf16.mxu0 0
        %6417 = vmatpush1.bf16.msra.mxu0 0
        %6418 = vmatprep.subr.bf16.mxu0 0
        %6419 = vmatpush1.bf16.msra.mxu0 0
        %6420 = vmatprep.subr.bf16.mxu0 0
        %6421 = vmatpush1.bf16.msra.mxu0 0
        %6422 = vmatprep.subr.bf16.mxu0 0
        %6423 = vmatpush1.bf16.msra.mxu0 0
        %6424 = vmatprep.subr.bf16.mxu0 0
        %6425 = vmatpush1.bf16.msra.mxu0 0
        %6426 = vmatprep.subr.bf16.mxu0 0
        %6427 = vmatpush1.bf16.msra.mxu0 0
        %6428 = vmatprep.subr.bf16.mxu0 0
        %6429 = vmatpush1.bf16.msra.mxu0 0
        %6430 = vmatprep.mubr.bf16.mxu0 0
        %6431 = vmatmul.mubr.bf16.gmra.mrb[0].mxu0 %v6387
        %v6432 = vpop.f32.mrb[0].mxu0
        %v6433 = vadd.f32 0.0, %v6432
        %v6434 = vpop.f32.mrb[0].mxu0
        %v6435 = vpop.f32.mrb[0].mxu0
        %v6436 = vadd.f32 0.0, %v6435
        %v6437 = vpop.f32.mrb[0].mxu0
        %6438 = vmatprep.mubr.bf16.mxu0 0
        %6439 = vmatmul.mubr.bf16.gmra.mrb[0].mxu0 %v6390
        %v6440 = vpop.f32.mrb[0].mxu0
        %v6441 = vadd.f32 0.0, %v6440
        %v6442 = vpop.f32.mrb[0].mxu0
        %v6443 = vpop.f32.mrb[0].mxu0
        %v6444 = vadd.f32 0.0, %v6443
        %v6445 = vpop.f32.mrb[0].mxu0
        %6446 = vmatprep.mubr.bf16.mxu0 0
        %6447 = vmatmul.mubr.bf16.gmra.mrb[0].mxu0 %v6393
        %v6448 = vpop.f32.mrb[0].mxu0
        %v6449 = vadd.f32 0.0, %v6448
        %v6450 = vpop.f32.mrb[0].mxu0
        %v6451 = vpop.f32.mrb[0].mxu0
        %v6452 = vadd.f32 0.0, %v6451
        %v6453 = vpop.f32.mrb[0].mxu0
        %6454 = vmatprep.mubr.bf16.mxu0 0
        %6455 = vmatmul.mubr.bf16.gmra.mrb[0].mxu0 %v6396
        %v6456 = vpop.f32.mrb[0].mxu0
        %v6457 = vadd.f32 0.0, %v6456
        %v6458 = vpop.f32.mrb[0].mxu0
        %v6459 = vpop.f32.mrb[0].mxu0
        %v6460 = vadd.f32 0.0, %v6459
        %v6461 = vpop.f32.mrb[0].mxu0
        %6462 = vdwg.mxu0
        %v6463 = vadd.f32 %v6289, %v6433
        %v6464 = vadd.f32 %v6290, %v6436
        %v6465 = vadd.f32 %v6291, %v6441
        %v6466 = vadd.f32 %v6292, %v6444
        %v6467 = vadd.f32 %v6293, %v6449
        %v6468 = vadd.f32 %v6294, %v6452
        %v6469 = vadd.f32 %v6295, %v6457
        %v6470 = vadd.f32 %v6296, %v6460
        %v6472 = vunpack.c.l.s4 1983009808
        %v6473 = vunpack.c.0.s8 %v6472
        %v6474 = vlaneseq
        %v6475 = vshrl.u32 %v6474, 7
        %v6476 = vsub.s32 %v6473, %v6475
        %v6477 = vrot.slane %v5337, %v6476
        %v6478 = vcombine.high %v6477, %v6477
        %v6480 = vunpack.c.l.s4 1983009808
        %v6481 = vunpack.c.0.s8 %v6480
        %v6482 = vlaneseq
        %v6483 = vshrl.u32 %v6482, 7
        %v6484 = vsub.s32 %v6481, %v6483
        %v6485 = vrot.slane %v5343, %v6484
        %v6486 = vcombine.high %v6485, %v6485
        %v6488 = vunpack.c.l.s4 1983009808
        %v6489 = vunpack.c.0.s8 %v6488
        %v6490 = vlaneseq
        %v6491 = vshrl.u32 %v6490, 7
        %v6492 = vsub.s32 %v6489, %v6491
        %v6493 = vrot.slane %v5349, %v6492
        %v6494 = vcombine.high %v6493, %v6493
        %v6496 = vunpack.c.l.s4 1983009808
        %v6497 = vunpack.c.0.s8 %v6496
        %v6498 = vlaneseq
        %v6499 = vshrl.u32 %v6498, 7
        %v6500 = vsub.s32 %v6497, %v6499
        %v6501 = vrot.slane %v5355, %v6500
        %v6502 = vcombine.high %v6501, %v6501
        %v6504 = vshrl.u32 %v6477, 16
        %v6506 = vrot.slane %v6504, 6
        %v6507 = vshll.u32 %v6477, 16
        %v6509 = vrot.slane %v6507, 7
        %v6510 = vor.u32 %v6506, %v6509
        %v6511 = vrot.slane %v6510, 2
        %v6513 = vshll.u32 %v6478, 16
        %v6515 = vrot.slane %v6513, 7
        %v6516 = vsel %vm5511, %v6511, %v6515
        %v6518 = vshrl.u32 %v6485, 16
        %v6520 = vrot.slane %v6518, 6
        %v6521 = vshll.u32 %v6485, 16
        %v6523 = vrot.slane %v6521, 7
        %v6524 = vor.u32 %v6520, %v6523
        %v6525 = vrot.slane %v6524, 2
        %v6527 = vshll.u32 %v6486, 16
        %v6529 = vrot.slane %v6527, 7
        %v6530 = vsel %vm5511, %v6525, %v6529
        %v6532 = vshrl.u32 %v6493, 16
        %v6534 = vrot.slane %v6532, 6
        %v6535 = vshll.u32 %v6493, 16
        %v6537 = vrot.slane %v6535, 7
        %v6538 = vor.u32 %v6534, %v6537
        %v6539 = vrot.slane %v6538, 2
        %v6541 = vshll.u32 %v6494, 16
        %v6543 = vrot.slane %v6541, 7
        %v6544 = vsel %vm5511, %v6539, %v6543
        %v6546 = vshrl.u32 %v6501, 16
        %v6548 = vrot.slane %v6546, 6
        %v6549 = vshll.u32 %v6501, 16
        %v6551 = vrot.slane %v6549, 7
        %v6552 = vor.u32 %v6548, %v6551
        %v6553 = vrot.slane %v6552, 2
        %v6555 = vshll.u32 %v6502, 16
        %v6557 = vrot.slane %v6555, 7
        %v6558 = vsel %vm5511, %v6553, %v6557
        %s6559 = scalar_lea.vmem %s3, 64
        %v6560 = vld [vmem:[%s6559] sm:$0xf]
        %v6561 = vld [vmem:[%s6559 + $0x4] sm:$0xf]
        %v6562 = vld [vmem:[%s6559 + $0x8] sm:$0xf]
        %v6563 = vld [vmem:[%s6559 + $0xc] sm:$0xf]
        %v6564 = vcombine.low %v5539, %v5553
        %v6565 = vcombine.low %v5567, %v6516
        %v6567 = vunpack.c.l.s4 1983009808
        %v6568 = vunpack.c.0.s8 %v6567
        %v6569 = vlaneseq
        %v6570 = vshrl.u32 %v6569, 7
        %v6571 = vsub.s32 %v6568, %v6570
        %v6572 = vrot.slane %v6564, %v6571
        %v6574 = vunpack.c.l.s4 1983009808
        %v6575 = vunpack.c.0.s8 %v6574
        %v6576 = vlaneseq
        %v6577 = vshrl.u32 %v6576, 7
        %v6578 = vsub.s32 %v6575, %v6577
        %v6579 = vrot.slane %v6565, %v6578
        %v6580 = vcombine.low %v6572, %v6579
        %v6581 = vcombine.low %v5595, %v5609
        %v6582 = vcombine.low %v5623, %v6530
        %v6584 = vunpack.c.l.s4 1983009808
        %v6585 = vunpack.c.0.s8 %v6584
        %v6586 = vlaneseq
        %v6587 = vshrl.u32 %v6586, 7
        %v6588 = vsub.s32 %v6585, %v6587
        %v6589 = vrot.slane %v6581, %v6588
        %v6591 = vunpack.c.l.s4 1983009808
        %v6592 = vunpack.c.0.s8 %v6591
        %v6593 = vlaneseq
        %v6594 = vshrl.u32 %v6593, 7
        %v6595 = vsub.s32 %v6592, %v6594
        %v6596 = vrot.slane %v6582, %v6595
        %v6597 = vcombine.low %v6589, %v6596
        %v6598 = vcombine.low %v5651, %v5665
        %v6599 = vcombine.low %v5679, %v6544
        %v6601 = vunpack.c.l.s4 1983009808
        %v6602 = vunpack.c.0.s8 %v6601
        %v6603 = vlaneseq
        %v6604 = vshrl.u32 %v6603, 7
        %v6605 = vsub.s32 %v6602, %v6604
        %v6606 = vrot.slane %v6598, %v6605
        %v6608 = vunpack.c.l.s4 1983009808
        %v6609 = vunpack.c.0.s8 %v6608
        %v6610 = vlaneseq
        %v6611 = vshrl.u32 %v6610, 7
        %v6612 = vsub.s32 %v6609, %v6611
        %v6613 = vrot.slane %v6599, %v6612
        %v6614 = vcombine.low %v6606, %v6613
        %v6615 = vcombine.low %v5707, %v5721
        %v6616 = vcombine.low %v5735, %v6558
        %v6618 = vunpack.c.l.s4 1983009808
        %v6619 = vunpack.c.0.s8 %v6618
        %v6620 = vlaneseq
        %v6621 = vshrl.u32 %v6620, 7
        %v6622 = vsub.s32 %v6619, %v6621
        %v6623 = vrot.slane %v6615, %v6622
        %v6625 = vunpack.c.l.s4 1983009808
        %v6626 = vunpack.c.0.s8 %v6625
        %v6627 = vlaneseq
        %v6628 = vshrl.u32 %v6627, 7
        %v6629 = vsub.s32 %v6626, %v6628
        %v6630 = vrot.slane %v6616, %v6629
        %v6631 = vcombine.low %v6623, %v6630
        %v6636 = vunpack.c.l.b16 %v6560
        %v6637 = vunpack.c.l.b16 %v6561
        %v6638 = vunpack.c.l.b16 %v6562
        %v6639 = vunpack.c.l.b16 %v6563
        %v6640 = vpack.c.b16 %v6637, %v6636
        %v6641 = vpack.c.b16 %v6639, %v6638
        %v6645 = vsel %vm5821, %v6580, 0
        %v6648 = vsel %vm5821, %v6597, 0
        %v6651 = vsel %vm5821, %v6614, 0
        %v6654 = vsel %vm5821, %v6631, 0
        %6656 = vmatprep.subr.bf16.mxu0 0
        %6657 = vmatpush1.bf16.msra.mxu0 %v6640
        %6658 = vmatprep.subr.bf16.mxu0 0
        %6659 = vmatpush1.bf16.msra.mxu0 %v6641
        %6660 = vmatprep.subr.bf16.mxu0 0
        %6661 = vmatpush1.bf16.msra.mxu0 0
        %6662 = vmatprep.subr.bf16.mxu0 0
        %6663 = vmatpush1.bf16.msra.mxu0 0
        %6664 = vmatprep.subr.bf16.mxu0 0
        %6665 = vmatpush1.bf16.msra.mxu0 0
        %6666 = vmatprep.subr.bf16.mxu0 0
        %6667 = vmatpush1.bf16.msra.mxu0 0
        %6668 = vmatprep.subr.bf16.mxu0 0
        %6669 = vmatpush1.bf16.msra.mxu0 0
        %6670 = vmatprep.subr.bf16.mxu0 0
        %6671 = vmatpush1.bf16.msra.mxu0 0
        %6672 = vmatprep.subr.bf16.mxu0 0
        %6673 = vmatpush1.bf16.msra.mxu0 0
        %6674 = vmatprep.subr.bf16.mxu0 0
        %6675 = vmatpush1.bf16.msra.mxu0 0
        %6676 = vmatprep.subr.bf16.mxu0 0
        %6677 = vmatpush1.bf16.msra.mxu0 0
        %6678 = vmatprep.subr.bf16.mxu0 0
        %6679 = vmatpush1.bf16.msra.mxu0 0
        %6680 = vmatprep.subr.bf16.mxu0 0
        %6681 = vmatpush1.bf16.msra.mxu0 0
        %6682 = vmatprep.subr.bf16.mxu0 0
        %6683 = vmatpush1.bf16.msra.mxu0 0
        %6684 = vmatprep.subr.bf16.mxu0 0
        %6685 = vmatpush1.bf16.msra.mxu0 0
        %6686 = vmatprep.subr.bf16.mxu0 0
        %6687 = vmatpush1.bf16.msra.mxu0 0
        %6688 = vmatprep.mubr.bf16.mxu0 0
        %6689 = vmatmul.mubr.bf16.gmra.mrb[0].mxu0 %v6645
        %v6690 = vpop.f32.mrb[0].mxu0
        %v6691 = vadd.f32 0.0, %v6690
        %v6692 = vpop.f32.mrb[0].mxu0
        %v6693 = vpop.f32.mrb[0].mxu0
        %v6694 = vadd.f32 0.0, %v6693
        %v6695 = vpop.f32.mrb[0].mxu0
        %6696 = vmatprep.mubr.bf16.mxu0 0
        %6697 = vmatmul.mubr.bf16.gmra.mrb[0].mxu0 %v6648
        %v6698 = vpop.f32.mrb[0].mxu0
        %v6699 = vadd.f32 0.0, %v6698
        %v6700 = vpop.f32.mrb[0].mxu0
        %v6701 = vpop.f32.mrb[0].mxu0
        %v6702 = vadd.f32 0.0, %v6701
        %v6703 = vpop.f32.mrb[0].mxu0
        %6704 = vmatprep.mubr.bf16.mxu0 0
        %6705 = vmatmul.mubr.bf16.gmra.mrb[0].mxu0 %v6651
        %v6706 = vpop.f32.mrb[0].mxu0
        %v6707 = vadd.f32 0.0, %v6706
        %v6708 = vpop.f32.mrb[0].mxu0
        %v6709 = vpop.f32.mrb[0].mxu0
        %v6710 = vadd.f32 0.0, %v6709
        %v6711 = vpop.f32.mrb[0].mxu0
        %6712 = vmatprep.mubr.bf16.mxu0 0
        %6713 = vmatmul.mubr.bf16.gmra.mrb[0].mxu0 %v6654
        %v6714 = vpop.f32.mrb[0].mxu0
        %v6715 = vadd.f32 0.0, %v6714
        %v6716 = vpop.f32.mrb[0].mxu0
        %v6717 = vpop.f32.mrb[0].mxu0
        %v6718 = vadd.f32 0.0, %v6717
        %v6719 = vpop.f32.mrb[0].mxu0
        %6720 = vdwg.mxu0
        %v6721 = vadd.f32 %v6463, %v6691
        %v6722 = vadd.f32 %v6464, %v6694
        %v6723 = vadd.f32 %v6465, %v6699
        %v6724 = vadd.f32 %v6466, %v6702
        %v6725 = vadd.f32 %v6467, %v6707
        %v6726 = vadd.f32 %v6468, %v6710
        %v6727 = vadd.f32 %v6469, %v6715
        %v6728 = vadd.f32 %v6470, %v6718
        %v6729 = vrot.slane %v6477, 7
        %v6730 = vrot.slane %v6729, 2
        %v6731 = vrot.slane %v6478, 7
        %v6732 = vsel %vm6062, %v6730, %v6731
        %v6733 = vrot.slane %v6485, 7
        %v6734 = vrot.slane %v6733, 2
        %v6735 = vrot.slane %v6486, 7
        %v6736 = vsel %vm6062, %v6734, %v6735
        %v6737 = vrot.slane %v6493, 7
        %v6738 = vrot.slane %v6737, 2
        %v6739 = vrot.slane %v6494, 7
        %v6740 = vsel %vm6062, %v6738, %v6739
        %v6741 = vrot.slane %v6501, 7
        %v6742 = vrot.slane %v6741, 2
        %v6743 = vrot.slane %v6502, 7
        %v6744 = vsel %vm6062, %v6742, %v6743
        %s6745 = scalar_lea.vmem %s3, 80
        %v6746 = vld [vmem:[%s6745] sm:$0xf]
        %v6747 = vld [vmem:[%s6745 + $0x4] sm:$0xf]
        %v6748 = vld [vmem:[%s6745 + $0x8] sm:$0xf]
        %v6749 = vld [vmem:[%s6745 + $0xc] sm:$0xf]
        %v6750 = vcombine.low %v6070, %v6074
        %v6751 = vcombine.low %v6078, %v6732
        %v6753 = vunpack.c.l.s4 1983009808
        %v6754 = vunpack.c.0.s8 %v6753
        %v6755 = vlaneseq
        %v6756 = vshrl.u32 %v6755, 7
        %v6757 = vsub.s32 %v6754, %v6756
        %v6758 = vrot.slane %v6750, %v6757
        %v6760 = vunpack.c.l.s4 1983009808
        %v6761 = vunpack.c.0.s8 %v6760
        %v6762 = vlaneseq
        %v6763 = vshrl.u32 %v6762, 7
        %v6764 = vsub.s32 %v6761, %v6763
        %v6765 = vrot.slane %v6751, %v6764
        %v6766 = vcombine.low %v6758, %v6765
        %v6767 = vcombine.low %v6086, %v6090
        %v6768 = vcombine.low %v6094, %v6736
        %v6770 = vunpack.c.l.s4 1983009808
        %v6771 = vunpack.c.0.s8 %v6770
        %v6772 = vlaneseq
        %v6773 = vshrl.u32 %v6772, 7
        %v6774 = vsub.s32 %v6771, %v6773
        %v6775 = vrot.slane %v6767, %v6774
        %v6777 = vunpack.c.l.s4 1983009808
        %v6778 = vunpack.c.0.s8 %v6777
        %v6779 = vlaneseq
        %v6780 = vshrl.u32 %v6779, 7
        %v6781 = vsub.s32 %v6778, %v6780
        %v6782 = vrot.slane %v6768, %v6781
        %v6783 = vcombine.low %v6775, %v6782
        %v6784 = vcombine.low %v6102, %v6106
        %v6785 = vcombine.low %v6110, %v6740
        %v6787 = vunpack.c.l.s4 1983009808
        %v6788 = vunpack.c.0.s8 %v6787
        %v6789 = vlaneseq
        %v6790 = vshrl.u32 %v6789, 7
        %v6791 = vsub.s32 %v6788, %v6790
        %v6792 = vrot.slane %v6784, %v6791
        %v6794 = vunpack.c.l.s4 1983009808
        %v6795 = vunpack.c.0.s8 %v6794
        %v6796 = vlaneseq
        %v6797 = vshrl.u32 %v6796, 7
        %v6798 = vsub.s32 %v6795, %v6797
        %v6799 = vrot.slane %v6785, %v6798
        %v6800 = vcombine.low %v6792, %v6799
        %v6801 = vcombine.low %v6118, %v6122
        %v6802 = vcombine.low %v6126, %v6744
        %v6804 = vunpack.c.l.s4 1983009808
        %v6805 = vunpack.c.0.s8 %v6804
        %v6806 = vlaneseq
        %v6807 = vshrl.u32 %v6806, 7
        %v6808 = vsub.s32 %v6805, %v6807
        %v6809 = vrot.slane %v6801, %v6808
        %v6811 = vunpack.c.l.s4 1983009808
        %v6812 = vunpack.c.0.s8 %v6811
        %v6813 = vlaneseq
        %v6814 = vshrl.u32 %v6813, 7
        %v6815 = vsub.s32 %v6812, %v6814
        %v6816 = vrot.slane %v6802, %v6815
        %v6817 = vcombine.low %v6809, %v6816
        %v6822 = vunpack.c.l.b16 %v6746
        %v6823 = vunpack.c.l.b16 %v6747
        %v6824 = vunpack.c.l.b16 %v6748
        %v6825 = vunpack.c.l.b16 %v6749
        %v6826 = vpack.c.b16 %v6823, %v6822
        %v6827 = vpack.c.b16 %v6825, %v6824
        %v6831 = vsel %vm5821, %v6766, 0
        %v6834 = vsel %vm5821, %v6783, 0
        %v6837 = vsel %vm5821, %v6800, 0
        %v6840 = vsel %vm5821, %v6817, 0
        %6842 = vmatprep.subr.bf16.mxu0 0
        %6843 = vmatpush1.bf16.msra.mxu0 %v6826
        %6844 = vmatprep.subr.bf16.mxu0 0
        %6845 = vmatpush1.bf16.msra.mxu0 %v6827
        %6846 = vmatprep.subr.bf16.mxu0 0
        %6847 = vmatpush1.bf16.msra.mxu0 0
        %6848 = vmatprep.subr.bf16.mxu0 0
        %6849 = vmatpush1.bf16.msra.mxu0 0
        %6850 = vmatprep.subr.bf16.mxu0 0
        %6851 = vmatpush1.bf16.msra.mxu0 0
        %6852 = vmatprep.subr.bf16.mxu0 0
        %6853 = vmatpush1.bf16.msra.mxu0 0
        %6854 = vmatprep.subr.bf16.mxu0 0
        %6855 = vmatpush1.bf16.msra.mxu0 0
        %6856 = vmatprep.subr.bf16.mxu0 0
        %6857 = vmatpush1.bf16.msra.mxu0 0
        %6858 = vmatprep.subr.bf16.mxu0 0
        %6859 = vmatpush1.bf16.msra.mxu0 0
        %6860 = vmatprep.subr.bf16.mxu0 0
        %6861 = vmatpush1.bf16.msra.mxu0 0
        %6862 = vmatprep.subr.bf16.mxu0 0
        %6863 = vmatpush1.bf16.msra.mxu0 0
        %6864 = vmatprep.subr.bf16.mxu0 0
        %6865 = vmatpush1.bf16.msra.mxu0 0
        %6866 = vmatprep.subr.bf16.mxu0 0
        %6867 = vmatpush1.bf16.msra.mxu0 0
        %6868 = vmatprep.subr.bf16.mxu0 0
        %6869 = vmatpush1.bf16.msra.mxu0 0
        %6870 = vmatprep.subr.bf16.mxu0 0
        %6871 = vmatpush1.bf16.msra.mxu0 0
        %6872 = vmatprep.subr.bf16.mxu0 0
        %6873 = vmatpush1.bf16.msra.mxu0 0
        %6874 = vmatprep.mubr.bf16.mxu0 0
        %6875 = vmatmul.mubr.bf16.gmra.mrb[0].mxu0 %v6831
        %v6876 = vpop.f32.mrb[0].mxu0
        %v6877 = vadd.f32 0.0, %v6876
        %v6878 = vpop.f32.mrb[0].mxu0
        %v6879 = vpop.f32.mrb[0].mxu0
        %v6880 = vadd.f32 0.0, %v6879
        %v6881 = vpop.f32.mrb[0].mxu0
        %6882 = vmatprep.mubr.bf16.mxu0 0
        %6883 = vmatmul.mubr.bf16.gmra.mrb[0].mxu0 %v6834
        %v6884 = vpop.f32.mrb[0].mxu0
        %v6885 = vadd.f32 0.0, %v6884
        %v6886 = vpop.f32.mrb[0].mxu0
        %v6887 = vpop.f32.mrb[0].mxu0
        %v6888 = vadd.f32 0.0, %v6887
        %v6889 = vpop.f32.mrb[0].mxu0
        %6890 = vmatprep.mubr.bf16.mxu0 0
        %6891 = vmatmul.mubr.bf16.gmra.mrb[0].mxu0 %v6837
        %v6892 = vpop.f32.mrb[0].mxu0
        %v6893 = vadd.f32 0.0, %v6892
        %v6894 = vpop.f32.mrb[0].mxu0
        %v6895 = vpop.f32.mrb[0].mxu0
        %v6896 = vadd.f32 0.0, %v6895
        %v6897 = vpop.f32.mrb[0].mxu0
        %6898 = vmatprep.mubr.bf16.mxu0 0
        %6899 = vmatmul.mubr.bf16.gmra.mrb[0].mxu0 %v6840
        %v6900 = vpop.f32.mrb[0].mxu0
        %v6901 = vadd.f32 0.0, %v6900
        %v6902 = vpop.f32.mrb[0].mxu0
        %v6903 = vpop.f32.mrb[0].mxu0
        %v6904 = vadd.f32 0.0, %v6903
        %v6905 = vpop.f32.mrb[0].mxu0
        %6906 = vdwg.mxu0
        %v6907 = vadd.f32 %v6721, %v6877
        %v6908 = vadd.f32 %v6722, %v6880
        %v6909 = vadd.f32 %v6723, %v6885
        %v6910 = vadd.f32 %v6724, %v6888
        %v6911 = vadd.f32 %v6725, %v6893
        %v6912 = vadd.f32 %v6726, %v6896
        %v6913 = vadd.f32 %v6727, %v6901
        %v6914 = vadd.f32 %v6728, %v6904
        %s6915 = scalar_lea.vmem %s3, 96
        %v6916 = vld [vmem:[%s6915] sm:$0xf]
        %v6917 = vld [vmem:[%s6915 + $0x4] sm:$0xf]
        %v6918 = vld [vmem:[%s6915 + $0x8] sm:$0xf]
        %v6919 = vld [vmem:[%s6915 + $0xc] sm:$0xf]
        %v6924 = vcombine.low %v5337, %v5338
        %v6926 = vunpack.c.l.s4 1983009808
        %v6927 = vunpack.c.0.s8 %v6926
        %v6928 = vlaneseq
        %v6929 = vshrl.u32 %v6928, 7
        %v6930 = vsub.s32 %v6927, %v6929
        %v6931 = vrot.slane %v6924, %v6930
        %v6932 = vcombine.low %v5914, %v6931
        %v6933 = vcombine.low %v5343, %v5344
        %v6935 = vunpack.c.l.s4 1983009808
        %v6936 = vunpack.c.0.s8 %v6935
        %v6937 = vlaneseq
        %v6938 = vshrl.u32 %v6937, 7
        %v6939 = vsub.s32 %v6936, %v6938
        %v6940 = vrot.slane %v6933, %v6939
        %v6941 = vcombine.low %v5931, %v6940
        %v6942 = vcombine.low %v5349, %v5350
        %v6944 = vunpack.c.l.s4 1983009808
        %v6945 = vunpack.c.0.s8 %v6944
        %v6946 = vlaneseq
        %v6947 = vshrl.u32 %v6946, 7
        %v6948 = vsub.s32 %v6945, %v6947
        %v6949 = vrot.slane %v6942, %v6948
        %v6950 = vcombine.low %v5948, %v6949
        %v6951 = vcombine.low %v5355, %v5356
        %v6953 = vunpack.c.l.s4 1983009808
        %v6954 = vunpack.c.0.s8 %v6953
        %v6955 = vlaneseq
        %v6956 = vshrl.u32 %v6955, 7
        %v6957 = vsub.s32 %v6954, %v6956
        %v6958 = vrot.slane %v6951, %v6957
        %v6959 = vcombine.low %v5965, %v6958
        %v6964 = vunpack.c.l.b16 %v6916
        %v6965 = vunpack.c.l.b16 %v6917
        %v6966 = vunpack.c.l.b16 %v6918
        %v6967 = vunpack.c.l.b16 %v6919
        %v6968 = vpack.c.b16 %v6965, %v6964
        %v6969 = vpack.c.b16 %v6967, %v6966
        %v6973 = vsel %vm5821, %v6932, 0
        %v6976 = vsel %vm5821, %v6941, 0
        %v6979 = vsel %vm5821, %v6950, 0
        %v6982 = vsel %vm5821, %v6959, 0
        %6984 = vmatprep.subr.bf16.mxu0 0
        %6985 = vmatpush1.bf16.msra.mxu0 %v6968
        %6986 = vmatprep.subr.bf16.mxu0 0
        %6987 = vmatpush1.bf16.msra.mxu0 %v6969
        %6988 = vmatprep.subr.bf16.mxu0 0
        %6989 = vmatpush1.bf16.msra.mxu0 0
        %6990 = vmatprep.subr.bf16.mxu0 0
        %6991 = vmatpush1.bf16.msra.mxu0 0
        %6992 = vmatprep.subr.bf16.mxu0 0
        %6993 = vmatpush1.bf16.msra.mxu0 0
        %6994 = vmatprep.subr.bf16.mxu0 0
        %6995 = vmatpush1.bf16.msra.mxu0 0
        %6996 = vmatprep.subr.bf16.mxu0 0
        %6997 = vmatpush1.bf16.msra.mxu0 0
        %6998 = vmatprep.subr.bf16.mxu0 0
        %6999 = vmatpush1.bf16.msra.mxu0 0
        %7000 = vmatprep.subr.bf16.mxu0 0
        %7001 = vmatpush1.bf16.msra.mxu0 0
        %7002 = vmatprep.subr.bf16.mxu0 0
        %7003 = vmatpush1.bf16.msra.mxu0 0
        %7004 = vmatprep.subr.bf16.mxu0 0
        %7005 = vmatpush1.bf16.msra.mxu0 0
        %7006 = vmatprep.subr.bf16.mxu0 0
        %7007 = vmatpush1.bf16.msra.mxu0 0
        %7008 = vmatprep.subr.bf16.mxu0 0
        %7009 = vmatpush1.bf16.msra.mxu0 0
        %7010 = vmatprep.subr.bf16.mxu0 0
        %7011 = vmatpush1.bf16.msra.mxu0 0
        %7012 = vmatprep.subr.bf16.mxu0 0
        %7013 = vmatpush1.bf16.msra.mxu0 0
        %7014 = vmatprep.subr.bf16.mxu0 0
        %7015 = vmatpush1.bf16.msra.mxu0 0
        %7016 = vmatprep.mubr.bf16.mxu0 0
        %7017 = vmatmul.mubr.bf16.gmra.mrb[0].mxu0 %v6973
        %v7018 = vpop.f32.mrb[0].mxu0
        %v7019 = vadd.f32 0.0, %v7018
        %v7020 = vpop.f32.mrb[0].mxu0
        %v7021 = vpop.f32.mrb[0].mxu0
        %v7022 = vadd.f32 0.0, %v7021
        %v7023 = vpop.f32.mrb[0].mxu0
        %7024 = vmatprep.mubr.bf16.mxu0 0
        %7025 = vmatmul.mubr.bf16.gmra.mrb[0].mxu0 %v6976
        %v7026 = vpop.f32.mrb[0].mxu0
        %v7027 = vadd.f32 0.0, %v7026
        %v7028 = vpop.f32.mrb[0].mxu0
        %v7029 = vpop.f32.mrb[0].mxu0
        %v7030 = vadd.f32 0.0, %v7029
        %v7031 = vpop.f32.mrb[0].mxu0
        %7032 = vmatprep.mubr.bf16.mxu0 0
        %7033 = vmatmul.mubr.bf16.gmra.mrb[0].mxu0 %v6979
        %v7034 = vpop.f32.mrb[0].mxu0
        %v7035 = vadd.f32 0.0, %v7034
        %v7036 = vpop.f32.mrb[0].mxu0
        %v7037 = vpop.f32.mrb[0].mxu0
        %v7038 = vadd.f32 0.0, %v7037
        %v7039 = vpop.f32.mrb[0].mxu0
        %7040 = vmatprep.mubr.bf16.mxu0 0
        %7041 = vmatmul.mubr.bf16.gmra.mrb[0].mxu0 %v6982
        %v7042 = vpop.f32.mrb[0].mxu0
        %v7043 = vadd.f32 0.0, %v7042
        %v7044 = vpop.f32.mrb[0].mxu0
        %v7045 = vpop.f32.mrb[0].mxu0
        %v7046 = vadd.f32 0.0, %v7045
        %v7047 = vpop.f32.mrb[0].mxu0
        %7048 = vdwg.mxu0
        %v7049 = vadd.f32 %v6907, %v7019
        %v7050 = vadd.f32 %v6908, %v7022
        %v7051 = vadd.f32 %v6909, %v7027
        %v7052 = vadd.f32 %v6910, %v7030
        %v7053 = vadd.f32 %v6911, %v7035
        %v7054 = vadd.f32 %v6912, %v7038
        %v7055 = vadd.f32 %v6913, %v7043
        %v7056 = vadd.f32 %v6914, %v7046
        %v7058 = vunpack.c.l.s4 1983009808
        %v7059 = vunpack.c.0.s8 %v7058
        %v7060 = vlaneseq
        %v7061 = vshrl.u32 %v7060, 7
        %v7062 = vsub.s32 %v7059, %v7061
        %v7063 = vrot.slane %v5338, %v7062
        %v7064 = vcombine.high %v7063, %v7063
        %v7066 = vunpack.c.l.s4 1983009808
        %v7067 = vunpack.c.0.s8 %v7066
        %v7068 = vlaneseq
        %v7069 = vshrl.u32 %v7068, 7
        %v7070 = vsub.s32 %v7067, %v7069
        %v7071 = vrot.slane %v5344, %v7070
        %v7072 = vcombine.high %v7071, %v7071
        %v7074 = vunpack.c.l.s4 1983009808
        %v7075 = vunpack.c.0.s8 %v7074
        %v7076 = vlaneseq
        %v7077 = vshrl.u32 %v7076, 7
        %v7078 = vsub.s32 %v7075, %v7077
        %v7079 = vrot.slane %v5350, %v7078
        %v7080 = vcombine.high %v7079, %v7079
        %v7082 = vunpack.c.l.s4 1983009808
        %v7083 = vunpack.c.0.s8 %v7082
        %v7084 = vlaneseq
        %v7085 = vshrl.u32 %v7084, 7
        %v7086 = vsub.s32 %v7083, %v7085
        %v7087 = vrot.slane %v5356, %v7086
        %v7088 = vcombine.high %v7087, %v7087
        %v7090 = vshrl.u32 %v7063, 16
        %v7092 = vrot.slane %v7090, 6
        %v7093 = vshll.u32 %v7063, 16
        %v7095 = vrot.slane %v7093, 7
        %v7096 = vor.u32 %v7092, %v7095
        %v7097 = vrot.slane %v7096, 2
        %v7099 = vshll.u32 %v7064, 16
        %v7101 = vrot.slane %v7099, 7
        %v7102 = vsel %vm5511, %v7097, %v7101
        %v7104 = vshrl.u32 %v7071, 16
        %v7106 = vrot.slane %v7104, 6
        %v7107 = vshll.u32 %v7071, 16
        %v7109 = vrot.slane %v7107, 7
        %v7110 = vor.u32 %v7106, %v7109
        %v7111 = vrot.slane %v7110, 2
        %v7113 = vshll.u32 %v7072, 16
        %v7115 = vrot.slane %v7113, 7
        %v7116 = vsel %vm5511, %v7111, %v7115
        %v7118 = vshrl.u32 %v7079, 16
        %v7120 = vrot.slane %v7118, 6
        %v7121 = vshll.u32 %v7079, 16
        %v7123 = vrot.slane %v7121, 7
        %v7124 = vor.u32 %v7120, %v7123
        %v7125 = vrot.slane %v7124, 2
        %v7127 = vshll.u32 %v7080, 16
        %v7129 = vrot.slane %v7127, 7
        %v7130 = vsel %vm5511, %v7125, %v7129
        %v7132 = vshrl.u32 %v7087, 16
        %v7134 = vrot.slane %v7132, 6
        %v7135 = vshll.u32 %v7087, 16
        %v7137 = vrot.slane %v7135, 7
        %v7138 = vor.u32 %v7134, %v7137
        %v7139 = vrot.slane %v7138, 2
        %v7141 = vshll.u32 %v7088, 16
        %v7143 = vrot.slane %v7141, 7
        %v7144 = vsel %vm5511, %v7139, %v7143
        %s7145 = scalar_lea.vmem %s3, 112
        %v7146 = vld [vmem:[%s7145] sm:$0xf]
        %v7147 = vld [vmem:[%s7145 + $0x4] sm:$0xf]
        %v7148 = vld [vmem:[%s7145 + $0x8] sm:$0xf]
        %v7149 = vld [vmem:[%s7145 + $0xc] sm:$0xf]
        %v7150 = vcombine.low %v6516, %v7102
        %v7152 = vunpack.c.l.s4 1983009808
        %v7153 = vunpack.c.0.s8 %v7152
        %v7154 = vlaneseq
        %v7155 = vshrl.u32 %v7154, 7
        %v7156 = vsub.s32 %v7153, %v7155
        %v7157 = vrot.slane %v7150, %v7156
        %v7158 = vcombine.low %v5756, %v7157
        %v7159 = vcombine.low %v6530, %v7116
        %v7161 = vunpack.c.l.s4 1983009808
        %v7162 = vunpack.c.0.s8 %v7161
        %v7163 = vlaneseq
        %v7164 = vshrl.u32 %v7163, 7
        %v7165 = vsub.s32 %v7162, %v7164
        %v7166 = vrot.slane %v7159, %v7165
        %v7167 = vcombine.low %v5773, %v7166
        %v7168 = vcombine.low %v6544, %v7130
        %v7170 = vunpack.c.l.s4 1983009808
        %v7171 = vunpack.c.0.s8 %v7170
        %v7172 = vlaneseq
        %v7173 = vshrl.u32 %v7172, 7
        %v7174 = vsub.s32 %v7171, %v7173
        %v7175 = vrot.slane %v7168, %v7174
        %v7176 = vcombine.low %v5790, %v7175
        %v7177 = vcombine.low %v6558, %v7144
        %v7179 = vunpack.c.l.s4 1983009808
        %v7180 = vunpack.c.0.s8 %v7179
        %v7181 = vlaneseq
        %v7182 = vshrl.u32 %v7181, 7
        %v7183 = vsub.s32 %v7180, %v7182
        %v7184 = vrot.slane %v7177, %v7183
        %v7185 = vcombine.low %v5807, %v7184
        %v7190 = vunpack.c.l.b16 %v7146
        %v7191 = vunpack.c.l.b16 %v7147
        %v7192 = vunpack.c.l.b16 %v7148
        %v7193 = vunpack.c.l.b16 %v7149
        %v7194 = vpack.c.b16 %v7191, %v7190
        %v7195 = vpack.c.b16 %v7193, %v7192
        %v7199 = vsel %vm5821, %v7158, 0
        %v7202 = vsel %vm5821, %v7167, 0
        %v7205 = vsel %vm5821, %v7176, 0
        %v7208 = vsel %vm5821, %v7185, 0
        %7210 = vmatprep.subr.bf16.mxu0 0
        %7211 = vmatpush1.bf16.msra.mxu0 %v7194
        %7212 = vmatprep.subr.bf16.mxu0 0
        %7213 = vmatpush1.bf16.msra.mxu0 %v7195
        %7214 = vmatprep.subr.bf16.mxu0 0
        %7215 = vmatpush1.bf16.msra.mxu0 0
        %7216 = vmatprep.subr.bf16.mxu0 0
        %7217 = vmatpush1.bf16.msra.mxu0 0
        %7218 = vmatprep.subr.bf16.mxu0 0
        %7219 = vmatpush1.bf16.msra.mxu0 0
        %7220 = vmatprep.subr.bf16.mxu0 0
        %7221 = vmatpush1.bf16.msra.mxu0 0
        %7222 = vmatprep.subr.bf16.mxu0 0
        %7223 = vmatpush1.bf16.msra.mxu0 0
        %7224 = vmatprep.subr.bf16.mxu0 0
        %7225 = vmatpush1.bf16.msra.mxu0 0
        %7226 = vmatprep.subr.bf16.mxu0 0
        %7227 = vmatpush1.bf16.msra.mxu0 0
        %7228 = vmatprep.subr.bf16.mxu0 0
        %7229 = vmatpush1.bf16.msra.mxu0 0
        %7230 = vmatprep.subr.bf16.mxu0 0
        %7231 = vmatpush1.bf16.msra.mxu0 0
        %7232 = vmatprep.subr.bf16.mxu0 0
        %7233 = vmatpush1.bf16.msra.mxu0 0
        %7234 = vmatprep.subr.bf16.mxu0 0
        %7235 = vmatpush1.bf16.msra.mxu0 0
        %7236 = vmatprep.subr.bf16.mxu0 0
        %7237 = vmatpush1.bf16.msra.mxu0 0
        %7238 = vmatprep.subr.bf16.mxu0 0
        %7239 = vmatpush1.bf16.msra.mxu0 0
        %7240 = vmatprep.subr.bf16.mxu0 0
        %7241 = vmatpush1.bf16.msra.mxu0 0
        %7242 = vmatprep.mubr.bf16.mxu0 0
        %7243 = vmatmul.mubr.bf16.gmra.mrb[0].mxu0 %v7199
        %v7244 = vpop.f32.mrb[0].mxu0
        %v7245 = vadd.f32 0.0, %v7244
        %v7246 = vpop.f32.mrb[0].mxu0
        %v7247 = vpop.f32.mrb[0].mxu0
        %v7248 = vadd.f32 0.0, %v7247
        %v7249 = vpop.f32.mrb[0].mxu0
        %7250 = vmatprep.mubr.bf16.mxu0 0
        %7251 = vmatmul.mubr.bf16.gmra.mrb[0].mxu0 %v7202
        %v7252 = vpop.f32.mrb[0].mxu0
        %v7253 = vadd.f32 0.0, %v7252
        %v7254 = vpop.f32.mrb[0].mxu0
        %v7255 = vpop.f32.mrb[0].mxu0
        %v7256 = vadd.f32 0.0, %v7255
        %v7257 = vpop.f32.mrb[0].mxu0
        %7258 = vmatprep.mubr.bf16.mxu0 0
        %7259 = vmatmul.mubr.bf16.gmra.mrb[0].mxu0 %v7205
        %v7260 = vpop.f32.mrb[0].mxu0
        %v7261 = vadd.f32 0.0, %v7260
        %v7262 = vpop.f32.mrb[0].mxu0
        %v7263 = vpop.f32.mrb[0].mxu0
        %v7264 = vadd.f32 0.0, %v7263
        %v7265 = vpop.f32.mrb[0].mxu0
        %7266 = vmatprep.mubr.bf16.mxu0 0
        %7267 = vmatmul.mubr.bf16.gmra.mrb[0].mxu0 %v7208
        %v7268 = vpop.f32.mrb[0].mxu0
        %v7269 = vadd.f32 0.0, %v7268
        %v7270 = vpop.f32.mrb[0].mxu0
        %v7271 = vpop.f32.mrb[0].mxu0
        %v7272 = vadd.f32 0.0, %v7271
        %v7273 = vpop.f32.mrb[0].mxu0
        %7274 = vdwg.mxu0
        %v7275 = vadd.f32 %v7049, %v7245
        %v7276 = vadd.f32 %v7050, %v7248
        %v7277 = vadd.f32 %v7051, %v7253
        %v7278 = vadd.f32 %v7052, %v7256
        %v7279 = vadd.f32 %v7053, %v7261
        %v7280 = vadd.f32 %v7054, %v7264
        %v7281 = vadd.f32 %v7055, %v7269
        %v7282 = vadd.f32 %v7056, %v7272
        %v7283 = vrot.slane %v7063, 7
        %v7284 = vrot.slane %v7283, 2
        %v7285 = vrot.slane %v7064, 7
        %v7286 = vsel %vm6062, %v7284, %v7285
        %v7287 = vrot.slane %v7071, 7
        %v7288 = vrot.slane %v7287, 2
        %v7289 = vrot.slane %v7072, 7
        %v7290 = vsel %vm6062, %v7288, %v7289
        %v7291 = vrot.slane %v7079, 7
        %v7292 = vrot.slane %v7291, 2
        %v7293 = vrot.slane %v7080, 7
        %v7294 = vsel %vm6062, %v7292, %v7293
        %v7295 = vrot.slane %v7087, 7
        %v7296 = vrot.slane %v7295, 2
        %v7297 = vrot.slane %v7088, 7
        %v7298 = vsel %vm6062, %v7296, %v7297
        %s7299 = scalar_lea.vmem %s3, 128
        %v7300 = vld [vmem:[%s7299] sm:$0xf]
        %v7301 = vld [vmem:[%s7299 + $0x4] sm:$0xf]
        %v7302 = vld [vmem:[%s7299 + $0x8] sm:$0xf]
        %v7303 = vld [vmem:[%s7299 + $0xc] sm:$0xf]
        %v7304 = vcombine.low %v6732, %v7286
        %v7306 = vunpack.c.l.s4 1983009808
        %v7307 = vunpack.c.0.s8 %v7306
        %v7308 = vlaneseq
        %v7309 = vshrl.u32 %v7308, 7
        %v7310 = vsub.s32 %v7307, %v7309
        %v7311 = vrot.slane %v7304, %v7310
        %v7312 = vcombine.low %v6147, %v7311
        %v7313 = vcombine.low %v6736, %v7290
        %v7315 = vunpack.c.l.s4 1983009808
        %v7316 = vunpack.c.0.s8 %v7315
        %v7317 = vlaneseq
        %v7318 = vshrl.u32 %v7317, 7
        %v7319 = vsub.s32 %v7316, %v7318
        %v7320 = vrot.slane %v7313, %v7319
        %v7321 = vcombine.low %v6164, %v7320
        %v7322 = vcombine.low %v6740, %v7294
        %v7324 = vunpack.c.l.s4 1983009808
        %v7325 = vunpack.c.0.s8 %v7324
        %v7326 = vlaneseq
        %v7327 = vshrl.u32 %v7326, 7
        %v7328 = vsub.s32 %v7325, %v7327
        %v7329 = vrot.slane %v7322, %v7328
        %v7330 = vcombine.low %v6181, %v7329
        %v7331 = vcombine.low %v6744, %v7298
        %v7333 = vunpack.c.l.s4 1983009808
        %v7334 = vunpack.c.0.s8 %v7333
        %v7335 = vlaneseq
        %v7336 = vshrl.u32 %v7335, 7
        %v7337 = vsub.s32 %v7334, %v7336
        %v7338 = vrot.slane %v7331, %v7337
        %v7339 = vcombine.low %v6198, %v7338
        %v7344 = vunpack.c.l.b16 %v7300
        %v7345 = vunpack.c.l.b16 %v7301
        %v7346 = vunpack.c.l.b16 %v7302
        %v7347 = vunpack.c.l.b16 %v7303
        %v7348 = vpack.c.b16 %v7345, %v7344
        %v7349 = vpack.c.b16 %v7347, %v7346
        %v7353 = vsel %vm5821, %v7312, 0
        %v7356 = vsel %vm5821, %v7321, 0
        %v7359 = vsel %vm5821, %v7330, 0
        %v7362 = vsel %vm5821, %v7339, 0
        %7364 = vmatprep.subr.bf16.mxu0 0
        %7365 = vmatpush1.bf16.msra.mxu0 %v7348
        %7366 = vmatprep.subr.bf16.mxu0 0
        %7367 = vmatpush1.bf16.msra.mxu0 %v7349
        %7368 = vmatprep.subr.bf16.mxu0 0
        %7369 = vmatpush1.bf16.msra.mxu0 0
        %7370 = vmatprep.subr.bf16.mxu0 0
        %7371 = vmatpush1.bf16.msra.mxu0 0
        %7372 = vmatprep.subr.bf16.mxu0 0
        %7373 = vmatpush1.bf16.msra.mxu0 0
        %7374 = vmatprep.subr.bf16.mxu0 0
        %7375 = vmatpush1.bf16.msra.mxu0 0
        %7376 = vmatprep.subr.bf16.mxu0 0
        %7377 = vmatpush1.bf16.msra.mxu0 0
        %7378 = vmatprep.subr.bf16.mxu0 0
        %7379 = vmatpush1.bf16.msra.mxu0 0
        %7380 = vmatprep.subr.bf16.mxu0 0
        %7381 = vmatpush1.bf16.msra.mxu0 0
        %7382 = vmatprep.subr.bf16.mxu0 0
        %7383 = vmatpush1.bf16.msra.mxu0 0
        %7384 = vmatprep.subr.bf16.mxu0 0
        %7385 = vmatpush1.bf16.msra.mxu0 0
        %7386 = vmatprep.subr.bf16.mxu0 0
        %7387 = vmatpush1.bf16.msra.mxu0 0
        %7388 = vmatprep.subr.bf16.mxu0 0
        %7389 = vmatpush1.bf16.msra.mxu0 0
        %7390 = vmatprep.subr.bf16.mxu0 0
        %7391 = vmatpush1.bf16.msra.mxu0 0
        %7392 = vmatprep.subr.bf16.mxu0 0
        %7393 = vmatpush1.bf16.msra.mxu0 0
        %7394 = vmatprep.subr.bf16.mxu0 0
        %7395 = vmatpush1.bf16.msra.mxu0 0
        %7396 = vmatprep.mubr.bf16.mxu0 0
        %7397 = vmatmul.mubr.bf16.gmra.mrb[0].mxu0 %v7353
        %v7398 = vpop.f32.mrb[0].mxu0
        %v7399 = vadd.f32 0.0, %v7398
        %v7400 = vpop.f32.mrb[0].mxu0
        %v7401 = vpop.f32.mrb[0].mxu0
        %v7402 = vadd.f32 0.0, %v7401
        %v7403 = vpop.f32.mrb[0].mxu0
        %7404 = vmatprep.mubr.bf16.mxu0 0
        %7405 = vmatmul.mubr.bf16.gmra.mrb[0].mxu0 %v7356
        %v7406 = vpop.f32.mrb[0].mxu0
        %v7407 = vadd.f32 0.0, %v7406
        %v7408 = vpop.f32.mrb[0].mxu0
        %v7409 = vpop.f32.mrb[0].mxu0
        %v7410 = vadd.f32 0.0, %v7409
        %v7411 = vpop.f32.mrb[0].mxu0
        %7412 = vmatprep.mubr.bf16.mxu0 0
        %7413 = vmatmul.mubr.bf16.gmra.mrb[0].mxu0 %v7359
        %v7414 = vpop.f32.mrb[0].mxu0
        %v7415 = vadd.f32 0.0, %v7414
        %v7416 = vpop.f32.mrb[0].mxu0
        %v7417 = vpop.f32.mrb[0].mxu0
        %v7418 = vadd.f32 0.0, %v7417
        %v7419 = vpop.f32.mrb[0].mxu0
        %7420 = vmatprep.mubr.bf16.mxu0 0
        %7421 = vmatmul.mubr.bf16.gmra.mrb[0].mxu0 %v7362
        %v7422 = vpop.f32.mrb[0].mxu0
        %v7423 = vadd.f32 0.0, %v7422
        %v7424 = vpop.f32.mrb[0].mxu0
        %v7425 = vpop.f32.mrb[0].mxu0
        %v7426 = vadd.f32 0.0, %v7425
        %v7427 = vpop.f32.mrb[0].mxu0
        %7428 = vdwg.mxu0
        %v7429 = vadd.f32 %v7275, %v7399
        %v7430 = vadd.f32 %v7276, %v7402
        %v7431 = vadd.f32 %v7277, %v7407
        %v7432 = vadd.f32 %v7278, %v7410
        %v7433 = vadd.f32 %v7279, %v7415
        %v7434 = vadd.f32 %v7280, %v7418
        %v7435 = vadd.f32 %v7281, %v7423
        %v7436 = vadd.f32 %v7282, %v7426
        %v7437 = vld [vmem:[%s4] sm:$0x1]
        %v7439 = vlaneseq
        %v7440 = vshrl.u32 %v7439, 7
        %v7441 = vsub.s32 0, %v7440
        %v7442 = vrot.slane %v7437, %v7441
        %v7444 = vadd.f32 %v7429, %v7442
        %v7445 = vadd.f32 %v7430, %v7442
        %v7446 = vadd.f32 %v7431, %v7442
        %v7447 = vadd.f32 %v7432, %v7442
        %v7448 = vadd.f32 %v7433, %v7442
        %v7449 = vadd.f32 %v7434, %v7442
        %v7450 = vadd.f32 %v7435, %v7442
        %v7451 = vadd.f32 %v7436, %v7442
        %v7460 = vcombine.high %v7444, %v7444
        %v7461 = vcombine.high %v7445, %v7445
        %v7462 = vcombine.high %v7446, %v7446
        %v7463 = vcombine.high %v7447, %v7447
        %v7464 = vcombine.high %v7448, %v7448
        %v7465 = vcombine.high %v7449, %v7449
        %v7466 = vcombine.high %v7450, %v7450
        %v7467 = vcombine.high %v7451, %v7451
        %v7476 = vunpack.c.l.bf16 %v5334
        %v7477 = vunpack.c.l.bf16 %v5335
        %v7478 = vunpack.c.l.bf16 %v5336
        %v7479 = vunpack.c.l.bf16 %v5337
        %v7480 = vunpack.c.l.bf16 %v5340
        %v7481 = vunpack.c.l.bf16 %v5341
        %v7482 = vunpack.c.l.bf16 %v5342
        %v7483 = vunpack.c.l.bf16 %v5343
        %v7484 = vunpack.c.l.bf16 %v5346
        %v7485 = vunpack.c.l.bf16 %v5347
        %v7486 = vunpack.c.l.bf16 %v5348
        %v7487 = vunpack.c.l.bf16 %v5349
        %v7488 = vunpack.c.l.bf16 %v5352
        %v7489 = vunpack.c.l.bf16 %v5353
        %v7490 = vunpack.c.l.bf16 %v5354
        %v7491 = vunpack.c.l.bf16 %v5355
        %vm7492 = vcmp.gt.f32.partialorder %v7444, 0.5
        %vm7493 = vcmp.gt.f32.partialorder %v7460, 0.5
        %vm7494 = vcmp.gt.f32.partialorder %v7445, 0.5
        %vm7495 = vcmp.gt.f32.partialorder %v7461, 0.5
        %v7496 = vsel %vm7492, 1, 0
        %v7497 = vsel %vm7493, 1, 0
        %v7498 = vsel %vm7494, 1, 0
        %v7499 = vsel %vm7495, 1, 0
        %v7500 = vcvt.s32.f32 %v7496
        %v7501 = vcvt.s32.f32 %v7497
        %v7502 = vcvt.s32.f32 %v7498
        %v7503 = vcvt.s32.f32 %v7499
        %v7508 = vcombine.high %v7476, %v7476
        %v7509 = vcombine.high %v7477, %v7477
        %v7510 = vcombine.high %v7478, %v7478
        %v7511 = vcombine.high %v7479, %v7479
        %vm7512 = vcmask 1042432
        %vm7513 = vcmask 1046532
        %vm7514 = vmor %vm7512, %vm7513
        %v7515 = vrot.slane %v7476, 5
        %v7516 = vrot.slane %v7515, 4
        %v7517 = vrot.slane %v7508, 5
        %v7518 = vsel %vm7514, %v7516, %v7517
        %v7519 = vrot.slane %v7477, 5
        %v7520 = vrot.slane %v7519, 4
        %v7521 = vrot.slane %v7509, 5
        %v7522 = vsel %vm7514, %v7520, %v7521
        %v7523 = vrot.slane %v7478, 5
        %v7524 = vrot.slane %v7523, 4
        %v7525 = vrot.slane %v7510, 5
        %v7526 = vsel %vm7514, %v7524, %v7525
        %v7527 = vrot.slane %v7479, 5
        %v7528 = vrot.slane %v7527, 4
        %v7529 = vrot.slane %v7511, 5
        %v7530 = vsel %vm7514, %v7528, %v7529
        %v7535 = vadd.f32 %v7500, %v7518
        %v7536 = vadd.f32 %v7501, %v7522
        %v7537 = vadd.f32 %v7502, %v7526
        %v7538 = vadd.f32 %v7503, %v7530
        %v7539 = vcombine.low %v7535, %v7537
        %v7541 = vunpack.c.l.s4 1983009808
        %v7542 = vunpack.c.0.s8 %v7541
        %v7543 = vlaneseq
        %v7544 = vshrl.u32 %v7543, 7
        %v7545 = vsub.s32 %v7542, %v7544
        %v7546 = vrot.slane %v7539, %v7545
        %v7547 = vcombine.low %v7536, %v7538
        %v7549 = vunpack.c.l.s4 1983009808
        %v7550 = vunpack.c.0.s8 %v7549
        %v7551 = vlaneseq
        %v7552 = vshrl.u32 %v7551, 7
        %v7553 = vsub.s32 %v7550, %v7552
        %v7554 = vrot.slane %v7547, %v7553
        %v7555 = vcombine.low %v7546, %v7554
        %v7556 = vcombine.high %v7546, %v7554
        %v7558 = vunpack.c.l.s4 1934713408
        %v7559 = vunpack.c.0.s8 %v7558
        %v7560 = vlaneseq
        %v7561 = vshrl.u32 %v7560, 7
        %v7562 = vsub.s32 %v7559, %v7561
        %v7563 = vrot.slane %v7555, %v7562
        %v7565 = vunpack.c.l.s4 1934713408
        %v7566 = vunpack.c.0.s8 %v7565
        %v7567 = vlaneseq
        %v7568 = vshrl.u32 %v7567, 7
        %v7569 = vsub.s32 %v7566, %v7568
        %v7570 = vrot.slane %v7556, %v7569
        %v7571 = vcombine.high %v7563, 0.0
        %v7572 = vcombine.high %v7570, 0.0
        %7574 = vrot.lane.b32.xlu0 %v7571, 32
        %v7575 = vpop.permute.xlu0 %7574
        %7578 = vrot.lane.b32.xlu0 %v7570, 64
        %v7579 = vpop.permute.xlu0 %7578
        %7582 = vrot.lane.b32.xlu0 %v7572, 96
        %v7583 = vpop.permute.xlu0 %7582
        %v7585 = vsel %vm5821, %v7563, %v7575
        %vm7586 = vcmask 523264
        %v7587 = vsel %vm7586, %v7585, %v7579
        %vm7588 = vcmask 785408
        %v7589 = vsel %vm7588, %v7587, %v7583
        %7590 = vst [vmem:[%s217] sm:$0xf] %v7589
        %v7591 = vsub.f32 1.0, %v7500
        %v7592 = vsub.f32 1.0, %v7501
        %v7593 = vsub.f32 1.0, %v7502
        %v7594 = vsub.f32 1.0, %v7503
        %v7595 = vmul.f32 %v7591, 0.25
        %v7596 = vmul.f32 %v7592, 0.25
        %v7597 = vmul.f32 %v7593, 0.25
        %v7598 = vmul.f32 %v7594, 0.25
        %v7599 = vmul.f32 %v7444, %v7595
        %v7600 = vmul.f32 %v7460, %v7596
        %v7601 = vmul.f32 %v7445, %v7597
        %v7602 = vmul.f32 %v7461, %v7598
        %v7603 = vadd.f32 %v7599, %v7446
        %v7604 = vadd.f32 %v7600, %v7462
        %v7605 = vadd.f32 %v7601, %v7447
        %v7606 = vadd.f32 %v7602, %v7463
        %vm7607 = vcmp.gt.f32.partialorder %v7603, 0.5
        %vm7608 = vcmp.gt.f32.partialorder %v7604, 0.5
        %vm7609 = vcmp.gt.f32.partialorder %v7605, 0.5
        %vm7610 = vcmp.gt.f32.partialorder %v7606, 0.5
        %v7611 = vsel %vm7607, 1, 0
        %v7612 = vsel %vm7608, 1, 0
        %v7613 = vsel %vm7609, 1, 0
        %v7614 = vsel %vm7610, 1, 0
        %v7615 = vcvt.s32.f32 %v7611
        %v7616 = vcvt.s32.f32 %v7612
        %v7617 = vcvt.s32.f32 %v7613
        %v7618 = vcvt.s32.f32 %v7614
        %v7623 = vcombine.high %v7480, %v7480
        %v7624 = vcombine.high %v7481, %v7481
        %v7625 = vcombine.high %v7482, %v7482
        %v7626 = vcombine.high %v7483, %v7483
        %v7627 = vrot.slane %v7480, 5
        %v7628 = vrot.slane %v7627, 4
        %v7629 = vrot.slane %v7623, 5
        %v7630 = vsel %vm7514, %v7628, %v7629
        %v7631 = vrot.slane %v7481, 5
        %v7632 = vrot.slane %v7631, 4
        %v7633 = vrot.slane %v7624, 5
        %v7634 = vsel %vm7514, %v7632, %v7633
        %v7635 = vrot.slane %v7482, 5
        %v7636 = vrot.slane %v7635, 4
        %v7637 = vrot.slane %v7625, 5
        %v7638 = vsel %vm7514, %v7636, %v7637
        %v7639 = vrot.slane %v7483, 5
        %v7640 = vrot.slane %v7639, 4
        %v7641 = vrot.slane %v7626, 5
        %v7642 = vsel %vm7514, %v7640, %v7641
        %v7647 = vadd.f32 %v7615, %v7630
        %v7648 = vadd.f32 %v7616, %v7634
        %v7649 = vadd.f32 %v7617, %v7638
        %v7650 = vadd.f32 %v7618, %v7642
        %v7651 = vcombine.low %v7647, %v7649
        %v7653 = vunpack.c.l.s4 1983009808
        %v7654 = vunpack.c.0.s8 %v7653
        %v7655 = vlaneseq
        %v7656 = vshrl.u32 %v7655, 7
        %v7657 = vsub.s32 %v7654, %v7656
        %v7658 = vrot.slane %v7651, %v7657
        %v7659 = vcombine.low %v7648, %v7650
        %v7661 = vunpack.c.l.s4 1983009808
        %v7662 = vunpack.c.0.s8 %v7661
        %v7663 = vlaneseq
        %v7664 = vshrl.u32 %v7663, 7
        %v7665 = vsub.s32 %v7662, %v7664
        %v7666 = vrot.slane %v7659, %v7665
        %v7667 = vcombine.low %v7658, %v7666
        %v7668 = vcombine.high %v7658, %v7666
        %v7670 = vunpack.c.l.s4 1934713408
        %v7671 = vunpack.c.0.s8 %v7670
        %v7672 = vlaneseq
        %v7673 = vshrl.u32 %v7672, 7
        %v7674 = vsub.s32 %v7671, %v7673
        %v7675 = vrot.slane %v7667, %v7674
        %v7677 = vunpack.c.l.s4 1934713408
        %v7678 = vunpack.c.0.s8 %v7677
        %v7679 = vlaneseq
        %v7680 = vshrl.u32 %v7679, 7
        %v7681 = vsub.s32 %v7678, %v7680
        %v7682 = vrot.slane %v7668, %v7681
        %v7683 = vcombine.high %v7675, 0.0
        %v7684 = vcombine.high %v7682, 0.0
        %7686 = vrot.lane.b32.xlu0 %v7683, 32
        %v7687 = vpop.permute.xlu0 %7686
        %7690 = vrot.lane.b32.xlu0 %v7682, 64
        %v7691 = vpop.permute.xlu0 %7690
        %7694 = vrot.lane.b32.xlu0 %v7684, 96
        %v7695 = vpop.permute.xlu0 %7694
        %v7697 = vsel %vm5821, %v7675, %v7687
        %v7698 = vsel %vm7586, %v7697, %v7691
        %v7699 = vsel %vm7588, %v7698, %v7695
        %s7700 = scalar_lea.vmem %s217, 4 [#allocation3]
        %7701 = vst [vmem:[%s7700] sm:$0xf] %v7699
        %v7702 = vsub.f32 1.0, %v7615
        %v7703 = vsub.f32 1.0, %v7616
        %v7704 = vsub.f32 1.0, %v7617
        %v7705 = vsub.f32 1.0, %v7618
        %v7706 = vmul.f32 %v7702, 0.25
        %v7707 = vmul.f32 %v7703, 0.25
        %v7708 = vmul.f32 %v7704, 0.25
        %v7709 = vmul.f32 %v7705, 0.25
        %v7710 = vmul.f32 %v7603, %v7706
        %v7711 = vmul.f32 %v7604, %v7707
        %v7712 = vmul.f32 %v7605, %v7708
        %v7713 = vmul.f32 %v7606, %v7709
        %v7714 = vadd.f32 %v7710, %v7448
        %v7715 = vadd.f32 %v7711, %v7464
        %v7716 = vadd.f32 %v7712, %v7449
        %v7717 = vadd.f32 %v7713, %v7465
        %vm7718 = vcmp.gt.f32.partialorder %v7714, 0.5
        %vm7719 = vcmp.gt.f32.partialorder %v7715, 0.5
        %vm7720 = vcmp.gt.f32.partialorder %v7716, 0.5
        %vm7721 = vcmp.gt.f32.partialorder %v7717, 0.5
        %v7722 = vsel %vm7718, 1, 0
        %v7723 = vsel %vm7719, 1, 0
        %v7724 = vsel %vm7720, 1, 0
        %v7725 = vsel %vm7721, 1, 0
        %v7726 = vcvt.s32.f32 %v7722
        %v7727 = vcvt.s32.f32 %v7723
        %v7728 = vcvt.s32.f32 %v7724
        %v7729 = vcvt.s32.f32 %v7725
        %v7734 = vcombine.high %v7484, %v7484
        %v7735 = vcombine.high %v7485, %v7485
        %v7736 = vcombine.high %v7486, %v7486
        %v7737 = vcombine.high %v7487, %v7487
        %v7738 = vrot.slane %v7484, 5
        %v7739 = vrot.slane %v7738, 4
        %v7740 = vrot.slane %v7734, 5
        %v7741 = vsel %vm7514, %v7739, %v7740
        %v7742 = vrot.slane %v7485, 5
        %v7743 = vrot.slane %v7742, 4
        %v7744 = vrot.slane %v7735, 5
        %v7745 = vsel %vm7514, %v7743, %v7744
        %v7746 = vrot.slane %v7486, 5
        %v7747 = vrot.slane %v7746, 4
        %v7748 = vrot.slane %v7736, 5
        %v7749 = vsel %vm7514, %v7747, %v7748
        %v7750 = vrot.slane %v7487, 5
        %v7751 = vrot.slane %v7750, 4
        %v7752 = vrot.slane %v7737, 5
        %v7753 = vsel %vm7514, %v7751, %v7752
        %v7758 = vadd.f32 %v7726, %v7741
        %v7759 = vadd.f32 %v7727, %v7745
        %v7760 = vadd.f32 %v7728, %v7749
        %v7761 = vadd.f32 %v7729, %v7753
        %v7762 = vcombine.low %v7758, %v7760
        %v7764 = vunpack.c.l.s4 1983009808
        %v7765 = vunpack.c.0.s8 %v7764
        %v7766 = vlaneseq
        %v7767 = vshrl.u32 %v7766, 7
        %v7768 = vsub.s32 %v7765, %v7767
        %v7769 = vrot.slane %v7762, %v7768
        %v7770 = vcombine.low %v7759, %v7761
        %v7772 = vunpack.c.l.s4 1983009808
        %v7773 = vunpack.c.0.s8 %v7772
        %v7774 = vlaneseq
        %v7775 = vshrl.u32 %v7774, 7
        %v7776 = vsub.s32 %v7773, %v7775
        %v7777 = vrot.slane %v7770, %v7776
        %v7778 = vcombine.low %v7769, %v7777
        %v7779 = vcombine.high %v7769, %v7777
        %v7781 = vunpack.c.l.s4 1934713408
        %v7782 = vunpack.c.0.s8 %v7781
        %v7783 = vlaneseq
        %v7784 = vshrl.u32 %v7783, 7
        %v7785 = vsub.s32 %v7782, %v7784
        %v7786 = vrot.slane %v7778, %v7785
        %v7788 = vunpack.c.l.s4 1934713408
        %v7789 = vunpack.c.0.s8 %v7788
        %v7790 = vlaneseq
        %v7791 = vshrl.u32 %v7790, 7
        %v7792 = vsub.s32 %v7789, %v7791
        %v7793 = vrot.slane %v7779, %v7792
        %v7794 = vcombine.high %v7786, 0.0
        %v7795 = vcombine.high %v7793, 0.0
        %7797 = vrot.lane.b32.xlu0 %v7794, 32
        %v7798 = vpop.permute.xlu0 %7797
        %7801 = vrot.lane.b32.xlu0 %v7793, 64
        %v7802 = vpop.permute.xlu0 %7801
        %7805 = vrot.lane.b32.xlu0 %v7795, 96
        %v7806 = vpop.permute.xlu0 %7805
        %v7808 = vsel %vm5821, %v7786, %v7798
        %v7809 = vsel %vm7586, %v7808, %v7802
        %v7810 = vsel %vm7588, %v7809, %v7806
        %s7811 = scalar_lea.vmem %s217, 8 [#allocation3]
        %7812 = vst [vmem:[%s7811] sm:$0xf] %v7810
        %v7813 = vsub.f32 1.0, %v7726
        %v7814 = vsub.f32 1.0, %v7727
        %v7815 = vsub.f32 1.0, %v7728
        %v7816 = vsub.f32 1.0, %v7729
        %v7817 = vmul.f32 %v7813, 0.25
        %v7818 = vmul.f32 %v7814, 0.25
        %v7819 = vmul.f32 %v7815, 0.25
        %v7820 = vmul.f32 %v7816, 0.25
        %v7821 = vmul.f32 %v7714, %v7817
        %v7822 = vmul.f32 %v7715, %v7818
        %v7823 = vmul.f32 %v7716, %v7819
        %v7824 = vmul.f32 %v7717, %v7820
        %v7825 = vadd.f32 %v7821, %v7450
        %v7826 = vadd.f32 %v7822, %v7466
        %v7827 = vadd.f32 %v7823, %v7451
        %v7828 = vadd.f32 %v7824, %v7467
        %vm7829 = vcmp.gt.f32.partialorder %v7825, 0.5
        %vm7830 = vcmp.gt.f32.partialorder %v7826, 0.5
        %vm7831 = vcmp.gt.f32.partialorder %v7827, 0.5
        %vm7832 = vcmp.gt.f32.partialorder %v7828, 0.5
        %v7833 = vsel %vm7829, 1, 0
        %v7834 = vsel %vm7830, 1, 0
        %v7835 = vsel %vm7831, 1, 0
        %v7836 = vsel %vm7832, 1, 0
        %v7837 = vcvt.s32.f32 %v7833
        %v7838 = vcvt.s32.f32 %v7834
        %v7839 = vcvt.s32.f32 %v7835
        %v7840 = vcvt.s32.f32 %v7836
        %v7845 = vcombine.high %v7488, %v7488
        %v7846 = vcombine.high %v7489, %v7489
        %v7847 = vcombine.high %v7490, %v7490
        %v7848 = vcombine.high %v7491, %v7491
        %v7849 = vrot.slane %v7488, 5
        %v7850 = vrot.slane %v7849, 4
        %v7851 = vrot.slane %v7845, 5
        %v7852 = vsel %vm7514, %v7850, %v7851
        %v7853 = vrot.slane %v7489, 5
        %v7854 = vrot.slane %v7853, 4
        %v7855 = vrot.slane %v7846, 5
        %v7856 = vsel %vm7514, %v7854, %v7855
        %v7857 = vrot.slane %v7490, 5
        %v7858 = vrot.slane %v7857, 4
        %v7859 = vrot.slane %v7847, 5
        %v7860 = vsel %vm7514, %v7858, %v7859
        %v7861 = vrot.slane %v7491, 5
        %v7862 = vrot.slane %v7861, 4
        %v7863 = vrot.slane %v7848, 5
        %v7864 = vsel %vm7514, %v7862, %v7863
        %v7869 = vadd.f32 %v7837, %v7852
        %v7870 = vadd.f32 %v7838, %v7856
        %v7871 = vadd.f32 %v7839, %v7860
        %v7872 = vadd.f32 %v7840, %v7864
        %v7873 = vcombine.low %v7869, %v7871
        %v7875 = vunpack.c.l.s4 1983009808
        %v7876 = vunpack.c.0.s8 %v7875
        %v7877 = vlaneseq
        %v7878 = vshrl.u32 %v7877, 7
        %v7879 = vsub.s32 %v7876, %v7878
        %v7880 = vrot.slane %v7873, %v7879
        %v7881 = vcombine.low %v7870, %v7872
        %v7883 = vunpack.c.l.s4 1983009808
        %v7884 = vunpack.c.0.s8 %v7883
        %v7885 = vlaneseq
        %v7886 = vshrl.u32 %v7885, 7
        %v7887 = vsub.s32 %v7884, %v7886
        %v7888 = vrot.slane %v7881, %v7887
        %v7889 = vcombine.low %v7880, %v7888
        %v7890 = vcombine.high %v7880, %v7888
        %v7892 = vunpack.c.l.s4 1934713408
        %v7893 = vunpack.c.0.s8 %v7892
        %v7894 = vlaneseq
        %v7895 = vshrl.u32 %v7894, 7
        %v7896 = vsub.s32 %v7893, %v7895
        %v7897 = vrot.slane %v7889, %v7896
        %v7899 = vunpack.c.l.s4 1934713408
        %v7900 = vunpack.c.0.s8 %v7899
        %v7901 = vlaneseq
        %v7902 = vshrl.u32 %v7901, 7
        %v7903 = vsub.s32 %v7900, %v7902
        %v7904 = vrot.slane %v7890, %v7903
        %v7905 = vcombine.high %v7897, 0.0
        %v7906 = vcombine.high %v7904, 0.0
        %7908 = vrot.lane.b32.xlu0 %v7905, 32
        %v7909 = vpop.permute.xlu0 %7908
        %7912 = vrot.lane.b32.xlu0 %v7904, 64
        %v7913 = vpop.permute.xlu0 %7912
        %7916 = vrot.lane.b32.xlu0 %v7906, 96
        %v7917 = vpop.permute.xlu0 %7916
        %v7919 = vsel %vm5821, %v7897, %v7909
        %v7920 = vsel %vm7586, %v7919, %v7913
        %v7921 = vsel %vm7588, %v7920, %v7917
        %s7922 = scalar_lea.vmem %s217, 12 [#allocation3]
        %7923 = vst [vmem:[%s7922] sm:$0xf] %v7921
        %s7924 = sand.u32 %s137, 1
        %s7925 = scalar_lea.sflag [#allocation4], %s7924
        %s7926 = sand.u32 %s137, 1
        %s7927 = smul.addr %s7926, 16
        %s7928 = scalar_lea.vmem [#allocation3], %s7927
        // Predicated region
        $region41: #{tpu_custom_call.1} parent=39 // pred_check
          %p7929 = pneg %p147
        $region42: #{tpu_custom_call.1} parent=39 // pred_check_branch
          %7931 = sbr.rel (%p7929) target = $region44
        $region43: #{tpu_custom_call.1} parent=39 // pred_region
          %s7933 = ssub.s32 256, 256
          %7934 = vsyncadd %s7925, %s7933
          %s7935 = smul.addr %s19, 4
          %s7936 = smul.addr %s7935, 64
          %s7937 = scalar_lea.hbm %s5, %s7936
          %s7938 = sshll.u32 %s7928, 4
          %s7939 = int_to_ptr.vmem [resolvable:$true] %s7938
          %7944 = dma.vmem_to_hbm [thread:$0]  %s7939, 256, %s7937, %s7925, 64, 64, 4
        $region44: #{tpu_custom_call.1} parent=39 // pred_fallthru
          _
      $region40: #{tpu_custom_call.1} parent=5 // pred_fallthru
        _
      %p7945 = scmp.le.s32.totalorder 2, %s14
      // Predicated region
      $region45: #{tpu_custom_call.1} parent=5 // pred_check
        %p7946 = pneg %p7945
      $region46: #{tpu_custom_call.1} parent=5 // pred_check_branch
        %7948 = sbr.rel (%p7946) target = $region48
      $region47: #{tpu_custom_call.1} parent=5 // pred_region
        %s7949 = ssub.s32 %s14, 2
        // Predicated region
        $region49: #{tpu_custom_call.1} parent=47 // pred_check
          %p7950 = pneg %p153
        $region50: #{tpu_custom_call.1} parent=47 // pred_check_branch
          %7952 = sbr.rel (%p7950) target = $region52
        $region51: #{tpu_custom_call.1} parent=47 // pred_region
          %s7953 = sand.u32 %s138, 1
          %s7954 = scalar_lea.sflag [#allocation4], %s7953
          %s7955 = sand.u32 %s138, 1
          %s7956 = smul.addr %s7955, 16
          %s7957 = scalar_lea.vmem [#allocation3], %s7956
          %7958 = dma.done %s7954, 256
        $region52: #{tpu_custom_call.1} parent=47 // pred_fallthru
          _
      $region48: #{tpu_custom_call.1} parent=5 // pred_fallthru
        _
    $region6: #{tpu_custom_call.1} parent=1 // loop_footer
      %s18 = sadd.s32 1, %s14
    $region7: #{tpu_custom_call.1} parent=1 // loop_footer_branch
      %13 = sbr.rel target = $region3
    $region8: #{tpu_custom_call.1} parent=1 // loop_exit
      _
    %7959 = vsyncpa [#allocation4], 1
    %s7960 = scalar_lea.sflag [#allocation4], 1
    %7961 = vsyncpa %s7960, 1

</llo_original>
